<compile_context>
chip_gen: v5e
topology: v5e:2x2
jax: 0.10.0
libtpu: 0.0.40
codegen_flags: <defaults>
</compile_context>

<pallas_src>
import numpy as np

import jax
import jax.numpy as jnp
from jax import lax
from jax.experimental import pallas as pl
from jax.experimental.pallas import tpu as pltpu

# --------------------------- geometry constants ---------------------------- #
BT = 8                        # samples per grid step (multiple of 8)
H_IN = 45                     # HWF symbol is 1x45x45
HP = H_IN + 2                 # zero-padded width for conv1        -> 47
HP_AL = HP + 1                # rows padded for sublane alignment  -> 48
LX = BT * HP                  # input lanes per batch tile         -> 376
L1 = LX - 2                   # conv1 output lanes                 -> 374
P1 = H_IN // 2                # pooled1 spatial (floor)            -> 22
W1PAD = P1 + 2                # zero-padded width for conv2        -> 24
LP1 = BT * W1PAD              # pool1 output lanes                 -> 192
L2 = LP1 - 2                  # conv2 output lanes                 -> 190
P2 = P1 // 2                  # pooled2 spatial                    -> 11
NFEAT = 16 * P2 * P2          # flattened features                 -> 1936


# ------------------------------ fused kernel ------------------------------- #
def _encoder_kernel(x_ref, w1_ref, b1_ref, s1_ref, w2_ref, b2_ref,
                    s2_ref, w3_ref, b3_ref, o_ref):
    f32, bf16 = jnp.float32, jnp.bfloat16

    # ---- conv1 (1->6, 3x3, pad 1) as ONE MXU matmul -------------------------
    # Input lanes are b*47 + col (all BT samples side by side); rows are the 48
    # (zero-bordered + 1 alignment) image rows.  The three kx-shifted copies are
    # stacked along sublanes, the (ky, row) structure lives in the banded weight.
    x = x_ref[0].astype(bf16)                                          # (48, 376)
    b1op = jnp.concatenate([x[:, kx:kx + L1] for kx in range(3)], 0)   # (144, 374)
    c1 = jnp.dot(w1_ref[...], b1op, preferred_element_type=f32)        # (360, 374)
    c1 = jnp.maximum(c1.reshape(H_IN, 8, L1) + b1_ref[...], 0.0)       # (45, 8ch, 374)

    # ---- maxpool1 2x2 (floor): free row-pair max + small column decimation --
    r1 = c1[:2 * P1].reshape(P1, 2, 8, L1)
    v1 = jnp.maximum(r1[:, 0], r1[:, 1])                               # (22, 8, 374)
    h1 = jnp.maximum(v1[:, :, :L1 - 1], v1[:, :, 1:])                  # (22, 8, 373)
    h1 = h1.reshape(P1 * 8, L1 - 1).astype(bf16)                       # (176, 373)
    # S1 picks lane b*47 + 2j and scatters it to b*24 + (j+1): the result is the
    # pooled map already in the zero-padded 24-wide layout for conv2.
    p1 = jnp.dot(h1, s1_ref[...], preferred_element_type=f32)          # (176, 192)
    zpad = jnp.zeros((8, LP1), f32)
    p1 = jnp.concatenate([zpad, p1, zpad], axis=0).astype(bf16)        # (192, 192)

    # ---- conv2 (6->16, 3x3, pad 1) as ONE MXU matmul ------------------------
    b2op = jnp.concatenate([p1[:, kx:kx + L2] for kx in range(3)], 0)  # (576, 190)
    c2 = jnp.dot(w2_ref[...], b2op, preferred_element_type=f32)        # (352, 190)
    c2 = jnp.maximum(c2.reshape(P1, 16, L2) + b2_ref[...], 0.0)        # (22, 16, 190)

    # ---- maxpool2 2x2 -------------------------------------------------------
    r2 = c2.reshape(P2, 2, 16, L2)
    v2 = jnp.maximum(r2[:, 0], r2[:, 1])                               # (11, 16, 190)
    h2 = jnp.maximum(v2[:, :, :L2 - 1], v2[:, :, 1:])                  # (11, 16, 189)
    h2 = h2.reshape(P2 * 16, L2 - 1).astype(bf16)                      # (176, 189)
    # S2 picks lane b*24 + 2j and writes it to lane j*BT + b.
    pooled = jnp.dot(h2, s2_ref[...], preferred_element_type=f32)      # (176, 88)

    # Dropout2d(0.4) is identity at inference.
    # ---- fc (1936 -> 128) + ReLU, batch kept in lanes -----------------------
    # feature row index = j*176 + i*16 + oc  (w3 columns were permuted on host).
    feat = jnp.concatenate(
        [pooled[:, BT * j:BT * (j + 1)] for j in range(P2)], axis=0)   # (1936, BT)
    out = jnp.dot(w3_ref[...], feat.astype(bf16),
                  preferred_element_type=f32)                          # (128, BT)
    o_ref[0] = jnp.maximum(out + b3_ref[...], 0.0)


# ----------------------------- host-side prep ------------------------------ #
def init_params(key):
    """Deterministic PyTorch-shaped params (uniform(-1/sqrt(fan_in), +...))."""
    ks = jax.random.split(key, 6)

    def u(k, shape, fan_in):
        b = 1.0 / float(fan_in) ** 0.5
        return jax.random.uniform(k, shape, jnp.float32, -b, b)

    return {
        "w1": u(ks[0], (6, 1, 3, 3), 9),
        "b1": u(ks[1], (6,), 9),
        "w2": u(ks[2], (16, 6, 3, 3), 54),
        "b2": u(ks[3], (16,), 54),
        "w3": u(ks[4], (128, NFEAT), NFEAT),
        "b3": u(ks[5], (128,), NFEAT),
    }


def prepare_params(params):
    """One-time conversion to kernel-ready (bf16, banded / permuted) layouts."""
    w1 = np.asarray(params["w1"], np.float32)          # (6, 1, 3, 3)
    b1 = np.asarray(params["b1"], np.float32)
    w2 = np.asarray(params["w2"], np.float32)          # (16, 6, 3, 3)
    b2 = np.asarray(params["b2"], np.float32)
    w3 = np.asarray(params["w3"], np.float32)          # (128, 1936)
    b3 = np.asarray(params["b3"], np.float32)

    # conv1 banded weight: rows (out_row, oc[8 padded]); cols (kx, in_row[48]).
    w1big = np.zeros((H_IN * 8, 3 * HP_AL), np.float32)
    for r in range(H_IN):
        for oc in range(6):
            for ky in range(3):
                for kx in range(3):
                    w1big[r * 8 + oc, kx * HP_AL + r + ky] = w1[oc, 0, ky, kx]

    # conv2 banded weight: rows (out_row, oc[16]); cols (kx, in_row[24], ic[8 padded]).
    w2big = np.zeros((P1 * 16, 3 * W1PAD * 8), np.float32)
    for r in range(P1):
        for oc in range(16):
            for ky in range(3):
                for kx in range(3):
                    for ic in range(6):
                        w2big[r * 16 + oc,
                              kx * (W1PAD * 8) + (r + ky) * 8 + ic] = w2[oc, ic, ky, kx]

    # pool1 column decimation + scatter into the zero-padded 24-wide layout.
    s1 = np.zeros((L1 - 1, BT * W1PAD), np.float32)
    for b in range(BT):
        for j in range(P1):
            s1[b * HP + 2 * j, b * W1PAD + j + 1] = 1.0

    # pool2 column decimation; output lanes ordered (j, b) for the FC gather.
    s2 = np.zeros((L2 - 1, P2 * BT), np.float32)
    for b in range(BT):
        for j in range(P2):
            s2[b * W1PAD + 2 * j, j * BT + b] = 1.0

    # FC weight, columns permuted from torch order (oc, i, j) to kernel order (j, i, oc).
    w3p = np.transpose(w3.reshape(128, 16, P2, P2), (0, 3, 2, 1)).reshape(128, NFEAT)

    return {
        "w1big": jnp.asarray(w1big, jnp.bfloat16),
        "b1": jnp.asarray(np.concatenate([b1, np.zeros(2, np.float32)]).reshape(8, 1)),
        "s1": jnp.asarray(s1, jnp.bfloat16),
        "w2big": jnp.asarray(w2big, jnp.bfloat16),
        "b2": jnp.asarray(b2.reshape(16, 1)),
        "s2": jnp.asarray(s2, jnp.bfloat16),
        "w3p": jnp.asarray(w3p, jnp.bfloat16),
        "b3": jnp.asarray(b3.reshape(128, 1)),
    }


@jax.jit
def symbol_encoder_forward(kparams, x):
    """x: (B, 1, 45, 45) float32 NCHW -> (B, 128) float32."""
    B = x.shape[0]
    nb = -(-B // BT)                       # number of batch tiles
    bp = nb * BT
    # Zero-border + 1 alignment row; lay the BT samples of each tile side by side
    # along lanes: xk[g, r, b*47 + c] = padded_image[g*BT + b, r, c].
    xp = jnp.pad(x[:, 0], ((0, bp - B), (1, 2), (1, 1)))               # (bp, 48, 47)
    xk = xp.reshape(nb, BT, HP_AL, HP).transpose(0, 2, 1, 3).reshape(nb, HP_AL, LX)

    out = pl.pallas_call(
        _encoder_kernel,
        grid=(nb,),
        in_specs=[
            pl.BlockSpec((1, HP_AL, LX), lambda i: (i, 0, 0)),          # batch tile
            pl.BlockSpec((H_IN * 8, 3 * HP_AL), lambda i: (0, 0)),      # conv1 banded w
            pl.BlockSpec((8, 1), lambda i: (0, 0)),                     # b1 (padded)
            pl.BlockSpec((L1 - 1, BT * W1PAD), lambda i: (0, 0)),       # pool1 decim
            pl.BlockSpec((P1 * 16, 3 * W1PAD * 8), lambda i: (0, 0)),   # conv2 banded w
            pl.BlockSpec((16, 1), lambda i: (0, 0)),                    # b2
            pl.BlockSpec((L2 - 1, P2 * BT), lambda i: (0, 0)),          # pool2 decim
            pl.BlockSpec((128, NFEAT), lambda i: (0, 0)),               # fc weight
            pl.BlockSpec((128, 1), lambda i: (0, 0)),                   # b3
        ],
        out_specs=pl.BlockSpec((1, 128, BT), lambda i: (i, 0, 0)),
        out_shape=jax.ShapeDtypeStruct((nb, 128, BT), jnp.float32),
        compiler_params=pltpu.CompilerParams(
            dimension_semantics=("parallel",),
            vmem_limit_bytes=32 * 1024 * 1024),
    )(xk, kparams["w1big"], kparams["b1"], kparams["s1"],
      kparams["w2big"], kparams["b2"], kparams["s2"],
      kparams["w3p"], kparams["b3"])

    return out.transpose(0, 2, 1).reshape(bp, 128)[:B]


# --------------------------- pure-JAX reference ----------------------------- #
@jax.jit
def reference_forward(params, x):
    hp = lax.Precision.HIGHEST
    h = lax.conv_general_dilated(
        x, params["w1"], window_strides=(1, 1), padding=((1, 1), (1, 1)),
        dimension_numbers=("NCHW", "OIHW", "NCHW"), precision=hp)
    h = jnp.maximum(h + params["b1"][None, :, None, None], 0.0)
    h = lax.reduce_window(h, -jnp.inf, lax.max, (1, 1, 2, 2), (1, 1, 2, 2), "VALID")
    h = lax.conv_general_dilated(
        h, params["w2"], window_strides=(1, 1), padding=((1, 1), (1, 1)),
        dimension_numbers=("NCHW", "OIHW", "NCHW"), precision=hp)
    h = jnp.maximum(h + params["b2"][None, :, None, None], 0.0)
    h = lax.reduce_window(h, -jnp.inf, lax.max, (1, 1, 2, 2), (1, 1, 2, 2), "VALID")
    h = h.reshape(h.shape[0], -1)
    h = jnp.maximum(jnp.matmul(h, params["w3"].T, precision=hp) + params["b3"], 0.0)
    return h


if __name__ == "__main__":
    key = jax.random.PRNGKey(0)
    pkey, xkey = jax.random.split(key)
    params = init_params(pkey)
    kparams = prepare_params(params)
    x = jax.random.normal(xkey, (16, 1, H_IN, H_IN), dtype=jnp.float32)

    out = jax.block_until_ready(symbol_encoder_forward(kparams, x))
    assert out.shape == (16, 128), out.shape
    assert bool(jnp.all(out >= 0.0))                      # final ReLU

    ref = jax.block_until_ready(reference_forward(params, x))
    max_err = float(jnp.max(jnp.abs(out - ref)))
    assert jnp.allclose(out, ref, atol=3e-2, rtol=3e-2), max_err  # bf16 MXU operands

    print("KERNEL_OK")
</pallas_src>

<mosaic_0001>
module attributes {stable_mosaic.version = 11 : i64} {
  func.func @_encoder_kernel(%arg0: i32, %arg1: memref<1x48x376xf32, #tpu.memory_space<vmem>>, %arg2: memref<360x144xbf16, #tpu.memory_space<vmem>>, %arg3: memref<8x1xf32, #tpu.memory_space<vmem>>, %arg4: memref<373x192xbf16, #tpu.memory_space<vmem>>, %arg5: memref<352x576xbf16, #tpu.memory_space<vmem>>, %arg6: memref<16x1xf32, #tpu.memory_space<vmem>>, %arg7: memref<189x88xbf16, #tpu.memory_space<vmem>>, %arg8: memref<128x1936xbf16, #tpu.memory_space<vmem>>, %arg9: memref<128x1xf32, #tpu.memory_space<vmem>>, %arg10: memref<1x128x8xf32, #tpu.memory_space<vmem>>) attributes {dimension_semantics = [#tpu.dimension_semantics<parallel>], iteration_bounds = array<i64: 2>, scalar_prefetch = 0 : i64, scratch_operands = 0 : i64, tpu.core_type = #tpu.core_type<tc>, window_params = [{transform_indices = @transform_0, window_bounds = array<i64: 1, 48, 376>}, {pipeline_mode = #tpu.pipeline_mode<synchronous>, transform_indices = @transform_1, window_bounds = array<i64: 360, 144>}, {pipeline_mode = #tpu.pipeline_mode<synchronous>, transform_indices = @transform_2, window_bounds = array<i64: 8, 1>}, {pipeline_mode = #tpu.pipeline_mode<synchronous>, transform_indices = @transform_3, window_bounds = array<i64: 373, 192>}, {pipeline_mode = #tpu.pipeline_mode<synchronous>, transform_indices = @transform_4, window_bounds = array<i64: 352, 576>}, {pipeline_mode = #tpu.pipeline_mode<synchronous>, transform_indices = @transform_5, window_bounds = array<i64: 16, 1>}, {pipeline_mode = #tpu.pipeline_mode<synchronous>, transform_indices = @transform_6, window_bounds = array<i64: 189, 88>}, {pipeline_mode = #tpu.pipeline_mode<synchronous>, transform_indices = @transform_7, window_bounds = array<i64: 128, 1936>}, {pipeline_mode = #tpu.pipeline_mode<synchronous>, transform_indices = @transform_8, window_bounds = array<i64: 128, 1>}, {transform_indices = @transform_9, window_bounds = array<i64: 1, 128, 8>}]} {
    %c0 = arith.constant 0 : index
    %c0_0 = arith.constant 0 : index
    %c0_1 = arith.constant 0 : index
    %0 = vector.load %arg1[%c0, %c0_0, %c0_1] : memref<1x48x376xf32, #tpu.memory_space<vmem>>, vector<1x48x376xf32>
    %1 = vector.shape_cast %0 : vector<1x48x376xf32> to vector<48x376xf32>
    %2 = arith.truncf %1 : vector<48x376xf32> to vector<48x376xbf16>
    %3 = vector.extract_strided_slice %2 {offsets = [0, 0], sizes = [48, 374], strides = [1, 1]} : vector<48x376xbf16> to vector<48x374xbf16>
    %4 = vector.extract_strided_slice %2 {offsets = [0, 1], sizes = [48, 374], strides = [1, 1]} : vector<48x376xbf16> to vector<48x374xbf16>
    %5 = vector.extract_strided_slice %2 {offsets = [0, 2], sizes = [48, 374], strides = [1, 1]} : vector<48x376xbf16> to vector<48x374xbf16>
    %6 = tpu.concatenate %3, %4, %5 in 0 : vector<48x374xbf16>, vector<48x374xbf16>, vector<48x374xbf16> -> vector<144x374xbf16>
    %c0_2 = arith.constant 0 : index
    %c0_3 = arith.constant 0 : index
    %7 = vector.load %arg2[%c0_2, %c0_3] : memref<360x144xbf16, #tpu.memory_space<vmem>>, vector<360x144xbf16>
    %cst = arith.constant dense<0.000000e+00> : vector<360x374xf32>
    %8 = tpu.matmul %7, %6, %cst {dimension_numbers = #tpu.dot_dimension_numbers<[1], [0], [0], [1], [0, 0, 1, 1], [], []>} : vector<360x144xbf16>, vector<144x374xbf16>, vector<360x374xf32> -> vector<360x374xf32>
    %9 = vector.shape_cast %8 : vector<360x374xf32> to vector<45x8x374xf32>
    %c0_4 = arith.constant 0 : index
    %c0_5 = arith.constant 0 : index
    %10 = vector.load %arg3[%c0_4, %c0_5] : memref<8x1xf32, #tpu.memory_space<vmem>>, vector<8x1xf32>
    %11 = vector.shape_cast %10 : vector<8x1xf32> to vector<1x8x1xf32>
    %12 = vector.broadcast %11 : vector<1x8x1xf32> to vector<45x8x374xf32>
    %13 = arith.addf %9, %12 : vector<45x8x374xf32>
    %cst_6 = arith.constant 0.000000e+00 : f32
    %14 = vector.broadcast %cst_6 : f32 to vector<45x8x374xf32>
    %15 = arith.maximumf %13, %14 : vector<45x8x374xf32>
    %16 = vector.extract_strided_slice %15 {offsets = [0, 0, 0], sizes = [44, 8, 374], strides = [1, 1, 1]} : vector<45x8x374xf32> to vector<44x8x374xf32>
    %17 = vector.shape_cast %16 : vector<44x8x374xf32> to vector<22x2x8x374xf32>
    %18 = vector.extract_strided_slice %17 {offsets = [0, 0, 0, 0], sizes = [22, 1, 8, 374], strides = [1, 1, 1, 1]} : vector<22x2x8x374xf32> to vector<22x1x8x374xf32>
    %19 = vector.shape_cast %18 : vector<22x1x8x374xf32> to vector<22x8x374xf32>
    %20 = vector.extract_strided_slice %17 {offsets = [0, 1, 0, 0], sizes = [22, 1, 8, 374], strides = [1, 1, 1, 1]} : vector<22x2x8x374xf32> to vector<22x1x8x374xf32>
    %21 = vector.shape_cast %20 : vector<22x1x8x374xf32> to vector<22x8x374xf32>
    %22 = arith.maximumf %19, %21 : vector<22x8x374xf32>
    %23 = vector.extract_strided_slice %22 {offsets = [0, 0, 0], sizes = [22, 8, 373], strides = [1, 1, 1]} : vector<22x8x374xf32> to vector<22x8x373xf32>
    %24 = vector.extract_strided_slice %22 {offsets = [0, 0, 1], sizes = [22, 8, 373], strides = [1, 1, 1]} : vector<22x8x374xf32> to vector<22x8x373xf32>
    %25 = arith.maximumf %23, %24 : vector<22x8x373xf32>
    %26 = vector.shape_cast %25 : vector<22x8x373xf32> to vector<176x373xf32>
    %27 = arith.truncf %26 : vector<176x373xf32> to vector<176x373xbf16>
    %c0_7 = arith.constant 0 : index
    %c0_8 = arith.constant 0 : index
    %28 = vector.load %arg4[%c0_7, %c0_8] : memref<373x192xbf16, #tpu.memory_space<vmem>>, vector<373x192xbf16>
    %cst_9 = arith.constant dense<0.000000e+00> : vector<176x192xf32>
    %29 = tpu.matmul %27, %28, %cst_9 {dimension_numbers = #tpu.dot_dimension_numbers<[1], [0], [0], [1], [0, 0, 1, 1], [], []>} : vector<176x373xbf16>, vector<373x192xbf16>, vector<176x192xf32> -> vector<176x192xf32>
    %cst_10 = arith.constant 0.000000e+00 : f32
    %30 = vector.broadcast %cst_10 : f32 to vector<8x192xf32>
    %31 = tpu.concatenate %30, %29, %30 in 0 : vector<8x192xf32>, vector<176x192xf32>, vector<8x192xf32> -> vector<192x192xf32>
    %32 = arith.truncf %31 : vector<192x192xf32> to vector<192x192xbf16>
    %33 = vector.extract_strided_slice %32 {offsets = [0, 0], sizes = [192, 190], strides = [1, 1]} : vector<192x192xbf16> to vector<192x190xbf16>
    %34 = vector.extract_strided_slice %32 {offsets = [0, 1], sizes = [192, 190], strides = [1, 1]} : vector<192x192xbf16> to vector<192x190xbf16>
    %35 = vector.extract_strided_slice %32 {offsets = [0, 2], sizes = [192, 190], strides = [1, 1]} : vector<192x192xbf16> to vector<192x190xbf16>
    %36 = tpu.concatenate %33, %34, %35 in 0 : vector<192x190xbf16>, vector<192x190xbf16>, vector<192x190xbf16> -> vector<576x190xbf16>
    %c0_11 = arith.constant 0 : index
    %c0_12 = arith.constant 0 : index
    %37 = vector.load %arg5[%c0_11, %c0_12] : memref<352x576xbf16, #tpu.memory_space<vmem>>, vector<352x576xbf16>
    %cst_13 = arith.constant dense<0.000000e+00> : vector<352x190xf32>
    %38 = tpu.matmul %37, %36, %cst_13 {dimension_numbers = #tpu.dot_dimension_numbers<[1], [0], [0], [1], [0, 0, 1, 1], [], []>} : vector<352x576xbf16>, vector<576x190xbf16>, vector<352x190xf32> -> vector<352x190xf32>
    %39 = vector.shape_cast %38 : vector<352x190xf32> to vector<22x16x190xf32>
    %c0_14 = arith.constant 0 : index
    %c0_15 = arith.constant 0 : index
    %40 = vector.load %arg6[%c0_14, %c0_15] : memref<16x1xf32, #tpu.memory_space<vmem>>, vector<16x1xf32>
    %41 = vector.shape_cast %40 : vector<16x1xf32> to vector<1x16x1xf32>
    %42 = vector.broadcast %41 : vector<1x16x1xf32> to vector<22x16x190xf32>
    %43 = arith.addf %39, %42 : vector<22x16x190xf32>
    %cst_16 = arith.constant 0.000000e+00 : f32
    %44 = vector.broadcast %cst_16 : f32 to vector<22x16x190xf32>
    %45 = arith.maximumf %43, %44 : vector<22x16x190xf32>
    %46 = vector.shape_cast %45 : vector<22x16x190xf32> to vector<11x2x16x190xf32>
    %47 = vector.extract_strided_slice %46 {offsets = [0, 0, 0, 0], sizes = [11, 1, 16, 190], strides = [1, 1, 1, 1]} : vector<11x2x16x190xf32> to vector<11x1x16x190xf32>
    %48 = vector.shape_cast %47 : vector<11x1x16x190xf32> to vector<11x16x190xf32>
    %49 = vector.extract_strided_slice %46 {offsets = [0, 1, 0, 0], sizes = [11, 1, 16, 190], strides = [1, 1, 1, 1]} : vector<11x2x16x190xf32> to vector<11x1x16x190xf32>
    %50 = vector.shape_cast %49 : vector<11x1x16x190xf32> to vector<11x16x190xf32>
    %51 = arith.maximumf %48, %50 : vector<11x16x190xf32>
    %52 = vector.extract_strided_slice %51 {offsets = [0, 0, 0], sizes = [11, 16, 189], strides = [1, 1, 1]} : vector<11x16x190xf32> to vector<11x16x189xf32>
    %53 = vector.extract_strided_slice %51 {offsets = [0, 0, 1], sizes = [11, 16, 189], strides = [1, 1, 1]} : vector<11x16x190xf32> to vector<11x16x189xf32>
    %54 = arith.maximumf %52, %53 : vector<11x16x189xf32>
    %55 = vector.shape_cast %54 : vector<11x16x189xf32> to vector<176x189xf32>
    %56 = arith.truncf %55 : vector<176x189xf32> to vector<176x189xbf16>
    %c0_17 = arith.constant 0 : index
    %c0_18 = arith.constant 0 : index
    %57 = vector.load %arg7[%c0_17, %c0_18] : memref<189x88xbf16, #tpu.memory_space<vmem>>, vector<189x88xbf16>
    %cst_19 = arith.constant dense<0.000000e+00> : vector<176x88xf32>
    %58 = tpu.matmul %56, %57, %cst_19 {dimension_numbers = #tpu.dot_dimension_numbers<[1], [0], [0], [1], [0, 0, 1, 1], [], []>} : vector<176x189xbf16>, vector<189x88xbf16>, vector<176x88xf32> -> vector<176x88xf32>
    %59 = vector.extract_strided_slice %58 {offsets = [0, 0], sizes = [176, 8], strides = [1, 1]} : vector<176x88xf32> to vector<176x8xf32>
    %60 = vector.extract_strided_slice %58 {offsets = [0, 8], sizes = [176, 8], strides = [1, 1]} : vector<176x88xf32> to vector<176x8xf32>
    %61 = vector.extract_strided_slice %58 {offsets = [0, 16], sizes = [176, 8], strides = [1, 1]} : vector<176x88xf32> to vector<176x8xf32>
    %62 = vector.extract_strided_slice %58 {offsets = [0, 24], sizes = [176, 8], strides = [1, 1]} : vector<176x88xf32> to vector<176x8xf32>
    %63 = vector.extract_strided_slice %58 {offsets = [0, 32], sizes = [176, 8], strides = [1, 1]} : vector<176x88xf32> to vector<176x8xf32>
    %64 = vector.extract_strided_slice %58 {offsets = [0, 40], sizes = [176, 8], strides = [1, 1]} : vector<176x88xf32> to vector<176x8xf32>
    %65 = vector.extract_strided_slice %58 {offsets = [0, 48], sizes = [176, 8], strides = [1, 1]} : vector<176x88xf32> to vector<176x8xf32>
    %66 = vector.extract_strided_slice %58 {offsets = [0, 56], sizes = [176, 8], strides = [1, 1]} : vector<176x88xf32> to vector<176x8xf32>
    %67 = vector.extract_strided_slice %58 {offsets = [0, 64], sizes = [176, 8], strides = [1, 1]} : vector<176x88xf32> to vector<176x8xf32>
    %68 = vector.extract_strided_slice %58 {offsets = [0, 72], sizes = [176, 8], strides = [1, 1]} : vector<176x88xf32> to vector<176x8xf32>
    %69 = vector.extract_strided_slice %58 {offsets = [0, 80], sizes = [176, 8], strides = [1, 1]} : vector<176x88xf32> to vector<176x8xf32>
    %70 = tpu.concatenate %59, %60, %61, %62, %63, %64, %65, %66, %67, %68, %69 in 0 : vector<176x8xf32>, vector<176x8xf32>, vector<176x8xf32>, vector<176x8xf32>, vector<176x8xf32>, vector<176x8xf32>, vector<176x8xf32>, vector<176x8xf32>, vector<176x8xf32>, vector<176x8xf32>, vector<176x8xf32> -> vector<1936x8xf32>
    %c0_20 = arith.constant 0 : index
    %c0_21 = arith.constant 0 : index
    %71 = vector.load %arg8[%c0_20, %c0_21] : memref<128x1936xbf16, #tpu.memory_space<vmem>>, vector<128x1936xbf16>
    %72 = arith.truncf %70 : vector<1936x8xf32> to vector<1936x8xbf16>
    %cst_22 = arith.constant dense<0.000000e+00> : vector<128x8xf32>
    %73 = tpu.matmul %71, %72, %cst_22 {dimension_numbers = #tpu.dot_dimension_numbers<[1], [0], [0], [1], [0, 0, 1, 1], [], []>} : vector<128x1936xbf16>, vector<1936x8xbf16>, vector<128x8xf32> -> vector<128x8xf32>
    %c0_23 = arith.constant 0 : index
    %c0_24 = arith.constant 0 : index
    %74 = vector.load %arg9[%c0_23, %c0_24] : memref<128x1xf32, #tpu.memory_space<vmem>>, vector<128x1xf32>
    %75 = vector.broadcast %74 : vector<128x1xf32> to vector<128x8xf32>
    %76 = arith.addf %73, %75 : vector<128x8xf32>
    %cst_25 = arith.constant 0.000000e+00 : f32
    %77 = vector.broadcast %cst_25 : f32 to vector<128x8xf32>
    %78 = arith.maximumf %76, %77 : vector<128x8xf32>
    %c0_26 = arith.constant 0 : index
    %c0_27 = arith.constant 0 : index
    %c0_28 = arith.constant 0 : index
    %79 = vector.load %arg10[%c0_26, %c0_27, %c0_28] : memref<1x128x8xf32, #tpu.memory_space<vmem>>, vector<1x128x8xf32>
    %80 = vector.shape_cast %79 : vector<1x128x8xf32> to vector<128x8xf32>
    %81 = vector.shape_cast %78 : vector<128x8xf32> to vector<1x128x8xf32>
    tpu.vector_store %arg10[%c0_26, %c0_27, %c0_28], %81 {strides = array<i32>} : memref<1x128x8xf32, #tpu.memory_space<vmem>>, vector<1x128x8xf32>,
    return
  }
  func.func @transform_0(%arg0: i32) -> (i32, i32, i32) {
    %c0_i32 = arith.constant 0 : i32
    %c0_i32_0 = arith.constant 0 : i32
    %c0_i32_1 = arith.constant 0 : i32
    return %arg0, %c0_i32, %c0_i32_0 : i32, i32, i32
  }
  func.func @transform_1(%arg0: i32) -> (i32, i32) {
    %c0_i32 = arith.constant 0 : i32
    %c0_i32_0 = arith.constant 0 : i32
    %c0_i32_1 = arith.constant 0 : i32
    return %c0_i32, %c0_i32_0 : i32, i32
  }
  func.func @transform_2(%arg0: i32) -> (i32, i32) {
    %c0_i32 = arith.constant 0 : i32
    %c0_i32_0 = arith.constant 0 : i32
    %c0_i32_1 = arith.constant 0 : i32
    return %c0_i32, %c0_i32_0 : i32, i32
  }
  func.func @transform_3(%arg0: i32) -> (i32, i32) {
    %c0_i32 = arith.constant 0 : i32
    %c0_i32_0 = arith.constant 0 : i32
    %c0_i32_1 = arith.constant 0 : i32
    return %c0_i32, %c0_i32_0 : i32, i32
  }
  func.func @transform_4(%arg0: i32) -> (i32, i32) {
    %c0_i32 = arith.constant 0 : i32
    %c0_i32_0 = arith.constant 0 : i32
    %c0_i32_1 = arith.constant 0 : i32
    return %c0_i32, %c0_i32_0 : i32, i32
  }
  func.func @transform_5(%arg0: i32) -> (i32, i32) {
    %c0_i32 = arith.constant 0 : i32
    %c0_i32_0 = arith.constant 0 : i32
    %c0_i32_1 = arith.constant 0 : i32
    return %c0_i32, %c0_i32_0 : i32, i32
  }
  func.func @transform_6(%arg0: i32) -> (i32, i32) {
    %c0_i32 = arith.constant 0 : i32
    %c0_i32_0 = arith.constant 0 : i32
    %c0_i32_1 = arith.constant 0 : i32
    return %c0_i32, %c0_i32_0 : i32, i32
  }
  func.func @transform_7(%arg0: i32) -> (i32, i32) {
    %c0_i32 = arith.constant 0 : i32
    %c0_i32_0 = arith.constant 0 : i32
    %c0_i32_1 = arith.constant 0 : i32
    return %c0_i32, %c0_i32_0 : i32, i32
  }
  func.func @transform_8(%arg0: i32) -> (i32, i32) {
    %c0_i32 = arith.constant 0 : i32
    %c0_i32_0 = arith.constant 0 : i32
    %c0_i32_1 = arith.constant 0 : i32
    return %c0_i32, %c0_i32_0 : i32, i32
  }
  func.func @transform_9(%arg0: i32) -> (i32, i32, i32) {
    %c0_i32 = arith.constant 0 : i32
    %c0_i32_0 = arith.constant 0 : i32
    %c0_i32_1 = arith.constant 0 : i32
    return %arg0, %c0_i32, %c0_i32_0 : i32, i32, i32
  }
}

</mosaic_0001>

<llo_original>
// kernel: symbol_encoder_forward.1
$region0: #{symbol_encoder_forward.1}
  #allocation0 [shape = 'u32[]', space=smem, size = 0x4, offset = 0x4, fixed_abs, tag = 'smem constant byte address 0x4 - core index']
  #allocation1 [shape = 'u32[72,128]{1,0:T(1,128)}', space=vmem, size = 0x9000, scoped, tag = 'internal scratch']
  %s0 = inlined_call_operand.vmem [shape: f32[2,48,376], index: 0, kind: input, shape index: {}]
  %s1 = inlined_call_operand.vmem [shape: bf16[360,144], index: 1, kind: input, shape index: {}]
  %s2 = inlined_call_operand.vmem [shape: f32[8,1], index: 2, kind: input, shape index: {}]
  %s3 = inlined_call_operand.vmem [shape: bf16[373,192], index: 3, kind: input, shape index: {}]
  %s4 = inlined_call_operand.vmem [shape: bf16[352,576], index: 4, kind: input, shape index: {}]
  %s5 = inlined_call_operand.vmem [shape: f32[16,1], index: 5, kind: input, shape index: {}]
  %s6 = inlined_call_operand.vmem [shape: bf16[189,88], index: 6, kind: input, shape index: {}]
  %s7 = inlined_call_operand.vmem [shape: bf16[128,1936], index: 7, kind: input, shape index: {}]
  %s8 = inlined_call_operand.vmem [shape: f32[128,1], index: 8, kind: input, shape index: {}]
  %s9 = inlined_call_operand.vmem [shape: f32[2,128,8], index: 9, kind: output, shape index: {}]
  %s10 = sld [smem:[#allocation0]]
  $region69: #{symbol_encoder_forward.1} parent=0
    _
  %s12 = ssub.s32 1, %s10
  %s13 = scalar_select 0, %s12, %s10
  loop: start=0, step=1, limit=4
  $region2: #{symbol_encoder_forward.1} parent=0 // loop_pre_header
    _
  $region3: #{symbol_encoder_forward.1} parent=0 // loop_header
    %s15 = sphi 0, %s19
    %p16 = scmp.ge.s32.totalorder %s15, 4
    %s25 = sphi 0, %s27
    %s28 = sphi 0, %s25
    %s29 = sphi 0, %s28
    %s45 = sphi 0, %s29
    %s49 = sphi 0, %s49
    %s51 = sphi 0, %s49
    %s52 = sphi 0, %s51
    %s66 = sphi 0, %s52
    %s70 = sphi 0, %s70
    %s72 = sphi 0, %s70
    %s73 = sphi 0, %s72
    %s87 = sphi 0, %s73
    %s91 = sphi 0, %s91
    %s93 = sphi 0, %s91
    %s94 = sphi 0, %s93
    %s108 = sphi 0, %s94
    %s112 = sphi 0, %s112
    %s114 = sphi 0, %s112
    %s115 = sphi 0, %s114
    %s129 = sphi 0, %s115
    %s133 = sphi 0, %s133
    %s135 = sphi 0, %s133
    %s136 = sphi 0, %s135
    %s150 = sphi 0, %s136
    %s154 = sphi 0, %s154
    %s156 = sphi 0, %s154
    %s157 = sphi 0, %s156
    %s171 = sphi 0, %s157
    %s175 = sphi 0, %s175
    %s177 = sphi 0, %s175
    %s178 = sphi 0, %s177
    %s192 = sphi 0, %s178
    %s196 = sphi 0, %s196
    %s198 = sphi 0, %s196
    %s199 = sphi 0, %s198
    %s213 = sphi 0, %s199
    %s219 = sphi 0, %s221
    %s222 = sphi 0, %s219
    %s223 = sphi 0, %s222
    %s239 = sphi 0, %s223
  $region4: #{symbol_encoder_forward.1} parent=0 // loop_header_branch
    %18 = sbr.rel (%p16) target = $region8
  $region5: #{symbol_encoder_forward.1} parent=0 // loop_body
    %s20 = ssub.s32 %s15, 1
    %s21 = ssub.s32 %s15, 2
    %s22 = sadd.s32 %s15, 1
    %s23 = ssub.s32 %s15, %s22
    %p24 = scmp.eq.s32.totalorder %s23, 0
    %s26 = sadd.s32 %s25, 1
    %s27 = scalar_select %p24, %s25, %s26
    %p30 = pneg %p24
    %p31 = scmp.eq.s32.totalorder %s15, 1
    %p32 = por %p30, %p31
    %p33 = scmp.ne.s32.totalorder %s25, %s28
    %p34 = scmp.eq.s32.totalorder %s15, 0
    %p35 = por %p33, %p34
    %p36 = scmp.ne.s32.totalorder %s25, %s28
    %p37 = scmp.eq.s32.totalorder %s20, 1
    %p38 = por %p36, %p37
    %p39 = scmp.ne.s32.totalorder %s28, %s29
    %p40 = scmp.eq.s32.totalorder %s20, 0
    %p41 = por %p39, %p40
    %p42 = scmp.ne.s32.totalorder %s28, %s29
    %p43 = scmp.eq.s32.totalorder %s21, 1
    %p44 = por %p42, %p43
    %p46 = scmp.ne.s32.totalorder %s29, %s45
    %p47 = scmp.eq.s32.totalorder %s21, 0
    %p48 = por %p46, %p47
    %s50 = sadd.s32 %s49, 1
    %p53 = scmp.eq.s32.totalorder %s15, 1
    %p54 = scmp.ne.s32.totalorder %s49, %s51
    %p55 = scmp.eq.s32.totalorder %s15, 0
    %p56 = por %p54, %p55
    %p57 = scmp.ne.s32.totalorder %s49, %s51
    %p58 = scmp.eq.s32.totalorder %s20, 1
    %p59 = por %p57, %p58
    %p60 = scmp.ne.s32.totalorder %s51, %s52
    %p61 = scmp.eq.s32.totalorder %s20, 0
    %p62 = por %p60, %p61
    %p63 = scmp.ne.s32.totalorder %s51, %s52
    %p64 = scmp.eq.s32.totalorder %s21, 1
    %p65 = por %p63, %p64
    %p67 = scmp.ne.s32.totalorder %s52, %s66
    %p68 = scmp.eq.s32.totalorder %s21, 0
    %p69 = por %p67, %p68
    %s71 = sadd.s32 %s70, 1
    %p74 = scmp.eq.s32.totalorder %s15, 1
    %p75 = scmp.ne.s32.totalorder %s70, %s72
    %p76 = scmp.eq.s32.totalorder %s15, 0
    %p77 = por %p75, %p76
    %p78 = scmp.ne.s32.totalorder %s70, %s72
    %p79 = scmp.eq.s32.totalorder %s20, 1
    %p80 = por %p78, %p79
    %p81 = scmp.ne.s32.totalorder %s72, %s73
    %p82 = scmp.eq.s32.totalorder %s20, 0
    %p83 = por %p81, %p82
    %p84 = scmp.ne.s32.totalorder %s72, %s73
    %p85 = scmp.eq.s32.totalorder %s21, 1
    %p86 = por %p84, %p85
    %p88 = scmp.ne.s32.totalorder %s73, %s87
    %p89 = scmp.eq.s32.totalorder %s21, 0
    %p90 = por %p88, %p89
    %s92 = sadd.s32 %s91, 1
    %p95 = scmp.eq.s32.totalorder %s15, 1
    %p96 = scmp.ne.s32.totalorder %s91, %s93
    %p97 = scmp.eq.s32.totalorder %s15, 0
    %p98 = por %p96, %p97
    %p99 = scmp.ne.s32.totalorder %s91, %s93
    %p100 = scmp.eq.s32.totalorder %s20, 1
    %p101 = por %p99, %p100
    %p102 = scmp.ne.s32.totalorder %s93, %s94
    %p103 = scmp.eq.s32.totalorder %s20, 0
    %p104 = por %p102, %p103
    %p105 = scmp.ne.s32.totalorder %s93, %s94
    %p106 = scmp.eq.s32.totalorder %s21, 1
    %p107 = por %p105, %p106
    %p109 = scmp.ne.s32.totalorder %s94, %s108
    %p110 = scmp.eq.s32.totalorder %s21, 0
    %p111 = por %p109, %p110
    %s113 = sadd.s32 %s112, 1
    %p116 = scmp.eq.s32.totalorder %s15, 1
    %p117 = scmp.ne.s32.totalorder %s112, %s114
    %p118 = scmp.eq.s32.totalorder %s15, 0
    %p119 = por %p117, %p118
    %p120 = scmp.ne.s32.totalorder %s112, %s114
    %p121 = scmp.eq.s32.totalorder %s20, 1
    %p122 = por %p120, %p121
    %p123 = scmp.ne.s32.totalorder %s114, %s115
    %p124 = scmp.eq.s32.totalorder %s20, 0
    %p125 = por %p123, %p124
    %p126 = scmp.ne.s32.totalorder %s114, %s115
    %p127 = scmp.eq.s32.totalorder %s21, 1
    %p128 = por %p126, %p127
    %p130 = scmp.ne.s32.totalorder %s115, %s129
    %p131 = scmp.eq.s32.totalorder %s21, 0
    %p132 = por %p130, %p131
    %s134 = sadd.s32 %s133, 1
    %p137 = scmp.eq.s32.totalorder %s15, 1
    %p138 = scmp.ne.s32.totalorder %s133, %s135
    %p139 = scmp.eq.s32.totalorder %s15, 0
    %p140 = por %p138, %p139
    %p141 = scmp.ne.s32.totalorder %s133, %s135
    %p142 = scmp.eq.s32.totalorder %s20, 1
    %p143 = por %p141, %p142
    %p144 = scmp.ne.s32.totalorder %s135, %s136
    %p145 = scmp.eq.s32.totalorder %s20, 0
    %p146 = por %p144, %p145
    %p147 = scmp.ne.s32.totalorder %s135, %s136
    %p148 = scmp.eq.s32.totalorder %s21, 1
    %p149 = por %p147, %p148
    %p151 = scmp.ne.s32.totalorder %s136, %s150
    %p152 = scmp.eq.s32.totalorder %s21, 0
    %p153 = por %p151, %p152
    %s155 = sadd.s32 %s154, 1
    %p158 = scmp.eq.s32.totalorder %s15, 1
    %p159 = scmp.ne.s32.totalorder %s154, %s156
    %p160 = scmp.eq.s32.totalorder %s15, 0
    %p161 = por %p159, %p160
    %p162 = scmp.ne.s32.totalorder %s154, %s156
    %p163 = scmp.eq.s32.totalorder %s20, 1
    %p164 = por %p162, %p163
    %p165 = scmp.ne.s32.totalorder %s156, %s157
    %p166 = scmp.eq.s32.totalorder %s20, 0
    %p167 = por %p165, %p166
    %p168 = scmp.ne.s32.totalorder %s156, %s157
    %p169 = scmp.eq.s32.totalorder %s21, 1
    %p170 = por %p168, %p169
    %p172 = scmp.ne.s32.totalorder %s157, %s171
    %p173 = scmp.eq.s32.totalorder %s21, 0
    %p174 = por %p172, %p173
    %s176 = sadd.s32 %s175, 1
    %p179 = scmp.eq.s32.totalorder %s15, 1
    %p180 = scmp.ne.s32.totalorder %s175, %s177
    %p181 = scmp.eq.s32.totalorder %s15, 0
    %p182 = por %p180, %p181
    %p183 = scmp.ne.s32.totalorder %s175, %s177
    %p184 = scmp.eq.s32.totalorder %s20, 1
    %p185 = por %p183, %p184
    %p186 = scmp.ne.s32.totalorder %s177, %s178
    %p187 = scmp.eq.s32.totalorder %s20, 0
    %p188 = por %p186, %p187
    %p189 = scmp.ne.s32.totalorder %s177, %s178
    %p190 = scmp.eq.s32.totalorder %s21, 1
    %p191 = por %p189, %p190
    %p193 = scmp.ne.s32.totalorder %s178, %s192
    %p194 = scmp.eq.s32.totalorder %s21, 0
    %p195 = por %p193, %p194
    %s197 = sadd.s32 %s196, 1
    %p200 = scmp.eq.s32.totalorder %s15, 1
    %p201 = scmp.ne.s32.totalorder %s196, %s198
    %p202 = scmp.eq.s32.totalorder %s15, 0
    %p203 = por %p201, %p202
    %p204 = scmp.ne.s32.totalorder %s196, %s198
    %p205 = scmp.eq.s32.totalorder %s20, 1
    %p206 = por %p204, %p205
    %p207 = scmp.ne.s32.totalorder %s198, %s199
    %p208 = scmp.eq.s32.totalorder %s20, 0
    %p209 = por %p207, %p208
    %p210 = scmp.ne.s32.totalorder %s198, %s199
    %p211 = scmp.eq.s32.totalorder %s21, 1
    %p212 = por %p210, %p211
    %p214 = scmp.ne.s32.totalorder %s199, %s213
    %p215 = scmp.eq.s32.totalorder %s21, 0
    %p216 = por %p214, %p215
    %s217 = ssub.s32 %s15, %s22
    %p218 = scmp.eq.s32.totalorder %s217, 0
    %s220 = sadd.s32 %s219, 1
    %s221 = scalar_select %p218, %s219, %s220
    %p224 = pneg %p218
    %p225 = scmp.eq.s32.totalorder %s15, 1
    %p226 = por %p224, %p225
    %p227 = scmp.ne.s32.totalorder %s219, %s222
    %p228 = scmp.eq.s32.totalorder %s15, 0
    %p229 = por %p227, %p228
    %p230 = scmp.ne.s32.totalorder %s219, %s222
    %p231 = scmp.eq.s32.totalorder %s20, 1
    %p232 = por %p230, %p231
    %p233 = scmp.ne.s32.totalorder %s222, %s223
    %p234 = scmp.eq.s32.totalorder %s20, 0
    %p235 = por %p233, %p234
    %p236 = scmp.ne.s32.totalorder %s222, %s223
    %p237 = scmp.eq.s32.totalorder %s21, 1
    %p238 = por %p236, %p237
    %p240 = scmp.ne.s32.totalorder %s223, %s239
    %p241 = scmp.eq.s32.totalorder %s21, 0
    %p242 = por %p240, %p241
    %p243 = scmp.le.s32.totalorder 1, %s15
    %p244 = scmp.lt.s32.totalorder %s15, 3
    %p245 = pnand %p243, %p244
    %p246 = pneg %p245
    // Predicated region
    $region9: #{symbol_encoder_forward.1} parent=5 // pred_check
      _
    $region10: #{symbol_encoder_forward.1} parent=5 // pred_check_branch
      %248 = sbr.rel (%p245) target = $region12
    $region11: #{symbol_encoder_forward.1} parent=5 // pred_region
      %s249 = ssub.s32 %s15, 1
      // Predicated region
      $region13: #{symbol_encoder_forward.1} parent=11 // pred_check
        %p250 = pneg %p62
      $region14: #{symbol_encoder_forward.1} parent=11 // pred_check_branch
        %252 = sbr.rel (%p250) target = $region16
      $region15: #{symbol_encoder_forward.1} parent=11 // pred_region
        _
      $region16: #{symbol_encoder_forward.1} parent=11 // pred_fallthru
        _
      // Predicated region
      $region17: #{symbol_encoder_forward.1} parent=11 // pred_check
        %p253 = pneg %p83
      $region18: #{symbol_encoder_forward.1} parent=11 // pred_check_branch
        %255 = sbr.rel (%p253) target = $region20
      $region19: #{symbol_encoder_forward.1} parent=11 // pred_region
        _
      $region20: #{symbol_encoder_forward.1} parent=11 // pred_fallthru
        _
      // Predicated region
      $region21: #{symbol_encoder_forward.1} parent=11 // pred_check
        %p256 = pneg %p104
      $region22: #{symbol_encoder_forward.1} parent=11 // pred_check_branch
        %258 = sbr.rel (%p256) target = $region24
      $region23: #{symbol_encoder_forward.1} parent=11 // pred_region
        _
      $region24: #{symbol_encoder_forward.1} parent=11 // pred_fallthru
        _
      // Predicated region
      $region25: #{symbol_encoder_forward.1} parent=11 // pred_check
        %p259 = pneg %p125
      $region26: #{symbol_encoder_forward.1} parent=11 // pred_check_branch
        %261 = sbr.rel (%p259) target = $region28
      $region27: #{symbol_encoder_forward.1} parent=11 // pred_region
        _
      $region28: #{symbol_encoder_forward.1} parent=11 // pred_fallthru
        _
      // Predicated region
      $region29: #{symbol_encoder_forward.1} parent=11 // pred_check
        %p262 = pneg %p146
      $region30: #{symbol_encoder_forward.1} parent=11 // pred_check_branch
        %264 = sbr.rel (%p262) target = $region32
      $region31: #{symbol_encoder_forward.1} parent=11 // pred_region
        _
      $region32: #{symbol_encoder_forward.1} parent=11 // pred_fallthru
        _
      // Predicated region
      $region33: #{symbol_encoder_forward.1} parent=11 // pred_check
        %p265 = pneg %p167
      $region34: #{symbol_encoder_forward.1} parent=11 // pred_check_branch
        %267 = sbr.rel (%p265) target = $region36
      $region35: #{symbol_encoder_forward.1} parent=11 // pred_region
        _
      $region36: #{symbol_encoder_forward.1} parent=11 // pred_fallthru
        _
      // Predicated region
      $region37: #{symbol_encoder_forward.1} parent=11 // pred_check
        %p268 = pneg %p188
      $region38: #{symbol_encoder_forward.1} parent=11 // pred_check_branch
        %270 = sbr.rel (%p268) target = $region40
      $region39: #{symbol_encoder_forward.1} parent=11 // pred_region
        _
      $region40: #{symbol_encoder_forward.1} parent=11 // pred_fallthru
        _
      // Predicated region
      $region41: #{symbol_encoder_forward.1} parent=11 // pred_check
        %p271 = pneg %p209
      $region42: #{symbol_encoder_forward.1} parent=11 // pred_check_branch
        %273 = sbr.rel (%p271) target = $region44
      $region43: #{symbol_encoder_forward.1} parent=11 // pred_region
        _
      $region44: #{symbol_encoder_forward.1} parent=11 // pred_fallthru
        _
    $region12: #{symbol_encoder_forward.1} parent=5 // pred_fallthru
      _
    %p274 = scmp.lt.s32.totalorder %s15, 2
    // Predicated region
    $region45: #{symbol_encoder_forward.1} parent=5 // pred_check
      %p275 = pneg %p274
    $region46: #{symbol_encoder_forward.1} parent=5 // pred_check_branch
      %277 = sbr.rel (%p275) target = $region48
    $region47: #{symbol_encoder_forward.1} parent=5 // pred_region
      // Predicated region
      $region49: #{symbol_encoder_forward.1} parent=47 // pred_check
        %p278 = pneg %p35
      $region50: #{symbol_encoder_forward.1} parent=47 // pred_check_branch
        %280 = sbr.rel (%p278) target = $region52
      $region51: #{symbol_encoder_forward.1} parent=47 // pred_region
        %p281 = scmp.lt.s32.totalorder %s15, 1
        %s282 = scalar_select %p281, %s15, 1
        %s283 = smul.addr %s282, 18
        %s284 = smul.addr %s283, 8
        %s285 = scalar_lea.vmem %s0, %s284
      $region52: #{symbol_encoder_forward.1} parent=47 // pred_fallthru
        _
    $region48: #{symbol_encoder_forward.1} parent=5 // pred_fallthru
      _
    %p286 = scmp.le.s32.totalorder 1, %s15
    %p287 = scmp.lt.s32.totalorder %s15, 3
    %p288 = pnand %p286, %p287
    %p289 = pneg %p288
    // Predicated region
    $region53: #{symbol_encoder_forward.1} parent=5 // pred_check
      _
    $region54: #{symbol_encoder_forward.1} parent=5 // pred_check_branch
      %291 = sbr.rel (%p288) target = $region56
    $region55: #{symbol_encoder_forward.1} parent=5 // pred_region
      %s292 = ssub.s32 %s15, 1
      %p293 = scmp.lt.s32.totalorder %s20, 1
      %s294 = scalar_select %p293, %s20, 1
      %s295 = smul.addr %s294, 18
      %s296 = smul.addr %s295, 8
      %s297 = scalar_lea.vmem %s0, %s296
      %p298 = pneg %p41
      %p299 = pneg %p38
      %p300 = pneg %p62
      %p301 = pneg %p59
      %p302 = pneg %p83
      %p303 = pneg %p80
      %p304 = pneg %p104
      %p305 = pneg %p101
      %p306 = pneg %p125
      %p307 = pneg %p122
      %p308 = pneg %p146
      %p309 = pneg %p143
      %p310 = pneg %p167
      %p311 = pneg %p164
      %p312 = pneg %p188
      %p313 = pneg %p185
      %p314 = pneg %p209
      %p315 = pneg %p206
      %p316 = pneg %p235
      %p317 = pneg %p232
      %p318 = scmp.lt.s32.totalorder %s20, 1
      %s319 = scalar_select %p318, %s20, 1
      %s320 = smul.addr %s319, 16
      %s321 = smul.addr %s320, 8
      %s322 = scalar_lea.vmem %s9, %s321
      %p323 = scmp.lt.s32.totalorder %s20, 1
      %s324 = scalar_select %p323, %s20, 1
      %s325 = smul.addr %s324, 18
      %s326 = smul.addr %s325, 8
      %s327 = scalar_lea.vmem %s0, %s326
      %p328 = scmp.lt.s32.totalorder %s20, 1
      %s329 = scalar_select %p328, %s20, 1
      %s330 = smul.addr %s329, 16
      %s331 = smul.addr %s330, 8
      %s332 = scalar_lea.vmem %s9, %s331
      %v334 = vld [vmem:[%s327] sm:$0xff]
      %v335 = vld [vmem:[%s327 + $0x8] sm:$0xff]
      %v336 = vld [vmem:[%s327 + $0x10] sm:$0xff]
      %v337 = vld [vmem:[%s327 + $0x18] sm:$0xff]
      %v338 = vld [vmem:[%s327 + $0x20] sm:$0xff]
      %v339 = vld [vmem:[%s327 + $0x28] sm:$0xff]
      %v340 = vld [vmem:[%s327 + $0x30] sm:$0xff]
      %v341 = vld [vmem:[%s327 + $0x38] sm:$0xff]
      %v342 = vld [vmem:[%s327 + $0x40] sm:$0xff]
      %v343 = vld [vmem:[%s327 + $0x48] sm:$0xff]
      %v344 = vld [vmem:[%s327 + $0x50] sm:$0xff]
      %v345 = vld [vmem:[%s327 + $0x58] sm:$0xff]
      %v346 = vld [vmem:[%s327 + $0x60] sm:$0xff]
      %v347 = vld [vmem:[%s327 + $0x68] sm:$0xff]
      %v348 = vld [vmem:[%s327 + $0x70] sm:$0xff]
      %v349 = vld [vmem:[%s327 + $0x78] sm:$0xff]
      %v350 = vld [vmem:[%s327 + $0x80] sm:$0xff]
      %v351 = vld [vmem:[%s327 + $0x88] sm:$0xff]
      %v352 = vpack.c.bf16 %v335, %v334
      %v353 = vpack.c.bf16 %v336, %v336
      %v354 = vpack.c.bf16 %v338, %v337
      %v355 = vpack.c.bf16 %v339, %v339
      %v356 = vpack.c.bf16 %v341, %v340
      %v357 = vpack.c.bf16 %v342, %v342
      %v358 = vpack.c.bf16 %v344, %v343
      %v359 = vpack.c.bf16 %v345, %v345
      %v360 = vpack.c.bf16 %v347, %v346
      %v361 = vpack.c.bf16 %v348, %v348
      %v362 = vpack.c.bf16 %v350, %v349
      %v363 = vpack.c.bf16 %v351, %v351
      %v376 = vunpack.c.l.b16 %v352
      %v377 = vunpack.c.h.b16 %v352
      %v378 = vunpack.c.l.b16 %v353
      %v379 = vunpack.c.l.b16 %v354
      %v380 = vunpack.c.h.b16 %v354
      %v381 = vunpack.c.l.b16 %v355
      %v382 = vunpack.c.l.b16 %v356
      %v383 = vunpack.c.h.b16 %v356
      %v384 = vunpack.c.l.b16 %v357
      %v385 = vunpack.c.l.b16 %v358
      %v386 = vunpack.c.h.b16 %v358
      %v387 = vunpack.c.l.b16 %v359
      %v388 = vunpack.c.l.b16 %v360
      %v389 = vunpack.c.h.b16 %v360
      %v390 = vunpack.c.l.b16 %v361
      %v391 = vunpack.c.l.b16 %v362
      %v392 = vunpack.c.h.b16 %v362
      %v393 = vunpack.c.l.b16 %v363
      %v394 = vpack.c.b16 %v379, %v376
      %v395 = vpack.c.b16 %v380, %v377
      %v396 = vpack.c.b16 %v381, %v378
      %v397 = vpack.c.b16 %v385, %v382
      %v398 = vpack.c.b16 %v386, %v383
      %v399 = vpack.c.b16 %v387, %v384
      %v400 = vpack.c.b16 %v391, %v388
      %v401 = vpack.c.b16 %v392, %v389
      %v402 = vpack.c.b16 %v393, %v390
      %412 = vrot.lane.b32.xlu0 %v394, 127
      %v413 = vpop.permute.xlu0 %412
      %414 = vrot.lane.b32.xlu0 %v395, 127
      %v415 = vpop.permute.xlu0 %414
      %416 = vrot.lane.b32.xlu0 %v396, 127
      %v417 = vpop.permute.xlu0 %416
      %418 = vrot.lane.b32.xlu0 %v397, 127
      %v419 = vpop.permute.xlu0 %418
      %420 = vrot.lane.b32.xlu0 %v398, 127
      %v421 = vpop.permute.xlu0 %420
      %422 = vrot.lane.b32.xlu0 %v399, 127
      %v423 = vpop.permute.xlu0 %422
      %424 = vrot.lane.b32.xlu0 %v400, 127
      %v425 = vpop.permute.xlu0 %424
      %426 = vrot.lane.b32.xlu0 %v401, 127
      %v427 = vpop.permute.xlu0 %426
      %428 = vrot.lane.b32.xlu0 %v402, 127
      %v429 = vpop.permute.xlu0 %428
      %vm430 = vcmask 1039360
      %v431 = vsel %vm430, %v413, %v415
      %v432 = vsel %vm430, %v415, %v417
      %v433 = vsel %vm430, %v419, %v421
      %v434 = vsel %vm430, %v421, %v423
      %v435 = vsel %vm430, %v425, %v427
      %v436 = vsel %vm430, %v427, %v429
      %446 = vrot.lane.b32.xlu0 %v394, 126
      %v447 = vpop.permute.xlu0 %446
      %448 = vrot.lane.b32.xlu0 %v395, 126
      %v449 = vpop.permute.xlu0 %448
      %450 = vrot.lane.b32.xlu0 %v396, 126
      %v451 = vpop.permute.xlu0 %450
      %452 = vrot.lane.b32.xlu0 %v397, 126
      %v453 = vpop.permute.xlu0 %452
      %454 = vrot.lane.b32.xlu0 %v398, 126
      %v455 = vpop.permute.xlu0 %454
      %456 = vrot.lane.b32.xlu0 %v399, 126
      %v457 = vpop.permute.xlu0 %456
      %458 = vrot.lane.b32.xlu0 %v400, 126
      %v459 = vpop.permute.xlu0 %458
      %460 = vrot.lane.b32.xlu0 %v401, 126
      %v461 = vpop.permute.xlu0 %460
      %462 = vrot.lane.b32.xlu0 %v402, 126
      %v463 = vpop.permute.xlu0 %462
      %vm464 = vcmask 1031168
      %v465 = vsel %vm464, %v447, %v449
      %v466 = vsel %vm464, %v449, %v451
      %v467 = vsel %vm464, %v453, %v455
      %v468 = vsel %vm464, %v455, %v457
      %v469 = vsel %vm464, %v459, %v461
      %v470 = vsel %vm464, %v461, %v463
      %v480 = vld [vmem:[%s1] sm:$0xff]
      %v481 = vld [vmem:[%s1 + $0x8] sm:$0xff]
      %v482 = vld [vmem:[%s1 + $0x10] sm:$0xff]
      %v483 = vld [vmem:[%s1 + $0x18] sm:$0xff]
      %v484 = vld [vmem:[%s1 + $0x20] sm:$0xff]
      %v485 = vld [vmem:[%s1 + $0x28] sm:$0xff]
      %v486 = vld [vmem:[%s1 + $0x30] sm:$0xff]
      %v487 = vld [vmem:[%s1 + $0x38] sm:$0xff]
      %v488 = vld [vmem:[%s1 + $0x40] sm:$0xff]
      %v489 = vld [vmem:[%s1 + $0x48] sm:$0xff]
      %v490 = vld [vmem:[%s1 + $0x50] sm:$0xff]
      %v491 = vld [vmem:[%s1 + $0x58] sm:$0xff]
      %v492 = vld [vmem:[%s1 + $0x60] sm:$0xff]
      %v493 = vld [vmem:[%s1 + $0x68] sm:$0xff]
      %v494 = vld [vmem:[%s1 + $0x70] sm:$0xff]
      %v495 = vld [vmem:[%s1 + $0x78] sm:$0xff]
      %v496 = vld [vmem:[%s1 + $0x80] sm:$0xff]
      %v497 = vld [vmem:[%s1 + $0x88] sm:$0xff]
      %v498 = vld [vmem:[%s1 + $0x90] sm:$0xff]
      %v499 = vld [vmem:[%s1 + $0x98] sm:$0xff]
      %v500 = vld [vmem:[%s1 + $0xa0] sm:$0xff]
      %v501 = vld [vmem:[%s1 + $0xa8] sm:$0xff]
      %v502 = vld [vmem:[%s1 + $0xb0] sm:$0xff]
      %v503 = vld [vmem:[%s1 + $0xb8] sm:$0xff]
      %v504 = vld [vmem:[%s1 + $0xc0] sm:$0xff]
      %v505 = vld [vmem:[%s1 + $0xc8] sm:$0xff]
      %v506 = vld [vmem:[%s1 + $0xd0] sm:$0xff]
      %v507 = vld [vmem:[%s1 + $0xd8] sm:$0xff]
      %v508 = vld [vmem:[%s1 + $0xe0] sm:$0xff]
      %v509 = vld [vmem:[%s1 + $0xe8] sm:$0xff]
      %v510 = vld [vmem:[%s1 + $0xf0] sm:$0xff]
      %v511 = vld [vmem:[%s1 + $0xf8] sm:$0xff]
      %v512 = vld [vmem:[%s1 + $0x100] sm:$0xff]
      %v513 = vld [vmem:[%s1 + $0x108] sm:$0xff]
      %v514 = vld [vmem:[%s1 + $0x110] sm:$0xff]
      %v515 = vld [vmem:[%s1 + $0x118] sm:$0xff]
      %v516 = vld [vmem:[%s1 + $0x120] sm:$0xff]
      %v517 = vld [vmem:[%s1 + $0x128] sm:$0xff]
      %v518 = vld [vmem:[%s1 + $0x130] sm:$0xff]
      %v519 = vld [vmem:[%s1 + $0x138] sm:$0xff]
      %v520 = vld [vmem:[%s1 + $0x140] sm:$0xff]
      %v521 = vld [vmem:[%s1 + $0x148] sm:$0xff]
      %v522 = vld [vmem:[%s1 + $0x150] sm:$0xff]
      %v523 = vld [vmem:[%s1 + $0x158] sm:$0xff]
      %v524 = vld [vmem:[%s1 + $0x160] sm:$0xff]
      %v570 = vunpack.c.l.b16 %v480
      %v571 = vunpack.c.h.b16 %v480
      %v572 = vunpack.c.l.b16 %v481
      %v573 = vunpack.c.h.b16 %v481
      %v574 = vunpack.c.l.b16 %v482
      %v575 = vunpack.c.h.b16 %v482
      %v576 = vunpack.c.l.b16 %v483
      %v577 = vunpack.c.h.b16 %v483
      %v578 = vunpack.c.l.b16 %v484
      %v579 = vunpack.c.h.b16 %v484
      %v580 = vunpack.c.l.b16 %v485
      %v581 = vunpack.c.h.b16 %v485
      %v582 = vunpack.c.l.b16 %v486
      %v583 = vunpack.c.h.b16 %v486
      %v584 = vunpack.c.l.b16 %v487
      %v585 = vunpack.c.h.b16 %v487
      %v586 = vunpack.c.l.b16 %v488
      %v587 = vunpack.c.h.b16 %v488
      %v588 = vunpack.c.l.b16 %v489
      %v589 = vunpack.c.h.b16 %v489
      %v590 = vunpack.c.l.b16 %v490
      %v591 = vunpack.c.h.b16 %v490
      %v592 = vunpack.c.l.b16 %v491
      %v593 = vunpack.c.h.b16 %v491
      %v594 = vunpack.c.l.b16 %v492
      %v595 = vunpack.c.h.b16 %v492
      %v596 = vunpack.c.l.b16 %v493
      %v597 = vunpack.c.h.b16 %v493
      %v598 = vunpack.c.l.b16 %v494
      %v599 = vunpack.c.h.b16 %v494
      %v600 = vunpack.c.l.b16 %v495
      %v601 = vunpack.c.h.b16 %v495
      %v602 = vunpack.c.l.b16 %v496
      %v603 = vunpack.c.h.b16 %v496
      %v604 = vunpack.c.l.b16 %v497
      %v605 = vunpack.c.h.b16 %v497
      %v606 = vunpack.c.l.b16 %v498
      %v607 = vunpack.c.h.b16 %v498
      %v608 = vunpack.c.l.b16 %v499
      %v609 = vunpack.c.h.b16 %v499
      %v610 = vunpack.c.l.b16 %v500
      %v611 = vunpack.c.h.b16 %v500
      %v612 = vunpack.c.l.b16 %v501
      %v613 = vunpack.c.h.b16 %v501
      %v614 = vunpack.c.l.b16 %v502
      %v615 = vunpack.c.h.b16 %v502
      %v616 = vunpack.c.l.b16 %v503
      %v617 = vunpack.c.h.b16 %v503
      %v618 = vunpack.c.l.b16 %v504
      %v619 = vunpack.c.h.b16 %v504
      %v620 = vunpack.c.l.b16 %v505
      %v621 = vunpack.c.h.b16 %v505
      %v622 = vunpack.c.l.b16 %v506
      %v623 = vunpack.c.h.b16 %v506
      %v624 = vunpack.c.l.b16 %v507
      %v625 = vunpack.c.h.b16 %v507
      %v626 = vunpack.c.l.b16 %v508
      %v627 = vunpack.c.h.b16 %v508
      %v628 = vunpack.c.l.b16 %v509
      %v629 = vunpack.c.h.b16 %v509
      %v630 = vunpack.c.l.b16 %v510
      %v631 = vunpack.c.h.b16 %v510
      %v632 = vunpack.c.l.b16 %v511
      %v633 = vunpack.c.h.b16 %v511
      %v634 = vunpack.c.l.b16 %v512
      %v635 = vunpack.c.h.b16 %v512
      %v636 = vunpack.c.l.b16 %v513
      %v637 = vunpack.c.h.b16 %v513
      %v638 = vunpack.c.l.b16 %v514
      %v639 = vunpack.c.h.b16 %v514
      %v640 = vunpack.c.l.b16 %v515
      %v641 = vunpack.c.h.b16 %v515
      %v642 = vunpack.c.l.b16 %v516
      %v643 = vunpack.c.h.b16 %v516
      %v644 = vunpack.c.l.b16 %v517
      %v645 = vunpack.c.h.b16 %v517
      %v646 = vunpack.c.l.b16 %v518
      %v647 = vunpack.c.h.b16 %v518
      %v648 = vunpack.c.l.b16 %v519
      %v649 = vunpack.c.h.b16 %v519
      %v650 = vunpack.c.l.b16 %v520
      %v651 = vunpack.c.h.b16 %v520
      %v652 = vunpack.c.l.b16 %v521
      %v653 = vunpack.c.h.b16 %v521
      %v654 = vunpack.c.l.b16 %v522
      %v655 = vunpack.c.h.b16 %v522
      %v656 = vunpack.c.l.b16 %v523
      %v657 = vunpack.c.h.b16 %v523
      %v658 = vunpack.c.l.b16 %v524
      %v659 = vunpack.c.h.b16 %v524
      %v660 = vpack.c.b16 %v572, %v570
      %v661 = vpack.c.b16 %v573, %v571
      %v662 = vpack.c.b16 %v576, %v574
      %v663 = vpack.c.b16 %v577, %v575
      %v664 = vpack.c.b16 %v580, %v578
      %v665 = vpack.c.b16 %v581, %v579
      %v666 = vpack.c.b16 %v584, %v582
      %v667 = vpack.c.b16 %v585, %v583
      %v668 = vpack.c.b16 %v588, %v586
      %v669 = vpack.c.b16 %v589, %v587
      %v670 = vpack.c.b16 %v592, %v590
      %v671 = vpack.c.b16 %v593, %v591
      %v672 = vpack.c.b16 %v596, %v594
      %v673 = vpack.c.b16 %v597, %v595
      %v674 = vpack.c.b16 %v600, %v598
      %v675 = vpack.c.b16 %v601, %v599
      %v676 = vpack.c.b16 %v604, %v602
      %v677 = vpack.c.b16 %v605, %v603
      %v678 = vpack.c.b16 %v608, %v606
      %v679 = vpack.c.b16 %v609, %v607
      %v680 = vpack.c.b16 %v612, %v610
      %v681 = vpack.c.b16 %v613, %v611
      %v682 = vpack.c.b16 %v616, %v614
      %v683 = vpack.c.b16 %v617, %v615
      %v684 = vpack.c.b16 %v620, %v618
      %v685 = vpack.c.b16 %v621, %v619
      %v686 = vpack.c.b16 %v624, %v622
      %v687 = vpack.c.b16 %v625, %v623
      %v688 = vpack.c.b16 %v628, %v626
      %v689 = vpack.c.b16 %v629, %v627
      %v690 = vpack.c.b16 %v632, %v630
      %v691 = vpack.c.b16 %v633, %v631
      %v692 = vpack.c.b16 %v636, %v634
      %v693 = vpack.c.b16 %v637, %v635
      %v694 = vpack.c.b16 %v640, %v638
      %v695 = vpack.c.b16 %v641, %v639
      %v696 = vpack.c.b16 %v644, %v642
      %v697 = vpack.c.b16 %v645, %v643
      %v698 = vpack.c.b16 %v648, %v646
      %v699 = vpack.c.b16 %v649, %v647
      %v700 = vpack.c.b16 %v652, %v650
      %v701 = vpack.c.b16 %v653, %v651
      %v702 = vpack.c.b16 %v656, %v654
      %v703 = vpack.c.b16 %v657, %v655
      %v704 = vpack.c.b16 %v658, %v658
      %v705 = vpack.c.b16 %v659, %v659
      %vm729 = vcmask 130048
      %v731 = vsel %vm729, %v661, 0
      %v734 = vsel %vm729, %v663, 0
      %v737 = vsel %vm729, %v665, 0
      %v740 = vsel %vm729, %v667, 0
      %v743 = vsel %vm729, %v669, 0
      %v746 = vsel %vm729, %v671, 0
      %v749 = vsel %vm729, %v673, 0
      %v752 = vsel %vm729, %v675, 0
      %v755 = vsel %vm729, %v677, 0
      %v758 = vsel %vm729, %v679, 0
      %v761 = vsel %vm729, %v681, 0
      %v764 = vsel %vm729, %v683, 0
      %v767 = vsel %vm729, %v685, 0
      %v770 = vsel %vm729, %v687, 0
      %v773 = vsel %vm729, %v689, 0
      %v776 = vsel %vm729, %v691, 0
      %v779 = vsel %vm729, %v693, 0
      %v782 = vsel %vm729, %v695, 0
      %v785 = vsel %vm729, %v697, 0
      %v788 = vsel %vm729, %v699, 0
      %v791 = vsel %vm729, %v701, 0
      %v794 = vsel %vm729, %v703, 0
      %v797 = vsel %vm729, %v705, 0
      %799 = vmatpush.bf16.msra.mxu0 %v467
      %800 = vmatpush.bf16.msra.mxu0 %v465
      %801 = vmatpush.bf16.msra.mxu0 %v435
      %802 = vmatpush.bf16.msra.mxu0 %v433
      %803 = vmatpush.bf16.msra.mxu0 %v431
      %804 = vmatpush.bf16.msra.mxu0 %v400
      %805 = vmatpush.bf16.msra.mxu0 %v397
      %806 = vmatpush.bf16.msra.mxu0 %v394
      %807 = vmatmul.bf16.gmra.mxu0 %v660
      %v808 = vpop.f32.mrf.mxu0
      %v809 = vadd.f32 0.0, %v808
      %v810 = vpop.f32.mrf.mxu0
      %v811 = vadd.f32 0.0, %v810
      %812 = vmatmul.bf16.gmra.mxu0 %v662
      %v813 = vpop.f32.mrf.mxu0
      %v814 = vadd.f32 0.0, %v813
      %v815 = vpop.f32.mrf.mxu0
      %v816 = vadd.f32 0.0, %v815
      %817 = vmatmul.bf16.gmra.mxu0 %v664
      %v818 = vpop.f32.mrf.mxu0
      %v819 = vadd.f32 0.0, %v818
      %v820 = vpop.f32.mrf.mxu0
      %v821 = vadd.f32 0.0, %v820
      %822 = vmatmul.bf16.gmra.mxu0 %v666
      %v823 = vpop.f32.mrf.mxu0
      %v824 = vadd.f32 0.0, %v823
      %v825 = vpop.f32.mrf.mxu0
      %v826 = vadd.f32 0.0, %v825
      %827 = vmatmul.bf16.gmra.mxu0 %v668
      %v828 = vpop.f32.mrf.mxu0
      %v829 = vadd.f32 0.0, %v828
      %v830 = vpop.f32.mrf.mxu0
      %v831 = vadd.f32 0.0, %v830
      %832 = vmatmul.bf16.gmra.mxu0 %v670
      %v833 = vpop.f32.mrf.mxu0
      %v834 = vadd.f32 0.0, %v833
      %v835 = vpop.f32.mrf.mxu0
      %v836 = vadd.f32 0.0, %v835
      %837 = vmatmul.bf16.gmra.mxu0 %v672
      %v838 = vpop.f32.mrf.mxu0
      %v839 = vadd.f32 0.0, %v838
      %v840 = vpop.f32.mrf.mxu0
      %v841 = vadd.f32 0.0, %v840
      %842 = vmatmul.bf16.gmra.mxu0 %v674
      %v843 = vpop.f32.mrf.mxu0
      %v844 = vadd.f32 0.0, %v843
      %v845 = vpop.f32.mrf.mxu0
      %v846 = vadd.f32 0.0, %v845
      %847 = vmatmul.bf16.gmra.mxu0 %v676
      %v848 = vpop.f32.mrf.mxu0
      %v849 = vadd.f32 0.0, %v848
      %v850 = vpop.f32.mrf.mxu0
      %v851 = vadd.f32 0.0, %v850
      %852 = vmatmul.bf16.gmra.mxu0 %v678
      %v853 = vpop.f32.mrf.mxu0
      %v854 = vadd.f32 0.0, %v853
      %v855 = vpop.f32.mrf.mxu0
      %v856 = vadd.f32 0.0, %v855
      %857 = vmatmul.bf16.gmra.mxu0 %v680
      %v858 = vpop.f32.mrf.mxu0
      %v859 = vadd.f32 0.0, %v858
      %v860 = vpop.f32.mrf.mxu0
      %v861 = vadd.f32 0.0, %v860
      %862 = vmatmul.bf16.gmra.mxu0 %v682
      %v863 = vpop.f32.mrf.mxu0
      %v864 = vadd.f32 0.0, %v863
      %v865 = vpop.f32.mrf.mxu0
      %v866 = vadd.f32 0.0, %v865
      %867 = vmatmul.bf16.gmra.mxu0 %v684
      %v868 = vpop.f32.mrf.mxu0
      %v869 = vadd.f32 0.0, %v868
      %v870 = vpop.f32.mrf.mxu0
      %v871 = vadd.f32 0.0, %v870
      %872 = vmatmul.bf16.gmra.mxu0 %v686
      %v873 = vpop.f32.mrf.mxu0
      %v874 = vadd.f32 0.0, %v873
      %v875 = vpop.f32.mrf.mxu0
      %v876 = vadd.f32 0.0, %v875
      %877 = vmatmul.bf16.gmra.mxu0 %v688
      %v878 = vpop.f32.mrf.mxu0
      %v879 = vadd.f32 0.0, %v878
      %v880 = vpop.f32.mrf.mxu0
      %v881 = vadd.f32 0.0, %v880
      %882 = vmatmul.bf16.gmra.mxu0 %v690
      %v883 = vpop.f32.mrf.mxu0
      %v884 = vadd.f32 0.0, %v883
      %v885 = vpop.f32.mrf.mxu0
      %v886 = vadd.f32 0.0, %v885
      %887 = vmatmul.bf16.gmra.mxu0 %v692
      %v888 = vpop.f32.mrf.mxu0
      %v889 = vadd.f32 0.0, %v888
      %v890 = vpop.f32.mrf.mxu0
      %v891 = vadd.f32 0.0, %v890
      %892 = vmatmul.bf16.gmra.mxu0 %v694
      %v893 = vpop.f32.mrf.mxu0
      %v894 = vadd.f32 0.0, %v893
      %v895 = vpop.f32.mrf.mxu0
      %v896 = vadd.f32 0.0, %v895
      %897 = vmatmul.bf16.gmra.mxu0 %v696
      %v898 = vpop.f32.mrf.mxu0
      %v899 = vadd.f32 0.0, %v898
      %v900 = vpop.f32.mrf.mxu0
      %v901 = vadd.f32 0.0, %v900
      %902 = vmatmul.bf16.gmra.mxu0 %v698
      %v903 = vpop.f32.mrf.mxu0
      %v904 = vadd.f32 0.0, %v903
      %v905 = vpop.f32.mrf.mxu0
      %v906 = vadd.f32 0.0, %v905
      %907 = vmatmul.bf16.gmra.mxu0 %v700
      %v908 = vpop.f32.mrf.mxu0
      %v909 = vadd.f32 0.0, %v908
      %v910 = vpop.f32.mrf.mxu0
      %v911 = vadd.f32 0.0, %v910
      %912 = vmatmul.bf16.gmra.mxu0 %v702
      %v913 = vpop.f32.mrf.mxu0
      %v914 = vadd.f32 0.0, %v913
      %v915 = vpop.f32.mrf.mxu0
      %v916 = vadd.f32 0.0, %v915
      %917 = vmatmul.bf16.gmra.mxu0 %v704
      %v918 = vpop.f32.mrf.mxu0
      %v919 = vpop.f32.mrf.mxu0
      %920 = vdwg.mxu0
      %921 = vmatpush.bf16.msra.mxu0 0
      %922 = vmatpush.bf16.msra.mxu0 0
      %923 = vmatpush.bf16.msra.mxu0 0
      %924 = vmatpush.bf16.msra.mxu0 0
      %925 = vmatpush.bf16.msra.mxu0 0
      %926 = vmatpush.bf16.msra.mxu0 0
      %927 = vmatpush.bf16.msra.mxu0 0
      %928 = vmatpush.bf16.msra.mxu0 %v469
      %929 = vmatmul.bf16.gmra.mxu0 %v731
      %v930 = vpop.f32.mrf.mxu0
      %v931 = vadd.f32 %v809, %v930
      %v932 = vpop.f32.mrf.mxu0
      %v933 = vadd.f32 %v811, %v932
      %934 = vmatmul.bf16.gmra.mxu0 %v734
      %v935 = vpop.f32.mrf.mxu0
      %v936 = vadd.f32 %v814, %v935
      %v937 = vpop.f32.mrf.mxu0
      %v938 = vadd.f32 %v816, %v937
      %939 = vmatmul.bf16.gmra.mxu0 %v737
      %v940 = vpop.f32.mrf.mxu0
      %v941 = vadd.f32 %v819, %v940
      %v942 = vpop.f32.mrf.mxu0
      %v943 = vadd.f32 %v821, %v942
      %944 = vmatmul.bf16.gmra.mxu0 %v740
      %v945 = vpop.f32.mrf.mxu0
      %v946 = vadd.f32 %v824, %v945
      %v947 = vpop.f32.mrf.mxu0
      %v948 = vadd.f32 %v826, %v947
      %949 = vmatmul.bf16.gmra.mxu0 %v743
      %v950 = vpop.f32.mrf.mxu0
      %v951 = vadd.f32 %v829, %v950
      %v952 = vpop.f32.mrf.mxu0
      %v953 = vadd.f32 %v831, %v952
      %954 = vmatmul.bf16.gmra.mxu0 %v746
      %v955 = vpop.f32.mrf.mxu0
      %v956 = vadd.f32 %v834, %v955
      %v957 = vpop.f32.mrf.mxu0
      %v958 = vadd.f32 %v836, %v957
      %959 = vmatmul.bf16.gmra.mxu0 %v749
      %v960 = vpop.f32.mrf.mxu0
      %v961 = vadd.f32 %v839, %v960
      %v962 = vpop.f32.mrf.mxu0
      %v963 = vadd.f32 %v841, %v962
      %964 = vmatmul.bf16.gmra.mxu0 %v752
      %v965 = vpop.f32.mrf.mxu0
      %v966 = vadd.f32 %v844, %v965
      %v967 = vpop.f32.mrf.mxu0
      %v968 = vadd.f32 %v846, %v967
      %969 = vmatmul.bf16.gmra.mxu0 %v755
      %v970 = vpop.f32.mrf.mxu0
      %v971 = vadd.f32 %v849, %v970
      %v972 = vpop.f32.mrf.mxu0
      %v973 = vadd.f32 %v851, %v972
      %974 = vmatmul.bf16.gmra.mxu0 %v758
      %v975 = vpop.f32.mrf.mxu0
      %v976 = vadd.f32 %v854, %v975
      %v977 = vpop.f32.mrf.mxu0
      %v978 = vadd.f32 %v856, %v977
      %979 = vmatmul.bf16.gmra.mxu0 %v761
      %v980 = vpop.f32.mrf.mxu0
      %v981 = vadd.f32 %v859, %v980
      %v982 = vpop.f32.mrf.mxu0
      %v983 = vadd.f32 %v861, %v982
      %984 = vmatmul.bf16.gmra.mxu0 %v764
      %v985 = vpop.f32.mrf.mxu0
      %v986 = vadd.f32 %v864, %v985
      %v987 = vpop.f32.mrf.mxu0
      %v988 = vadd.f32 %v866, %v987
      %989 = vmatmul.bf16.gmra.mxu0 %v767
      %v990 = vpop.f32.mrf.mxu0
      %v991 = vadd.f32 %v869, %v990
      %v992 = vpop.f32.mrf.mxu0
      %v993 = vadd.f32 %v871, %v992
      %994 = vmatmul.bf16.gmra.mxu0 %v770
      %v995 = vpop.f32.mrf.mxu0
      %v996 = vadd.f32 %v874, %v995
      %v997 = vpop.f32.mrf.mxu0
      %v998 = vadd.f32 %v876, %v997
      %999 = vmatmul.bf16.gmra.mxu0 %v773
      %v1000 = vpop.f32.mrf.mxu0
      %v1001 = vadd.f32 %v879, %v1000
      %v1002 = vpop.f32.mrf.mxu0
      %v1003 = vadd.f32 %v881, %v1002
      %1004 = vmatmul.bf16.gmra.mxu0 %v776
      %v1005 = vpop.f32.mrf.mxu0
      %v1006 = vadd.f32 %v884, %v1005
      %v1007 = vpop.f32.mrf.mxu0
      %v1008 = vadd.f32 %v886, %v1007
      %1009 = vmatmul.bf16.gmra.mxu0 %v779
      %v1010 = vpop.f32.mrf.mxu0
      %v1011 = vadd.f32 %v889, %v1010
      %v1012 = vpop.f32.mrf.mxu0
      %v1013 = vadd.f32 %v891, %v1012
      %1014 = vmatmul.bf16.gmra.mxu0 %v782
      %v1015 = vpop.f32.mrf.mxu0
      %v1016 = vadd.f32 %v894, %v1015
      %v1017 = vpop.f32.mrf.mxu0
      %v1018 = vadd.f32 %v896, %v1017
      %1019 = vmatmul.bf16.gmra.mxu0 %v785
      %v1020 = vpop.f32.mrf.mxu0
      %v1021 = vadd.f32 %v899, %v1020
      %v1022 = vpop.f32.mrf.mxu0
      %v1023 = vadd.f32 %v901, %v1022
      %1024 = vmatmul.bf16.gmra.mxu0 %v788
      %v1025 = vpop.f32.mrf.mxu0
      %v1026 = vadd.f32 %v904, %v1025
      %v1027 = vpop.f32.mrf.mxu0
      %v1028 = vadd.f32 %v906, %v1027
      %1029 = vmatmul.bf16.gmra.mxu0 %v791
      %v1030 = vpop.f32.mrf.mxu0
      %v1031 = vadd.f32 %v909, %v1030
      %v1032 = vpop.f32.mrf.mxu0
      %v1033 = vadd.f32 %v911, %v1032
      %1034 = vmatmul.bf16.gmra.mxu0 %v794
      %v1035 = vpop.f32.mrf.mxu0
      %v1036 = vadd.f32 %v914, %v1035
      %v1037 = vpop.f32.mrf.mxu0
      %v1038 = vadd.f32 %v916, %v1037
      %1039 = vmatmul.bf16.gmra.mxu0 %v797
      %v1040 = vpop.f32.mrf.mxu0
      %v1041 = vpop.f32.mrf.mxu0
      %1042 = vdwg.mxu0
      %1043 = vmatpush.bf16.msra.mxu0 %v468
      %1044 = vmatpush.bf16.msra.mxu0 %v466
      %1045 = vmatpush.bf16.msra.mxu0 %v436
      %1046 = vmatpush.bf16.msra.mxu0 %v434
      %1047 = vmatpush.bf16.msra.mxu0 %v432
      %1048 = vmatpush.bf16.msra.mxu0 %v401
      %1049 = vmatpush.bf16.msra.mxu0 %v398
      %1050 = vmatpush.bf16.msra.mxu0 %v395
      %1051 = vmatmul.bf16.gmra.mxu0 %v660
      %v1052 = vpop.f32.mrf.mxu0
      %v1053 = vadd.f32 0.0, %v1052
      %v1054 = vpop.f32.mrf.mxu0
      %v1055 = vadd.f32 0.0, %v1054
      %1056 = vmatmul.bf16.gmra.mxu0 %v662
      %v1057 = vpop.f32.mrf.mxu0
      %v1058 = vadd.f32 0.0, %v1057
      %v1059 = vpop.f32.mrf.mxu0
      %v1060 = vadd.f32 0.0, %v1059
      %1061 = vmatmul.bf16.gmra.mxu0 %v664
      %v1062 = vpop.f32.mrf.mxu0
      %v1063 = vadd.f32 0.0, %v1062
      %v1064 = vpop.f32.mrf.mxu0
      %v1065 = vadd.f32 0.0, %v1064
      %1066 = vmatmul.bf16.gmra.mxu0 %v666
      %v1067 = vpop.f32.mrf.mxu0
      %v1068 = vadd.f32 0.0, %v1067
      %v1069 = vpop.f32.mrf.mxu0
      %v1070 = vadd.f32 0.0, %v1069
      %1071 = vmatmul.bf16.gmra.mxu0 %v668
      %v1072 = vpop.f32.mrf.mxu0
      %v1073 = vadd.f32 0.0, %v1072
      %v1074 = vpop.f32.mrf.mxu0
      %v1075 = vadd.f32 0.0, %v1074
      %1076 = vmatmul.bf16.gmra.mxu0 %v670
      %v1077 = vpop.f32.mrf.mxu0
      %v1078 = vadd.f32 0.0, %v1077
      %v1079 = vpop.f32.mrf.mxu0
      %v1080 = vadd.f32 0.0, %v1079
      %1081 = vmatmul.bf16.gmra.mxu0 %v672
      %v1082 = vpop.f32.mrf.mxu0
      %v1083 = vadd.f32 0.0, %v1082
      %v1084 = vpop.f32.mrf.mxu0
      %v1085 = vadd.f32 0.0, %v1084
      %1086 = vmatmul.bf16.gmra.mxu0 %v674
      %v1087 = vpop.f32.mrf.mxu0
      %v1088 = vadd.f32 0.0, %v1087
      %v1089 = vpop.f32.mrf.mxu0
      %v1090 = vadd.f32 0.0, %v1089
      %1091 = vmatmul.bf16.gmra.mxu0 %v676
      %v1092 = vpop.f32.mrf.mxu0
      %v1093 = vadd.f32 0.0, %v1092
      %v1094 = vpop.f32.mrf.mxu0
      %v1095 = vadd.f32 0.0, %v1094
      %1096 = vmatmul.bf16.gmra.mxu0 %v678
      %v1097 = vpop.f32.mrf.mxu0
      %v1098 = vadd.f32 0.0, %v1097
      %v1099 = vpop.f32.mrf.mxu0
      %v1100 = vadd.f32 0.0, %v1099
      %1101 = vmatmul.bf16.gmra.mxu0 %v680
      %v1102 = vpop.f32.mrf.mxu0
      %v1103 = vadd.f32 0.0, %v1102
      %v1104 = vpop.f32.mrf.mxu0
      %v1105 = vadd.f32 0.0, %v1104
      %1106 = vmatmul.bf16.gmra.mxu0 %v682
      %v1107 = vpop.f32.mrf.mxu0
      %v1108 = vadd.f32 0.0, %v1107
      %v1109 = vpop.f32.mrf.mxu0
      %v1110 = vadd.f32 0.0, %v1109
      %1111 = vmatmul.bf16.gmra.mxu0 %v684
      %v1112 = vpop.f32.mrf.mxu0
      %v1113 = vadd.f32 0.0, %v1112
      %v1114 = vpop.f32.mrf.mxu0
      %v1115 = vadd.f32 0.0, %v1114
      %1116 = vmatmul.bf16.gmra.mxu0 %v686
      %v1117 = vpop.f32.mrf.mxu0
      %v1118 = vadd.f32 0.0, %v1117
      %v1119 = vpop.f32.mrf.mxu0
      %v1120 = vadd.f32 0.0, %v1119
      %1121 = vmatmul.bf16.gmra.mxu0 %v688
      %v1122 = vpop.f32.mrf.mxu0
      %v1123 = vadd.f32 0.0, %v1122
      %v1124 = vpop.f32.mrf.mxu0
      %v1125 = vadd.f32 0.0, %v1124
      %1126 = vmatmul.bf16.gmra.mxu0 %v690
      %v1127 = vpop.f32.mrf.mxu0
      %v1128 = vadd.f32 0.0, %v1127
      %v1129 = vpop.f32.mrf.mxu0
      %v1130 = vadd.f32 0.0, %v1129
      %1131 = vmatmul.bf16.gmra.mxu0 %v692
      %v1132 = vpop.f32.mrf.mxu0
      %v1133 = vadd.f32 0.0, %v1132
      %v1134 = vpop.f32.mrf.mxu0
      %v1135 = vadd.f32 0.0, %v1134
      %1136 = vmatmul.bf16.gmra.mxu0 %v694
      %v1137 = vpop.f32.mrf.mxu0
      %v1138 = vadd.f32 0.0, %v1137
      %v1139 = vpop.f32.mrf.mxu0
      %v1140 = vadd.f32 0.0, %v1139
      %1141 = vmatmul.bf16.gmra.mxu0 %v696
      %v1142 = vpop.f32.mrf.mxu0
      %v1143 = vadd.f32 0.0, %v1142
      %v1144 = vpop.f32.mrf.mxu0
      %v1145 = vadd.f32 0.0, %v1144
      %1146 = vmatmul.bf16.gmra.mxu0 %v698
      %v1147 = vpop.f32.mrf.mxu0
      %v1148 = vadd.f32 0.0, %v1147
      %v1149 = vpop.f32.mrf.mxu0
      %v1150 = vadd.f32 0.0, %v1149
      %1151 = vmatmul.bf16.gmra.mxu0 %v700
      %v1152 = vpop.f32.mrf.mxu0
      %v1153 = vadd.f32 0.0, %v1152
      %v1154 = vpop.f32.mrf.mxu0
      %v1155 = vadd.f32 0.0, %v1154
      %1156 = vmatmul.bf16.gmra.mxu0 %v702
      %v1157 = vpop.f32.mrf.mxu0
      %v1158 = vadd.f32 0.0, %v1157
      %v1159 = vpop.f32.mrf.mxu0
      %v1160 = vadd.f32 0.0, %v1159
      %1161 = vmatmul.bf16.gmra.mxu0 %v704
      %v1162 = vpop.f32.mrf.mxu0
      %v1163 = vpop.f32.mrf.mxu0
      %1164 = vdwg.mxu0
      %1165 = vmatpush.bf16.msra.mxu0 0
      %1166 = vmatpush.bf16.msra.mxu0 0
      %1167 = vmatpush.bf16.msra.mxu0 0
      %1168 = vmatpush.bf16.msra.mxu0 0
      %1169 = vmatpush.bf16.msra.mxu0 0
      %1170 = vmatpush.bf16.msra.mxu0 0
      %1171 = vmatpush.bf16.msra.mxu0 0
      %1172 = vmatpush.bf16.msra.mxu0 %v470
      %1173 = vmatmul.bf16.gmra.mxu0 %v731
      %v1174 = vpop.f32.mrf.mxu0
      %v1175 = vadd.f32 %v1053, %v1174
      %v1176 = vpop.f32.mrf.mxu0
      %v1177 = vadd.f32 %v1055, %v1176
      %1178 = vmatmul.bf16.gmra.mxu0 %v734
      %v1179 = vpop.f32.mrf.mxu0
      %v1180 = vadd.f32 %v1058, %v1179
      %v1181 = vpop.f32.mrf.mxu0
      %v1182 = vadd.f32 %v1060, %v1181
      %1183 = vmatmul.bf16.gmra.mxu0 %v737
      %v1184 = vpop.f32.mrf.mxu0
      %v1185 = vadd.f32 %v1063, %v1184
      %v1186 = vpop.f32.mrf.mxu0
      %v1187 = vadd.f32 %v1065, %v1186
      %1188 = vmatmul.bf16.gmra.mxu0 %v740
      %v1189 = vpop.f32.mrf.mxu0
      %v1190 = vadd.f32 %v1068, %v1189
      %v1191 = vpop.f32.mrf.mxu0
      %v1192 = vadd.f32 %v1070, %v1191
      %1193 = vmatmul.bf16.gmra.mxu0 %v743
      %v1194 = vpop.f32.mrf.mxu0
      %v1195 = vadd.f32 %v1073, %v1194
      %v1196 = vpop.f32.mrf.mxu0
      %v1197 = vadd.f32 %v1075, %v1196
      %1198 = vmatmul.bf16.gmra.mxu0 %v746
      %v1199 = vpop.f32.mrf.mxu0
      %v1200 = vadd.f32 %v1078, %v1199
      %v1201 = vpop.f32.mrf.mxu0
      %v1202 = vadd.f32 %v1080, %v1201
      %1203 = vmatmul.bf16.gmra.mxu0 %v749
      %v1204 = vpop.f32.mrf.mxu0
      %v1205 = vadd.f32 %v1083, %v1204
      %v1206 = vpop.f32.mrf.mxu0
      %v1207 = vadd.f32 %v1085, %v1206
      %1208 = vmatmul.bf16.gmra.mxu0 %v752
      %v1209 = vpop.f32.mrf.mxu0
      %v1210 = vadd.f32 %v1088, %v1209
      %v1211 = vpop.f32.mrf.mxu0
      %v1212 = vadd.f32 %v1090, %v1211
      %1213 = vmatmul.bf16.gmra.mxu0 %v755
      %v1214 = vpop.f32.mrf.mxu0
      %v1215 = vadd.f32 %v1093, %v1214
      %v1216 = vpop.f32.mrf.mxu0
      %v1217 = vadd.f32 %v1095, %v1216
      %1218 = vmatmul.bf16.gmra.mxu0 %v758
      %v1219 = vpop.f32.mrf.mxu0
      %v1220 = vadd.f32 %v1098, %v1219
      %v1221 = vpop.f32.mrf.mxu0
      %v1222 = vadd.f32 %v1100, %v1221
      %1223 = vmatmul.bf16.gmra.mxu0 %v761
      %v1224 = vpop.f32.mrf.mxu0
      %v1225 = vadd.f32 %v1103, %v1224
      %v1226 = vpop.f32.mrf.mxu0
      %v1227 = vadd.f32 %v1105, %v1226
      %1228 = vmatmul.bf16.gmra.mxu0 %v764
      %v1229 = vpop.f32.mrf.mxu0
      %v1230 = vadd.f32 %v1108, %v1229
      %v1231 = vpop.f32.mrf.mxu0
      %v1232 = vadd.f32 %v1110, %v1231
      %1233 = vmatmul.bf16.gmra.mxu0 %v767
      %v1234 = vpop.f32.mrf.mxu0
      %v1235 = vadd.f32 %v1113, %v1234
      %v1236 = vpop.f32.mrf.mxu0
      %v1237 = vadd.f32 %v1115, %v1236
      %1238 = vmatmul.bf16.gmra.mxu0 %v770
      %v1239 = vpop.f32.mrf.mxu0
      %v1240 = vadd.f32 %v1118, %v1239
      %v1241 = vpop.f32.mrf.mxu0
      %v1242 = vadd.f32 %v1120, %v1241
      %1243 = vmatmul.bf16.gmra.mxu0 %v773
      %v1244 = vpop.f32.mrf.mxu0
      %v1245 = vadd.f32 %v1123, %v1244
      %v1246 = vpop.f32.mrf.mxu0
      %v1247 = vadd.f32 %v1125, %v1246
      %1248 = vmatmul.bf16.gmra.mxu0 %v776
      %v1249 = vpop.f32.mrf.mxu0
      %v1250 = vadd.f32 %v1128, %v1249
      %v1251 = vpop.f32.mrf.mxu0
      %v1252 = vadd.f32 %v1130, %v1251
      %1253 = vmatmul.bf16.gmra.mxu0 %v779
      %v1254 = vpop.f32.mrf.mxu0
      %v1255 = vadd.f32 %v1133, %v1254
      %v1256 = vpop.f32.mrf.mxu0
      %v1257 = vadd.f32 %v1135, %v1256
      %1258 = vmatmul.bf16.gmra.mxu0 %v782
      %v1259 = vpop.f32.mrf.mxu0
      %v1260 = vadd.f32 %v1138, %v1259
      %v1261 = vpop.f32.mrf.mxu0
      %v1262 = vadd.f32 %v1140, %v1261
      %1263 = vmatmul.bf16.gmra.mxu0 %v785
      %v1264 = vpop.f32.mrf.mxu0
      %v1265 = vadd.f32 %v1143, %v1264
      %v1266 = vpop.f32.mrf.mxu0
      %v1267 = vadd.f32 %v1145, %v1266
      %1268 = vmatmul.bf16.gmra.mxu0 %v788
      %v1269 = vpop.f32.mrf.mxu0
      %v1270 = vadd.f32 %v1148, %v1269
      %v1271 = vpop.f32.mrf.mxu0
      %v1272 = vadd.f32 %v1150, %v1271
      %1273 = vmatmul.bf16.gmra.mxu0 %v791
      %v1274 = vpop.f32.mrf.mxu0
      %v1275 = vadd.f32 %v1153, %v1274
      %v1276 = vpop.f32.mrf.mxu0
      %v1277 = vadd.f32 %v1155, %v1276
      %1278 = vmatmul.bf16.gmra.mxu0 %v794
      %v1279 = vpop.f32.mrf.mxu0
      %v1280 = vadd.f32 %v1158, %v1279
      %v1281 = vpop.f32.mrf.mxu0
      %v1282 = vadd.f32 %v1160, %v1281
      %1283 = vmatmul.bf16.gmra.mxu0 %v797
      %v1284 = vpop.f32.mrf.mxu0
      %v1285 = vpop.f32.mrf.mxu0
      %1286 = vdwg.mxu0
      %1287 = vmatpush.bf16.msra.mxu0 %v457
      %1288 = vmatpush.bf16.msra.mxu0 %v451
      %1289 = vmatpush.bf16.msra.mxu0 %v429
      %1290 = vmatpush.bf16.msra.mxu0 %v423
      %1291 = vmatpush.bf16.msra.mxu0 %v417
      %1292 = vmatpush.bf16.msra.mxu0 %v402
      %1293 = vmatpush.bf16.msra.mxu0 %v399
      %1294 = vmatpush.bf16.msra.mxu0 %v396
      %1295 = vmatmul.bf16.gmra.mxu0 %v660
      %v1296 = vpop.f32.mrf.mxu0
      %v1297 = vadd.f32 0.0, %v1296
      %v1298 = vpop.f32.mrf.mxu0
      %v1299 = vadd.f32 0.0, %v1298
      %1300 = vmatmul.bf16.gmra.mxu0 %v662
      %v1301 = vpop.f32.mrf.mxu0
      %v1302 = vadd.f32 0.0, %v1301
      %v1303 = vpop.f32.mrf.mxu0
      %v1304 = vadd.f32 0.0, %v1303
      %1305 = vmatmul.bf16.gmra.mxu0 %v664
      %v1306 = vpop.f32.mrf.mxu0
      %v1307 = vadd.f32 0.0, %v1306
      %v1308 = vpop.f32.mrf.mxu0
      %v1309 = vadd.f32 0.0, %v1308
      %1310 = vmatmul.bf16.gmra.mxu0 %v666
      %v1311 = vpop.f32.mrf.mxu0
      %v1312 = vadd.f32 0.0, %v1311
      %v1313 = vpop.f32.mrf.mxu0
      %v1314 = vadd.f32 0.0, %v1313
      %1315 = vmatmul.bf16.gmra.mxu0 %v668
      %v1316 = vpop.f32.mrf.mxu0
      %v1317 = vadd.f32 0.0, %v1316
      %v1318 = vpop.f32.mrf.mxu0
      %v1319 = vadd.f32 0.0, %v1318
      %1320 = vmatmul.bf16.gmra.mxu0 %v670
      %v1321 = vpop.f32.mrf.mxu0
      %v1322 = vadd.f32 0.0, %v1321
      %v1323 = vpop.f32.mrf.mxu0
      %v1324 = vadd.f32 0.0, %v1323
      %1325 = vmatmul.bf16.gmra.mxu0 %v672
      %v1326 = vpop.f32.mrf.mxu0
      %v1327 = vadd.f32 0.0, %v1326
      %v1328 = vpop.f32.mrf.mxu0
      %v1329 = vadd.f32 0.0, %v1328
      %1330 = vmatmul.bf16.gmra.mxu0 %v674
      %v1331 = vpop.f32.mrf.mxu0
      %v1332 = vadd.f32 0.0, %v1331
      %v1333 = vpop.f32.mrf.mxu0
      %v1334 = vadd.f32 0.0, %v1333
      %1335 = vmatmul.bf16.gmra.mxu0 %v676
      %v1336 = vpop.f32.mrf.mxu0
      %v1337 = vadd.f32 0.0, %v1336
      %v1338 = vpop.f32.mrf.mxu0
      %v1339 = vadd.f32 0.0, %v1338
      %1340 = vmatmul.bf16.gmra.mxu0 %v678
      %v1341 = vpop.f32.mrf.mxu0
      %v1342 = vadd.f32 0.0, %v1341
      %v1343 = vpop.f32.mrf.mxu0
      %v1344 = vadd.f32 0.0, %v1343
      %1345 = vmatmul.bf16.gmra.mxu0 %v680
      %v1346 = vpop.f32.mrf.mxu0
      %v1347 = vadd.f32 0.0, %v1346
      %v1348 = vpop.f32.mrf.mxu0
      %v1349 = vadd.f32 0.0, %v1348
      %1350 = vmatmul.bf16.gmra.mxu0 %v682
      %v1351 = vpop.f32.mrf.mxu0
      %v1352 = vadd.f32 0.0, %v1351
      %v1353 = vpop.f32.mrf.mxu0
      %v1354 = vadd.f32 0.0, %v1353
      %1355 = vmatmul.bf16.gmra.mxu0 %v684
      %v1356 = vpop.f32.mrf.mxu0
      %v1357 = vadd.f32 0.0, %v1356
      %v1358 = vpop.f32.mrf.mxu0
      %v1359 = vadd.f32 0.0, %v1358
      %1360 = vmatmul.bf16.gmra.mxu0 %v686
      %v1361 = vpop.f32.mrf.mxu0
      %v1362 = vadd.f32 0.0, %v1361
      %v1363 = vpop.f32.mrf.mxu0
      %v1364 = vadd.f32 0.0, %v1363
      %1365 = vmatmul.bf16.gmra.mxu0 %v688
      %v1366 = vpop.f32.mrf.mxu0
      %v1367 = vadd.f32 0.0, %v1366
      %v1368 = vpop.f32.mrf.mxu0
      %v1369 = vadd.f32 0.0, %v1368
      %1370 = vmatmul.bf16.gmra.mxu0 %v690
      %v1371 = vpop.f32.mrf.mxu0
      %v1372 = vadd.f32 0.0, %v1371
      %v1373 = vpop.f32.mrf.mxu0
      %v1374 = vadd.f32 0.0, %v1373
      %1375 = vmatmul.bf16.gmra.mxu0 %v692
      %v1376 = vpop.f32.mrf.mxu0
      %v1377 = vadd.f32 0.0, %v1376
      %v1378 = vpop.f32.mrf.mxu0
      %v1379 = vadd.f32 0.0, %v1378
      %1380 = vmatmul.bf16.gmra.mxu0 %v694
      %v1381 = vpop.f32.mrf.mxu0
      %v1382 = vadd.f32 0.0, %v1381
      %v1383 = vpop.f32.mrf.mxu0
      %v1384 = vadd.f32 0.0, %v1383
      %1385 = vmatmul.bf16.gmra.mxu0 %v696
      %v1386 = vpop.f32.mrf.mxu0
      %v1387 = vadd.f32 0.0, %v1386
      %v1388 = vpop.f32.mrf.mxu0
      %v1389 = vadd.f32 0.0, %v1388
      %1390 = vmatmul.bf16.gmra.mxu0 %v698
      %v1391 = vpop.f32.mrf.mxu0
      %v1392 = vadd.f32 0.0, %v1391
      %v1393 = vpop.f32.mrf.mxu0
      %v1394 = vadd.f32 0.0, %v1393
      %1395 = vmatmul.bf16.gmra.mxu0 %v700
      %v1396 = vpop.f32.mrf.mxu0
      %v1397 = vadd.f32 0.0, %v1396
      %v1398 = vpop.f32.mrf.mxu0
      %v1399 = vadd.f32 0.0, %v1398
      %1400 = vmatmul.bf16.gmra.mxu0 %v702
      %v1401 = vpop.f32.mrf.mxu0
      %v1402 = vadd.f32 0.0, %v1401
      %v1403 = vpop.f32.mrf.mxu0
      %v1404 = vadd.f32 0.0, %v1403
      %1405 = vmatmul.bf16.gmra.mxu0 %v704
      %v1406 = vpop.f32.mrf.mxu0
      %v1407 = vpop.f32.mrf.mxu0
      %1408 = vdwg.mxu0
      %1409 = vmatpush.bf16.msra.mxu0 0
      %1410 = vmatpush.bf16.msra.mxu0 0
      %1411 = vmatpush.bf16.msra.mxu0 0
      %1412 = vmatpush.bf16.msra.mxu0 0
      %1413 = vmatpush.bf16.msra.mxu0 0
      %1414 = vmatpush.bf16.msra.mxu0 0
      %1415 = vmatpush.bf16.msra.mxu0 0
      %1416 = vmatpush.bf16.msra.mxu0 %v463
      %1417 = vmatmul.bf16.gmra.mxu0 %v731
      %v1418 = vpop.f32.mrf.mxu0
      %v1419 = vadd.f32 %v1297, %v1418
      %v1420 = vpop.f32.mrf.mxu0
      %v1421 = vadd.f32 %v1299, %v1420
      %1422 = vmatmul.bf16.gmra.mxu0 %v734
      %v1423 = vpop.f32.mrf.mxu0
      %v1424 = vadd.f32 %v1302, %v1423
      %v1425 = vpop.f32.mrf.mxu0
      %v1426 = vadd.f32 %v1304, %v1425
      %1427 = vmatmul.bf16.gmra.mxu0 %v737
      %v1428 = vpop.f32.mrf.mxu0
      %v1429 = vadd.f32 %v1307, %v1428
      %v1430 = vpop.f32.mrf.mxu0
      %v1431 = vadd.f32 %v1309, %v1430
      %1432 = vmatmul.bf16.gmra.mxu0 %v740
      %v1433 = vpop.f32.mrf.mxu0
      %v1434 = vadd.f32 %v1312, %v1433
      %v1435 = vpop.f32.mrf.mxu0
      %v1436 = vadd.f32 %v1314, %v1435
      %1437 = vmatmul.bf16.gmra.mxu0 %v743
      %v1438 = vpop.f32.mrf.mxu0
      %v1439 = vadd.f32 %v1317, %v1438
      %v1440 = vpop.f32.mrf.mxu0
      %v1441 = vadd.f32 %v1319, %v1440
      %1442 = vmatmul.bf16.gmra.mxu0 %v746
      %v1443 = vpop.f32.mrf.mxu0
      %v1444 = vadd.f32 %v1322, %v1443
      %v1445 = vpop.f32.mrf.mxu0
      %v1446 = vadd.f32 %v1324, %v1445
      %1447 = vmatmul.bf16.gmra.mxu0 %v749
      %v1448 = vpop.f32.mrf.mxu0
      %v1449 = vadd.f32 %v1327, %v1448
      %v1450 = vpop.f32.mrf.mxu0
      %v1451 = vadd.f32 %v1329, %v1450
      %1452 = vmatmul.bf16.gmra.mxu0 %v752
      %v1453 = vpop.f32.mrf.mxu0
      %v1454 = vadd.f32 %v1332, %v1453
      %v1455 = vpop.f32.mrf.mxu0
      %v1456 = vadd.f32 %v1334, %v1455
      %1457 = vmatmul.bf16.gmra.mxu0 %v755
      %v1458 = vpop.f32.mrf.mxu0
      %v1459 = vadd.f32 %v1337, %v1458
      %v1460 = vpop.f32.mrf.mxu0
      %v1461 = vadd.f32 %v1339, %v1460
      %1462 = vmatmul.bf16.gmra.mxu0 %v758
      %v1463 = vpop.f32.mrf.mxu0
      %v1464 = vadd.f32 %v1342, %v1463
      %v1465 = vpop.f32.mrf.mxu0
      %v1466 = vadd.f32 %v1344, %v1465
      %1467 = vmatmul.bf16.gmra.mxu0 %v761
      %v1468 = vpop.f32.mrf.mxu0
      %v1469 = vadd.f32 %v1347, %v1468
      %v1470 = vpop.f32.mrf.mxu0
      %v1471 = vadd.f32 %v1349, %v1470
      %1472 = vmatmul.bf16.gmra.mxu0 %v764
      %v1473 = vpop.f32.mrf.mxu0
      %v1474 = vadd.f32 %v1352, %v1473
      %v1475 = vpop.f32.mrf.mxu0
      %v1476 = vadd.f32 %v1354, %v1475
      %1477 = vmatmul.bf16.gmra.mxu0 %v767
      %v1478 = vpop.f32.mrf.mxu0
      %v1479 = vadd.f32 %v1357, %v1478
      %v1480 = vpop.f32.mrf.mxu0
      %v1481 = vadd.f32 %v1359, %v1480
      %1482 = vmatmul.bf16.gmra.mxu0 %v770
      %v1483 = vpop.f32.mrf.mxu0
      %v1484 = vadd.f32 %v1362, %v1483
      %v1485 = vpop.f32.mrf.mxu0
      %v1486 = vadd.f32 %v1364, %v1485
      %1487 = vmatmul.bf16.gmra.mxu0 %v773
      %v1488 = vpop.f32.mrf.mxu0
      %v1489 = vadd.f32 %v1367, %v1488
      %v1490 = vpop.f32.mrf.mxu0
      %v1491 = vadd.f32 %v1369, %v1490
      %1492 = vmatmul.bf16.gmra.mxu0 %v776
      %v1493 = vpop.f32.mrf.mxu0
      %v1494 = vadd.f32 %v1372, %v1493
      %v1495 = vpop.f32.mrf.mxu0
      %v1496 = vadd.f32 %v1374, %v1495
      %1497 = vmatmul.bf16.gmra.mxu0 %v779
      %v1498 = vpop.f32.mrf.mxu0
      %v1499 = vadd.f32 %v1377, %v1498
      %v1500 = vpop.f32.mrf.mxu0
      %v1501 = vadd.f32 %v1379, %v1500
      %1502 = vmatmul.bf16.gmra.mxu0 %v782
      %v1503 = vpop.f32.mrf.mxu0
      %v1504 = vadd.f32 %v1382, %v1503
      %v1505 = vpop.f32.mrf.mxu0
      %v1506 = vadd.f32 %v1384, %v1505
      %1507 = vmatmul.bf16.gmra.mxu0 %v785
      %v1508 = vpop.f32.mrf.mxu0
      %v1509 = vadd.f32 %v1387, %v1508
      %v1510 = vpop.f32.mrf.mxu0
      %v1511 = vadd.f32 %v1389, %v1510
      %1512 = vmatmul.bf16.gmra.mxu0 %v788
      %v1513 = vpop.f32.mrf.mxu0
      %v1514 = vadd.f32 %v1392, %v1513
      %v1515 = vpop.f32.mrf.mxu0
      %v1516 = vadd.f32 %v1394, %v1515
      %1517 = vmatmul.bf16.gmra.mxu0 %v791
      %v1518 = vpop.f32.mrf.mxu0
      %v1519 = vadd.f32 %v1397, %v1518
      %v1520 = vpop.f32.mrf.mxu0
      %v1521 = vadd.f32 %v1399, %v1520
      %1522 = vmatmul.bf16.gmra.mxu0 %v794
      %v1523 = vpop.f32.mrf.mxu0
      %v1524 = vadd.f32 %v1402, %v1523
      %v1525 = vpop.f32.mrf.mxu0
      %v1526 = vadd.f32 %v1404, %v1525
      %1527 = vmatmul.bf16.gmra.mxu0 %v797
      %v1528 = vpop.f32.mrf.mxu0
      %v1529 = vpop.f32.mrf.mxu0
      %1530 = vdwg.mxu0
      %v1531 = vld [vmem:[%s2] sm:$0xff]
      %1533 = vset.pattern.permute.xlu0 0
      %1534 = vperm.xlu0 %1533, %v1531
      %v1535 = vpop.permute.xlu0 %1534
      %v1537 = vadd.f32 %v931, %v1535
      %v1538 = vadd.f32 %v1175, %v1535
      %v1539 = vadd.f32 %v1419, %v1535
      %v1540 = vadd.f32 %v933, %v1535
      %v1541 = vadd.f32 %v1177, %v1535
      %v1542 = vadd.f32 %v1421, %v1535
      %v1543 = vadd.f32 %v936, %v1535
      %v1544 = vadd.f32 %v1180, %v1535
      %v1545 = vadd.f32 %v1424, %v1535
      %v1546 = vadd.f32 %v938, %v1535
      %v1547 = vadd.f32 %v1182, %v1535
      %v1548 = vadd.f32 %v1426, %v1535
      %v1549 = vadd.f32 %v941, %v1535
      %v1550 = vadd.f32 %v1185, %v1535
      %v1551 = vadd.f32 %v1429, %v1535
      %v1552 = vadd.f32 %v943, %v1535
      %v1553 = vadd.f32 %v1187, %v1535
      %v1554 = vadd.f32 %v1431, %v1535
      %v1555 = vadd.f32 %v946, %v1535
      %v1556 = vadd.f32 %v1190, %v1535
      %v1557 = vadd.f32 %v1434, %v1535
      %v1558 = vadd.f32 %v948, %v1535
      %v1559 = vadd.f32 %v1192, %v1535
      %v1560 = vadd.f32 %v1436, %v1535
      %v1561 = vadd.f32 %v951, %v1535
      %v1562 = vadd.f32 %v1195, %v1535
      %v1563 = vadd.f32 %v1439, %v1535
      %v1564 = vadd.f32 %v953, %v1535
      %v1565 = vadd.f32 %v1197, %v1535
      %v1566 = vadd.f32 %v1441, %v1535
      %v1567 = vadd.f32 %v956, %v1535
      %v1568 = vadd.f32 %v1200, %v1535
      %v1569 = vadd.f32 %v1444, %v1535
      %v1570 = vadd.f32 %v958, %v1535
      %v1571 = vadd.f32 %v1202, %v1535
      %v1572 = vadd.f32 %v1446, %v1535
      %v1573 = vadd.f32 %v961, %v1535
      %v1574 = vadd.f32 %v1205, %v1535
      %v1575 = vadd.f32 %v1449, %v1535
      %v1576 = vadd.f32 %v963, %v1535
      %v1577 = vadd.f32 %v1207, %v1535
      %v1578 = vadd.f32 %v1451, %v1535
      %v1579 = vadd.f32 %v966, %v1535
      %v1580 = vadd.f32 %v1210, %v1535
      %v1581 = vadd.f32 %v1454, %v1535
      %v1582 = vadd.f32 %v968, %v1535
      %v1583 = vadd.f32 %v1212, %v1535
      %v1584 = vadd.f32 %v1456, %v1535
      %v1585 = vadd.f32 %v971, %v1535
      %v1586 = vadd.f32 %v1215, %v1535
      %v1587 = vadd.f32 %v1459, %v1535
      %v1588 = vadd.f32 %v973, %v1535
      %v1589 = vadd.f32 %v1217, %v1535
      %v1590 = vadd.f32 %v1461, %v1535
      %v1591 = vadd.f32 %v976, %v1535
      %v1592 = vadd.f32 %v1220, %v1535
      %v1593 = vadd.f32 %v1464, %v1535
      %v1594 = vadd.f32 %v978, %v1535
      %v1595 = vadd.f32 %v1222, %v1535
      %v1596 = vadd.f32 %v1466, %v1535
      %v1597 = vadd.f32 %v981, %v1535
      %v1598 = vadd.f32 %v1225, %v1535
      %v1599 = vadd.f32 %v1469, %v1535
      %v1600 = vadd.f32 %v983, %v1535
      %v1601 = vadd.f32 %v1227, %v1535
      %v1602 = vadd.f32 %v1471, %v1535
      %v1603 = vadd.f32 %v986, %v1535
      %v1604 = vadd.f32 %v1230, %v1535
      %v1605 = vadd.f32 %v1474, %v1535
      %v1606 = vadd.f32 %v988, %v1535
      %v1607 = vadd.f32 %v1232, %v1535
      %v1608 = vadd.f32 %v1476, %v1535
      %v1609 = vadd.f32 %v991, %v1535
      %v1610 = vadd.f32 %v1235, %v1535
      %v1611 = vadd.f32 %v1479, %v1535
      %v1612 = vadd.f32 %v993, %v1535
      %v1613 = vadd.f32 %v1237, %v1535
      %v1614 = vadd.f32 %v1481, %v1535
      %v1615 = vadd.f32 %v996, %v1535
      %v1616 = vadd.f32 %v1240, %v1535
      %v1617 = vadd.f32 %v1484, %v1535
      %v1618 = vadd.f32 %v998, %v1535
      %v1619 = vadd.f32 %v1242, %v1535
      %v1620 = vadd.f32 %v1486, %v1535
      %v1621 = vadd.f32 %v1001, %v1535
      %v1622 = vadd.f32 %v1245, %v1535
      %v1623 = vadd.f32 %v1489, %v1535
      %v1624 = vadd.f32 %v1003, %v1535
      %v1625 = vadd.f32 %v1247, %v1535
      %v1626 = vadd.f32 %v1491, %v1535
      %v1627 = vadd.f32 %v1006, %v1535
      %v1628 = vadd.f32 %v1250, %v1535
      %v1629 = vadd.f32 %v1494, %v1535
      %v1630 = vadd.f32 %v1008, %v1535
      %v1631 = vadd.f32 %v1252, %v1535
      %v1632 = vadd.f32 %v1496, %v1535
      %v1633 = vadd.f32 %v1011, %v1535
      %v1634 = vadd.f32 %v1255, %v1535
      %v1635 = vadd.f32 %v1499, %v1535
      %v1636 = vadd.f32 %v1013, %v1535
      %v1637 = vadd.f32 %v1257, %v1535
      %v1638 = vadd.f32 %v1501, %v1535
      %v1639 = vadd.f32 %v1016, %v1535
      %v1640 = vadd.f32 %v1260, %v1535
      %v1641 = vadd.f32 %v1504, %v1535
      %v1642 = vadd.f32 %v1018, %v1535
      %v1643 = vadd.f32 %v1262, %v1535
      %v1644 = vadd.f32 %v1506, %v1535
      %v1645 = vadd.f32 %v1021, %v1535
      %v1646 = vadd.f32 %v1265, %v1535
      %v1647 = vadd.f32 %v1509, %v1535
      %v1648 = vadd.f32 %v1023, %v1535
      %v1649 = vadd.f32 %v1267, %v1535
      %v1650 = vadd.f32 %v1511, %v1535
      %v1651 = vadd.f32 %v1026, %v1535
      %v1652 = vadd.f32 %v1270, %v1535
      %v1653 = vadd.f32 %v1514, %v1535
      %v1654 = vadd.f32 %v1028, %v1535
      %v1655 = vadd.f32 %v1272, %v1535
      %v1656 = vadd.f32 %v1516, %v1535
      %v1657 = vadd.f32 %v1031, %v1535
      %v1658 = vadd.f32 %v1275, %v1535
      %v1659 = vadd.f32 %v1519, %v1535
      %v1660 = vadd.f32 %v1033, %v1535
      %v1661 = vadd.f32 %v1277, %v1535
      %v1662 = vadd.f32 %v1521, %v1535
      %v1663 = vadd.f32 %v1036, %v1535
      %v1664 = vadd.f32 %v1280, %v1535
      %v1665 = vadd.f32 %v1524, %v1535
      %v1666 = vadd.f32 %v1038, %v1535
      %v1667 = vadd.f32 %v1282, %v1535
      %v1668 = vadd.f32 %v1526, %v1535
      %v1669 = vmax.f32 %v1537, 0.0
      %v1670 = vmax.f32 %v1538, 0.0
      %v1671 = vmax.f32 %v1539, 0.0
      %v1672 = vmax.f32 %v1540, 0.0
      %v1673 = vmax.f32 %v1541, 0.0
      %v1674 = vmax.f32 %v1542, 0.0
      %v1675 = vmax.f32 %v1543, 0.0
      %v1676 = vmax.f32 %v1544, 0.0
      %v1677 = vmax.f32 %v1545, 0.0
      %v1678 = vmax.f32 %v1546, 0.0
      %v1679 = vmax.f32 %v1547, 0.0
      %v1680 = vmax.f32 %v1548, 0.0
      %v1681 = vmax.f32 %v1549, 0.0
      %v1682 = vmax.f32 %v1550, 0.0
      %v1683 = vmax.f32 %v1551, 0.0
      %v1684 = vmax.f32 %v1552, 0.0
      %v1685 = vmax.f32 %v1553, 0.0
      %v1686 = vmax.f32 %v1554, 0.0
      %v1687 = vmax.f32 %v1555, 0.0
      %v1688 = vmax.f32 %v1556, 0.0
      %v1689 = vmax.f32 %v1557, 0.0
      %v1690 = vmax.f32 %v1558, 0.0
      %v1691 = vmax.f32 %v1559, 0.0
      %v1692 = vmax.f32 %v1560, 0.0
      %v1693 = vmax.f32 %v1561, 0.0
      %v1694 = vmax.f32 %v1562, 0.0
      %v1695 = vmax.f32 %v1563, 0.0
      %v1696 = vmax.f32 %v1564, 0.0
      %v1697 = vmax.f32 %v1565, 0.0
      %v1698 = vmax.f32 %v1566, 0.0
      %v1699 = vmax.f32 %v1567, 0.0
      %v1700 = vmax.f32 %v1568, 0.0
      %v1701 = vmax.f32 %v1569, 0.0
      %v1702 = vmax.f32 %v1570, 0.0
      %v1703 = vmax.f32 %v1571, 0.0
      %v1704 = vmax.f32 %v1572, 0.0
      %v1705 = vmax.f32 %v1573, 0.0
      %v1706 = vmax.f32 %v1574, 0.0
      %v1707 = vmax.f32 %v1575, 0.0
      %v1708 = vmax.f32 %v1576, 0.0
      %v1709 = vmax.f32 %v1577, 0.0
      %v1710 = vmax.f32 %v1578, 0.0
      %v1711 = vmax.f32 %v1579, 0.0
      %v1712 = vmax.f32 %v1580, 0.0
      %v1713 = vmax.f32 %v1581, 0.0
      %v1714 = vmax.f32 %v1582, 0.0
      %v1715 = vmax.f32 %v1583, 0.0
      %v1716 = vmax.f32 %v1584, 0.0
      %v1717 = vmax.f32 %v1585, 0.0
      %v1718 = vmax.f32 %v1586, 0.0
      %v1719 = vmax.f32 %v1587, 0.0
      %v1720 = vmax.f32 %v1588, 0.0
      %v1721 = vmax.f32 %v1589, 0.0
      %v1722 = vmax.f32 %v1590, 0.0
      %v1723 = vmax.f32 %v1591, 0.0
      %v1724 = vmax.f32 %v1592, 0.0
      %v1725 = vmax.f32 %v1593, 0.0
      %v1726 = vmax.f32 %v1594, 0.0
      %v1727 = vmax.f32 %v1595, 0.0
      %v1728 = vmax.f32 %v1596, 0.0
      %v1729 = vmax.f32 %v1597, 0.0
      %v1730 = vmax.f32 %v1598, 0.0
      %v1731 = vmax.f32 %v1599, 0.0
      %v1732 = vmax.f32 %v1600, 0.0
      %v1733 = vmax.f32 %v1601, 0.0
      %v1734 = vmax.f32 %v1602, 0.0
      %v1735 = vmax.f32 %v1603, 0.0
      %v1736 = vmax.f32 %v1604, 0.0
      %v1737 = vmax.f32 %v1605, 0.0
      %v1738 = vmax.f32 %v1606, 0.0
      %v1739 = vmax.f32 %v1607, 0.0
      %v1740 = vmax.f32 %v1608, 0.0
      %v1741 = vmax.f32 %v1609, 0.0
      %v1742 = vmax.f32 %v1610, 0.0
      %v1743 = vmax.f32 %v1611, 0.0
      %v1744 = vmax.f32 %v1612, 0.0
      %v1745 = vmax.f32 %v1613, 0.0
      %v1746 = vmax.f32 %v1614, 0.0
      %v1747 = vmax.f32 %v1615, 0.0
      %v1748 = vmax.f32 %v1616, 0.0
      %v1749 = vmax.f32 %v1617, 0.0
      %v1750 = vmax.f32 %v1618, 0.0
      %v1751 = vmax.f32 %v1619, 0.0
      %v1752 = vmax.f32 %v1620, 0.0
      %v1753 = vmax.f32 %v1621, 0.0
      %v1754 = vmax.f32 %v1622, 0.0
      %v1755 = vmax.f32 %v1623, 0.0
      %v1756 = vmax.f32 %v1624, 0.0
      %v1757 = vmax.f32 %v1625, 0.0
      %v1758 = vmax.f32 %v1626, 0.0
      %v1759 = vmax.f32 %v1627, 0.0
      %v1760 = vmax.f32 %v1628, 0.0
      %v1761 = vmax.f32 %v1629, 0.0
      %v1762 = vmax.f32 %v1630, 0.0
      %v1763 = vmax.f32 %v1631, 0.0
      %v1764 = vmax.f32 %v1632, 0.0
      %v1765 = vmax.f32 %v1633, 0.0
      %v1766 = vmax.f32 %v1634, 0.0
      %v1767 = vmax.f32 %v1635, 0.0
      %v1768 = vmax.f32 %v1636, 0.0
      %v1769 = vmax.f32 %v1637, 0.0
      %v1770 = vmax.f32 %v1638, 0.0
      %v1771 = vmax.f32 %v1639, 0.0
      %v1772 = vmax.f32 %v1640, 0.0
      %v1773 = vmax.f32 %v1641, 0.0
      %v1774 = vmax.f32 %v1642, 0.0
      %v1775 = vmax.f32 %v1643, 0.0
      %v1776 = vmax.f32 %v1644, 0.0
      %v1777 = vmax.f32 %v1645, 0.0
      %v1778 = vmax.f32 %v1646, 0.0
      %v1779 = vmax.f32 %v1647, 0.0
      %v1780 = vmax.f32 %v1648, 0.0
      %v1781 = vmax.f32 %v1649, 0.0
      %v1782 = vmax.f32 %v1650, 0.0
      %v1783 = vmax.f32 %v1651, 0.0
      %v1784 = vmax.f32 %v1652, 0.0
      %v1785 = vmax.f32 %v1653, 0.0
      %v1786 = vmax.f32 %v1654, 0.0
      %v1787 = vmax.f32 %v1655, 0.0
      %v1788 = vmax.f32 %v1656, 0.0
      %v1789 = vmax.f32 %v1657, 0.0
      %v1790 = vmax.f32 %v1658, 0.0
      %v1791 = vmax.f32 %v1659, 0.0
      %v1792 = vmax.f32 %v1660, 0.0
      %v1793 = vmax.f32 %v1661, 0.0
      %v1794 = vmax.f32 %v1662, 0.0
      %v1795 = vmax.f32 %v1663, 0.0
      %v1796 = vmax.f32 %v1664, 0.0
      %v1797 = vmax.f32 %v1665, 0.0
      %v1798 = vmax.f32 %v1666, 0.0
      %v1799 = vmax.f32 %v1667, 0.0
      %v1800 = vmax.f32 %v1668, 0.0
      %v1801 = vmax.f32 %v1669, %v1672
      %v1802 = vmax.f32 %v1670, %v1673
      %v1803 = vmax.f32 %v1671, %v1674
      %v1804 = vmax.f32 %v1675, %v1678
      %v1805 = vmax.f32 %v1676, %v1679
      %v1806 = vmax.f32 %v1677, %v1680
      %v1807 = vmax.f32 %v1681, %v1684
      %v1808 = vmax.f32 %v1682, %v1685
      %v1809 = vmax.f32 %v1683, %v1686
      %v1810 = vmax.f32 %v1687, %v1690
      %v1811 = vmax.f32 %v1688, %v1691
      %v1812 = vmax.f32 %v1689, %v1692
      %v1813 = vmax.f32 %v1693, %v1696
      %v1814 = vmax.f32 %v1694, %v1697
      %v1815 = vmax.f32 %v1695, %v1698
      %v1816 = vmax.f32 %v1699, %v1702
      %v1817 = vmax.f32 %v1700, %v1703
      %v1818 = vmax.f32 %v1701, %v1704
      %v1819 = vmax.f32 %v1705, %v1708
      %v1820 = vmax.f32 %v1706, %v1709
      %v1821 = vmax.f32 %v1707, %v1710
      %v1822 = vmax.f32 %v1711, %v1714
      %v1823 = vmax.f32 %v1712, %v1715
      %v1824 = vmax.f32 %v1713, %v1716
      %v1825 = vmax.f32 %v1717, %v1720
      %v1826 = vmax.f32 %v1718, %v1721
      %v1827 = vmax.f32 %v1719, %v1722
      %v1828 = vmax.f32 %v1723, %v1726
      %v1829 = vmax.f32 %v1724, %v1727
      %v1830 = vmax.f32 %v1725, %v1728
      %v1831 = vmax.f32 %v1729, %v1732
      %v1832 = vmax.f32 %v1730, %v1733
      %v1833 = vmax.f32 %v1731, %v1734
      %v1834 = vmax.f32 %v1735, %v1738
      %v1835 = vmax.f32 %v1736, %v1739
      %v1836 = vmax.f32 %v1737, %v1740
      %v1837 = vmax.f32 %v1741, %v1744
      %v1838 = vmax.f32 %v1742, %v1745
      %v1839 = vmax.f32 %v1743, %v1746
      %v1840 = vmax.f32 %v1747, %v1750
      %v1841 = vmax.f32 %v1748, %v1751
      %v1842 = vmax.f32 %v1749, %v1752
      %v1843 = vmax.f32 %v1753, %v1756
      %v1844 = vmax.f32 %v1754, %v1757
      %v1845 = vmax.f32 %v1755, %v1758
      %v1846 = vmax.f32 %v1759, %v1762
      %v1847 = vmax.f32 %v1760, %v1763
      %v1848 = vmax.f32 %v1761, %v1764
      %v1849 = vmax.f32 %v1765, %v1768
      %v1850 = vmax.f32 %v1766, %v1769
      %v1851 = vmax.f32 %v1767, %v1770
      %v1852 = vmax.f32 %v1771, %v1774
      %v1853 = vmax.f32 %v1772, %v1775
      %v1854 = vmax.f32 %v1773, %v1776
      %v1855 = vmax.f32 %v1777, %v1780
      %v1856 = vmax.f32 %v1778, %v1781
      %v1857 = vmax.f32 %v1779, %v1782
      %v1858 = vmax.f32 %v1783, %v1786
      %v1859 = vmax.f32 %v1784, %v1787
      %v1860 = vmax.f32 %v1785, %v1788
      %v1861 = vmax.f32 %v1789, %v1792
      %v1862 = vmax.f32 %v1790, %v1793
      %v1863 = vmax.f32 %v1791, %v1794
      %v1864 = vmax.f32 %v1795, %v1798
      %v1865 = vmax.f32 %v1796, %v1799
      %v1866 = vmax.f32 %v1797, %v1800
      %1933 = vrot.lane.b32.xlu0 %v1801, 127
      %v1934 = vpop.permute.xlu0 %1933
      %1935 = vrot.lane.b32.xlu0 %v1802, 127
      %v1936 = vpop.permute.xlu0 %1935
      %1937 = vrot.lane.b32.xlu0 %v1803, 127
      %v1938 = vpop.permute.xlu0 %1937
      %1939 = vrot.lane.b32.xlu0 %v1804, 127
      %v1940 = vpop.permute.xlu0 %1939
      %1941 = vrot.lane.b32.xlu0 %v1805, 127
      %v1942 = vpop.permute.xlu0 %1941
      %1943 = vrot.lane.b32.xlu0 %v1806, 127
      %v1944 = vpop.permute.xlu0 %1943
      %1945 = vrot.lane.b32.xlu0 %v1807, 127
      %v1946 = vpop.permute.xlu0 %1945
      %1947 = vrot.lane.b32.xlu0 %v1808, 127
      %v1948 = vpop.permute.xlu0 %1947
      %1949 = vrot.lane.b32.xlu0 %v1809, 127
      %v1950 = vpop.permute.xlu0 %1949
      %1951 = vrot.lane.b32.xlu0 %v1810, 127
      %v1952 = vpop.permute.xlu0 %1951
      %1953 = vrot.lane.b32.xlu0 %v1811, 127
      %v1954 = vpop.permute.xlu0 %1953
      %1955 = vrot.lane.b32.xlu0 %v1812, 127
      %v1956 = vpop.permute.xlu0 %1955
      %1957 = vrot.lane.b32.xlu0 %v1813, 127
      %v1958 = vpop.permute.xlu0 %1957
      %1959 = vrot.lane.b32.xlu0 %v1814, 127
      %v1960 = vpop.permute.xlu0 %1959
      %1961 = vrot.lane.b32.xlu0 %v1815, 127
      %v1962 = vpop.permute.xlu0 %1961
      %1963 = vrot.lane.b32.xlu0 %v1816, 127
      %v1964 = vpop.permute.xlu0 %1963
      %1965 = vrot.lane.b32.xlu0 %v1817, 127
      %v1966 = vpop.permute.xlu0 %1965
      %1967 = vrot.lane.b32.xlu0 %v1818, 127
      %v1968 = vpop.permute.xlu0 %1967
      %1969 = vrot.lane.b32.xlu0 %v1819, 127
      %v1970 = vpop.permute.xlu0 %1969
      %1971 = vrot.lane.b32.xlu0 %v1820, 127
      %v1972 = vpop.permute.xlu0 %1971
      %1973 = vrot.lane.b32.xlu0 %v1821, 127
      %v1974 = vpop.permute.xlu0 %1973
      %1975 = vrot.lane.b32.xlu0 %v1822, 127
      %v1976 = vpop.permute.xlu0 %1975
      %1977 = vrot.lane.b32.xlu0 %v1823, 127
      %v1978 = vpop.permute.xlu0 %1977
      %1979 = vrot.lane.b32.xlu0 %v1824, 127
      %v1980 = vpop.permute.xlu0 %1979
      %1981 = vrot.lane.b32.xlu0 %v1825, 127
      %v1982 = vpop.permute.xlu0 %1981
      %1983 = vrot.lane.b32.xlu0 %v1826, 127
      %v1984 = vpop.permute.xlu0 %1983
      %1985 = vrot.lane.b32.xlu0 %v1827, 127
      %v1986 = vpop.permute.xlu0 %1985
      %1987 = vrot.lane.b32.xlu0 %v1828, 127
      %v1988 = vpop.permute.xlu0 %1987
      %1989 = vrot.lane.b32.xlu0 %v1829, 127
      %v1990 = vpop.permute.xlu0 %1989
      %1991 = vrot.lane.b32.xlu0 %v1830, 127
      %v1992 = vpop.permute.xlu0 %1991
      %1993 = vrot.lane.b32.xlu0 %v1831, 127
      %v1994 = vpop.permute.xlu0 %1993
      %1995 = vrot.lane.b32.xlu0 %v1832, 127
      %v1996 = vpop.permute.xlu0 %1995
      %1997 = vrot.lane.b32.xlu0 %v1833, 127
      %v1998 = vpop.permute.xlu0 %1997
      %1999 = vrot.lane.b32.xlu0 %v1834, 127
      %v2000 = vpop.permute.xlu0 %1999
      %2001 = vrot.lane.b32.xlu0 %v1835, 127
      %v2002 = vpop.permute.xlu0 %2001
      %2003 = vrot.lane.b32.xlu0 %v1836, 127
      %v2004 = vpop.permute.xlu0 %2003
      %2005 = vrot.lane.b32.xlu0 %v1837, 127
      %v2006 = vpop.permute.xlu0 %2005
      %2007 = vrot.lane.b32.xlu0 %v1838, 127
      %v2008 = vpop.permute.xlu0 %2007
      %2009 = vrot.lane.b32.xlu0 %v1839, 127
      %v2010 = vpop.permute.xlu0 %2009
      %2011 = vrot.lane.b32.xlu0 %v1840, 127
      %v2012 = vpop.permute.xlu0 %2011
      %2013 = vrot.lane.b32.xlu0 %v1841, 127
      %v2014 = vpop.permute.xlu0 %2013
      %2015 = vrot.lane.b32.xlu0 %v1842, 127
      %v2016 = vpop.permute.xlu0 %2015
      %2017 = vrot.lane.b32.xlu0 %v1843, 127
      %v2018 = vpop.permute.xlu0 %2017
      %2019 = vrot.lane.b32.xlu0 %v1844, 127
      %v2020 = vpop.permute.xlu0 %2019
      %2021 = vrot.lane.b32.xlu0 %v1845, 127
      %v2022 = vpop.permute.xlu0 %2021
      %2023 = vrot.lane.b32.xlu0 %v1846, 127
      %v2024 = vpop.permute.xlu0 %2023
      %2025 = vrot.lane.b32.xlu0 %v1847, 127
      %v2026 = vpop.permute.xlu0 %2025
      %2027 = vrot.lane.b32.xlu0 %v1848, 127
      %v2028 = vpop.permute.xlu0 %2027
      %2029 = vrot.lane.b32.xlu0 %v1849, 127
      %v2030 = vpop.permute.xlu0 %2029
      %2031 = vrot.lane.b32.xlu0 %v1850, 127
      %v2032 = vpop.permute.xlu0 %2031
      %2033 = vrot.lane.b32.xlu0 %v1851, 127
      %v2034 = vpop.permute.xlu0 %2033
      %2035 = vrot.lane.b32.xlu0 %v1852, 127
      %v2036 = vpop.permute.xlu0 %2035
      %2037 = vrot.lane.b32.xlu0 %v1853, 127
      %v2038 = vpop.permute.xlu0 %2037
      %2039 = vrot.lane.b32.xlu0 %v1854, 127
      %v2040 = vpop.permute.xlu0 %2039
      %2041 = vrot.lane.b32.xlu0 %v1855, 127
      %v2042 = vpop.permute.xlu0 %2041
      %2043 = vrot.lane.b32.xlu0 %v1856, 127
      %v2044 = vpop.permute.xlu0 %2043
      %2045 = vrot.lane.b32.xlu0 %v1857, 127
      %v2046 = vpop.permute.xlu0 %2045
      %2047 = vrot.lane.b32.xlu0 %v1858, 127
      %v2048 = vpop.permute.xlu0 %2047
      %2049 = vrot.lane.b32.xlu0 %v1859, 127
      %v2050 = vpop.permute.xlu0 %2049
      %2051 = vrot.lane.b32.xlu0 %v1860, 127
      %v2052 = vpop.permute.xlu0 %2051
      %2053 = vrot.lane.b32.xlu0 %v1861, 127
      %v2054 = vpop.permute.xlu0 %2053
      %2055 = vrot.lane.b32.xlu0 %v1862, 127
      %v2056 = vpop.permute.xlu0 %2055
      %2057 = vrot.lane.b32.xlu0 %v1863, 127
      %v2058 = vpop.permute.xlu0 %2057
      %2059 = vrot.lane.b32.xlu0 %v1864, 127
      %v2060 = vpop.permute.xlu0 %2059
      %2061 = vrot.lane.b32.xlu0 %v1865, 127
      %v2062 = vpop.permute.xlu0 %2061
      %2063 = vrot.lane.b32.xlu0 %v1866, 127
      %v2064 = vpop.permute.xlu0 %2063
      %vm2065 = vcmask 1039360
      %v2066 = vsel %vm2065, %v1934, %v1936
      %v2067 = vsel %vm2065, %v1936, %v1938
      %v2068 = vsel %vm2065, %v1940, %v1942
      %v2069 = vsel %vm2065, %v1942, %v1944
      %v2070 = vsel %vm2065, %v1946, %v1948
      %v2071 = vsel %vm2065, %v1948, %v1950
      %v2072 = vsel %vm2065, %v1952, %v1954
      %v2073 = vsel %vm2065, %v1954, %v1956
      %v2074 = vsel %vm2065, %v1958, %v1960
      %v2075 = vsel %vm2065, %v1960, %v1962
      %v2076 = vsel %vm2065, %v1964, %v1966
      %v2077 = vsel %vm2065, %v1966, %v1968
      %v2078 = vsel %vm2065, %v1970, %v1972
      %v2079 = vsel %vm2065, %v1972, %v1974
      %v2080 = vsel %vm2065, %v1976, %v1978
      %v2081 = vsel %vm2065, %v1978, %v1980
      %v2082 = vsel %vm2065, %v1982, %v1984
      %v2083 = vsel %vm2065, %v1984, %v1986
      %v2084 = vsel %vm2065, %v1988, %v1990
      %v2085 = vsel %vm2065, %v1990, %v1992
      %v2086 = vsel %vm2065, %v1994, %v1996
      %v2087 = vsel %vm2065, %v1996, %v1998
      %v2088 = vsel %vm2065, %v2000, %v2002
      %v2089 = vsel %vm2065, %v2002, %v2004
      %v2090 = vsel %vm2065, %v2006, %v2008
      %v2091 = vsel %vm2065, %v2008, %v2010
      %v2092 = vsel %vm2065, %v2012, %v2014
      %v2093 = vsel %vm2065, %v2014, %v2016
      %v2094 = vsel %vm2065, %v2018, %v2020
      %v2095 = vsel %vm2065, %v2020, %v2022
      %v2096 = vsel %vm2065, %v2024, %v2026
      %v2097 = vsel %vm2065, %v2026, %v2028
      %v2098 = vsel %vm2065, %v2030, %v2032
      %v2099 = vsel %vm2065, %v2032, %v2034
      %v2100 = vsel %vm2065, %v2036, %v2038
      %v2101 = vsel %vm2065, %v2038, %v2040
      %v2102 = vsel %vm2065, %v2042, %v2044
      %v2103 = vsel %vm2065, %v2044, %v2046
      %v2104 = vsel %vm2065, %v2048, %v2050
      %v2105 = vsel %vm2065, %v2050, %v2052
      %v2106 = vsel %vm2065, %v2054, %v2056
      %v2107 = vsel %vm2065, %v2056, %v2058
      %v2108 = vsel %vm2065, %v2060, %v2062
      %v2109 = vsel %vm2065, %v2062, %v2064
      %v2176 = vmax.f32 %v1801, %v2066
      %v2177 = vmax.f32 %v1802, %v2067
      %v2178 = vmax.f32 %v1803, %v1938
      %v2179 = vmax.f32 %v1804, %v2068
      %v2180 = vmax.f32 %v1805, %v2069
      %v2181 = vmax.f32 %v1806, %v1944
      %v2182 = vmax.f32 %v1807, %v2070
      %v2183 = vmax.f32 %v1808, %v2071
      %v2184 = vmax.f32 %v1809, %v1950
      %v2185 = vmax.f32 %v1810, %v2072
      %v2186 = vmax.f32 %v1811, %v2073
      %v2187 = vmax.f32 %v1812, %v1956
      %v2188 = vmax.f32 %v1813, %v2074
      %v2189 = vmax.f32 %v1814, %v2075
      %v2190 = vmax.f32 %v1815, %v1962
      %v2191 = vmax.f32 %v1816, %v2076
      %v2192 = vmax.f32 %v1817, %v2077
      %v2193 = vmax.f32 %v1818, %v1968
      %v2194 = vmax.f32 %v1819, %v2078
      %v2195 = vmax.f32 %v1820, %v2079
      %v2196 = vmax.f32 %v1821, %v1974
      %v2197 = vmax.f32 %v1822, %v2080
      %v2198 = vmax.f32 %v1823, %v2081
      %v2199 = vmax.f32 %v1824, %v1980
      %v2200 = vmax.f32 %v1825, %v2082
      %v2201 = vmax.f32 %v1826, %v2083
      %v2202 = vmax.f32 %v1827, %v1986
      %v2203 = vmax.f32 %v1828, %v2084
      %v2204 = vmax.f32 %v1829, %v2085
      %v2205 = vmax.f32 %v1830, %v1992
      %v2206 = vmax.f32 %v1831, %v2086
      %v2207 = vmax.f32 %v1832, %v2087
      %v2208 = vmax.f32 %v1833, %v1998
      %v2209 = vmax.f32 %v1834, %v2088
      %v2210 = vmax.f32 %v1835, %v2089
      %v2211 = vmax.f32 %v1836, %v2004
      %v2212 = vmax.f32 %v1837, %v2090
      %v2213 = vmax.f32 %v1838, %v2091
      %v2214 = vmax.f32 %v1839, %v2010
      %v2215 = vmax.f32 %v1840, %v2092
      %v2216 = vmax.f32 %v1841, %v2093
      %v2217 = vmax.f32 %v1842, %v2016
      %v2218 = vmax.f32 %v1843, %v2094
      %v2219 = vmax.f32 %v1844, %v2095
      %v2220 = vmax.f32 %v1845, %v2022
      %v2221 = vmax.f32 %v1846, %v2096
      %v2222 = vmax.f32 %v1847, %v2097
      %v2223 = vmax.f32 %v1848, %v2028
      %v2224 = vmax.f32 %v1849, %v2098
      %v2225 = vmax.f32 %v1850, %v2099
      %v2226 = vmax.f32 %v1851, %v2034
      %v2227 = vmax.f32 %v1852, %v2100
      %v2228 = vmax.f32 %v1853, %v2101
      %v2229 = vmax.f32 %v1854, %v2040
      %v2230 = vmax.f32 %v1855, %v2102
      %v2231 = vmax.f32 %v1856, %v2103
      %v2232 = vmax.f32 %v1857, %v2046
      %v2233 = vmax.f32 %v1858, %v2104
      %v2234 = vmax.f32 %v1859, %v2105
      %v2235 = vmax.f32 %v1860, %v2052
      %v2236 = vmax.f32 %v1861, %v2106
      %v2237 = vmax.f32 %v1862, %v2107
      %v2238 = vmax.f32 %v1863, %v2058
      %v2239 = vmax.f32 %v1864, %v2108
      %v2240 = vmax.f32 %v1865, %v2109
      %v2241 = vmax.f32 %v1866, %v2064
      %v2242 = vpack.c.bf16 %v2179, %v2176
      %v2243 = vpack.c.bf16 %v2180, %v2177
      %v2244 = vpack.c.bf16 %v2181, %v2178
      %v2245 = vpack.c.bf16 %v2185, %v2182
      %v2246 = vpack.c.bf16 %v2186, %v2183
      %v2247 = vpack.c.bf16 %v2187, %v2184
      %v2248 = vpack.c.bf16 %v2191, %v2188
      %v2249 = vpack.c.bf16 %v2192, %v2189
      %v2250 = vpack.c.bf16 %v2193, %v2190
      %v2251 = vpack.c.bf16 %v2197, %v2194
      %v2252 = vpack.c.bf16 %v2198, %v2195
      %v2253 = vpack.c.bf16 %v2199, %v2196
      %v2254 = vpack.c.bf16 %v2203, %v2200
      %v2255 = vpack.c.bf16 %v2204, %v2201
      %v2256 = vpack.c.bf16 %v2205, %v2202
      %v2257 = vpack.c.bf16 %v2209, %v2206
      %v2258 = vpack.c.bf16 %v2210, %v2207
      %v2259 = vpack.c.bf16 %v2211, %v2208
      %v2260 = vpack.c.bf16 %v2215, %v2212
      %v2261 = vpack.c.bf16 %v2216, %v2213
      %v2262 = vpack.c.bf16 %v2217, %v2214
      %v2263 = vpack.c.bf16 %v2221, %v2218
      %v2264 = vpack.c.bf16 %v2222, %v2219
      %v2265 = vpack.c.bf16 %v2223, %v2220
      %v2266 = vpack.c.bf16 %v2227, %v2224
      %v2267 = vpack.c.bf16 %v2228, %v2225
      %v2268 = vpack.c.bf16 %v2229, %v2226
      %v2269 = vpack.c.bf16 %v2233, %v2230
      %v2270 = vpack.c.bf16 %v2234, %v2231
      %v2271 = vpack.c.bf16 %v2235, %v2232
      %v2272 = vpack.c.bf16 %v2239, %v2236
      %v2273 = vpack.c.bf16 %v2240, %v2237
      %v2274 = vpack.c.bf16 %v2241, %v2238
      %v2275 = vld [vmem:[%s3] sm:$0xff]
      %v2276 = vld [vmem:[%s3 + $0x8] sm:$0xff]
      %v2277 = vld [vmem:[%s3 + $0x10] sm:$0xff]
      %v2278 = vld [vmem:[%s3 + $0x18] sm:$0xff]
      %v2279 = vld [vmem:[%s3 + $0x20] sm:$0xff]
      %v2280 = vld [vmem:[%s3 + $0x28] sm:$0xff]
      %v2281 = vld [vmem:[%s3 + $0x30] sm:$0xff]
      %v2282 = vld [vmem:[%s3 + $0x38] sm:$0xff]
      %v2283 = vld [vmem:[%s3 + $0x40] sm:$0xff]
      %v2284 = vld [vmem:[%s3 + $0x48] sm:$0xff]
      %v2285 = vld [vmem:[%s3 + $0x50] sm:$0xff]
      %v2286 = vld [vmem:[%s3 + $0x58] sm:$0xff]
      %v2287 = vld [vmem:[%s3 + $0x60] sm:$0xff]
      %v2288 = vld [vmem:[%s3 + $0x68] sm:$0xff]
      %v2289 = vld [vmem:[%s3 + $0x70] sm:$0xff]
      %v2290 = vld [vmem:[%s3 + $0x78] sm:$0xff]
      %v2291 = vld [vmem:[%s3 + $0x80] sm:$0xff]
      %v2292 = vld [vmem:[%s3 + $0x88] sm:$0xff]
      %v2293 = vld [vmem:[%s3 + $0x90] sm:$0xff]
      %v2294 = vld [vmem:[%s3 + $0x98] sm:$0xff]
      %v2295 = vld [vmem:[%s3 + $0xa0] sm:$0xff]
      %v2296 = vld [vmem:[%s3 + $0xa8] sm:$0xff]
      %v2297 = vld [vmem:[%s3 + $0xb0] sm:$0xff]
      %v2298 = vld [vmem:[%s3 + $0xb8] sm:$0xff]
      %v2299 = vld [vmem:[%s3 + $0xc0] sm:$0xff]
      %v2300 = vld [vmem:[%s3 + $0xc8] sm:$0xff]
      %v2301 = vld [vmem:[%s3 + $0xd0] sm:$0xff]
      %v2302 = vld [vmem:[%s3 + $0xd8] sm:$0xff]
      %v2303 = vld [vmem:[%s3 + $0xe0] sm:$0xff]
      %v2304 = vld [vmem:[%s3 + $0xe8] sm:$0xff]
      %v2305 = vld [vmem:[%s3 + $0xf0] sm:$0xff]
      %v2306 = vld [vmem:[%s3 + $0xf8] sm:$0xff]
      %v2307 = vld [vmem:[%s3 + $0x100] sm:$0xff]
      %v2308 = vld [vmem:[%s3 + $0x108] sm:$0xff]
      %v2309 = vld [vmem:[%s3 + $0x110] sm:$0xff]
      %v2310 = vld [vmem:[%s3 + $0x118] sm:$0xff]
      %v2311 = vld [vmem:[%s3 + $0x120] sm:$0xff]
      %v2312 = vld [vmem:[%s3 + $0x128] sm:$0xff]
      %v2313 = vld [vmem:[%s3 + $0x130] sm:$0xff]
      %v2314 = vld [vmem:[%s3 + $0x138] sm:$0xff]
      %v2315 = vld [vmem:[%s3 + $0x140] sm:$0xff]
      %v2316 = vld [vmem:[%s3 + $0x148] sm:$0xff]
      %v2317 = vld [vmem:[%s3 + $0x150] sm:$0xff]
      %v2318 = vld [vmem:[%s3 + $0x158] sm:$0xff]
      %v2319 = vld [vmem:[%s3 + $0x160] sm:$0xff]
      %v2320 = vld [vmem:[%s3 + $0x168] sm:$0xff]
      %v2321 = vld [vmem:[%s3 + $0x170] sm:$0x77]
      %v2369 = vunpack.c.l.b16 %v2275
      %v2370 = vunpack.c.h.b16 %v2275
      %v2371 = vunpack.c.l.b16 %v2276
      %v2372 = vunpack.c.h.b16 %v2276
      %v2373 = vunpack.c.l.b16 %v2277
      %v2374 = vunpack.c.h.b16 %v2277
      %v2375 = vunpack.c.l.b16 %v2278
      %v2376 = vunpack.c.h.b16 %v2278
      %v2377 = vunpack.c.l.b16 %v2279
      %v2378 = vunpack.c.h.b16 %v2279
      %v2379 = vunpack.c.l.b16 %v2280
      %v2380 = vunpack.c.h.b16 %v2280
      %v2381 = vunpack.c.l.b16 %v2281
      %v2382 = vunpack.c.h.b16 %v2281
      %v2383 = vunpack.c.l.b16 %v2282
      %v2384 = vunpack.c.h.b16 %v2282
      %v2385 = vunpack.c.l.b16 %v2283
      %v2386 = vunpack.c.h.b16 %v2283
      %v2387 = vunpack.c.l.b16 %v2284
      %v2388 = vunpack.c.h.b16 %v2284
      %v2389 = vunpack.c.l.b16 %v2285
      %v2390 = vunpack.c.h.b16 %v2285
      %v2391 = vunpack.c.l.b16 %v2286
      %v2392 = vunpack.c.h.b16 %v2286
      %v2393 = vunpack.c.l.b16 %v2287
      %v2394 = vunpack.c.h.b16 %v2287
      %v2395 = vunpack.c.l.b16 %v2288
      %v2396 = vunpack.c.h.b16 %v2288
      %v2397 = vunpack.c.l.b16 %v2289
      %v2398 = vunpack.c.h.b16 %v2289
      %v2399 = vunpack.c.l.b16 %v2290
      %v2400 = vunpack.c.h.b16 %v2290
      %v2401 = vunpack.c.l.b16 %v2291
      %v2402 = vunpack.c.h.b16 %v2291
      %v2403 = vunpack.c.l.b16 %v2292
      %v2404 = vunpack.c.h.b16 %v2292
      %v2405 = vunpack.c.l.b16 %v2293
      %v2406 = vunpack.c.h.b16 %v2293
      %v2407 = vunpack.c.l.b16 %v2294
      %v2408 = vunpack.c.h.b16 %v2294
      %v2409 = vunpack.c.l.b16 %v2295
      %v2410 = vunpack.c.h.b16 %v2295
      %v2411 = vunpack.c.l.b16 %v2296
      %v2412 = vunpack.c.h.b16 %v2296
      %v2413 = vunpack.c.l.b16 %v2297
      %v2414 = vunpack.c.h.b16 %v2297
      %v2415 = vunpack.c.l.b16 %v2298
      %v2416 = vunpack.c.h.b16 %v2298
      %v2417 = vunpack.c.l.b16 %v2299
      %v2418 = vunpack.c.h.b16 %v2299
      %v2419 = vunpack.c.l.b16 %v2300
      %v2420 = vunpack.c.h.b16 %v2300
      %v2421 = vunpack.c.l.b16 %v2301
      %v2422 = vunpack.c.h.b16 %v2301
      %v2423 = vunpack.c.l.b16 %v2302
      %v2424 = vunpack.c.h.b16 %v2302
      %v2425 = vunpack.c.l.b16 %v2303
      %v2426 = vunpack.c.h.b16 %v2303
      %v2427 = vunpack.c.l.b16 %v2304
      %v2428 = vunpack.c.h.b16 %v2304
      %v2429 = vunpack.c.l.b16 %v2305
      %v2430 = vunpack.c.h.b16 %v2305
      %v2431 = vunpack.c.l.b16 %v2306
      %v2432 = vunpack.c.h.b16 %v2306
      %v2433 = vunpack.c.l.b16 %v2307
      %v2434 = vunpack.c.h.b16 %v2307
      %v2435 = vunpack.c.l.b16 %v2308
      %v2436 = vunpack.c.h.b16 %v2308
      %v2437 = vunpack.c.l.b16 %v2309
      %v2438 = vunpack.c.h.b16 %v2309
      %v2439 = vunpack.c.l.b16 %v2310
      %v2440 = vunpack.c.h.b16 %v2310
      %v2441 = vunpack.c.l.b16 %v2311
      %v2442 = vunpack.c.h.b16 %v2311
      %v2443 = vunpack.c.l.b16 %v2312
      %v2444 = vunpack.c.h.b16 %v2312
      %v2445 = vunpack.c.l.b16 %v2313
      %v2446 = vunpack.c.h.b16 %v2313
      %v2447 = vunpack.c.l.b16 %v2314
      %v2448 = vunpack.c.h.b16 %v2314
      %v2449 = vunpack.c.l.b16 %v2315
      %v2450 = vunpack.c.h.b16 %v2315
      %v2451 = vunpack.c.l.b16 %v2316
      %v2452 = vunpack.c.h.b16 %v2316
      %v2453 = vunpack.c.l.b16 %v2317
      %v2454 = vunpack.c.h.b16 %v2317
      %v2455 = vunpack.c.l.b16 %v2318
      %v2456 = vunpack.c.h.b16 %v2318
      %v2457 = vunpack.c.l.b16 %v2319
      %v2458 = vunpack.c.h.b16 %v2319
      %v2459 = vunpack.c.l.b16 %v2320
      %v2460 = vunpack.c.h.b16 %v2320
      %v2461 = vunpack.c.l.b16 %v2321
      %v2462 = vunpack.c.h.b16 %v2321
      %v2463 = vpack.c.b16 %v2371, %v2369
      %v2464 = vpack.c.b16 %v2372, %v2370
      %v2465 = vpack.c.b16 %v2375, %v2373
      %v2466 = vpack.c.b16 %v2376, %v2374
      %v2467 = vpack.c.b16 %v2379, %v2377
      %v2468 = vpack.c.b16 %v2380, %v2378
      %v2469 = vpack.c.b16 %v2383, %v2381
      %v2470 = vpack.c.b16 %v2384, %v2382
      %v2471 = vpack.c.b16 %v2387, %v2385
      %v2472 = vpack.c.b16 %v2388, %v2386
      %v2473 = vpack.c.b16 %v2391, %v2389
      %v2474 = vpack.c.b16 %v2392, %v2390
      %v2475 = vpack.c.b16 %v2395, %v2393
      %v2476 = vpack.c.b16 %v2396, %v2394
      %v2477 = vpack.c.b16 %v2399, %v2397
      %v2478 = vpack.c.b16 %v2400, %v2398
      %v2479 = vpack.c.b16 %v2403, %v2401
      %v2480 = vpack.c.b16 %v2404, %v2402
      %v2481 = vpack.c.b16 %v2407, %v2405
      %v2482 = vpack.c.b16 %v2408, %v2406
      %v2483 = vpack.c.b16 %v2411, %v2409
      %v2484 = vpack.c.b16 %v2412, %v2410
      %v2485 = vpack.c.b16 %v2415, %v2413
      %v2486 = vpack.c.b16 %v2416, %v2414
      %v2487 = vpack.c.b16 %v2419, %v2417
      %v2488 = vpack.c.b16 %v2420, %v2418
      %v2489 = vpack.c.b16 %v2423, %v2421
      %v2490 = vpack.c.b16 %v2424, %v2422
      %v2491 = vpack.c.b16 %v2427, %v2425
      %v2492 = vpack.c.b16 %v2428, %v2426
      %v2493 = vpack.c.b16 %v2431, %v2429
      %v2494 = vpack.c.b16 %v2432, %v2430
      %v2495 = vpack.c.b16 %v2435, %v2433
      %v2496 = vpack.c.b16 %v2436, %v2434
      %v2497 = vpack.c.b16 %v2439, %v2437
      %v2498 = vpack.c.b16 %v2440, %v2438
      %v2499 = vpack.c.b16 %v2443, %v2441
      %v2500 = vpack.c.b16 %v2444, %v2442
      %v2501 = vpack.c.b16 %v2447, %v2445
      %v2502 = vpack.c.b16 %v2448, %v2446
      %v2503 = vpack.c.b16 %v2451, %v2449
      %v2504 = vpack.c.b16 %v2452, %v2450
      %v2505 = vpack.c.b16 %v2455, %v2453
      %v2506 = vpack.c.b16 %v2456, %v2454
      %v2507 = vpack.c.b16 %v2459, %v2457
      %v2508 = vpack.c.b16 %v2460, %v2458
      %v2509 = vpack.c.b16 %v2461, %v2461
      %v2510 = vpack.c.b16 %v2462, %v2462
      %vm2557 = vcmask 957440
      %v2559 = vsel %vm2557, %v2244, 0
      %v2562 = vsel %vm2557, %v2247, 0
      %v2565 = vsel %vm2557, %v2250, 0
      %v2568 = vsel %vm2557, %v2253, 0
      %v2571 = vsel %vm2557, %v2256, 0
      %v2574 = vsel %vm2557, %v2259, 0
      %v2577 = vsel %vm2557, %v2262, 0
      %v2580 = vsel %vm2557, %v2265, 0
      %v2583 = vsel %vm2557, %v2268, 0
      %v2586 = vsel %vm2557, %v2271, 0
      %v2589 = vsel %vm2557, %v2274, 0
      %vm2591 = vcmask 1041408
      %vm2592 = vcmask 1042432
      %v2593 = vsel %vm2591, 4294967295, 65535
      %v2594 = vsel %vm2592, %v2593, 0
      %v2596 = vand.u32 %v2509, %v2594
      %v2599 = vand.u32 %v2510, %v2594
      %2601 = vmatpush.bf16.msra.mxu0 %v2477
      %2602 = vmatpush.bf16.msra.mxu0 %v2475
      %2603 = vmatpush.bf16.msra.mxu0 %v2473
      %2604 = vmatpush.bf16.msra.mxu0 %v2471
      %2605 = vmatpush.bf16.msra.mxu0 %v2469
      %2606 = vmatpush.bf16.msra.mxu0 %v2467
      %2607 = vmatpush.bf16.msra.mxu0 %v2465
      %2608 = vmatpush.bf16.msra.mxu0 %v2463
      %2609 = vmatmul.bf16.gmra.mxu0 %v2242
      %v2610 = vpop.f32.mrf.mxu0
      %v2611 = vadd.f32 0.0, %v2610
      %v2612 = vpop.f32.mrf.mxu0
      %v2613 = vadd.f32 0.0, %v2612
      %2614 = vmatmul.bf16.gmra.mxu0 %v2245
      %v2615 = vpop.f32.mrf.mxu0
      %v2616 = vadd.f32 0.0, %v2615
      %v2617 = vpop.f32.mrf.mxu0
      %v2618 = vadd.f32 0.0, %v2617
      %2619 = vmatmul.bf16.gmra.mxu0 %v2248
      %v2620 = vpop.f32.mrf.mxu0
      %v2621 = vadd.f32 0.0, %v2620
      %v2622 = vpop.f32.mrf.mxu0
      %v2623 = vadd.f32 0.0, %v2622
      %2624 = vmatmul.bf16.gmra.mxu0 %v2251
      %v2625 = vpop.f32.mrf.mxu0
      %v2626 = vadd.f32 0.0, %v2625
      %v2627 = vpop.f32.mrf.mxu0
      %v2628 = vadd.f32 0.0, %v2627
      %2629 = vmatmul.bf16.gmra.mxu0 %v2254
      %v2630 = vpop.f32.mrf.mxu0
      %v2631 = vadd.f32 0.0, %v2630
      %v2632 = vpop.f32.mrf.mxu0
      %v2633 = vadd.f32 0.0, %v2632
      %2634 = vmatmul.bf16.gmra.mxu0 %v2257
      %v2635 = vpop.f32.mrf.mxu0
      %v2636 = vadd.f32 0.0, %v2635
      %v2637 = vpop.f32.mrf.mxu0
      %v2638 = vadd.f32 0.0, %v2637
      %2639 = vmatmul.bf16.gmra.mxu0 %v2260
      %v2640 = vpop.f32.mrf.mxu0
      %v2641 = vadd.f32 0.0, %v2640
      %v2642 = vpop.f32.mrf.mxu0
      %v2643 = vadd.f32 0.0, %v2642
      %2644 = vmatmul.bf16.gmra.mxu0 %v2263
      %v2645 = vpop.f32.mrf.mxu0
      %v2646 = vadd.f32 0.0, %v2645
      %v2647 = vpop.f32.mrf.mxu0
      %v2648 = vadd.f32 0.0, %v2647
      %2649 = vmatmul.bf16.gmra.mxu0 %v2266
      %v2650 = vpop.f32.mrf.mxu0
      %v2651 = vadd.f32 0.0, %v2650
      %v2652 = vpop.f32.mrf.mxu0
      %v2653 = vadd.f32 0.0, %v2652
      %2654 = vmatmul.bf16.gmra.mxu0 %v2269
      %v2655 = vpop.f32.mrf.mxu0
      %v2656 = vadd.f32 0.0, %v2655
      %v2657 = vpop.f32.mrf.mxu0
      %v2658 = vadd.f32 0.0, %v2657
      %2659 = vmatmul.bf16.gmra.mxu0 %v2272
      %v2660 = vpop.f32.mrf.mxu0
      %v2661 = vadd.f32 0.0, %v2660
      %v2662 = vpop.f32.mrf.mxu0
      %v2663 = vadd.f32 0.0, %v2662
      %2664 = vdwg.mxu0
      %2665 = vmatpush.bf16.msra.mxu0 %v2493
      %2666 = vmatpush.bf16.msra.mxu0 %v2491
      %2667 = vmatpush.bf16.msra.mxu0 %v2489
      %2668 = vmatpush.bf16.msra.mxu0 %v2487
      %2669 = vmatpush.bf16.msra.mxu0 %v2485
      %2670 = vmatpush.bf16.msra.mxu0 %v2483
      %2671 = vmatpush.bf16.msra.mxu0 %v2481
      %2672 = vmatpush.bf16.msra.mxu0 %v2479
      %2673 = vmatmul.bf16.gmra.mxu0 %v2243
      %v2674 = vpop.f32.mrf.mxu0
      %v2675 = vadd.f32 %v2611, %v2674
      %v2676 = vpop.f32.mrf.mxu0
      %v2677 = vadd.f32 %v2613, %v2676
      %2678 = vmatmul.bf16.gmra.mxu0 %v2246
      %v2679 = vpop.f32.mrf.mxu0
      %v2680 = vadd.f32 %v2616, %v2679
      %v2681 = vpop.f32.mrf.mxu0
      %v2682 = vadd.f32 %v2618, %v2681
      %2683 = vmatmul.bf16.gmra.mxu0 %v2249
      %v2684 = vpop.f32.mrf.mxu0
      %v2685 = vadd.f32 %v2621, %v2684
      %v2686 = vpop.f32.mrf.mxu0
      %v2687 = vadd.f32 %v2623, %v2686
      %2688 = vmatmul.bf16.gmra.mxu0 %v2252
      %v2689 = vpop.f32.mrf.mxu0
      %v2690 = vadd.f32 %v2626, %v2689
      %v2691 = vpop.f32.mrf.mxu0
      %v2692 = vadd.f32 %v2628, %v2691
      %2693 = vmatmul.bf16.gmra.mxu0 %v2255
      %v2694 = vpop.f32.mrf.mxu0
      %v2695 = vadd.f32 %v2631, %v2694
      %v2696 = vpop.f32.mrf.mxu0
      %v2697 = vadd.f32 %v2633, %v2696
      %2698 = vmatmul.bf16.gmra.mxu0 %v2258
      %v2699 = vpop.f32.mrf.mxu0
      %v2700 = vadd.f32 %v2636, %v2699
      %v2701 = vpop.f32.mrf.mxu0
      %v2702 = vadd.f32 %v2638, %v2701
      %2703 = vmatmul.bf16.gmra.mxu0 %v2261
      %v2704 = vpop.f32.mrf.mxu0
      %v2705 = vadd.f32 %v2641, %v2704
      %v2706 = vpop.f32.mrf.mxu0
      %v2707 = vadd.f32 %v2643, %v2706
      %2708 = vmatmul.bf16.gmra.mxu0 %v2264
      %v2709 = vpop.f32.mrf.mxu0
      %v2710 = vadd.f32 %v2646, %v2709
      %v2711 = vpop.f32.mrf.mxu0
      %v2712 = vadd.f32 %v2648, %v2711
      %2713 = vmatmul.bf16.gmra.mxu0 %v2267
      %v2714 = vpop.f32.mrf.mxu0
      %v2715 = vadd.f32 %v2651, %v2714
      %v2716 = vpop.f32.mrf.mxu0
      %v2717 = vadd.f32 %v2653, %v2716
      %2718 = vmatmul.bf16.gmra.mxu0 %v2270
      %v2719 = vpop.f32.mrf.mxu0
      %v2720 = vadd.f32 %v2656, %v2719
      %v2721 = vpop.f32.mrf.mxu0
      %v2722 = vadd.f32 %v2658, %v2721
      %2723 = vmatmul.bf16.gmra.mxu0 %v2273
      %v2724 = vpop.f32.mrf.mxu0
      %v2725 = vadd.f32 %v2661, %v2724
      %v2726 = vpop.f32.mrf.mxu0
      %v2727 = vadd.f32 %v2663, %v2726
      %2728 = vdwg.mxu0
      %2729 = vmatpush.bf16.msra.mxu0 %v2596
      %2730 = vmatpush.bf16.msra.mxu0 %v2507
      %2731 = vmatpush.bf16.msra.mxu0 %v2505
      %2732 = vmatpush.bf16.msra.mxu0 %v2503
      %2733 = vmatpush.bf16.msra.mxu0 %v2501
      %2734 = vmatpush.bf16.msra.mxu0 %v2499
      %2735 = vmatpush.bf16.msra.mxu0 %v2497
      %2736 = vmatpush.bf16.msra.mxu0 %v2495
      %2737 = vmatmul.bf16.gmra.mxu0 %v2559
      %v2738 = vpop.f32.mrf.mxu0
      %v2739 = vadd.f32 %v2675, %v2738
      %v2740 = vpop.f32.mrf.mxu0
      %v2741 = vadd.f32 %v2677, %v2740
      %2742 = vmatmul.bf16.gmra.mxu0 %v2562
      %v2743 = vpop.f32.mrf.mxu0
      %v2744 = vadd.f32 %v2680, %v2743
      %v2745 = vpop.f32.mrf.mxu0
      %v2746 = vadd.f32 %v2682, %v2745
      %2747 = vmatmul.bf16.gmra.mxu0 %v2565
      %v2748 = vpop.f32.mrf.mxu0
      %v2749 = vadd.f32 %v2685, %v2748
      %v2750 = vpop.f32.mrf.mxu0
      %v2751 = vadd.f32 %v2687, %v2750
      %2752 = vmatmul.bf16.gmra.mxu0 %v2568
      %v2753 = vpop.f32.mrf.mxu0
      %v2754 = vadd.f32 %v2690, %v2753
      %v2755 = vpop.f32.mrf.mxu0
      %v2756 = vadd.f32 %v2692, %v2755
      %2757 = vmatmul.bf16.gmra.mxu0 %v2571
      %v2758 = vpop.f32.mrf.mxu0
      %v2759 = vadd.f32 %v2695, %v2758
      %v2760 = vpop.f32.mrf.mxu0
      %v2761 = vadd.f32 %v2697, %v2760
      %2762 = vmatmul.bf16.gmra.mxu0 %v2574
      %v2763 = vpop.f32.mrf.mxu0
      %v2764 = vadd.f32 %v2700, %v2763
      %v2765 = vpop.f32.mrf.mxu0
      %v2766 = vadd.f32 %v2702, %v2765
      %2767 = vmatmul.bf16.gmra.mxu0 %v2577
      %v2768 = vpop.f32.mrf.mxu0
      %v2769 = vadd.f32 %v2705, %v2768
      %v2770 = vpop.f32.mrf.mxu0
      %v2771 = vadd.f32 %v2707, %v2770
      %2772 = vmatmul.bf16.gmra.mxu0 %v2580
      %v2773 = vpop.f32.mrf.mxu0
      %v2774 = vadd.f32 %v2710, %v2773
      %v2775 = vpop.f32.mrf.mxu0
      %v2776 = vadd.f32 %v2712, %v2775
      %2777 = vmatmul.bf16.gmra.mxu0 %v2583
      %v2778 = vpop.f32.mrf.mxu0
      %v2779 = vadd.f32 %v2715, %v2778
      %v2780 = vpop.f32.mrf.mxu0
      %v2781 = vadd.f32 %v2717, %v2780
      %2782 = vmatmul.bf16.gmra.mxu0 %v2586
      %v2783 = vpop.f32.mrf.mxu0
      %v2784 = vadd.f32 %v2720, %v2783
      %v2785 = vpop.f32.mrf.mxu0
      %v2786 = vadd.f32 %v2722, %v2785
      %2787 = vmatmul.bf16.gmra.mxu0 %v2589
      %v2788 = vpop.f32.mrf.mxu0
      %v2789 = vadd.f32 %v2725, %v2788
      %v2790 = vpop.f32.mrf.mxu0
      %v2791 = vadd.f32 %v2727, %v2790
      %2792 = vdwg.mxu0
      %2793 = vmatpush.bf16.msra.mxu0 %v2478
      %2794 = vmatpush.bf16.msra.mxu0 %v2476
      %2795 = vmatpush.bf16.msra.mxu0 %v2474
      %2796 = vmatpush.bf16.msra.mxu0 %v2472
      %2797 = vmatpush.bf16.msra.mxu0 %v2470
      %2798 = vmatpush.bf16.msra.mxu0 %v2468
      %2799 = vmatpush.bf16.msra.mxu0 %v2466
      %2800 = vmatpush.bf16.msra.mxu0 %v2464
      %2801 = vmatmul.bf16.gmra.mxu0 %v2242
      %v2802 = vpop.f32.mrf.mxu0
      %v2803 = vadd.f32 0.0, %v2802
      %v2804 = vpop.f32.mrf.mxu0
      %v2805 = vadd.f32 0.0, %v2804
      %2806 = vmatmul.bf16.gmra.mxu0 %v2245
      %v2807 = vpop.f32.mrf.mxu0
      %v2808 = vadd.f32 0.0, %v2807
      %v2809 = vpop.f32.mrf.mxu0
      %v2810 = vadd.f32 0.0, %v2809
      %2811 = vmatmul.bf16.gmra.mxu0 %v2248
      %v2812 = vpop.f32.mrf.mxu0
      %v2813 = vadd.f32 0.0, %v2812
      %v2814 = vpop.f32.mrf.mxu0
      %v2815 = vadd.f32 0.0, %v2814
      %2816 = vmatmul.bf16.gmra.mxu0 %v2251
      %v2817 = vpop.f32.mrf.mxu0
      %v2818 = vadd.f32 0.0, %v2817
      %v2819 = vpop.f32.mrf.mxu0
      %v2820 = vadd.f32 0.0, %v2819
      %2821 = vmatmul.bf16.gmra.mxu0 %v2254
      %v2822 = vpop.f32.mrf.mxu0
      %v2823 = vadd.f32 0.0, %v2822
      %v2824 = vpop.f32.mrf.mxu0
      %v2825 = vadd.f32 0.0, %v2824
      %2826 = vmatmul.bf16.gmra.mxu0 %v2257
      %v2827 = vpop.f32.mrf.mxu0
      %v2828 = vadd.f32 0.0, %v2827
      %v2829 = vpop.f32.mrf.mxu0
      %v2830 = vadd.f32 0.0, %v2829
      %2831 = vmatmul.bf16.gmra.mxu0 %v2260
      %v2832 = vpop.f32.mrf.mxu0
      %v2833 = vadd.f32 0.0, %v2832
      %v2834 = vpop.f32.mrf.mxu0
      %v2835 = vadd.f32 0.0, %v2834
      %2836 = vmatmul.bf16.gmra.mxu0 %v2263
      %v2837 = vpop.f32.mrf.mxu0
      %v2838 = vadd.f32 0.0, %v2837
      %v2839 = vpop.f32.mrf.mxu0
      %v2840 = vadd.f32 0.0, %v2839
      %2841 = vmatmul.bf16.gmra.mxu0 %v2266
      %v2842 = vpop.f32.mrf.mxu0
      %v2843 = vadd.f32 0.0, %v2842
      %v2844 = vpop.f32.mrf.mxu0
      %v2845 = vadd.f32 0.0, %v2844
      %2846 = vmatmul.bf16.gmra.mxu0 %v2269
      %v2847 = vpop.f32.mrf.mxu0
      %v2848 = vadd.f32 0.0, %v2847
      %v2849 = vpop.f32.mrf.mxu0
      %v2850 = vadd.f32 0.0, %v2849
      %2851 = vmatmul.bf16.gmra.mxu0 %v2272
      %v2852 = vpop.f32.mrf.mxu0
      %v2853 = vadd.f32 0.0, %v2852
      %v2854 = vpop.f32.mrf.mxu0
      %v2855 = vadd.f32 0.0, %v2854
      %2856 = vdwg.mxu0
      %2857 = vmatpush.bf16.msra.mxu0 %v2494
      %2858 = vmatpush.bf16.msra.mxu0 %v2492
      %2859 = vmatpush.bf16.msra.mxu0 %v2490
      %2860 = vmatpush.bf16.msra.mxu0 %v2488
      %2861 = vmatpush.bf16.msra.mxu0 %v2486
      %2862 = vmatpush.bf16.msra.mxu0 %v2484
      %2863 = vmatpush.bf16.msra.mxu0 %v2482
      %2864 = vmatpush.bf16.msra.mxu0 %v2480
      %2865 = vmatmul.bf16.gmra.mxu0 %v2243
      %v2866 = vpop.f32.mrf.mxu0
      %v2867 = vadd.f32 %v2803, %v2866
      %v2868 = vpop.f32.mrf.mxu0
      %v2869 = vadd.f32 %v2805, %v2868
      %2870 = vmatmul.bf16.gmra.mxu0 %v2246
      %v2871 = vpop.f32.mrf.mxu0
      %v2872 = vadd.f32 %v2808, %v2871
      %v2873 = vpop.f32.mrf.mxu0
      %v2874 = vadd.f32 %v2810, %v2873
      %2875 = vmatmul.bf16.gmra.mxu0 %v2249
      %v2876 = vpop.f32.mrf.mxu0
      %v2877 = vadd.f32 %v2813, %v2876
      %v2878 = vpop.f32.mrf.mxu0
      %v2879 = vadd.f32 %v2815, %v2878
      %2880 = vmatmul.bf16.gmra.mxu0 %v2252
      %v2881 = vpop.f32.mrf.mxu0
      %v2882 = vadd.f32 %v2818, %v2881
      %v2883 = vpop.f32.mrf.mxu0
      %v2884 = vadd.f32 %v2820, %v2883
      %2885 = vmatmul.bf16.gmra.mxu0 %v2255
      %v2886 = vpop.f32.mrf.mxu0
      %v2887 = vadd.f32 %v2823, %v2886
      %v2888 = vpop.f32.mrf.mxu0
      %v2889 = vadd.f32 %v2825, %v2888
      %2890 = vmatmul.bf16.gmra.mxu0 %v2258
      %v2891 = vpop.f32.mrf.mxu0
      %v2892 = vadd.f32 %v2828, %v2891
      %v2893 = vpop.f32.mrf.mxu0
      %v2894 = vadd.f32 %v2830, %v2893
      %2895 = vmatmul.bf16.gmra.mxu0 %v2261
      %v2896 = vpop.f32.mrf.mxu0
      %v2897 = vadd.f32 %v2833, %v2896
      %v2898 = vpop.f32.mrf.mxu0
      %v2899 = vadd.f32 %v2835, %v2898
      %2900 = vmatmul.bf16.gmra.mxu0 %v2264
      %v2901 = vpop.f32.mrf.mxu0
      %v2902 = vadd.f32 %v2838, %v2901
      %v2903 = vpop.f32.mrf.mxu0
      %v2904 = vadd.f32 %v2840, %v2903
      %2905 = vmatmul.bf16.gmra.mxu0 %v2267
      %v2906 = vpop.f32.mrf.mxu0
      %v2907 = vadd.f32 %v2843, %v2906
      %v2908 = vpop.f32.mrf.mxu0
      %v2909 = vadd.f32 %v2845, %v2908
      %2910 = vmatmul.bf16.gmra.mxu0 %v2270
      %v2911 = vpop.f32.mrf.mxu0
      %v2912 = vadd.f32 %v2848, %v2911
      %v2913 = vpop.f32.mrf.mxu0
      %v2914 = vadd.f32 %v2850, %v2913
      %2915 = vmatmul.bf16.gmra.mxu0 %v2273
      %v2916 = vpop.f32.mrf.mxu0
      %v2917 = vadd.f32 %v2853, %v2916
      %v2918 = vpop.f32.mrf.mxu0
      %v2919 = vadd.f32 %v2855, %v2918
      %2920 = vdwg.mxu0
      %2921 = vmatpush.bf16.msra.mxu0 %v2599
      %2922 = vmatpush.bf16.msra.mxu0 %v2508
      %2923 = vmatpush.bf16.msra.mxu0 %v2506
      %2924 = vmatpush.bf16.msra.mxu0 %v2504
      %2925 = vmatpush.bf16.msra.mxu0 %v2502
      %2926 = vmatpush.bf16.msra.mxu0 %v2500
      %2927 = vmatpush.bf16.msra.mxu0 %v2498
      %2928 = vmatpush.bf16.msra.mxu0 %v2496
      %2929 = vmatmul.bf16.gmra.mxu0 %v2559
      %v2930 = vpop.f32.mrf.mxu0
      %v2931 = vadd.f32 %v2867, %v2930
      %v2932 = vpop.f32.mrf.mxu0
      %v2933 = vadd.f32 %v2869, %v2932
      %2934 = vmatmul.bf16.gmra.mxu0 %v2562
      %v2935 = vpop.f32.mrf.mxu0
      %v2936 = vadd.f32 %v2872, %v2935
      %v2937 = vpop.f32.mrf.mxu0
      %v2938 = vadd.f32 %v2874, %v2937
      %2939 = vmatmul.bf16.gmra.mxu0 %v2565
      %v2940 = vpop.f32.mrf.mxu0
      %v2941 = vadd.f32 %v2877, %v2940
      %v2942 = vpop.f32.mrf.mxu0
      %v2943 = vadd.f32 %v2879, %v2942
      %2944 = vmatmul.bf16.gmra.mxu0 %v2568
      %v2945 = vpop.f32.mrf.mxu0
      %v2946 = vadd.f32 %v2882, %v2945
      %v2947 = vpop.f32.mrf.mxu0
      %v2948 = vadd.f32 %v2884, %v2947
      %2949 = vmatmul.bf16.gmra.mxu0 %v2571
      %v2950 = vpop.f32.mrf.mxu0
      %v2951 = vadd.f32 %v2887, %v2950
      %v2952 = vpop.f32.mrf.mxu0
      %v2953 = vadd.f32 %v2889, %v2952
      %2954 = vmatmul.bf16.gmra.mxu0 %v2574
      %v2955 = vpop.f32.mrf.mxu0
      %v2956 = vadd.f32 %v2892, %v2955
      %v2957 = vpop.f32.mrf.mxu0
      %v2958 = vadd.f32 %v2894, %v2957
      %2959 = vmatmul.bf16.gmra.mxu0 %v2577
      %v2960 = vpop.f32.mrf.mxu0
      %v2961 = vadd.f32 %v2897, %v2960
      %v2962 = vpop.f32.mrf.mxu0
      %v2963 = vadd.f32 %v2899, %v2962
      %2964 = vmatmul.bf16.gmra.mxu0 %v2580
      %v2965 = vpop.f32.mrf.mxu0
      %v2966 = vadd.f32 %v2902, %v2965
      %v2967 = vpop.f32.mrf.mxu0
      %v2968 = vadd.f32 %v2904, %v2967
      %2969 = vmatmul.bf16.gmra.mxu0 %v2583
      %v2970 = vpop.f32.mrf.mxu0
      %v2971 = vadd.f32 %v2907, %v2970
      %v2972 = vpop.f32.mrf.mxu0
      %v2973 = vadd.f32 %v2909, %v2972
      %2974 = vmatmul.bf16.gmra.mxu0 %v2586
      %v2975 = vpop.f32.mrf.mxu0
      %v2976 = vadd.f32 %v2912, %v2975
      %v2977 = vpop.f32.mrf.mxu0
      %v2978 = vadd.f32 %v2914, %v2977
      %2979 = vmatmul.bf16.gmra.mxu0 %v2589
      %v2980 = vpop.f32.mrf.mxu0
      %v2981 = vadd.f32 %v2917, %v2980
      %v2982 = vpop.f32.mrf.mxu0
      %v2983 = vadd.f32 %v2919, %v2982
      %2984 = vdwg.mxu0
      %v2985 = vpack.c.bf16 0.0, 0.0
      %v2986 = vpack.c.bf16 %v2931, %v2739
      %v2987 = vpack.c.bf16 %v2933, %v2741
      %v2988 = vpack.c.bf16 %v2936, %v2744
      %v2989 = vpack.c.bf16 %v2938, %v2746
      %v2990 = vpack.c.bf16 %v2941, %v2749
      %v2991 = vpack.c.bf16 %v2943, %v2751
      %v2992 = vpack.c.bf16 %v2946, %v2754
      %v2993 = vpack.c.bf16 %v2948, %v2756
      %v2994 = vpack.c.bf16 %v2951, %v2759
      %v2995 = vpack.c.bf16 %v2953, %v2761
      %v2996 = vpack.c.bf16 %v2956, %v2764
      %v2997 = vpack.c.bf16 %v2958, %v2766
      %v2998 = vpack.c.bf16 %v2961, %v2769
      %v2999 = vpack.c.bf16 %v2963, %v2771
      %v3000 = vpack.c.bf16 %v2966, %v2774
      %v3001 = vpack.c.bf16 %v2968, %v2776
      %v3002 = vpack.c.bf16 %v2971, %v2779
      %v3003 = vpack.c.bf16 %v2973, %v2781
      %v3004 = vpack.c.bf16 %v2976, %v2784
      %v3005 = vpack.c.bf16 %v2978, %v2786
      %v3006 = vpack.c.bf16 %v2981, %v2789
      %v3007 = vpack.c.bf16 %v2983, %v2791
      %v3031 = vunpack.c.l.b16 %v2985
      %v3032 = vunpack.c.h.b16 %v2985
      %v3033 = vunpack.c.l.b16 %v2986
      %v3034 = vunpack.c.h.b16 %v2986
      %v3035 = vunpack.c.l.b16 %v2987
      %v3036 = vunpack.c.h.b16 %v2987
      %v3037 = vunpack.c.l.b16 %v2988
      %v3038 = vunpack.c.h.b16 %v2988
      %v3039 = vunpack.c.l.b16 %v2989
      %v3040 = vunpack.c.h.b16 %v2989
      %v3041 = vunpack.c.l.b16 %v2990
      %v3042 = vunpack.c.h.b16 %v2990
      %v3043 = vunpack.c.l.b16 %v2991
      %v3044 = vunpack.c.h.b16 %v2991
      %v3045 = vunpack.c.l.b16 %v2992
      %v3046 = vunpack.c.h.b16 %v2992
      %v3047 = vunpack.c.l.b16 %v2993
      %v3048 = vunpack.c.h.b16 %v2993
      %v3049 = vunpack.c.l.b16 %v2994
      %v3050 = vunpack.c.h.b16 %v2994
      %v3051 = vunpack.c.l.b16 %v2995
      %v3052 = vunpack.c.h.b16 %v2995
      %v3053 = vunpack.c.l.b16 %v2996
      %v3054 = vunpack.c.h.b16 %v2996
      %v3055 = vunpack.c.l.b16 %v2997
      %v3056 = vunpack.c.h.b16 %v2997
      %v3057 = vunpack.c.l.b16 %v2998
      %v3058 = vunpack.c.h.b16 %v2998
      %v3059 = vunpack.c.l.b16 %v2999
      %v3060 = vunpack.c.h.b16 %v2999
      %v3061 = vunpack.c.l.b16 %v3000
      %v3062 = vunpack.c.h.b16 %v3000
      %v3063 = vunpack.c.l.b16 %v3001
      %v3064 = vunpack.c.h.b16 %v3001
      %v3065 = vunpack.c.l.b16 %v3002
      %v3066 = vunpack.c.h.b16 %v3002
      %v3067 = vunpack.c.l.b16 %v3003
      %v3068 = vunpack.c.h.b16 %v3003
      %v3069 = vunpack.c.l.b16 %v3004
      %v3070 = vunpack.c.h.b16 %v3004
      %v3071 = vunpack.c.l.b16 %v3005
      %v3072 = vunpack.c.h.b16 %v3005
      %v3073 = vunpack.c.l.b16 %v3006
      %v3074 = vunpack.c.h.b16 %v3006
      %v3075 = vunpack.c.l.b16 %v3007
      %v3076 = vunpack.c.h.b16 %v3007
      %v3077 = vpack.c.b16 %v3033, %v3031
      %v3078 = vpack.c.b16 %v3034, %v3032
      %v3079 = vpack.c.b16 %v3037, %v3035
      %v3080 = vpack.c.b16 %v3038, %v3036
      %v3081 = vpack.c.b16 %v3041, %v3039
      %v3082 = vpack.c.b16 %v3042, %v3040
      %v3083 = vpack.c.b16 %v3045, %v3043
      %v3084 = vpack.c.b16 %v3046, %v3044
      %v3085 = vpack.c.b16 %v3049, %v3047
      %v3086 = vpack.c.b16 %v3050, %v3048
      %v3087 = vpack.c.b16 %v3053, %v3051
      %v3088 = vpack.c.b16 %v3054, %v3052
      %v3089 = vpack.c.b16 %v3057, %v3055
      %v3090 = vpack.c.b16 %v3058, %v3056
      %v3091 = vpack.c.b16 %v3061, %v3059
      %v3092 = vpack.c.b16 %v3062, %v3060
      %v3093 = vpack.c.b16 %v3065, %v3063
      %v3094 = vpack.c.b16 %v3066, %v3064
      %v3095 = vpack.c.b16 %v3069, %v3067
      %v3096 = vpack.c.b16 %v3070, %v3068
      %v3097 = vpack.c.b16 %v3073, %v3071
      %v3098 = vpack.c.b16 %v3074, %v3072
      %v3099 = vpack.c.b16 %v3031, %v3075
      %v3100 = vpack.c.b16 %v3032, %v3076
      %3125 = vrot.lane.b32.xlu0 %v3077, 127
      %v3126 = vpop.permute.xlu0 %3125
      %3127 = vrot.lane.b32.xlu0 %v3078, 127
      %v3128 = vpop.permute.xlu0 %3127
      %3129 = vrot.lane.b32.xlu0 %v3079, 127
      %v3130 = vpop.permute.xlu0 %3129
      %3131 = vrot.lane.b32.xlu0 %v3080, 127
      %v3132 = vpop.permute.xlu0 %3131
      %3133 = vrot.lane.b32.xlu0 %v3081, 127
      %v3134 = vpop.permute.xlu0 %3133
      %3135 = vrot.lane.b32.xlu0 %v3082, 127
      %v3136 = vpop.permute.xlu0 %3135
      %3137 = vrot.lane.b32.xlu0 %v3083, 127
      %v3138 = vpop.permute.xlu0 %3137
      %3139 = vrot.lane.b32.xlu0 %v3084, 127
      %v3140 = vpop.permute.xlu0 %3139
      %3141 = vrot.lane.b32.xlu0 %v3085, 127
      %v3142 = vpop.permute.xlu0 %3141
      %3143 = vrot.lane.b32.xlu0 %v3086, 127
      %v3144 = vpop.permute.xlu0 %3143
      %3145 = vrot.lane.b32.xlu0 %v3087, 127
      %v3146 = vpop.permute.xlu0 %3145
      %3147 = vrot.lane.b32.xlu0 %v3088, 127
      %v3148 = vpop.permute.xlu0 %3147
      %3149 = vrot.lane.b32.xlu0 %v3089, 127
      %v3150 = vpop.permute.xlu0 %3149
      %3151 = vrot.lane.b32.xlu0 %v3090, 127
      %v3152 = vpop.permute.xlu0 %3151
      %3153 = vrot.lane.b32.xlu0 %v3091, 127
      %v3154 = vpop.permute.xlu0 %3153
      %3155 = vrot.lane.b32.xlu0 %v3092, 127
      %v3156 = vpop.permute.xlu0 %3155
      %3157 = vrot.lane.b32.xlu0 %v3093, 127
      %v3158 = vpop.permute.xlu0 %3157
      %3159 = vrot.lane.b32.xlu0 %v3094, 127
      %v3160 = vpop.permute.xlu0 %3159
      %3161 = vrot.lane.b32.xlu0 %v3095, 127
      %v3162 = vpop.permute.xlu0 %3161
      %3163 = vrot.lane.b32.xlu0 %v3096, 127
      %v3164 = vpop.permute.xlu0 %3163
      %3165 = vrot.lane.b32.xlu0 %v3097, 127
      %v3166 = vpop.permute.xlu0 %3165
      %3167 = vrot.lane.b32.xlu0 %v3098, 127
      %v3168 = vpop.permute.xlu0 %3167
      %3169 = vrot.lane.b32.xlu0 %v3099, 127
      %v3170 = vpop.permute.xlu0 %3169
      %3171 = vrot.lane.b32.xlu0 %v3100, 127
      %v3172 = vpop.permute.xlu0 %3171
      %v3173 = vsel %vm430, %v3126, %v3128
      %v3174 = vsel %vm430, %v3130, %v3132
      %v3175 = vsel %vm430, %v3134, %v3136
      %v3176 = vsel %vm430, %v3138, %v3140
      %v3177 = vsel %vm430, %v3142, %v3144
      %v3178 = vsel %vm430, %v3146, %v3148
      %v3179 = vsel %vm430, %v3150, %v3152
      %v3180 = vsel %vm430, %v3154, %v3156
      %v3181 = vsel %vm430, %v3158, %v3160
      %v3182 = vsel %vm430, %v3162, %v3164
      %v3183 = vsel %vm430, %v3166, %v3168
      %v3184 = vsel %vm430, %v3170, %v3172
      %3209 = vrot.lane.b32.xlu0 %v3077, 126
      %v3210 = vpop.permute.xlu0 %3209
      %3211 = vrot.lane.b32.xlu0 %v3078, 126
      %v3212 = vpop.permute.xlu0 %3211
      %3213 = vrot.lane.b32.xlu0 %v3079, 126
      %v3214 = vpop.permute.xlu0 %3213
      %3215 = vrot.lane.b32.xlu0 %v3080, 126
      %v3216 = vpop.permute.xlu0 %3215
      %3217 = vrot.lane.b32.xlu0 %v3081, 126
      %v3218 = vpop.permute.xlu0 %3217
      %3219 = vrot.lane.b32.xlu0 %v3082, 126
      %v3220 = vpop.permute.xlu0 %3219
      %3221 = vrot.lane.b32.xlu0 %v3083, 126
      %v3222 = vpop.permute.xlu0 %3221
      %3223 = vrot.lane.b32.xlu0 %v3084, 126
      %v3224 = vpop.permute.xlu0 %3223
      %3225 = vrot.lane.b32.xlu0 %v3085, 126
      %v3226 = vpop.permute.xlu0 %3225
      %3227 = vrot.lane.b32.xlu0 %v3086, 126
      %v3228 = vpop.permute.xlu0 %3227
      %3229 = vrot.lane.b32.xlu0 %v3087, 126
      %v3230 = vpop.permute.xlu0 %3229
      %3231 = vrot.lane.b32.xlu0 %v3088, 126
      %v3232 = vpop.permute.xlu0 %3231
      %3233 = vrot.lane.b32.xlu0 %v3089, 126
      %v3234 = vpop.permute.xlu0 %3233
      %3235 = vrot.lane.b32.xlu0 %v3090, 126
      %v3236 = vpop.permute.xlu0 %3235
      %3237 = vrot.lane.b32.xlu0 %v3091, 126
      %v3238 = vpop.permute.xlu0 %3237
      %3239 = vrot.lane.b32.xlu0 %v3092, 126
      %v3240 = vpop.permute.xlu0 %3239
      %3241 = vrot.lane.b32.xlu0 %v3093, 126
      %v3242 = vpop.permute.xlu0 %3241
      %3243 = vrot.lane.b32.xlu0 %v3094, 126
      %v3244 = vpop.permute.xlu0 %3243
      %3245 = vrot.lane.b32.xlu0 %v3095, 126
      %v3246 = vpop.permute.xlu0 %3245
      %3247 = vrot.lane.b32.xlu0 %v3096, 126
      %v3248 = vpop.permute.xlu0 %3247
      %3249 = vrot.lane.b32.xlu0 %v3097, 126
      %v3250 = vpop.permute.xlu0 %3249
      %3251 = vrot.lane.b32.xlu0 %v3098, 126
      %v3252 = vpop.permute.xlu0 %3251
      %3253 = vrot.lane.b32.xlu0 %v3099, 126
      %v3254 = vpop.permute.xlu0 %3253
      %3255 = vrot.lane.b32.xlu0 %v3100, 126
      %v3256 = vpop.permute.xlu0 %3255
      %v3257 = vsel %vm464, %v3210, %v3212
      %v3258 = vsel %vm464, %v3214, %v3216
      %v3259 = vsel %vm464, %v3218, %v3220
      %v3260 = vsel %vm464, %v3222, %v3224
      %v3261 = vsel %vm464, %v3226, %v3228
      %v3262 = vsel %vm464, %v3230, %v3232
      %v3263 = vsel %vm464, %v3234, %v3236
      %v3264 = vsel %vm464, %v3238, %v3240
      %v3265 = vsel %vm464, %v3242, %v3244
      %v3266 = vsel %vm464, %v3246, %v3248
      %v3267 = vsel %vm464, %v3250, %v3252
      %v3268 = vsel %vm464, %v3254, %v3256
      %v3293 = vld [vmem:[%s4] sm:$0xff]
      %v3294 = vld [vmem:[%s4 + $0x8] sm:$0xff]
      %v3295 = vld [vmem:[%s4 + $0x10] sm:$0xf]
      %v3296 = vld [vmem:[%s4 + $0x14] sm:$0xff]
      %v3297 = vld [vmem:[%s4 + $0x1c] sm:$0xff]
      %v3298 = vld [vmem:[%s4 + $0x24] sm:$0xf]
      %v3299 = vld [vmem:[%s4 + $0x28] sm:$0xff]
      %v3300 = vld [vmem:[%s4 + $0x30] sm:$0xff]
      %v3301 = vld [vmem:[%s4 + $0x38] sm:$0xf]
      %v3302 = vld [vmem:[%s4 + $0x3c] sm:$0xff]
      %v3303 = vld [vmem:[%s4 + $0x44] sm:$0xff]
      %v3304 = vld [vmem:[%s4 + $0x4c] sm:$0xf]
      %v3305 = vld [vmem:[%s4 + $0x50] sm:$0xff]
      %v3306 = vld [vmem:[%s4 + $0x58] sm:$0xff]
      %v3307 = vld [vmem:[%s4 + $0x60] sm:$0xf]
      %v3308 = vld [vmem:[%s4 + $0x64] sm:$0xff]
      %v3309 = vld [vmem:[%s4 + $0x6c] sm:$0xff]
      %v3310 = vld [vmem:[%s4 + $0x74] sm:$0xf]
      %v3311 = vld [vmem:[%s4 + $0x78] sm:$0xff]
      %v3312 = vld [vmem:[%s4 + $0x80] sm:$0xff]
      %v3313 = vld [vmem:[%s4 + $0x88] sm:$0xf]
      %v3314 = vld [vmem:[%s4 + $0x8c] sm:$0xff]
      %v3315 = vld [vmem:[%s4 + $0x94] sm:$0xff]
      %v3316 = vld [vmem:[%s4 + $0x9c] sm:$0xf]
      %v3317 = vld [vmem:[%s4 + $0xa0] sm:$0xff]
      %v3318 = vld [vmem:[%s4 + $0xa8] sm:$0xff]
      %v3319 = vld [vmem:[%s4 + $0xb0] sm:$0xf]
      %v3320 = vld [vmem:[%s4 + $0xb4] sm:$0xff]
      %v3321 = vld [vmem:[%s4 + $0xbc] sm:$0xff]
      %v3322 = vld [vmem:[%s4 + $0xc4] sm:$0xf]
      %v3323 = vld [vmem:[%s4 + $0xc8] sm:$0xff]
      %v3324 = vld [vmem:[%s4 + $0xd0] sm:$0xff]
      %v3325 = vld [vmem:[%s4 + $0xd8] sm:$0xf]
      %v3326 = vld [vmem:[%s4 + $0xdc] sm:$0xff]
      %v3327 = vld [vmem:[%s4 + $0xe4] sm:$0xff]
      %v3328 = vld [vmem:[%s4 + $0xec] sm:$0xf]
      %v3329 = vld [vmem:[%s4 + $0xf0] sm:$0xff]
      %v3330 = vld [vmem:[%s4 + $0xf8] sm:$0xff]
      %v3331 = vld [vmem:[%s4 + $0x100] sm:$0xf]
      %v3332 = vld [vmem:[%s4 + $0x104] sm:$0xff]
      %v3333 = vld [vmem:[%s4 + $0x10c] sm:$0xff]
      %v3334 = vld [vmem:[%s4 + $0x114] sm:$0xf]
      %v3335 = vld [vmem:[%s4 + $0x118] sm:$0xff]
      %v3336 = vld [vmem:[%s4 + $0x120] sm:$0xff]
      %v3337 = vld [vmem:[%s4 + $0x128] sm:$0xf]
      %v3338 = vld [vmem:[%s4 + $0x12c] sm:$0xff]
      %v3339 = vld [vmem:[%s4 + $0x134] sm:$0xff]
      %v3340 = vld [vmem:[%s4 + $0x13c] sm:$0xf]
      %v3341 = vld [vmem:[%s4 + $0x140] sm:$0xff]
      %v3342 = vld [vmem:[%s4 + $0x148] sm:$0xff]
      %v3343 = vld [vmem:[%s4 + $0x150] sm:$0xf]
      %v3344 = vld [vmem:[%s4 + $0x154] sm:$0xff]
      %v3345 = vld [vmem:[%s4 + $0x15c] sm:$0xff]
      %v3346 = vld [vmem:[%s4 + $0x164] sm:$0xf]
      %v3347 = vld [vmem:[%s4 + $0x168] sm:$0xff]
      %v3348 = vld [vmem:[%s4 + $0x170] sm:$0xff]
      %v3349 = vld [vmem:[%s4 + $0x178] sm:$0xf]
      %v3350 = vld [vmem:[%s4 + $0x17c] sm:$0xff]
      %v3351 = vld [vmem:[%s4 + $0x184] sm:$0xff]
      %v3352 = vld [vmem:[%s4 + $0x18c] sm:$0xf]
      %v3353 = vld [vmem:[%s4 + $0x190] sm:$0xff]
      %v3354 = vld [vmem:[%s4 + $0x198] sm:$0xff]
      %v3355 = vld [vmem:[%s4 + $0x1a0] sm:$0xf]
      %v3356 = vld [vmem:[%s4 + $0x1a4] sm:$0xff]
      %v3357 = vld [vmem:[%s4 + $0x1ac] sm:$0xff]
      %v3358 = vld [vmem:[%s4 + $0x1b4] sm:$0xf]
      %v3359 = vld [vmem:[%s4 + $0x1b8] sm:$0xff]
      %v3360 = vld [vmem:[%s4 + $0x1c0] sm:$0xff]
      %v3361 = vld [vmem:[%s4 + $0x1c8] sm:$0xf]
      %v3362 = vld [vmem:[%s4 + $0x1cc] sm:$0xff]
      %v3363 = vld [vmem:[%s4 + $0x1d4] sm:$0xff]
      %v3364 = vld [vmem:[%s4 + $0x1dc] sm:$0xf]
      %v3365 = vld [vmem:[%s4 + $0x1e0] sm:$0xff]
      %v3366 = vld [vmem:[%s4 + $0x1e8] sm:$0xff]
      %v3367 = vld [vmem:[%s4 + $0x1f0] sm:$0xf]
      %v3368 = vld [vmem:[%s4 + $0x1f4] sm:$0xff]
      %v3369 = vld [vmem:[%s4 + $0x1fc] sm:$0xff]
      %v3370 = vld [vmem:[%s4 + $0x204] sm:$0xf]
      %v3371 = vld [vmem:[%s4 + $0x208] sm:$0xff]
      %v3372 = vld [vmem:[%s4 + $0x210] sm:$0xff]
      %v3373 = vld [vmem:[%s4 + $0x218] sm:$0xf]
      %v3374 = vld [vmem:[%s4 + $0x21c] sm:$0xff]
      %v3375 = vld [vmem:[%s4 + $0x224] sm:$0xff]
      %v3376 = vld [vmem:[%s4 + $0x22c] sm:$0xf]
      %v3377 = vld [vmem:[%s4 + $0x230] sm:$0xff]
      %v3378 = vld [vmem:[%s4 + $0x238] sm:$0xff]
      %v3379 = vld [vmem:[%s4 + $0x240] sm:$0xf]
      %v3380 = vld [vmem:[%s4 + $0x244] sm:$0xff]
      %v3381 = vld [vmem:[%s4 + $0x24c] sm:$0xff]
      %v3382 = vld [vmem:[%s4 + $0x254] sm:$0xf]
      %v3383 = vld [vmem:[%s4 + $0x258] sm:$0xff]
      %v3384 = vld [vmem:[%s4 + $0x260] sm:$0xff]
      %v3385 = vld [vmem:[%s4 + $0x268] sm:$0xf]
      %v3386 = vld [vmem:[%s4 + $0x26c] sm:$0xff]
      %v3387 = vld [vmem:[%s4 + $0x274] sm:$0xff]
      %v3388 = vld [vmem:[%s4 + $0x27c] sm:$0xf]
      %v3389 = vld [vmem:[%s4 + $0x280] sm:$0xff]
      %v3390 = vld [vmem:[%s4 + $0x288] sm:$0xff]
      %v3391 = vld [vmem:[%s4 + $0x290] sm:$0xf]
      %v3392 = vld [vmem:[%s4 + $0x294] sm:$0xff]
      %v3393 = vld [vmem:[%s4 + $0x29c] sm:$0xff]
      %v3394 = vld [vmem:[%s4 + $0x2a4] sm:$0xf]
      %v3395 = vld [vmem:[%s4 + $0x2a8] sm:$0xff]
      %v3396 = vld [vmem:[%s4 + $0x2b0] sm:$0xff]
      %v3397 = vld [vmem:[%s4 + $0x2b8] sm:$0xf]
      %v3398 = vld [vmem:[%s4 + $0x2bc] sm:$0xff]
      %v3399 = vld [vmem:[%s4 + $0x2c4] sm:$0xff]
      %v3400 = vld [vmem:[%s4 + $0x2cc] sm:$0xf]
      %v3401 = vld [vmem:[%s4 + $0x2d0] sm:$0xff]
      %v3402 = vld [vmem:[%s4 + $0x2d8] sm:$0xff]
      %v3403 = vld [vmem:[%s4 + $0x2e0] sm:$0xf]
      %v3404 = vld [vmem:[%s4 + $0x2e4] sm:$0xff]
      %v3405 = vld [vmem:[%s4 + $0x2ec] sm:$0xff]
      %v3406 = vld [vmem:[%s4 + $0x2f4] sm:$0xf]
      %v3407 = vld [vmem:[%s4 + $0x2f8] sm:$0xff]
      %v3408 = vld [vmem:[%s4 + $0x300] sm:$0xff]
      %v3409 = vld [vmem:[%s4 + $0x308] sm:$0xf]
      %v3410 = vld [vmem:[%s4 + $0x30c] sm:$0xff]
      %v3411 = vld [vmem:[%s4 + $0x314] sm:$0xff]
      %v3412 = vld [vmem:[%s4 + $0x31c] sm:$0xf]
      %v3413 = vld [vmem:[%s4 + $0x320] sm:$0xff]
      %v3414 = vld [vmem:[%s4 + $0x328] sm:$0xff]
      %v3415 = vld [vmem:[%s4 + $0x330] sm:$0xf]
      %v3416 = vld [vmem:[%s4 + $0x334] sm:$0xff]
      %v3417 = vld [vmem:[%s4 + $0x33c] sm:$0xff]
      %v3418 = vld [vmem:[%s4 + $0x344] sm:$0xf]
      %v3419 = vld [vmem:[%s4 + $0x348] sm:$0xff]
      %v3420 = vld [vmem:[%s4 + $0x350] sm:$0xff]
      %v3421 = vld [vmem:[%s4 + $0x358] sm:$0xf]
      %v3422 = vld [vmem:[%s4 + $0x35c] sm:$0xff]
      %v3423 = vld [vmem:[%s4 + $0x364] sm:$0xff]
      %v3424 = vld [vmem:[%s4 + $0x36c] sm:$0xf]
      %v3557 = vunpack.c.l.b16 %v3293
      %v3558 = vunpack.c.h.b16 %v3293
      %v3559 = vunpack.c.l.b16 %v3294
      %v3560 = vunpack.c.h.b16 %v3294
      %v3561 = vunpack.c.l.b16 %v3295
      %v3562 = vunpack.c.l.b16 %v3296
      %v3563 = vunpack.c.h.b16 %v3296
      %v3564 = vunpack.c.l.b16 %v3297
      %v3565 = vunpack.c.h.b16 %v3297
      %v3566 = vunpack.c.l.b16 %v3298
      %v3567 = vunpack.c.l.b16 %v3299
      %v3568 = vunpack.c.h.b16 %v3299
      %v3569 = vunpack.c.l.b16 %v3300
      %v3570 = vunpack.c.h.b16 %v3300
      %v3571 = vunpack.c.l.b16 %v3301
      %v3572 = vunpack.c.l.b16 %v3302
      %v3573 = vunpack.c.h.b16 %v3302
      %v3574 = vunpack.c.l.b16 %v3303
      %v3575 = vunpack.c.h.b16 %v3303
      %v3576 = vunpack.c.l.b16 %v3304
      %v3577 = vunpack.c.l.b16 %v3305
      %v3578 = vunpack.c.h.b16 %v3305
      %v3579 = vunpack.c.l.b16 %v3306
      %v3580 = vunpack.c.h.b16 %v3306
      %v3581 = vunpack.c.l.b16 %v3307
      %v3582 = vunpack.c.l.b16 %v3308
      %v3583 = vunpack.c.h.b16 %v3308
      %v3584 = vunpack.c.l.b16 %v3309
      %v3585 = vunpack.c.h.b16 %v3309
      %v3586 = vunpack.c.l.b16 %v3310
      %v3587 = vunpack.c.l.b16 %v3311
      %v3588 = vunpack.c.h.b16 %v3311
      %v3589 = vunpack.c.l.b16 %v3312
      %v3590 = vunpack.c.h.b16 %v3312
      %v3591 = vunpack.c.l.b16 %v3313
      %v3592 = vunpack.c.l.b16 %v3314
      %v3593 = vunpack.c.h.b16 %v3314
      %v3594 = vunpack.c.l.b16 %v3315
      %v3595 = vunpack.c.h.b16 %v3315
      %v3596 = vunpack.c.l.b16 %v3316
      %v3597 = vunpack.c.l.b16 %v3317
      %v3598 = vunpack.c.h.b16 %v3317
      %v3599 = vunpack.c.l.b16 %v3318
      %v3600 = vunpack.c.h.b16 %v3318
      %v3601 = vunpack.c.l.b16 %v3319
      %v3602 = vunpack.c.l.b16 %v3320
      %v3603 = vunpack.c.h.b16 %v3320
      %v3604 = vunpack.c.l.b16 %v3321
      %v3605 = vunpack.c.h.b16 %v3321
      %v3606 = vunpack.c.l.b16 %v3322
      %v3607 = vunpack.c.l.b16 %v3323
      %v3608 = vunpack.c.h.b16 %v3323
      %v3609 = vunpack.c.l.b16 %v3324
      %v3610 = vunpack.c.h.b16 %v3324
      %v3611 = vunpack.c.l.b16 %v3325
      %v3612 = vunpack.c.l.b16 %v3326
      %v3613 = vunpack.c.h.b16 %v3326
      %v3614 = vunpack.c.l.b16 %v3327
      %v3615 = vunpack.c.h.b16 %v3327
      %v3616 = vunpack.c.l.b16 %v3328
      %v3617 = vunpack.c.l.b16 %v3329
      %v3618 = vunpack.c.h.b16 %v3329
      %v3619 = vunpack.c.l.b16 %v3330
      %v3620 = vunpack.c.h.b16 %v3330
      %v3621 = vunpack.c.l.b16 %v3331
      %v3622 = vunpack.c.l.b16 %v3332
      %v3623 = vunpack.c.h.b16 %v3332
      %v3624 = vunpack.c.l.b16 %v3333
      %v3625 = vunpack.c.h.b16 %v3333
      %v3626 = vunpack.c.l.b16 %v3334
      %v3627 = vunpack.c.l.b16 %v3335
      %v3628 = vunpack.c.h.b16 %v3335
      %v3629 = vunpack.c.l.b16 %v3336
      %v3630 = vunpack.c.h.b16 %v3336
      %v3631 = vunpack.c.l.b16 %v3337
      %v3632 = vunpack.c.l.b16 %v3338
      %v3633 = vunpack.c.h.b16 %v3338
      %v3634 = vunpack.c.l.b16 %v3339
      %v3635 = vunpack.c.h.b16 %v3339
      %v3636 = vunpack.c.l.b16 %v3340
      %v3637 = vunpack.c.l.b16 %v3341
      %v3638 = vunpack.c.h.b16 %v3341
      %v3639 = vunpack.c.l.b16 %v3342
      %v3640 = vunpack.c.h.b16 %v3342
      %v3641 = vunpack.c.l.b16 %v3343
      %v3642 = vunpack.c.l.b16 %v3344
      %v3643 = vunpack.c.h.b16 %v3344
      %v3644 = vunpack.c.l.b16 %v3345
      %v3645 = vunpack.c.h.b16 %v3345
      %v3646 = vunpack.c.l.b16 %v3346
      %v3647 = vunpack.c.l.b16 %v3347
      %v3648 = vunpack.c.h.b16 %v3347
      %v3649 = vunpack.c.l.b16 %v3348
      %v3650 = vunpack.c.h.b16 %v3348
      %v3651 = vunpack.c.l.b16 %v3349
      %v3652 = vunpack.c.l.b16 %v3350
      %v3653 = vunpack.c.h.b16 %v3350
      %v3654 = vunpack.c.l.b16 %v3351
      %v3655 = vunpack.c.h.b16 %v3351
      %v3656 = vunpack.c.l.b16 %v3352
      %v3657 = vunpack.c.l.b16 %v3353
      %v3658 = vunpack.c.h.b16 %v3353
      %v3659 = vunpack.c.l.b16 %v3354
      %v3660 = vunpack.c.h.b16 %v3354
      %v3661 = vunpack.c.l.b16 %v3355
      %v3662 = vunpack.c.l.b16 %v3356
      %v3663 = vunpack.c.h.b16 %v3356
      %v3664 = vunpack.c.l.b16 %v3357
      %v3665 = vunpack.c.h.b16 %v3357
      %v3666 = vunpack.c.l.b16 %v3358
      %v3667 = vunpack.c.l.b16 %v3359
      %v3668 = vunpack.c.h.b16 %v3359
      %v3669 = vunpack.c.l.b16 %v3360
      %v3670 = vunpack.c.h.b16 %v3360
      %v3671 = vunpack.c.l.b16 %v3361
      %v3672 = vunpack.c.l.b16 %v3362
      %v3673 = vunpack.c.h.b16 %v3362
      %v3674 = vunpack.c.l.b16 %v3363
      %v3675 = vunpack.c.h.b16 %v3363
      %v3676 = vunpack.c.l.b16 %v3364
      %v3677 = vunpack.c.l.b16 %v3365
      %v3678 = vunpack.c.h.b16 %v3365
      %v3679 = vunpack.c.l.b16 %v3366
      %v3680 = vunpack.c.h.b16 %v3366
      %v3681 = vunpack.c.l.b16 %v3367
      %v3682 = vunpack.c.l.b16 %v3368
      %v3683 = vunpack.c.h.b16 %v3368
      %v3684 = vunpack.c.l.b16 %v3369
      %v3685 = vunpack.c.h.b16 %v3369
      %v3686 = vunpack.c.l.b16 %v3370
      %v3687 = vunpack.c.l.b16 %v3371
      %v3688 = vunpack.c.h.b16 %v3371
      %v3689 = vunpack.c.l.b16 %v3372
      %v3690 = vunpack.c.h.b16 %v3372
      %v3691 = vunpack.c.l.b16 %v3373
      %v3692 = vunpack.c.l.b16 %v3374
      %v3693 = vunpack.c.h.b16 %v3374
      %v3694 = vunpack.c.l.b16 %v3375
      %v3695 = vunpack.c.h.b16 %v3375
      %v3696 = vunpack.c.l.b16 %v3376
      %v3697 = vunpack.c.l.b16 %v3377
      %v3698 = vunpack.c.h.b16 %v3377
      %v3699 = vunpack.c.l.b16 %v3378
      %v3700 = vunpack.c.h.b16 %v3378
      %v3701 = vunpack.c.l.b16 %v3379
      %v3702 = vunpack.c.l.b16 %v3380
      %v3703 = vunpack.c.h.b16 %v3380
      %v3704 = vunpack.c.l.b16 %v3381
      %v3705 = vunpack.c.h.b16 %v3381
      %v3706 = vunpack.c.l.b16 %v3382
      %v3707 = vunpack.c.l.b16 %v3383
      %v3708 = vunpack.c.h.b16 %v3383
      %v3709 = vunpack.c.l.b16 %v3384
      %v3710 = vunpack.c.h.b16 %v3384
      %v3711 = vunpack.c.l.b16 %v3385
      %v3712 = vunpack.c.l.b16 %v3386
      %v3713 = vunpack.c.h.b16 %v3386
      %v3714 = vunpack.c.l.b16 %v3387
      %v3715 = vunpack.c.h.b16 %v3387
      %v3716 = vunpack.c.l.b16 %v3388
      %v3717 = vunpack.c.l.b16 %v3389
      %v3718 = vunpack.c.h.b16 %v3389
      %v3719 = vunpack.c.l.b16 %v3390
      %v3720 = vunpack.c.h.b16 %v3390
      %v3721 = vunpack.c.l.b16 %v3391
      %v3722 = vunpack.c.l.b16 %v3392
      %v3723 = vunpack.c.h.b16 %v3392
      %v3724 = vunpack.c.l.b16 %v3393
      %v3725 = vunpack.c.h.b16 %v3393
      %v3726 = vunpack.c.l.b16 %v3394
      %v3727 = vunpack.c.l.b16 %v3395
      %v3728 = vunpack.c.h.b16 %v3395
      %v3729 = vunpack.c.l.b16 %v3396
      %v3730 = vunpack.c.h.b16 %v3396
      %v3731 = vunpack.c.l.b16 %v3397
      %v3732 = vunpack.c.l.b16 %v3398
      %v3733 = vunpack.c.h.b16 %v3398
      %v3734 = vunpack.c.l.b16 %v3399
      %v3735 = vunpack.c.h.b16 %v3399
      %v3736 = vunpack.c.l.b16 %v3400
      %v3737 = vunpack.c.l.b16 %v3401
      %v3738 = vunpack.c.h.b16 %v3401
      %v3739 = vunpack.c.l.b16 %v3402
      %v3740 = vunpack.c.h.b16 %v3402
      %v3741 = vunpack.c.l.b16 %v3403
      %v3742 = vunpack.c.l.b16 %v3404
      %v3743 = vunpack.c.h.b16 %v3404
      %v3744 = vunpack.c.l.b16 %v3405
      %v3745 = vunpack.c.h.b16 %v3405
      %v3746 = vunpack.c.l.b16 %v3406
      %v3747 = vunpack.c.l.b16 %v3407
      %v3748 = vunpack.c.h.b16 %v3407
      %v3749 = vunpack.c.l.b16 %v3408
      %v3750 = vunpack.c.h.b16 %v3408
      %v3751 = vunpack.c.l.b16 %v3409
      %v3752 = vunpack.c.l.b16 %v3410
      %v3753 = vunpack.c.h.b16 %v3410
      %v3754 = vunpack.c.l.b16 %v3411
      %v3755 = vunpack.c.h.b16 %v3411
      %v3756 = vunpack.c.l.b16 %v3412
      %v3757 = vunpack.c.l.b16 %v3413
      %v3758 = vunpack.c.h.b16 %v3413
      %v3759 = vunpack.c.l.b16 %v3414
      %v3760 = vunpack.c.h.b16 %v3414
      %v3761 = vunpack.c.l.b16 %v3415
      %v3762 = vunpack.c.l.b16 %v3416
      %v3763 = vunpack.c.h.b16 %v3416
      %v3764 = vunpack.c.l.b16 %v3417
      %v3765 = vunpack.c.h.b16 %v3417
      %v3766 = vunpack.c.l.b16 %v3418
      %v3767 = vunpack.c.l.b16 %v3419
      %v3768 = vunpack.c.h.b16 %v3419
      %v3769 = vunpack.c.l.b16 %v3420
      %v3770 = vunpack.c.h.b16 %v3420
      %v3771 = vunpack.c.l.b16 %v3421
      %v3772 = vunpack.c.l.b16 %v3422
      %v3773 = vunpack.c.h.b16 %v3422
      %v3774 = vunpack.c.l.b16 %v3423
      %v3775 = vunpack.c.h.b16 %v3423
      %v3776 = vunpack.c.l.b16 %v3424
      %v3777 = vpack.c.b16 %v3562, %v3557
      %v3778 = vpack.c.b16 %v3563, %v3558
      %v3779 = vpack.c.b16 %v3564, %v3559
      %v3780 = vpack.c.b16 %v3565, %v3560
      %v3781 = vpack.c.b16 %v3566, %v3561
      %v3782 = vpack.c.b16 %v3572, %v3567
      %v3783 = vpack.c.b16 %v3573, %v3568
      %v3784 = vpack.c.b16 %v3574, %v3569
      %v3785 = vpack.c.b16 %v3575, %v3570
      %v3786 = vpack.c.b16 %v3576, %v3571
      %v3787 = vpack.c.b16 %v3582, %v3577
      %v3788 = vpack.c.b16 %v3583, %v3578
      %v3789 = vpack.c.b16 %v3584, %v3579
      %v3790 = vpack.c.b16 %v3585, %v3580
      %v3791 = vpack.c.b16 %v3586, %v3581
      %v3792 = vpack.c.b16 %v3592, %v3587
      %v3793 = vpack.c.b16 %v3593, %v3588
      %v3794 = vpack.c.b16 %v3594, %v3589
      %v3795 = vpack.c.b16 %v3595, %v3590
      %v3796 = vpack.c.b16 %v3596, %v3591
      %v3797 = vpack.c.b16 %v3602, %v3597
      %v3798 = vpack.c.b16 %v3603, %v3598
      %v3799 = vpack.c.b16 %v3604, %v3599
      %v3800 = vpack.c.b16 %v3605, %v3600
      %v3801 = vpack.c.b16 %v3606, %v3601
      %v3802 = vpack.c.b16 %v3612, %v3607
      %v3803 = vpack.c.b16 %v3613, %v3608
      %v3804 = vpack.c.b16 %v3614, %v3609
      %v3805 = vpack.c.b16 %v3615, %v3610
      %v3806 = vpack.c.b16 %v3616, %v3611
      %v3807 = vpack.c.b16 %v3622, %v3617
      %v3808 = vpack.c.b16 %v3623, %v3618
      %v3809 = vpack.c.b16 %v3624, %v3619
      %v3810 = vpack.c.b16 %v3625, %v3620
      %v3811 = vpack.c.b16 %v3626, %v3621
      %v3812 = vpack.c.b16 %v3632, %v3627
      %v3813 = vpack.c.b16 %v3633, %v3628
      %v3814 = vpack.c.b16 %v3634, %v3629
      %v3815 = vpack.c.b16 %v3635, %v3630
      %v3816 = vpack.c.b16 %v3636, %v3631
      %v3817 = vpack.c.b16 %v3642, %v3637
      %v3818 = vpack.c.b16 %v3643, %v3638
      %v3819 = vpack.c.b16 %v3644, %v3639
      %v3820 = vpack.c.b16 %v3645, %v3640
      %v3821 = vpack.c.b16 %v3646, %v3641
      %v3822 = vpack.c.b16 %v3652, %v3647
      %v3823 = vpack.c.b16 %v3653, %v3648
      %v3824 = vpack.c.b16 %v3654, %v3649
      %v3825 = vpack.c.b16 %v3655, %v3650
      %v3826 = vpack.c.b16 %v3656, %v3651
      %v3827 = vpack.c.b16 %v3662, %v3657
      %v3828 = vpack.c.b16 %v3663, %v3658
      %v3829 = vpack.c.b16 %v3664, %v3659
      %v3830 = vpack.c.b16 %v3665, %v3660
      %v3831 = vpack.c.b16 %v3666, %v3661
      %v3832 = vpack.c.b16 %v3672, %v3667
      %v3833 = vpack.c.b16 %v3673, %v3668
      %v3834 = vpack.c.b16 %v3674, %v3669
      %v3835 = vpack.c.b16 %v3675, %v3670
      %v3836 = vpack.c.b16 %v3676, %v3671
      %v3837 = vpack.c.b16 %v3682, %v3677
      %v3838 = vpack.c.b16 %v3683, %v3678
      %v3839 = vpack.c.b16 %v3684, %v3679
      %v3840 = vpack.c.b16 %v3685, %v3680
      %v3841 = vpack.c.b16 %v3686, %v3681
      %v3842 = vpack.c.b16 %v3692, %v3687
      %v3843 = vpack.c.b16 %v3693, %v3688
      %v3844 = vpack.c.b16 %v3694, %v3689
      %v3845 = vpack.c.b16 %v3695, %v3690
      %v3846 = vpack.c.b16 %v3696, %v3691
      %v3847 = vpack.c.b16 %v3702, %v3697
      %v3848 = vpack.c.b16 %v3703, %v3698
      %v3849 = vpack.c.b16 %v3704, %v3699
      %v3850 = vpack.c.b16 %v3705, %v3700
      %v3851 = vpack.c.b16 %v3706, %v3701
      %v3852 = vpack.c.b16 %v3712, %v3707
      %v3853 = vpack.c.b16 %v3713, %v3708
      %v3854 = vpack.c.b16 %v3714, %v3709
      %v3855 = vpack.c.b16 %v3715, %v3710
      %v3856 = vpack.c.b16 %v3716, %v3711
      %v3857 = vpack.c.b16 %v3722, %v3717
      %v3858 = vpack.c.b16 %v3723, %v3718
      %v3859 = vpack.c.b16 %v3724, %v3719
      %v3860 = vpack.c.b16 %v3725, %v3720
      %v3861 = vpack.c.b16 %v3726, %v3721
      %v3862 = vpack.c.b16 %v3732, %v3727
      %v3863 = vpack.c.b16 %v3733, %v3728
      %v3864 = vpack.c.b16 %v3734, %v3729
      %v3865 = vpack.c.b16 %v3735, %v3730
      %v3866 = vpack.c.b16 %v3736, %v3731
      %v3867 = vpack.c.b16 %v3742, %v3737
      %v3868 = vpack.c.b16 %v3743, %v3738
      %v3869 = vpack.c.b16 %v3744, %v3739
      %v3870 = vpack.c.b16 %v3745, %v3740
      %v3871 = vpack.c.b16 %v3746, %v3741
      %v3872 = vpack.c.b16 %v3752, %v3747
      %v3873 = vpack.c.b16 %v3753, %v3748
      %v3874 = vpack.c.b16 %v3754, %v3749
      %v3875 = vpack.c.b16 %v3755, %v3750
      %v3876 = vpack.c.b16 %v3756, %v3751
      %v3877 = vpack.c.b16 %v3762, %v3757
      %v3878 = vpack.c.b16 %v3763, %v3758
      %v3879 = vpack.c.b16 %v3764, %v3759
      %v3880 = vpack.c.b16 %v3765, %v3760
      %v3881 = vpack.c.b16 %v3766, %v3761
      %v3882 = vpack.c.b16 %v3772, %v3767
      %v3883 = vpack.c.b16 %v3773, %v3768
      %v3884 = vpack.c.b16 %v3774, %v3769
      %v3885 = vpack.c.b16 %v3775, %v3770
      %v3886 = vpack.c.b16 %v3776, %v3771
      %vm3975 = vcmask 523264
      %v3977 = vsel %vm3975, %v3781, 0
      %v3980 = vsel %vm3975, %v3786, 0
      %v3983 = vsel %vm3975, %v3791, 0
      %v3986 = vsel %vm3975, %v3796, 0
      %v3989 = vsel %vm3975, %v3801, 0
      %v3992 = vsel %vm3975, %v3806, 0
      %v3995 = vsel %vm3975, %v3811, 0
      %v3998 = vsel %vm3975, %v3816, 0
      %v4001 = vsel %vm3975, %v3821, 0
      %v4004 = vsel %vm3975, %v3826, 0
      %v4007 = vsel %vm3975, %v3831, 0
      %v4010 = vsel %vm3975, %v3836, 0
      %v4013 = vsel %vm3975, %v3841, 0
      %v4016 = vsel %vm3975, %v3846, 0
      %v4019 = vsel %vm3975, %v3851, 0
      %v4022 = vsel %vm3975, %v3856, 0
      %v4025 = vsel %vm3975, %v3861, 0
      %v4028 = vsel %vm3975, %v3866, 0
      %v4031 = vsel %vm3975, %v3871, 0
      %v4034 = vsel %vm3975, %v3876, 0
      %v4037 = vsel %vm3975, %v3881, 0
      %v4040 = vsel %vm3975, %v3886, 0
      %4042 = vmatpush.bf16.msra.mxu0 %v3091
      %4043 = vmatpush.bf16.msra.mxu0 %v3089
      %4044 = vmatpush.bf16.msra.mxu0 %v3087
      %4045 = vmatpush.bf16.msra.mxu0 %v3085
      %4046 = vmatpush.bf16.msra.mxu0 %v3083
      %4047 = vmatpush.bf16.msra.mxu0 %v3081
      %4048 = vmatpush.bf16.msra.mxu0 %v3079
      %4049 = vmatpush.bf16.msra.mxu0 %v3077
      %4050 = vmatmul.bf16.gmra.mxu0 %v3777
      %v4051 = vpop.f32.mrf.mxu0
      %v4052 = vadd.f32 0.0, %v4051
      %v4053 = vpop.f32.mrf.mxu0
      %v4054 = vadd.f32 0.0, %v4053
      %4055 = vmatmul.bf16.gmra.mxu0 %v3782
      %v4056 = vpop.f32.mrf.mxu0
      %v4057 = vadd.f32 0.0, %v4056
      %v4058 = vpop.f32.mrf.mxu0
      %v4059 = vadd.f32 0.0, %v4058
      %4060 = vmatmul.bf16.gmra.mxu0 %v3787
      %v4061 = vpop.f32.mrf.mxu0
      %v4062 = vadd.f32 0.0, %v4061
      %v4063 = vpop.f32.mrf.mxu0
      %v4064 = vadd.f32 0.0, %v4063
      %4065 = vmatmul.bf16.gmra.mxu0 %v3792
      %v4066 = vpop.f32.mrf.mxu0
      %v4067 = vadd.f32 0.0, %v4066
      %v4068 = vpop.f32.mrf.mxu0
      %v4069 = vadd.f32 0.0, %v4068
      %4070 = vmatmul.bf16.gmra.mxu0 %v3797
      %v4071 = vpop.f32.mrf.mxu0
      %v4072 = vadd.f32 0.0, %v4071
      %v4073 = vpop.f32.mrf.mxu0
      %v4074 = vadd.f32 0.0, %v4073
      %4075 = vmatmul.bf16.gmra.mxu0 %v3802
      %v4076 = vpop.f32.mrf.mxu0
      %v4077 = vadd.f32 0.0, %v4076
      %v4078 = vpop.f32.mrf.mxu0
      %v4079 = vadd.f32 0.0, %v4078
      %4080 = vmatmul.bf16.gmra.mxu0 %v3807
      %v4081 = vpop.f32.mrf.mxu0
      %v4082 = vadd.f32 0.0, %v4081
      %v4083 = vpop.f32.mrf.mxu0
      %v4084 = vadd.f32 0.0, %v4083
      %4085 = vmatmul.bf16.gmra.mxu0 %v3812
      %v4086 = vpop.f32.mrf.mxu0
      %v4087 = vadd.f32 0.0, %v4086
      %v4088 = vpop.f32.mrf.mxu0
      %v4089 = vadd.f32 0.0, %v4088
      %4090 = vmatmul.bf16.gmra.mxu0 %v3817
      %v4091 = vpop.f32.mrf.mxu0
      %v4092 = vadd.f32 0.0, %v4091
      %v4093 = vpop.f32.mrf.mxu0
      %v4094 = vadd.f32 0.0, %v4093
      %4095 = vmatmul.bf16.gmra.mxu0 %v3822
      %v4096 = vpop.f32.mrf.mxu0
      %v4097 = vadd.f32 0.0, %v4096
      %v4098 = vpop.f32.mrf.mxu0
      %v4099 = vadd.f32 0.0, %v4098
      %4100 = vmatmul.bf16.gmra.mxu0 %v3827
      %v4101 = vpop.f32.mrf.mxu0
      %v4102 = vadd.f32 0.0, %v4101
      %v4103 = vpop.f32.mrf.mxu0
      %v4104 = vadd.f32 0.0, %v4103
      %4105 = vmatmul.bf16.gmra.mxu0 %v3832
      %v4106 = vpop.f32.mrf.mxu0
      %v4107 = vadd.f32 0.0, %v4106
      %v4108 = vpop.f32.mrf.mxu0
      %v4109 = vadd.f32 0.0, %v4108
      %4110 = vmatmul.bf16.gmra.mxu0 %v3837
      %v4111 = vpop.f32.mrf.mxu0
      %v4112 = vadd.f32 0.0, %v4111
      %v4113 = vpop.f32.mrf.mxu0
      %v4114 = vadd.f32 0.0, %v4113
      %4115 = vmatmul.bf16.gmra.mxu0 %v3842
      %v4116 = vpop.f32.mrf.mxu0
      %v4117 = vadd.f32 0.0, %v4116
      %v4118 = vpop.f32.mrf.mxu0
      %v4119 = vadd.f32 0.0, %v4118
      %4120 = vmatmul.bf16.gmra.mxu0 %v3847
      %v4121 = vpop.f32.mrf.mxu0
      %v4122 = vadd.f32 0.0, %v4121
      %v4123 = vpop.f32.mrf.mxu0
      %v4124 = vadd.f32 0.0, %v4123
      %4125 = vmatmul.bf16.gmra.mxu0 %v3852
      %v4126 = vpop.f32.mrf.mxu0
      %v4127 = vadd.f32 0.0, %v4126
      %v4128 = vpop.f32.mrf.mxu0
      %v4129 = vadd.f32 0.0, %v4128
      %4130 = vmatmul.bf16.gmra.mxu0 %v3857
      %v4131 = vpop.f32.mrf.mxu0
      %v4132 = vadd.f32 0.0, %v4131
      %v4133 = vpop.f32.mrf.mxu0
      %v4134 = vadd.f32 0.0, %v4133
      %4135 = vmatmul.bf16.gmra.mxu0 %v3862
      %v4136 = vpop.f32.mrf.mxu0
      %v4137 = vadd.f32 0.0, %v4136
      %v4138 = vpop.f32.mrf.mxu0
      %v4139 = vadd.f32 0.0, %v4138
      %4140 = vmatmul.bf16.gmra.mxu0 %v3867
      %v4141 = vpop.f32.mrf.mxu0
      %v4142 = vadd.f32 0.0, %v4141
      %v4143 = vpop.f32.mrf.mxu0
      %v4144 = vadd.f32 0.0, %v4143
      %4145 = vmatmul.bf16.gmra.mxu0 %v3872
      %v4146 = vpop.f32.mrf.mxu0
      %v4147 = vadd.f32 0.0, %v4146
      %v4148 = vpop.f32.mrf.mxu0
      %v4149 = vadd.f32 0.0, %v4148
      %4150 = vmatmul.bf16.gmra.mxu0 %v3877
      %v4151 = vpop.f32.mrf.mxu0
      %v4152 = vadd.f32 0.0, %v4151
      %v4153 = vpop.f32.mrf.mxu0
      %v4154 = vadd.f32 0.0, %v4153
      %4155 = vmatmul.bf16.gmra.mxu0 %v3882
      %v4156 = vpop.f32.mrf.mxu0
      %v4157 = vadd.f32 0.0, %v4156
      %v4158 = vpop.f32.mrf.mxu0
      %v4159 = vadd.f32 0.0, %v4158
      %4160 = vdwg.mxu0
      %4161 = vmatpush.bf16.msra.mxu0 %v3176
      %4162 = vmatpush.bf16.msra.mxu0 %v3175
      %4163 = vmatpush.bf16.msra.mxu0 %v3174
      %4164 = vmatpush.bf16.msra.mxu0 %v3173
      %4165 = vmatpush.bf16.msra.mxu0 %v3099
      %4166 = vmatpush.bf16.msra.mxu0 %v3097
      %4167 = vmatpush.bf16.msra.mxu0 %v3095
      %4168 = vmatpush.bf16.msra.mxu0 %v3093
      %4169 = vmatmul.bf16.gmra.mxu0 %v3778
      %v4170 = vpop.f32.mrf.mxu0
      %v4171 = vadd.f32 %v4052, %v4170
      %v4172 = vpop.f32.mrf.mxu0
      %v4173 = vadd.f32 %v4054, %v4172
      %4174 = vmatmul.bf16.gmra.mxu0 %v3783
      %v4175 = vpop.f32.mrf.mxu0
      %v4176 = vadd.f32 %v4057, %v4175
      %v4177 = vpop.f32.mrf.mxu0
      %v4178 = vadd.f32 %v4059, %v4177
      %4179 = vmatmul.bf16.gmra.mxu0 %v3788
      %v4180 = vpop.f32.mrf.mxu0
      %v4181 = vadd.f32 %v4062, %v4180
      %v4182 = vpop.f32.mrf.mxu0
      %v4183 = vadd.f32 %v4064, %v4182
      %4184 = vmatmul.bf16.gmra.mxu0 %v3793
      %v4185 = vpop.f32.mrf.mxu0
      %v4186 = vadd.f32 %v4067, %v4185
      %v4187 = vpop.f32.mrf.mxu0
      %v4188 = vadd.f32 %v4069, %v4187
      %4189 = vmatmul.bf16.gmra.mxu0 %v3798
      %v4190 = vpop.f32.mrf.mxu0
      %v4191 = vadd.f32 %v4072, %v4190
      %v4192 = vpop.f32.mrf.mxu0
      %v4193 = vadd.f32 %v4074, %v4192
      %4194 = vmatmul.bf16.gmra.mxu0 %v3803
      %v4195 = vpop.f32.mrf.mxu0
      %v4196 = vadd.f32 %v4077, %v4195
      %v4197 = vpop.f32.mrf.mxu0
      %v4198 = vadd.f32 %v4079, %v4197
      %4199 = vmatmul.bf16.gmra.mxu0 %v3808
      %v4200 = vpop.f32.mrf.mxu0
      %v4201 = vadd.f32 %v4082, %v4200
      %v4202 = vpop.f32.mrf.mxu0
      %v4203 = vadd.f32 %v4084, %v4202
      %4204 = vmatmul.bf16.gmra.mxu0 %v3813
      %v4205 = vpop.f32.mrf.mxu0
      %v4206 = vadd.f32 %v4087, %v4205
      %v4207 = vpop.f32.mrf.mxu0
      %v4208 = vadd.f32 %v4089, %v4207
      %4209 = vmatmul.bf16.gmra.mxu0 %v3818
      %v4210 = vpop.f32.mrf.mxu0
      %v4211 = vadd.f32 %v4092, %v4210
      %v4212 = vpop.f32.mrf.mxu0
      %v4213 = vadd.f32 %v4094, %v4212
      %4214 = vmatmul.bf16.gmra.mxu0 %v3823
      %v4215 = vpop.f32.mrf.mxu0
      %v4216 = vadd.f32 %v4097, %v4215
      %v4217 = vpop.f32.mrf.mxu0
      %v4218 = vadd.f32 %v4099, %v4217
      %4219 = vmatmul.bf16.gmra.mxu0 %v3828
      %v4220 = vpop.f32.mrf.mxu0
      %v4221 = vadd.f32 %v4102, %v4220
      %v4222 = vpop.f32.mrf.mxu0
      %v4223 = vadd.f32 %v4104, %v4222
      %4224 = vmatmul.bf16.gmra.mxu0 %v3833
      %v4225 = vpop.f32.mrf.mxu0
      %v4226 = vadd.f32 %v4107, %v4225
      %v4227 = vpop.f32.mrf.mxu0
      %v4228 = vadd.f32 %v4109, %v4227
      %4229 = vmatmul.bf16.gmra.mxu0 %v3838
      %v4230 = vpop.f32.mrf.mxu0
      %v4231 = vadd.f32 %v4112, %v4230
      %v4232 = vpop.f32.mrf.mxu0
      %v4233 = vadd.f32 %v4114, %v4232
      %4234 = vmatmul.bf16.gmra.mxu0 %v3843
      %v4235 = vpop.f32.mrf.mxu0
      %v4236 = vadd.f32 %v4117, %v4235
      %v4237 = vpop.f32.mrf.mxu0
      %v4238 = vadd.f32 %v4119, %v4237
      %4239 = vmatmul.bf16.gmra.mxu0 %v3848
      %v4240 = vpop.f32.mrf.mxu0
      %v4241 = vadd.f32 %v4122, %v4240
      %v4242 = vpop.f32.mrf.mxu0
      %v4243 = vadd.f32 %v4124, %v4242
      %4244 = vmatmul.bf16.gmra.mxu0 %v3853
      %v4245 = vpop.f32.mrf.mxu0
      %v4246 = vadd.f32 %v4127, %v4245
      %v4247 = vpop.f32.mrf.mxu0
      %v4248 = vadd.f32 %v4129, %v4247
      %4249 = vmatmul.bf16.gmra.mxu0 %v3858
      %v4250 = vpop.f32.mrf.mxu0
      %v4251 = vadd.f32 %v4132, %v4250
      %v4252 = vpop.f32.mrf.mxu0
      %v4253 = vadd.f32 %v4134, %v4252
      %4254 = vmatmul.bf16.gmra.mxu0 %v3863
      %v4255 = vpop.f32.mrf.mxu0
      %v4256 = vadd.f32 %v4137, %v4255
      %v4257 = vpop.f32.mrf.mxu0
      %v4258 = vadd.f32 %v4139, %v4257
      %4259 = vmatmul.bf16.gmra.mxu0 %v3868
      %v4260 = vpop.f32.mrf.mxu0
      %v4261 = vadd.f32 %v4142, %v4260
      %v4262 = vpop.f32.mrf.mxu0
      %v4263 = vadd.f32 %v4144, %v4262
      %4264 = vmatmul.bf16.gmra.mxu0 %v3873
      %v4265 = vpop.f32.mrf.mxu0
      %v4266 = vadd.f32 %v4147, %v4265
      %v4267 = vpop.f32.mrf.mxu0
      %v4268 = vadd.f32 %v4149, %v4267
      %4269 = vmatmul.bf16.gmra.mxu0 %v3878
      %v4270 = vpop.f32.mrf.mxu0
      %v4271 = vadd.f32 %v4152, %v4270
      %v4272 = vpop.f32.mrf.mxu0
      %v4273 = vadd.f32 %v4154, %v4272
      %4274 = vmatmul.bf16.gmra.mxu0 %v3883
      %v4275 = vpop.f32.mrf.mxu0
      %v4276 = vadd.f32 %v4157, %v4275
      %v4277 = vpop.f32.mrf.mxu0
      %v4278 = vadd.f32 %v4159, %v4277
      %4279 = vdwg.mxu0
      %4280 = vmatpush.bf16.msra.mxu0 %v3184
      %4281 = vmatpush.bf16.msra.mxu0 %v3183
      %4282 = vmatpush.bf16.msra.mxu0 %v3182
      %4283 = vmatpush.bf16.msra.mxu0 %v3181
      %4284 = vmatpush.bf16.msra.mxu0 %v3180
      %4285 = vmatpush.bf16.msra.mxu0 %v3179
      %4286 = vmatpush.bf16.msra.mxu0 %v3178
      %4287 = vmatpush.bf16.msra.mxu0 %v3177
      %4288 = vmatmul.bf16.gmra.mxu0 %v3779
      %v4289 = vpop.f32.mrf.mxu0
      %v4290 = vadd.f32 %v4171, %v4289
      %v4291 = vpop.f32.mrf.mxu0
      %v4292 = vadd.f32 %v4173, %v4291
      %4293 = vmatmul.bf16.gmra.mxu0 %v3784
      %v4294 = vpop.f32.mrf.mxu0
      %v4295 = vadd.f32 %v4176, %v4294
      %v4296 = vpop.f32.mrf.mxu0
      %v4297 = vadd.f32 %v4178, %v4296
      %4298 = vmatmul.bf16.gmra.mxu0 %v3789
      %v4299 = vpop.f32.mrf.mxu0
      %v4300 = vadd.f32 %v4181, %v4299
      %v4301 = vpop.f32.mrf.mxu0
      %v4302 = vadd.f32 %v4183, %v4301
      %4303 = vmatmul.bf16.gmra.mxu0 %v3794
      %v4304 = vpop.f32.mrf.mxu0
      %v4305 = vadd.f32 %v4186, %v4304
      %v4306 = vpop.f32.mrf.mxu0
      %v4307 = vadd.f32 %v4188, %v4306
      %4308 = vmatmul.bf16.gmra.mxu0 %v3799
      %v4309 = vpop.f32.mrf.mxu0
      %v4310 = vadd.f32 %v4191, %v4309
      %v4311 = vpop.f32.mrf.mxu0
      %v4312 = vadd.f32 %v4193, %v4311
      %4313 = vmatmul.bf16.gmra.mxu0 %v3804
      %v4314 = vpop.f32.mrf.mxu0
      %v4315 = vadd.f32 %v4196, %v4314
      %v4316 = vpop.f32.mrf.mxu0
      %v4317 = vadd.f32 %v4198, %v4316
      %4318 = vmatmul.bf16.gmra.mxu0 %v3809
      %v4319 = vpop.f32.mrf.mxu0
      %v4320 = vadd.f32 %v4201, %v4319
      %v4321 = vpop.f32.mrf.mxu0
      %v4322 = vadd.f32 %v4203, %v4321
      %4323 = vmatmul.bf16.gmra.mxu0 %v3814
      %v4324 = vpop.f32.mrf.mxu0
      %v4325 = vadd.f32 %v4206, %v4324
      %v4326 = vpop.f32.mrf.mxu0
      %v4327 = vadd.f32 %v4208, %v4326
      %4328 = vmatmul.bf16.gmra.mxu0 %v3819
      %v4329 = vpop.f32.mrf.mxu0
      %v4330 = vadd.f32 %v4211, %v4329
      %v4331 = vpop.f32.mrf.mxu0
      %v4332 = vadd.f32 %v4213, %v4331
      %4333 = vmatmul.bf16.gmra.mxu0 %v3824
      %v4334 = vpop.f32.mrf.mxu0
      %v4335 = vadd.f32 %v4216, %v4334
      %v4336 = vpop.f32.mrf.mxu0
      %v4337 = vadd.f32 %v4218, %v4336
      %4338 = vmatmul.bf16.gmra.mxu0 %v3829
      %v4339 = vpop.f32.mrf.mxu0
      %v4340 = vadd.f32 %v4221, %v4339
      %v4341 = vpop.f32.mrf.mxu0
      %v4342 = vadd.f32 %v4223, %v4341
      %4343 = vmatmul.bf16.gmra.mxu0 %v3834
      %v4344 = vpop.f32.mrf.mxu0
      %v4345 = vadd.f32 %v4226, %v4344
      %v4346 = vpop.f32.mrf.mxu0
      %v4347 = vadd.f32 %v4228, %v4346
      %4348 = vmatmul.bf16.gmra.mxu0 %v3839
      %v4349 = vpop.f32.mrf.mxu0
      %v4350 = vadd.f32 %v4231, %v4349
      %v4351 = vpop.f32.mrf.mxu0
      %v4352 = vadd.f32 %v4233, %v4351
      %4353 = vmatmul.bf16.gmra.mxu0 %v3844
      %v4354 = vpop.f32.mrf.mxu0
      %v4355 = vadd.f32 %v4236, %v4354
      %v4356 = vpop.f32.mrf.mxu0
      %v4357 = vadd.f32 %v4238, %v4356
      %4358 = vmatmul.bf16.gmra.mxu0 %v3849
      %v4359 = vpop.f32.mrf.mxu0
      %v4360 = vadd.f32 %v4241, %v4359
      %v4361 = vpop.f32.mrf.mxu0
      %v4362 = vadd.f32 %v4243, %v4361
      %4363 = vmatmul.bf16.gmra.mxu0 %v3854
      %v4364 = vpop.f32.mrf.mxu0
      %v4365 = vadd.f32 %v4246, %v4364
      %v4366 = vpop.f32.mrf.mxu0
      %v4367 = vadd.f32 %v4248, %v4366
      %4368 = vmatmul.bf16.gmra.mxu0 %v3859
      %v4369 = vpop.f32.mrf.mxu0
      %v4370 = vadd.f32 %v4251, %v4369
      %v4371 = vpop.f32.mrf.mxu0
      %v4372 = vadd.f32 %v4253, %v4371
      %4373 = vmatmul.bf16.gmra.mxu0 %v3864
      %v4374 = vpop.f32.mrf.mxu0
      %v4375 = vadd.f32 %v4256, %v4374
      %v4376 = vpop.f32.mrf.mxu0
      %v4377 = vadd.f32 %v4258, %v4376
      %4378 = vmatmul.bf16.gmra.mxu0 %v3869
      %v4379 = vpop.f32.mrf.mxu0
      %v4380 = vadd.f32 %v4261, %v4379
      %v4381 = vpop.f32.mrf.mxu0
      %v4382 = vadd.f32 %v4263, %v4381
      %4383 = vmatmul.bf16.gmra.mxu0 %v3874
      %v4384 = vpop.f32.mrf.mxu0
      %v4385 = vadd.f32 %v4266, %v4384
      %v4386 = vpop.f32.mrf.mxu0
      %v4387 = vadd.f32 %v4268, %v4386
      %4388 = vmatmul.bf16.gmra.mxu0 %v3879
      %v4389 = vpop.f32.mrf.mxu0
      %v4390 = vadd.f32 %v4271, %v4389
      %v4391 = vpop.f32.mrf.mxu0
      %v4392 = vadd.f32 %v4273, %v4391
      %4393 = vmatmul.bf16.gmra.mxu0 %v3884
      %v4394 = vpop.f32.mrf.mxu0
      %v4395 = vadd.f32 %v4276, %v4394
      %v4396 = vpop.f32.mrf.mxu0
      %v4397 = vadd.f32 %v4278, %v4396
      %4398 = vdwg.mxu0
      %4399 = vmatpush.bf16.msra.mxu0 %v3264
      %4400 = vmatpush.bf16.msra.mxu0 %v3263
      %4401 = vmatpush.bf16.msra.mxu0 %v3262
      %4402 = vmatpush.bf16.msra.mxu0 %v3261
      %4403 = vmatpush.bf16.msra.mxu0 %v3260
      %4404 = vmatpush.bf16.msra.mxu0 %v3259
      %4405 = vmatpush.bf16.msra.mxu0 %v3258
      %4406 = vmatpush.bf16.msra.mxu0 %v3257
      %4407 = vmatmul.bf16.gmra.mxu0 %v3780
      %v4408 = vpop.f32.mrf.mxu0
      %v4409 = vadd.f32 %v4290, %v4408
      %v4410 = vpop.f32.mrf.mxu0
      %v4411 = vadd.f32 %v4292, %v4410
      %4412 = vmatmul.bf16.gmra.mxu0 %v3785
      %v4413 = vpop.f32.mrf.mxu0
      %v4414 = vadd.f32 %v4295, %v4413
      %v4415 = vpop.f32.mrf.mxu0
      %v4416 = vadd.f32 %v4297, %v4415
      %4417 = vmatmul.bf16.gmra.mxu0 %v3790
      %v4418 = vpop.f32.mrf.mxu0
      %v4419 = vadd.f32 %v4300, %v4418
      %v4420 = vpop.f32.mrf.mxu0
      %v4421 = vadd.f32 %v4302, %v4420
      %4422 = vmatmul.bf16.gmra.mxu0 %v3795
      %v4423 = vpop.f32.mrf.mxu0
      %v4424 = vadd.f32 %v4305, %v4423
      %v4425 = vpop.f32.mrf.mxu0
      %v4426 = vadd.f32 %v4307, %v4425
      %4427 = vmatmul.bf16.gmra.mxu0 %v3800
      %v4428 = vpop.f32.mrf.mxu0
      %v4429 = vadd.f32 %v4310, %v4428
      %v4430 = vpop.f32.mrf.mxu0
      %v4431 = vadd.f32 %v4312, %v4430
      %4432 = vmatmul.bf16.gmra.mxu0 %v3805
      %v4433 = vpop.f32.mrf.mxu0
      %v4434 = vadd.f32 %v4315, %v4433
      %v4435 = vpop.f32.mrf.mxu0
      %v4436 = vadd.f32 %v4317, %v4435
      %4437 = vmatmul.bf16.gmra.mxu0 %v3810
      %v4438 = vpop.f32.mrf.mxu0
      %v4439 = vadd.f32 %v4320, %v4438
      %v4440 = vpop.f32.mrf.mxu0
      %v4441 = vadd.f32 %v4322, %v4440
      %4442 = vmatmul.bf16.gmra.mxu0 %v3815
      %v4443 = vpop.f32.mrf.mxu0
      %v4444 = vadd.f32 %v4325, %v4443
      %v4445 = vpop.f32.mrf.mxu0
      %v4446 = vadd.f32 %v4327, %v4445
      %4447 = vmatmul.bf16.gmra.mxu0 %v3820
      %v4448 = vpop.f32.mrf.mxu0
      %v4449 = vadd.f32 %v4330, %v4448
      %v4450 = vpop.f32.mrf.mxu0
      %v4451 = vadd.f32 %v4332, %v4450
      %4452 = vmatmul.bf16.gmra.mxu0 %v3825
      %v4453 = vpop.f32.mrf.mxu0
      %v4454 = vadd.f32 %v4335, %v4453
      %v4455 = vpop.f32.mrf.mxu0
      %v4456 = vadd.f32 %v4337, %v4455
      %4457 = vmatmul.bf16.gmra.mxu0 %v3830
      %v4458 = vpop.f32.mrf.mxu0
      %v4459 = vadd.f32 %v4340, %v4458
      %v4460 = vpop.f32.mrf.mxu0
      %v4461 = vadd.f32 %v4342, %v4460
      %4462 = vmatmul.bf16.gmra.mxu0 %v3835
      %v4463 = vpop.f32.mrf.mxu0
      %v4464 = vadd.f32 %v4345, %v4463
      %v4465 = vpop.f32.mrf.mxu0
      %v4466 = vadd.f32 %v4347, %v4465
      %4467 = vmatmul.bf16.gmra.mxu0 %v3840
      %v4468 = vpop.f32.mrf.mxu0
      %v4469 = vadd.f32 %v4350, %v4468
      %v4470 = vpop.f32.mrf.mxu0
      %v4471 = vadd.f32 %v4352, %v4470
      %4472 = vmatmul.bf16.gmra.mxu0 %v3845
      %v4473 = vpop.f32.mrf.mxu0
      %v4474 = vadd.f32 %v4355, %v4473
      %v4475 = vpop.f32.mrf.mxu0
      %v4476 = vadd.f32 %v4357, %v4475
      %4477 = vmatmul.bf16.gmra.mxu0 %v3850
      %v4478 = vpop.f32.mrf.mxu0
      %v4479 = vadd.f32 %v4360, %v4478
      %v4480 = vpop.f32.mrf.mxu0
      %v4481 = vadd.f32 %v4362, %v4480
      %4482 = vmatmul.bf16.gmra.mxu0 %v3855
      %v4483 = vpop.f32.mrf.mxu0
      %v4484 = vadd.f32 %v4365, %v4483
      %v4485 = vpop.f32.mrf.mxu0
      %v4486 = vadd.f32 %v4367, %v4485
      %4487 = vmatmul.bf16.gmra.mxu0 %v3860
      %v4488 = vpop.f32.mrf.mxu0
      %v4489 = vadd.f32 %v4370, %v4488
      %v4490 = vpop.f32.mrf.mxu0
      %v4491 = vadd.f32 %v4372, %v4490
      %4492 = vmatmul.bf16.gmra.mxu0 %v3865
      %v4493 = vpop.f32.mrf.mxu0
      %v4494 = vadd.f32 %v4375, %v4493
      %v4495 = vpop.f32.mrf.mxu0
      %v4496 = vadd.f32 %v4377, %v4495
      %4497 = vmatmul.bf16.gmra.mxu0 %v3870
      %v4498 = vpop.f32.mrf.mxu0
      %v4499 = vadd.f32 %v4380, %v4498
      %v4500 = vpop.f32.mrf.mxu0
      %v4501 = vadd.f32 %v4382, %v4500
      %4502 = vmatmul.bf16.gmra.mxu0 %v3875
      %v4503 = vpop.f32.mrf.mxu0
      %v4504 = vadd.f32 %v4385, %v4503
      %v4505 = vpop.f32.mrf.mxu0
      %v4506 = vadd.f32 %v4387, %v4505
      %4507 = vmatmul.bf16.gmra.mxu0 %v3880
      %v4508 = vpop.f32.mrf.mxu0
      %v4509 = vadd.f32 %v4390, %v4508
      %v4510 = vpop.f32.mrf.mxu0
      %v4511 = vadd.f32 %v4392, %v4510
      %4512 = vmatmul.bf16.gmra.mxu0 %v3885
      %v4513 = vpop.f32.mrf.mxu0
      %v4514 = vadd.f32 %v4395, %v4513
      %v4515 = vpop.f32.mrf.mxu0
      %v4516 = vadd.f32 %v4397, %v4515
      %4517 = vdwg.mxu0
      %4518 = vmatpush.bf16.msra.mxu0 0
      %4519 = vmatpush.bf16.msra.mxu0 0
      %4520 = vmatpush.bf16.msra.mxu0 0
      %4521 = vmatpush.bf16.msra.mxu0 0
      %4522 = vmatpush.bf16.msra.mxu0 %v3268
      %4523 = vmatpush.bf16.msra.mxu0 %v3267
      %4524 = vmatpush.bf16.msra.mxu0 %v3266
      %4525 = vmatpush.bf16.msra.mxu0 %v3265
      %4526 = vmatmul.bf16.gmra.mxu0 %v3977
      %v4527 = vpop.f32.mrf.mxu0
      %v4528 = vadd.f32 %v4409, %v4527
      %v4529 = vpop.f32.mrf.mxu0
      %v4530 = vadd.f32 %v4411, %v4529
      %4531 = vmatmul.bf16.gmra.mxu0 %v3980
      %v4532 = vpop.f32.mrf.mxu0
      %v4533 = vadd.f32 %v4414, %v4532
      %v4534 = vpop.f32.mrf.mxu0
      %v4535 = vadd.f32 %v4416, %v4534
      %4536 = vmatmul.bf16.gmra.mxu0 %v3983
      %v4537 = vpop.f32.mrf.mxu0
      %v4538 = vadd.f32 %v4419, %v4537
      %v4539 = vpop.f32.mrf.mxu0
      %v4540 = vadd.f32 %v4421, %v4539
      %4541 = vmatmul.bf16.gmra.mxu0 %v3986
      %v4542 = vpop.f32.mrf.mxu0
      %v4543 = vadd.f32 %v4424, %v4542
      %v4544 = vpop.f32.mrf.mxu0
      %v4545 = vadd.f32 %v4426, %v4544
      %4546 = vmatmul.bf16.gmra.mxu0 %v3989
      %v4547 = vpop.f32.mrf.mxu0
      %v4548 = vadd.f32 %v4429, %v4547
      %v4549 = vpop.f32.mrf.mxu0
      %v4550 = vadd.f32 %v4431, %v4549
      %4551 = vmatmul.bf16.gmra.mxu0 %v3992
      %v4552 = vpop.f32.mrf.mxu0
      %v4553 = vadd.f32 %v4434, %v4552
      %v4554 = vpop.f32.mrf.mxu0
      %v4555 = vadd.f32 %v4436, %v4554
      %4556 = vmatmul.bf16.gmra.mxu0 %v3995
      %v4557 = vpop.f32.mrf.mxu0
      %v4558 = vadd.f32 %v4439, %v4557
      %v4559 = vpop.f32.mrf.mxu0
      %v4560 = vadd.f32 %v4441, %v4559
      %4561 = vmatmul.bf16.gmra.mxu0 %v3998
      %v4562 = vpop.f32.mrf.mxu0
      %v4563 = vadd.f32 %v4444, %v4562
      %v4564 = vpop.f32.mrf.mxu0
      %v4565 = vadd.f32 %v4446, %v4564
      %4566 = vmatmul.bf16.gmra.mxu0 %v4001
      %v4567 = vpop.f32.mrf.mxu0
      %v4568 = vadd.f32 %v4449, %v4567
      %v4569 = vpop.f32.mrf.mxu0
      %v4570 = vadd.f32 %v4451, %v4569
      %4571 = vmatmul.bf16.gmra.mxu0 %v4004
      %v4572 = vpop.f32.mrf.mxu0
      %v4573 = vadd.f32 %v4454, %v4572
      %v4574 = vpop.f32.mrf.mxu0
      %v4575 = vadd.f32 %v4456, %v4574
      %4576 = vmatmul.bf16.gmra.mxu0 %v4007
      %v4577 = vpop.f32.mrf.mxu0
      %v4578 = vadd.f32 %v4459, %v4577
      %v4579 = vpop.f32.mrf.mxu0
      %v4580 = vadd.f32 %v4461, %v4579
      %4581 = vmatmul.bf16.gmra.mxu0 %v4010
      %v4582 = vpop.f32.mrf.mxu0
      %v4583 = vadd.f32 %v4464, %v4582
      %v4584 = vpop.f32.mrf.mxu0
      %v4585 = vadd.f32 %v4466, %v4584
      %4586 = vmatmul.bf16.gmra.mxu0 %v4013
      %v4587 = vpop.f32.mrf.mxu0
      %v4588 = vadd.f32 %v4469, %v4587
      %v4589 = vpop.f32.mrf.mxu0
      %v4590 = vadd.f32 %v4471, %v4589
      %4591 = vmatmul.bf16.gmra.mxu0 %v4016
      %v4592 = vpop.f32.mrf.mxu0
      %v4593 = vadd.f32 %v4474, %v4592
      %v4594 = vpop.f32.mrf.mxu0
      %v4595 = vadd.f32 %v4476, %v4594
      %4596 = vmatmul.bf16.gmra.mxu0 %v4019
      %v4597 = vpop.f32.mrf.mxu0
      %v4598 = vadd.f32 %v4479, %v4597
      %v4599 = vpop.f32.mrf.mxu0
      %v4600 = vadd.f32 %v4481, %v4599
      %4601 = vmatmul.bf16.gmra.mxu0 %v4022
      %v4602 = vpop.f32.mrf.mxu0
      %v4603 = vadd.f32 %v4484, %v4602
      %v4604 = vpop.f32.mrf.mxu0
      %v4605 = vadd.f32 %v4486, %v4604
      %4606 = vmatmul.bf16.gmra.mxu0 %v4025
      %v4607 = vpop.f32.mrf.mxu0
      %v4608 = vadd.f32 %v4489, %v4607
      %v4609 = vpop.f32.mrf.mxu0
      %v4610 = vadd.f32 %v4491, %v4609
      %4611 = vmatmul.bf16.gmra.mxu0 %v4028
      %v4612 = vpop.f32.mrf.mxu0
      %v4613 = vadd.f32 %v4494, %v4612
      %v4614 = vpop.f32.mrf.mxu0
      %v4615 = vadd.f32 %v4496, %v4614
      %4616 = vmatmul.bf16.gmra.mxu0 %v4031
      %v4617 = vpop.f32.mrf.mxu0
      %v4618 = vadd.f32 %v4499, %v4617
      %v4619 = vpop.f32.mrf.mxu0
      %v4620 = vadd.f32 %v4501, %v4619
      %4621 = vmatmul.bf16.gmra.mxu0 %v4034
      %v4622 = vpop.f32.mrf.mxu0
      %v4623 = vadd.f32 %v4504, %v4622
      %v4624 = vpop.f32.mrf.mxu0
      %v4625 = vadd.f32 %v4506, %v4624
      %4626 = vmatmul.bf16.gmra.mxu0 %v4037
      %v4627 = vpop.f32.mrf.mxu0
      %v4628 = vadd.f32 %v4509, %v4627
      %v4629 = vpop.f32.mrf.mxu0
      %v4630 = vadd.f32 %v4511, %v4629
      %4631 = vmatmul.bf16.gmra.mxu0 %v4040
      %v4632 = vpop.f32.mrf.mxu0
      %v4633 = vadd.f32 %v4514, %v4632
      %v4634 = vpop.f32.mrf.mxu0
      %v4635 = vadd.f32 %v4516, %v4634
      %4636 = vdwg.mxu0
      %4637 = vmatpush.bf16.msra.mxu0 %v3092
      %4638 = vmatpush.bf16.msra.mxu0 %v3090
      %4639 = vmatpush.bf16.msra.mxu0 %v3088
      %4640 = vmatpush.bf16.msra.mxu0 %v3086
      %4641 = vmatpush.bf16.msra.mxu0 %v3084
      %4642 = vmatpush.bf16.msra.mxu0 %v3082
      %4643 = vmatpush.bf16.msra.mxu0 %v3080
      %4644 = vmatpush.bf16.msra.mxu0 %v3078
      %4645 = vmatmul.bf16.gmra.mxu0 %v3777
      %v4646 = vpop.f32.mrf.mxu0
      %v4647 = vadd.f32 0.0, %v4646
      %v4648 = vpop.f32.mrf.mxu0
      %v4649 = vadd.f32 0.0, %v4648
      %4650 = vmatmul.bf16.gmra.mxu0 %v3782
      %v4651 = vpop.f32.mrf.mxu0
      %v4652 = vadd.f32 0.0, %v4651
      %v4653 = vpop.f32.mrf.mxu0
      %v4654 = vadd.f32 0.0, %v4653
      %4655 = vmatmul.bf16.gmra.mxu0 %v3787
      %v4656 = vpop.f32.mrf.mxu0
      %v4657 = vadd.f32 0.0, %v4656
      %v4658 = vpop.f32.mrf.mxu0
      %v4659 = vadd.f32 0.0, %v4658
      %4660 = vmatmul.bf16.gmra.mxu0 %v3792
      %v4661 = vpop.f32.mrf.mxu0
      %v4662 = vadd.f32 0.0, %v4661
      %v4663 = vpop.f32.mrf.mxu0
      %v4664 = vadd.f32 0.0, %v4663
      %4665 = vmatmul.bf16.gmra.mxu0 %v3797
      %v4666 = vpop.f32.mrf.mxu0
      %v4667 = vadd.f32 0.0, %v4666
      %v4668 = vpop.f32.mrf.mxu0
      %v4669 = vadd.f32 0.0, %v4668
      %4670 = vmatmul.bf16.gmra.mxu0 %v3802
      %v4671 = vpop.f32.mrf.mxu0
      %v4672 = vadd.f32 0.0, %v4671
      %v4673 = vpop.f32.mrf.mxu0
      %v4674 = vadd.f32 0.0, %v4673
      %4675 = vmatmul.bf16.gmra.mxu0 %v3807
      %v4676 = vpop.f32.mrf.mxu0
      %v4677 = vadd.f32 0.0, %v4676
      %v4678 = vpop.f32.mrf.mxu0
      %v4679 = vadd.f32 0.0, %v4678
      %4680 = vmatmul.bf16.gmra.mxu0 %v3812
      %v4681 = vpop.f32.mrf.mxu0
      %v4682 = vadd.f32 0.0, %v4681
      %v4683 = vpop.f32.mrf.mxu0
      %v4684 = vadd.f32 0.0, %v4683
      %4685 = vmatmul.bf16.gmra.mxu0 %v3817
      %v4686 = vpop.f32.mrf.mxu0
      %v4687 = vadd.f32 0.0, %v4686
      %v4688 = vpop.f32.mrf.mxu0
      %v4689 = vadd.f32 0.0, %v4688
      %4690 = vmatmul.bf16.gmra.mxu0 %v3822
      %v4691 = vpop.f32.mrf.mxu0
      %v4692 = vadd.f32 0.0, %v4691
      %v4693 = vpop.f32.mrf.mxu0
      %v4694 = vadd.f32 0.0, %v4693
      %4695 = vmatmul.bf16.gmra.mxu0 %v3827
      %v4696 = vpop.f32.mrf.mxu0
      %v4697 = vadd.f32 0.0, %v4696
      %v4698 = vpop.f32.mrf.mxu0
      %v4699 = vadd.f32 0.0, %v4698
      %4700 = vmatmul.bf16.gmra.mxu0 %v3832
      %v4701 = vpop.f32.mrf.mxu0
      %v4702 = vadd.f32 0.0, %v4701
      %v4703 = vpop.f32.mrf.mxu0
      %v4704 = vadd.f32 0.0, %v4703
      %4705 = vmatmul.bf16.gmra.mxu0 %v3837
      %v4706 = vpop.f32.mrf.mxu0
      %v4707 = vadd.f32 0.0, %v4706
      %v4708 = vpop.f32.mrf.mxu0
      %v4709 = vadd.f32 0.0, %v4708
      %4710 = vmatmul.bf16.gmra.mxu0 %v3842
      %v4711 = vpop.f32.mrf.mxu0
      %v4712 = vadd.f32 0.0, %v4711
      %v4713 = vpop.f32.mrf.mxu0
      %v4714 = vadd.f32 0.0, %v4713
      %4715 = vmatmul.bf16.gmra.mxu0 %v3847
      %v4716 = vpop.f32.mrf.mxu0
      %v4717 = vadd.f32 0.0, %v4716
      %v4718 = vpop.f32.mrf.mxu0
      %v4719 = vadd.f32 0.0, %v4718
      %4720 = vmatmul.bf16.gmra.mxu0 %v3852
      %v4721 = vpop.f32.mrf.mxu0
      %v4722 = vadd.f32 0.0, %v4721
      %v4723 = vpop.f32.mrf.mxu0
      %v4724 = vadd.f32 0.0, %v4723
      %4725 = vmatmul.bf16.gmra.mxu0 %v3857
      %v4726 = vpop.f32.mrf.mxu0
      %v4727 = vadd.f32 0.0, %v4726
      %v4728 = vpop.f32.mrf.mxu0
      %v4729 = vadd.f32 0.0, %v4728
      %4730 = vmatmul.bf16.gmra.mxu0 %v3862
      %v4731 = vpop.f32.mrf.mxu0
      %v4732 = vadd.f32 0.0, %v4731
      %v4733 = vpop.f32.mrf.mxu0
      %v4734 = vadd.f32 0.0, %v4733
      %4735 = vmatmul.bf16.gmra.mxu0 %v3867
      %v4736 = vpop.f32.mrf.mxu0
      %v4737 = vadd.f32 0.0, %v4736
      %v4738 = vpop.f32.mrf.mxu0
      %v4739 = vadd.f32 0.0, %v4738
      %4740 = vmatmul.bf16.gmra.mxu0 %v3872
      %v4741 = vpop.f32.mrf.mxu0
      %v4742 = vadd.f32 0.0, %v4741
      %v4743 = vpop.f32.mrf.mxu0
      %v4744 = vadd.f32 0.0, %v4743
      %4745 = vmatmul.bf16.gmra.mxu0 %v3877
      %v4746 = vpop.f32.mrf.mxu0
      %v4747 = vadd.f32 0.0, %v4746
      %v4748 = vpop.f32.mrf.mxu0
      %v4749 = vadd.f32 0.0, %v4748
      %4750 = vmatmul.bf16.gmra.mxu0 %v3882
      %v4751 = vpop.f32.mrf.mxu0
      %v4752 = vadd.f32 0.0, %v4751
      %v4753 = vpop.f32.mrf.mxu0
      %v4754 = vadd.f32 0.0, %v4753
      %4755 = vdwg.mxu0
      %4756 = vmatpush.bf16.msra.mxu0 %v3140
      %4757 = vmatpush.bf16.msra.mxu0 %v3136
      %4758 = vmatpush.bf16.msra.mxu0 %v3132
      %4759 = vmatpush.bf16.msra.mxu0 %v3128
      %4760 = vmatpush.bf16.msra.mxu0 %v3100
      %4761 = vmatpush.bf16.msra.mxu0 %v3098
      %4762 = vmatpush.bf16.msra.mxu0 %v3096
      %4763 = vmatpush.bf16.msra.mxu0 %v3094
      %4764 = vmatmul.bf16.gmra.mxu0 %v3778
      %v4765 = vpop.f32.mrf.mxu0
      %v4766 = vadd.f32 %v4647, %v4765
      %v4767 = vpop.f32.mrf.mxu0
      %v4768 = vadd.f32 %v4649, %v4767
      %4769 = vmatmul.bf16.gmra.mxu0 %v3783
      %v4770 = vpop.f32.mrf.mxu0
      %v4771 = vadd.f32 %v4652, %v4770
      %v4772 = vpop.f32.mrf.mxu0
      %v4773 = vadd.f32 %v4654, %v4772
      %4774 = vmatmul.bf16.gmra.mxu0 %v3788
      %v4775 = vpop.f32.mrf.mxu0
      %v4776 = vadd.f32 %v4657, %v4775
      %v4777 = vpop.f32.mrf.mxu0
      %v4778 = vadd.f32 %v4659, %v4777
      %4779 = vmatmul.bf16.gmra.mxu0 %v3793
      %v4780 = vpop.f32.mrf.mxu0
      %v4781 = vadd.f32 %v4662, %v4780
      %v4782 = vpop.f32.mrf.mxu0
      %v4783 = vadd.f32 %v4664, %v4782
      %4784 = vmatmul.bf16.gmra.mxu0 %v3798
      %v4785 = vpop.f32.mrf.mxu0
      %v4786 = vadd.f32 %v4667, %v4785
      %v4787 = vpop.f32.mrf.mxu0
      %v4788 = vadd.f32 %v4669, %v4787
      %4789 = vmatmul.bf16.gmra.mxu0 %v3803
      %v4790 = vpop.f32.mrf.mxu0
      %v4791 = vadd.f32 %v4672, %v4790
      %v4792 = vpop.f32.mrf.mxu0
      %v4793 = vadd.f32 %v4674, %v4792
      %4794 = vmatmul.bf16.gmra.mxu0 %v3808
      %v4795 = vpop.f32.mrf.mxu0
      %v4796 = vadd.f32 %v4677, %v4795
      %v4797 = vpop.f32.mrf.mxu0
      %v4798 = vadd.f32 %v4679, %v4797
      %4799 = vmatmul.bf16.gmra.mxu0 %v3813
      %v4800 = vpop.f32.mrf.mxu0
      %v4801 = vadd.f32 %v4682, %v4800
      %v4802 = vpop.f32.mrf.mxu0
      %v4803 = vadd.f32 %v4684, %v4802
      %4804 = vmatmul.bf16.gmra.mxu0 %v3818
      %v4805 = vpop.f32.mrf.mxu0
      %v4806 = vadd.f32 %v4687, %v4805
      %v4807 = vpop.f32.mrf.mxu0
      %v4808 = vadd.f32 %v4689, %v4807
      %4809 = vmatmul.bf16.gmra.mxu0 %v3823
      %v4810 = vpop.f32.mrf.mxu0
      %v4811 = vadd.f32 %v4692, %v4810
      %v4812 = vpop.f32.mrf.mxu0
      %v4813 = vadd.f32 %v4694, %v4812
      %4814 = vmatmul.bf16.gmra.mxu0 %v3828
      %v4815 = vpop.f32.mrf.mxu0
      %v4816 = vadd.f32 %v4697, %v4815
      %v4817 = vpop.f32.mrf.mxu0
      %v4818 = vadd.f32 %v4699, %v4817
      %4819 = vmatmul.bf16.gmra.mxu0 %v3833
      %v4820 = vpop.f32.mrf.mxu0
      %v4821 = vadd.f32 %v4702, %v4820
      %v4822 = vpop.f32.mrf.mxu0
      %v4823 = vadd.f32 %v4704, %v4822
      %4824 = vmatmul.bf16.gmra.mxu0 %v3838
      %v4825 = vpop.f32.mrf.mxu0
      %v4826 = vadd.f32 %v4707, %v4825
      %v4827 = vpop.f32.mrf.mxu0
      %v4828 = vadd.f32 %v4709, %v4827
      %4829 = vmatmul.bf16.gmra.mxu0 %v3843
      %v4830 = vpop.f32.mrf.mxu0
      %v4831 = vadd.f32 %v4712, %v4830
      %v4832 = vpop.f32.mrf.mxu0
      %v4833 = vadd.f32 %v4714, %v4832
      %4834 = vmatmul.bf16.gmra.mxu0 %v3848
      %v4835 = vpop.f32.mrf.mxu0
      %v4836 = vadd.f32 %v4717, %v4835
      %v4837 = vpop.f32.mrf.mxu0
      %v4838 = vadd.f32 %v4719, %v4837
      %4839 = vmatmul.bf16.gmra.mxu0 %v3853
      %v4840 = vpop.f32.mrf.mxu0
      %v4841 = vadd.f32 %v4722, %v4840
      %v4842 = vpop.f32.mrf.mxu0
      %v4843 = vadd.f32 %v4724, %v4842
      %4844 = vmatmul.bf16.gmra.mxu0 %v3858
      %v4845 = vpop.f32.mrf.mxu0
      %v4846 = vadd.f32 %v4727, %v4845
      %v4847 = vpop.f32.mrf.mxu0
      %v4848 = vadd.f32 %v4729, %v4847
      %4849 = vmatmul.bf16.gmra.mxu0 %v3863
      %v4850 = vpop.f32.mrf.mxu0
      %v4851 = vadd.f32 %v4732, %v4850
      %v4852 = vpop.f32.mrf.mxu0
      %v4853 = vadd.f32 %v4734, %v4852
      %4854 = vmatmul.bf16.gmra.mxu0 %v3868
      %v4855 = vpop.f32.mrf.mxu0
      %v4856 = vadd.f32 %v4737, %v4855
      %v4857 = vpop.f32.mrf.mxu0
      %v4858 = vadd.f32 %v4739, %v4857
      %4859 = vmatmul.bf16.gmra.mxu0 %v3873
      %v4860 = vpop.f32.mrf.mxu0
      %v4861 = vadd.f32 %v4742, %v4860
      %v4862 = vpop.f32.mrf.mxu0
      %v4863 = vadd.f32 %v4744, %v4862
      %4864 = vmatmul.bf16.gmra.mxu0 %v3878
      %v4865 = vpop.f32.mrf.mxu0
      %v4866 = vadd.f32 %v4747, %v4865
      %v4867 = vpop.f32.mrf.mxu0
      %v4868 = vadd.f32 %v4749, %v4867
      %4869 = vmatmul.bf16.gmra.mxu0 %v3883
      %v4870 = vpop.f32.mrf.mxu0
      %v4871 = vadd.f32 %v4752, %v4870
      %v4872 = vpop.f32.mrf.mxu0
      %v4873 = vadd.f32 %v4754, %v4872
      %4874 = vdwg.mxu0
      %4875 = vmatpush.bf16.msra.mxu0 %v3172
      %4876 = vmatpush.bf16.msra.mxu0 %v3168
      %4877 = vmatpush.bf16.msra.mxu0 %v3164
      %4878 = vmatpush.bf16.msra.mxu0 %v3160
      %4879 = vmatpush.bf16.msra.mxu0 %v3156
      %4880 = vmatpush.bf16.msra.mxu0 %v3152
      %4881 = vmatpush.bf16.msra.mxu0 %v3148
      %4882 = vmatpush.bf16.msra.mxu0 %v3144
      %4883 = vmatmul.bf16.gmra.mxu0 %v3779
      %v4884 = vpop.f32.mrf.mxu0
      %v4885 = vadd.f32 %v4766, %v4884
      %v4886 = vpop.f32.mrf.mxu0
      %v4887 = vadd.f32 %v4768, %v4886
      %4888 = vmatmul.bf16.gmra.mxu0 %v3784
      %v4889 = vpop.f32.mrf.mxu0
      %v4890 = vadd.f32 %v4771, %v4889
      %v4891 = vpop.f32.mrf.mxu0
      %v4892 = vadd.f32 %v4773, %v4891
      %4893 = vmatmul.bf16.gmra.mxu0 %v3789
      %v4894 = vpop.f32.mrf.mxu0
      %v4895 = vadd.f32 %v4776, %v4894
      %v4896 = vpop.f32.mrf.mxu0
      %v4897 = vadd.f32 %v4778, %v4896
      %4898 = vmatmul.bf16.gmra.mxu0 %v3794
      %v4899 = vpop.f32.mrf.mxu0
      %v4900 = vadd.f32 %v4781, %v4899
      %v4901 = vpop.f32.mrf.mxu0
      %v4902 = vadd.f32 %v4783, %v4901
      %4903 = vmatmul.bf16.gmra.mxu0 %v3799
      %v4904 = vpop.f32.mrf.mxu0
      %v4905 = vadd.f32 %v4786, %v4904
      %v4906 = vpop.f32.mrf.mxu0
      %v4907 = vadd.f32 %v4788, %v4906
      %4908 = vmatmul.bf16.gmra.mxu0 %v3804
      %v4909 = vpop.f32.mrf.mxu0
      %v4910 = vadd.f32 %v4791, %v4909
      %v4911 = vpop.f32.mrf.mxu0
      %v4912 = vadd.f32 %v4793, %v4911
      %4913 = vmatmul.bf16.gmra.mxu0 %v3809
      %v4914 = vpop.f32.mrf.mxu0
      %v4915 = vadd.f32 %v4796, %v4914
      %v4916 = vpop.f32.mrf.mxu0
      %v4917 = vadd.f32 %v4798, %v4916
      %4918 = vmatmul.bf16.gmra.mxu0 %v3814
      %v4919 = vpop.f32.mrf.mxu0
      %v4920 = vadd.f32 %v4801, %v4919
      %v4921 = vpop.f32.mrf.mxu0
      %v4922 = vadd.f32 %v4803, %v4921
      %4923 = vmatmul.bf16.gmra.mxu0 %v3819
      %v4924 = vpop.f32.mrf.mxu0
      %v4925 = vadd.f32 %v4806, %v4924
      %v4926 = vpop.f32.mrf.mxu0
      %v4927 = vadd.f32 %v4808, %v4926
      %4928 = vmatmul.bf16.gmra.mxu0 %v3824
      %v4929 = vpop.f32.mrf.mxu0
      %v4930 = vadd.f32 %v4811, %v4929
      %v4931 = vpop.f32.mrf.mxu0
      %v4932 = vadd.f32 %v4813, %v4931
      %4933 = vmatmul.bf16.gmra.mxu0 %v3829
      %v4934 = vpop.f32.mrf.mxu0
      %v4935 = vadd.f32 %v4816, %v4934
      %v4936 = vpop.f32.mrf.mxu0
      %v4937 = vadd.f32 %v4818, %v4936
      %4938 = vmatmul.bf16.gmra.mxu0 %v3834
      %v4939 = vpop.f32.mrf.mxu0
      %v4940 = vadd.f32 %v4821, %v4939
      %v4941 = vpop.f32.mrf.mxu0
      %v4942 = vadd.f32 %v4823, %v4941
      %4943 = vmatmul.bf16.gmra.mxu0 %v3839
      %v4944 = vpop.f32.mrf.mxu0
      %v4945 = vadd.f32 %v4826, %v4944
      %v4946 = vpop.f32.mrf.mxu0
      %v4947 = vadd.f32 %v4828, %v4946
      %4948 = vmatmul.bf16.gmra.mxu0 %v3844
      %v4949 = vpop.f32.mrf.mxu0
      %v4950 = vadd.f32 %v4831, %v4949
      %v4951 = vpop.f32.mrf.mxu0
      %v4952 = vadd.f32 %v4833, %v4951
      %4953 = vmatmul.bf16.gmra.mxu0 %v3849
      %v4954 = vpop.f32.mrf.mxu0
      %v4955 = vadd.f32 %v4836, %v4954
      %v4956 = vpop.f32.mrf.mxu0
      %v4957 = vadd.f32 %v4838, %v4956
      %4958 = vmatmul.bf16.gmra.mxu0 %v3854
      %v4959 = vpop.f32.mrf.mxu0
      %v4960 = vadd.f32 %v4841, %v4959
      %v4961 = vpop.f32.mrf.mxu0
      %v4962 = vadd.f32 %v4843, %v4961
      %4963 = vmatmul.bf16.gmra.mxu0 %v3859
      %v4964 = vpop.f32.mrf.mxu0
      %v4965 = vadd.f32 %v4846, %v4964
      %v4966 = vpop.f32.mrf.mxu0
      %v4967 = vadd.f32 %v4848, %v4966
      %4968 = vmatmul.bf16.gmra.mxu0 %v3864
      %v4969 = vpop.f32.mrf.mxu0
      %v4970 = vadd.f32 %v4851, %v4969
      %v4971 = vpop.f32.mrf.mxu0
      %v4972 = vadd.f32 %v4853, %v4971
      %4973 = vmatmul.bf16.gmra.mxu0 %v3869
      %v4974 = vpop.f32.mrf.mxu0
      %v4975 = vadd.f32 %v4856, %v4974
      %v4976 = vpop.f32.mrf.mxu0
      %v4977 = vadd.f32 %v4858, %v4976
      %4978 = vmatmul.bf16.gmra.mxu0 %v3874
      %v4979 = vpop.f32.mrf.mxu0
      %v4980 = vadd.f32 %v4861, %v4979
      %v4981 = vpop.f32.mrf.mxu0
      %v4982 = vadd.f32 %v4863, %v4981
      %4983 = vmatmul.bf16.gmra.mxu0 %v3879
      %v4984 = vpop.f32.mrf.mxu0
      %v4985 = vadd.f32 %v4866, %v4984
      %v4986 = vpop.f32.mrf.mxu0
      %v4987 = vadd.f32 %v4868, %v4986
      %4988 = vmatmul.bf16.gmra.mxu0 %v3884
      %v4989 = vpop.f32.mrf.mxu0
      %v4990 = vadd.f32 %v4871, %v4989
      %v4991 = vpop.f32.mrf.mxu0
      %v4992 = vadd.f32 %v4873, %v4991
      %4993 = vdwg.mxu0
      %4994 = vmatpush.bf16.msra.mxu0 %v3240
      %4995 = vmatpush.bf16.msra.mxu0 %v3236
      %4996 = vmatpush.bf16.msra.mxu0 %v3232
      %4997 = vmatpush.bf16.msra.mxu0 %v3228
      %4998 = vmatpush.bf16.msra.mxu0 %v3224
      %4999 = vmatpush.bf16.msra.mxu0 %v3220
      %5000 = vmatpush.bf16.msra.mxu0 %v3216
      %5001 = vmatpush.bf16.msra.mxu0 %v3212
      %5002 = vmatmul.bf16.gmra.mxu0 %v3780
      %v5003 = vpop.f32.mrf.mxu0
      %v5004 = vadd.f32 %v4885, %v5003
      %v5005 = vpop.f32.mrf.mxu0
      %v5006 = vadd.f32 %v4887, %v5005
      %5007 = vmatmul.bf16.gmra.mxu0 %v3785
      %v5008 = vpop.f32.mrf.mxu0
      %v5009 = vadd.f32 %v4890, %v5008
      %v5010 = vpop.f32.mrf.mxu0
      %v5011 = vadd.f32 %v4892, %v5010
      %5012 = vmatmul.bf16.gmra.mxu0 %v3790
      %v5013 = vpop.f32.mrf.mxu0
      %v5014 = vadd.f32 %v4895, %v5013
      %v5015 = vpop.f32.mrf.mxu0
      %v5016 = vadd.f32 %v4897, %v5015
      %5017 = vmatmul.bf16.gmra.mxu0 %v3795
      %v5018 = vpop.f32.mrf.mxu0
      %v5019 = vadd.f32 %v4900, %v5018
      %v5020 = vpop.f32.mrf.mxu0
      %v5021 = vadd.f32 %v4902, %v5020
      %5022 = vmatmul.bf16.gmra.mxu0 %v3800
      %v5023 = vpop.f32.mrf.mxu0
      %v5024 = vadd.f32 %v4905, %v5023
      %v5025 = vpop.f32.mrf.mxu0
      %v5026 = vadd.f32 %v4907, %v5025
      %5027 = vmatmul.bf16.gmra.mxu0 %v3805
      %v5028 = vpop.f32.mrf.mxu0
      %v5029 = vadd.f32 %v4910, %v5028
      %v5030 = vpop.f32.mrf.mxu0
      %v5031 = vadd.f32 %v4912, %v5030
      %5032 = vmatmul.bf16.gmra.mxu0 %v3810
      %v5033 = vpop.f32.mrf.mxu0
      %v5034 = vadd.f32 %v4915, %v5033
      %v5035 = vpop.f32.mrf.mxu0
      %v5036 = vadd.f32 %v4917, %v5035
      %5037 = vmatmul.bf16.gmra.mxu0 %v3815
      %v5038 = vpop.f32.mrf.mxu0
      %v5039 = vadd.f32 %v4920, %v5038
      %v5040 = vpop.f32.mrf.mxu0
      %v5041 = vadd.f32 %v4922, %v5040
      %5042 = vmatmul.bf16.gmra.mxu0 %v3820
      %v5043 = vpop.f32.mrf.mxu0
      %v5044 = vadd.f32 %v4925, %v5043
      %v5045 = vpop.f32.mrf.mxu0
      %v5046 = vadd.f32 %v4927, %v5045
      %5047 = vmatmul.bf16.gmra.mxu0 %v3825
      %v5048 = vpop.f32.mrf.mxu0
      %v5049 = vadd.f32 %v4930, %v5048
      %v5050 = vpop.f32.mrf.mxu0
      %v5051 = vadd.f32 %v4932, %v5050
      %5052 = vmatmul.bf16.gmra.mxu0 %v3830
      %v5053 = vpop.f32.mrf.mxu0
      %v5054 = vadd.f32 %v4935, %v5053
      %v5055 = vpop.f32.mrf.mxu0
      %v5056 = vadd.f32 %v4937, %v5055
      %5057 = vmatmul.bf16.gmra.mxu0 %v3835
      %v5058 = vpop.f32.mrf.mxu0
      %v5059 = vadd.f32 %v4940, %v5058
      %v5060 = vpop.f32.mrf.mxu0
      %v5061 = vadd.f32 %v4942, %v5060
      %5062 = vmatmul.bf16.gmra.mxu0 %v3840
      %v5063 = vpop.f32.mrf.mxu0
      %v5064 = vadd.f32 %v4945, %v5063
      %v5065 = vpop.f32.mrf.mxu0
      %v5066 = vadd.f32 %v4947, %v5065
      %5067 = vmatmul.bf16.gmra.mxu0 %v3845
      %v5068 = vpop.f32.mrf.mxu0
      %v5069 = vadd.f32 %v4950, %v5068
      %v5070 = vpop.f32.mrf.mxu0
      %v5071 = vadd.f32 %v4952, %v5070
      %5072 = vmatmul.bf16.gmra.mxu0 %v3850
      %v5073 = vpop.f32.mrf.mxu0
      %v5074 = vadd.f32 %v4955, %v5073
      %v5075 = vpop.f32.mrf.mxu0
      %v5076 = vadd.f32 %v4957, %v5075
      %5077 = vmatmul.bf16.gmra.mxu0 %v3855
      %v5078 = vpop.f32.mrf.mxu0
      %v5079 = vadd.f32 %v4960, %v5078
      %v5080 = vpop.f32.mrf.mxu0
      %v5081 = vadd.f32 %v4962, %v5080
      %5082 = vmatmul.bf16.gmra.mxu0 %v3860
      %v5083 = vpop.f32.mrf.mxu0
      %v5084 = vadd.f32 %v4965, %v5083
      %v5085 = vpop.f32.mrf.mxu0
      %v5086 = vadd.f32 %v4967, %v5085
      %5087 = vmatmul.bf16.gmra.mxu0 %v3865
      %v5088 = vpop.f32.mrf.mxu0
      %v5089 = vadd.f32 %v4970, %v5088
      %v5090 = vpop.f32.mrf.mxu0
      %v5091 = vadd.f32 %v4972, %v5090
      %5092 = vmatmul.bf16.gmra.mxu0 %v3870
      %v5093 = vpop.f32.mrf.mxu0
      %v5094 = vadd.f32 %v4975, %v5093
      %v5095 = vpop.f32.mrf.mxu0
      %v5096 = vadd.f32 %v4977, %v5095
      %5097 = vmatmul.bf16.gmra.mxu0 %v3875
      %v5098 = vpop.f32.mrf.mxu0
      %v5099 = vadd.f32 %v4980, %v5098
      %v5100 = vpop.f32.mrf.mxu0
      %v5101 = vadd.f32 %v4982, %v5100
      %5102 = vmatmul.bf16.gmra.mxu0 %v3880
      %v5103 = vpop.f32.mrf.mxu0
      %v5104 = vadd.f32 %v4985, %v5103
      %v5105 = vpop.f32.mrf.mxu0
      %v5106 = vadd.f32 %v4987, %v5105
      %5107 = vmatmul.bf16.gmra.mxu0 %v3885
      %v5108 = vpop.f32.mrf.mxu0
      %v5109 = vadd.f32 %v4990, %v5108
      %v5110 = vpop.f32.mrf.mxu0
      %v5111 = vadd.f32 %v4992, %v5110
      %5112 = vdwg.mxu0
      %5113 = vmatpush.bf16.msra.mxu0 0
      %5114 = vmatpush.bf16.msra.mxu0 0
      %5115 = vmatpush.bf16.msra.mxu0 0
      %5116 = vmatpush.bf16.msra.mxu0 0
      %5117 = vmatpush.bf16.msra.mxu0 %v3256
      %5118 = vmatpush.bf16.msra.mxu0 %v3252
      %5119 = vmatpush.bf16.msra.mxu0 %v3248
      %5120 = vmatpush.bf16.msra.mxu0 %v3244
      %5121 = vmatmul.bf16.gmra.mxu0 %v3977
      %v5122 = vpop.f32.mrf.mxu0
      %v5123 = vadd.f32 %v5004, %v5122
      %v5124 = vpop.f32.mrf.mxu0
      %v5125 = vadd.f32 %v5006, %v5124
      %5126 = vmatmul.bf16.gmra.mxu0 %v3980
      %v5127 = vpop.f32.mrf.mxu0
      %v5128 = vadd.f32 %v5009, %v5127
      %v5129 = vpop.f32.mrf.mxu0
      %v5130 = vadd.f32 %v5011, %v5129
      %5131 = vmatmul.bf16.gmra.mxu0 %v3983
      %v5132 = vpop.f32.mrf.mxu0
      %v5133 = vadd.f32 %v5014, %v5132
      %v5134 = vpop.f32.mrf.mxu0
      %v5135 = vadd.f32 %v5016, %v5134
      %5136 = vmatmul.bf16.gmra.mxu0 %v3986
      %v5137 = vpop.f32.mrf.mxu0
      %v5138 = vadd.f32 %v5019, %v5137
      %v5139 = vpop.f32.mrf.mxu0
      %v5140 = vadd.f32 %v5021, %v5139
      %5141 = vmatmul.bf16.gmra.mxu0 %v3989
      %v5142 = vpop.f32.mrf.mxu0
      %v5143 = vadd.f32 %v5024, %v5142
      %v5144 = vpop.f32.mrf.mxu0
      %v5145 = vadd.f32 %v5026, %v5144
      %5146 = vmatmul.bf16.gmra.mxu0 %v3992
      %v5147 = vpop.f32.mrf.mxu0
      %v5148 = vadd.f32 %v5029, %v5147
      %v5149 = vpop.f32.mrf.mxu0
      %v5150 = vadd.f32 %v5031, %v5149
      %5151 = vmatmul.bf16.gmra.mxu0 %v3995
      %v5152 = vpop.f32.mrf.mxu0
      %v5153 = vadd.f32 %v5034, %v5152
      %v5154 = vpop.f32.mrf.mxu0
      %v5155 = vadd.f32 %v5036, %v5154
      %5156 = vmatmul.bf16.gmra.mxu0 %v3998
      %v5157 = vpop.f32.mrf.mxu0
      %v5158 = vadd.f32 %v5039, %v5157
      %v5159 = vpop.f32.mrf.mxu0
      %v5160 = vadd.f32 %v5041, %v5159
      %5161 = vmatmul.bf16.gmra.mxu0 %v4001
      %v5162 = vpop.f32.mrf.mxu0
      %v5163 = vadd.f32 %v5044, %v5162
      %v5164 = vpop.f32.mrf.mxu0
      %v5165 = vadd.f32 %v5046, %v5164
      %5166 = vmatmul.bf16.gmra.mxu0 %v4004
      %v5167 = vpop.f32.mrf.mxu0
      %v5168 = vadd.f32 %v5049, %v5167
      %v5169 = vpop.f32.mrf.mxu0
      %v5170 = vadd.f32 %v5051, %v5169
      %5171 = vmatmul.bf16.gmra.mxu0 %v4007
      %v5172 = vpop.f32.mrf.mxu0
      %v5173 = vadd.f32 %v5054, %v5172
      %v5174 = vpop.f32.mrf.mxu0
      %v5175 = vadd.f32 %v5056, %v5174
      %5176 = vmatmul.bf16.gmra.mxu0 %v4010
      %v5177 = vpop.f32.mrf.mxu0
      %v5178 = vadd.f32 %v5059, %v5177
      %v5179 = vpop.f32.mrf.mxu0
      %v5180 = vadd.f32 %v5061, %v5179
      %5181 = vmatmul.bf16.gmra.mxu0 %v4013
      %v5182 = vpop.f32.mrf.mxu0
      %v5183 = vadd.f32 %v5064, %v5182
      %v5184 = vpop.f32.mrf.mxu0
      %v5185 = vadd.f32 %v5066, %v5184
      %5186 = vmatmul.bf16.gmra.mxu0 %v4016
      %v5187 = vpop.f32.mrf.mxu0
      %v5188 = vadd.f32 %v5069, %v5187
      %v5189 = vpop.f32.mrf.mxu0
      %v5190 = vadd.f32 %v5071, %v5189
      %5191 = vmatmul.bf16.gmra.mxu0 %v4019
      %v5192 = vpop.f32.mrf.mxu0
      %v5193 = vadd.f32 %v5074, %v5192
      %v5194 = vpop.f32.mrf.mxu0
      %v5195 = vadd.f32 %v5076, %v5194
      %5196 = vmatmul.bf16.gmra.mxu0 %v4022
      %v5197 = vpop.f32.mrf.mxu0
      %v5198 = vadd.f32 %v5079, %v5197
      %v5199 = vpop.f32.mrf.mxu0
      %v5200 = vadd.f32 %v5081, %v5199
      %5201 = vmatmul.bf16.gmra.mxu0 %v4025
      %v5202 = vpop.f32.mrf.mxu0
      %v5203 = vadd.f32 %v5084, %v5202
      %v5204 = vpop.f32.mrf.mxu0
      %v5205 = vadd.f32 %v5086, %v5204
      %5206 = vmatmul.bf16.gmra.mxu0 %v4028
      %v5207 = vpop.f32.mrf.mxu0
      %v5208 = vadd.f32 %v5089, %v5207
      %v5209 = vpop.f32.mrf.mxu0
      %v5210 = vadd.f32 %v5091, %v5209
      %5211 = vmatmul.bf16.gmra.mxu0 %v4031
      %v5212 = vpop.f32.mrf.mxu0
      %v5213 = vadd.f32 %v5094, %v5212
      %v5214 = vpop.f32.mrf.mxu0
      %v5215 = vadd.f32 %v5096, %v5214
      %5216 = vmatmul.bf16.gmra.mxu0 %v4034
      %v5217 = vpop.f32.mrf.mxu0
      %v5218 = vadd.f32 %v5099, %v5217
      %v5219 = vpop.f32.mrf.mxu0
      %v5220 = vadd.f32 %v5101, %v5219
      %5221 = vmatmul.bf16.gmra.mxu0 %v4037
      %v5222 = vpop.f32.mrf.mxu0
      %v5223 = vadd.f32 %v5104, %v5222
      %v5224 = vpop.f32.mrf.mxu0
      %v5225 = vadd.f32 %v5106, %v5224
      %5226 = vmatmul.bf16.gmra.mxu0 %v4040
      %v5227 = vpop.f32.mrf.mxu0
      %v5228 = vadd.f32 %v5109, %v5227
      %v5229 = vpop.f32.mrf.mxu0
      %v5230 = vadd.f32 %v5111, %v5229
      %5231 = vdwg.mxu0
      %v5232 = vld [vmem:[%s5] sm:$0xff]
      %v5233 = vld [vmem:[%s5 + $0x8] sm:$0xff]
      %5235 = vset.pattern.permute.xlu0 0
      %5236 = vperm.xlu0 %5235, %v5232
      %v5237 = vpop.permute.xlu0 %5236
      %5240 = vset.pattern.permute.xlu0 0
      %5241 = vperm.xlu0 %5240, %v5233
      %v5242 = vpop.permute.xlu0 %5241
      %v5244 = vadd.f32 %v4528, %v5237
      %v5245 = vadd.f32 %v5123, %v5237
      %v5246 = vadd.f32 %v4530, %v5242
      %v5247 = vadd.f32 %v5125, %v5242
      %v5248 = vadd.f32 %v4533, %v5237
      %v5249 = vadd.f32 %v5128, %v5237
      %v5250 = vadd.f32 %v4535, %v5242
      %v5251 = vadd.f32 %v5130, %v5242
      %v5252 = vadd.f32 %v4538, %v5237
      %v5253 = vadd.f32 %v5133, %v5237
      %v5254 = vadd.f32 %v4540, %v5242
      %v5255 = vadd.f32 %v5135, %v5242
      %v5256 = vadd.f32 %v4543, %v5237
      %v5257 = vadd.f32 %v5138, %v5237
      %v5258 = vadd.f32 %v4545, %v5242
      %v5259 = vadd.f32 %v5140, %v5242
      %v5260 = vadd.f32 %v4548, %v5237
      %v5261 = vadd.f32 %v5143, %v5237
      %v5262 = vadd.f32 %v4550, %v5242
      %v5263 = vadd.f32 %v5145, %v5242
      %v5264 = vadd.f32 %v4553, %v5237
      %v5265 = vadd.f32 %v5148, %v5237
      %v5266 = vadd.f32 %v4555, %v5242
      %v5267 = vadd.f32 %v5150, %v5242
      %v5268 = vadd.f32 %v4558, %v5237
      %v5269 = vadd.f32 %v5153, %v5237
      %v5270 = vadd.f32 %v4560, %v5242
      %v5271 = vadd.f32 %v5155, %v5242
      %v5272 = vadd.f32 %v4563, %v5237
      %v5273 = vadd.f32 %v5158, %v5237
      %v5274 = vadd.f32 %v4565, %v5242
      %v5275 = vadd.f32 %v5160, %v5242
      %v5276 = vadd.f32 %v4568, %v5237
      %v5277 = vadd.f32 %v5163, %v5237
      %v5278 = vadd.f32 %v4570, %v5242
      %v5279 = vadd.f32 %v5165, %v5242
      %v5280 = vadd.f32 %v4573, %v5237
      %v5281 = vadd.f32 %v5168, %v5237
      %v5282 = vadd.f32 %v4575, %v5242
      %v5283 = vadd.f32 %v5170, %v5242
      %v5284 = vadd.f32 %v4578, %v5237
      %v5285 = vadd.f32 %v5173, %v5237
      %v5286 = vadd.f32 %v4580, %v5242
      %v5287 = vadd.f32 %v5175, %v5242
      %v5288 = vadd.f32 %v4583, %v5237
      %v5289 = vadd.f32 %v5178, %v5237
      %v5290 = vadd.f32 %v4585, %v5242
      %v5291 = vadd.f32 %v5180, %v5242
      %v5292 = vadd.f32 %v4588, %v5237
      %v5293 = vadd.f32 %v5183, %v5237
      %v5294 = vadd.f32 %v4590, %v5242
      %v5295 = vadd.f32 %v5185, %v5242
      %v5296 = vadd.f32 %v4593, %v5237
      %v5297 = vadd.f32 %v5188, %v5237
      %v5298 = vadd.f32 %v4595, %v5242
      %v5299 = vadd.f32 %v5190, %v5242
      %v5300 = vadd.f32 %v4598, %v5237
      %v5301 = vadd.f32 %v5193, %v5237
      %v5302 = vadd.f32 %v4600, %v5242
      %v5303 = vadd.f32 %v5195, %v5242
      %v5304 = vadd.f32 %v4603, %v5237
      %v5305 = vadd.f32 %v5198, %v5237
      %v5306 = vadd.f32 %v4605, %v5242
      %v5307 = vadd.f32 %v5200, %v5242
      %v5308 = vadd.f32 %v4608, %v5237
      %v5309 = vadd.f32 %v5203, %v5237
      %v5310 = vadd.f32 %v4610, %v5242
      %v5311 = vadd.f32 %v5205, %v5242
      %v5312 = vadd.f32 %v4613, %v5237
      %v5313 = vadd.f32 %v5208, %v5237
      %v5314 = vadd.f32 %v4615, %v5242
      %v5315 = vadd.f32 %v5210, %v5242
      %v5316 = vadd.f32 %v4618, %v5237
      %v5317 = vadd.f32 %v5213, %v5237
      %v5318 = vadd.f32 %v4620, %v5242
      %v5319 = vadd.f32 %v5215, %v5242
      %v5320 = vadd.f32 %v4623, %v5237
      %v5321 = vadd.f32 %v5218, %v5237
      %v5322 = vadd.f32 %v4625, %v5242
      %v5323 = vadd.f32 %v5220, %v5242
      %v5324 = vadd.f32 %v4628, %v5237
      %v5325 = vadd.f32 %v5223, %v5237
      %v5326 = vadd.f32 %v4630, %v5242
      %v5327 = vadd.f32 %v5225, %v5242
      %v5328 = vadd.f32 %v4633, %v5237
      %v5329 = vadd.f32 %v5228, %v5237
      %v5330 = vadd.f32 %v4635, %v5242
      %v5331 = vadd.f32 %v5230, %v5242
      %v5332 = vmax.f32 %v5244, 0.0
      %v5333 = vmax.f32 %v5245, 0.0
      %v5334 = vmax.f32 %v5246, 0.0
      %v5335 = vmax.f32 %v5247, 0.0
      %v5336 = vmax.f32 %v5248, 0.0
      %v5337 = vmax.f32 %v5249, 0.0
      %v5338 = vmax.f32 %v5250, 0.0
      %v5339 = vmax.f32 %v5251, 0.0
      %v5340 = vmax.f32 %v5252, 0.0
      %v5341 = vmax.f32 %v5253, 0.0
      %v5342 = vmax.f32 %v5254, 0.0
      %v5343 = vmax.f32 %v5255, 0.0
      %v5344 = vmax.f32 %v5256, 0.0
      %v5345 = vmax.f32 %v5257, 0.0
      %v5346 = vmax.f32 %v5258, 0.0
      %v5347 = vmax.f32 %v5259, 0.0
      %v5348 = vmax.f32 %v5260, 0.0
      %v5349 = vmax.f32 %v5261, 0.0
      %v5350 = vmax.f32 %v5262, 0.0
      %v5351 = vmax.f32 %v5263, 0.0
      %v5352 = vmax.f32 %v5264, 0.0
      %v5353 = vmax.f32 %v5265, 0.0
      %v5354 = vmax.f32 %v5266, 0.0
      %v5355 = vmax.f32 %v5267, 0.0
      %v5356 = vmax.f32 %v5268, 0.0
      %v5357 = vmax.f32 %v5269, 0.0
      %v5358 = vmax.f32 %v5270, 0.0
      %v5359 = vmax.f32 %v5271, 0.0
      %v5360 = vmax.f32 %v5272, 0.0
      %v5361 = vmax.f32 %v5273, 0.0
      %v5362 = vmax.f32 %v5274, 0.0
      %v5363 = vmax.f32 %v5275, 0.0
      %v5364 = vmax.f32 %v5276, 0.0
      %v5365 = vmax.f32 %v5277, 0.0
      %v5366 = vmax.f32 %v5278, 0.0
      %v5367 = vmax.f32 %v5279, 0.0
      %v5368 = vmax.f32 %v5280, 0.0
      %v5369 = vmax.f32 %v5281, 0.0
      %v5370 = vmax.f32 %v5282, 0.0
      %v5371 = vmax.f32 %v5283, 0.0
      %v5372 = vmax.f32 %v5284, 0.0
      %v5373 = vmax.f32 %v5285, 0.0
      %v5374 = vmax.f32 %v5286, 0.0
      %v5375 = vmax.f32 %v5287, 0.0
      %v5376 = vmax.f32 %v5288, 0.0
      %v5377 = vmax.f32 %v5289, 0.0
      %v5378 = vmax.f32 %v5290, 0.0
      %v5379 = vmax.f32 %v5291, 0.0
      %v5380 = vmax.f32 %v5292, 0.0
      %v5381 = vmax.f32 %v5293, 0.0
      %v5382 = vmax.f32 %v5294, 0.0
      %v5383 = vmax.f32 %v5295, 0.0
      %v5384 = vmax.f32 %v5296, 0.0
      %v5385 = vmax.f32 %v5297, 0.0
      %v5386 = vmax.f32 %v5298, 0.0
      %v5387 = vmax.f32 %v5299, 0.0
      %v5388 = vmax.f32 %v5300, 0.0
      %v5389 = vmax.f32 %v5301, 0.0
      %v5390 = vmax.f32 %v5302, 0.0
      %v5391 = vmax.f32 %v5303, 0.0
      %v5392 = vmax.f32 %v5304, 0.0
      %v5393 = vmax.f32 %v5305, 0.0
      %v5394 = vmax.f32 %v5306, 0.0
      %v5395 = vmax.f32 %v5307, 0.0
      %v5396 = vmax.f32 %v5308, 0.0
      %v5397 = vmax.f32 %v5309, 0.0
      %v5398 = vmax.f32 %v5310, 0.0
      %v5399 = vmax.f32 %v5311, 0.0
      %v5400 = vmax.f32 %v5312, 0.0
      %v5401 = vmax.f32 %v5313, 0.0
      %v5402 = vmax.f32 %v5314, 0.0
      %v5403 = vmax.f32 %v5315, 0.0
      %v5404 = vmax.f32 %v5316, 0.0
      %v5405 = vmax.f32 %v5317, 0.0
      %v5406 = vmax.f32 %v5318, 0.0
      %v5407 = vmax.f32 %v5319, 0.0
      %v5408 = vmax.f32 %v5320, 0.0
      %v5409 = vmax.f32 %v5321, 0.0
      %v5410 = vmax.f32 %v5322, 0.0
      %v5411 = vmax.f32 %v5323, 0.0
      %v5412 = vmax.f32 %v5324, 0.0
      %v5413 = vmax.f32 %v5325, 0.0
      %v5414 = vmax.f32 %v5326, 0.0
      %v5415 = vmax.f32 %v5327, 0.0
      %v5416 = vmax.f32 %v5328, 0.0
      %v5417 = vmax.f32 %v5329, 0.0
      %v5418 = vmax.f32 %v5330, 0.0
      %v5419 = vmax.f32 %v5331, 0.0
      %v5420 = vmax.f32 %v5332, %v5336
      %v5421 = vmax.f32 %v5333, %v5337
      %v5422 = vmax.f32 %v5334, %v5338
      %v5423 = vmax.f32 %v5335, %v5339
      %v5424 = vmax.f32 %v5340, %v5344
      %v5425 = vmax.f32 %v5341, %v5345
      %v5426 = vmax.f32 %v5342, %v5346
      %v5427 = vmax.f32 %v5343, %v5347
      %v5428 = vmax.f32 %v5348, %v5352
      %v5429 = vmax.f32 %v5349, %v5353
      %v5430 = vmax.f32 %v5350, %v5354
      %v5431 = vmax.f32 %v5351, %v5355
      %v5432 = vmax.f32 %v5356, %v5360
      %v5433 = vmax.f32 %v5357, %v5361
      %v5434 = vmax.f32 %v5358, %v5362
      %v5435 = vmax.f32 %v5359, %v5363
      %v5436 = vmax.f32 %v5364, %v5368
      %v5437 = vmax.f32 %v5365, %v5369
      %v5438 = vmax.f32 %v5366, %v5370
      %v5439 = vmax.f32 %v5367, %v5371
      %v5440 = vmax.f32 %v5372, %v5376
      %v5441 = vmax.f32 %v5373, %v5377
      %v5442 = vmax.f32 %v5374, %v5378
      %v5443 = vmax.f32 %v5375, %v5379
      %v5444 = vmax.f32 %v5380, %v5384
      %v5445 = vmax.f32 %v5381, %v5385
      %v5446 = vmax.f32 %v5382, %v5386
      %v5447 = vmax.f32 %v5383, %v5387
      %v5448 = vmax.f32 %v5388, %v5392
      %v5449 = vmax.f32 %v5389, %v5393
      %v5450 = vmax.f32 %v5390, %v5394
      %v5451 = vmax.f32 %v5391, %v5395
      %v5452 = vmax.f32 %v5396, %v5400
      %v5453 = vmax.f32 %v5397, %v5401
      %v5454 = vmax.f32 %v5398, %v5402
      %v5455 = vmax.f32 %v5399, %v5403
      %v5456 = vmax.f32 %v5404, %v5408
      %v5457 = vmax.f32 %v5405, %v5409
      %v5458 = vmax.f32 %v5406, %v5410
      %v5459 = vmax.f32 %v5407, %v5411
      %v5460 = vmax.f32 %v5412, %v5416
      %v5461 = vmax.f32 %v5413, %v5417
      %v5462 = vmax.f32 %v5414, %v5418
      %v5463 = vmax.f32 %v5415, %v5419
      %5508 = vrot.lane.b32.xlu0 %v5420, 127
      %v5509 = vpop.permute.xlu0 %5508
      %5510 = vrot.lane.b32.xlu0 %v5421, 127
      %v5511 = vpop.permute.xlu0 %5510
      %5512 = vrot.lane.b32.xlu0 %v5422, 127
      %v5513 = vpop.permute.xlu0 %5512
      %5514 = vrot.lane.b32.xlu0 %v5423, 127
      %v5515 = vpop.permute.xlu0 %5514
      %5516 = vrot.lane.b32.xlu0 %v5424, 127
      %v5517 = vpop.permute.xlu0 %5516
      %5518 = vrot.lane.b32.xlu0 %v5425, 127
      %v5519 = vpop.permute.xlu0 %5518
      %5520 = vrot.lane.b32.xlu0 %v5426, 127
      %v5521 = vpop.permute.xlu0 %5520
      %5522 = vrot.lane.b32.xlu0 %v5427, 127
      %v5523 = vpop.permute.xlu0 %5522
      %5524 = vrot.lane.b32.xlu0 %v5428, 127
      %v5525 = vpop.permute.xlu0 %5524
      %5526 = vrot.lane.b32.xlu0 %v5429, 127
      %v5527 = vpop.permute.xlu0 %5526
      %5528 = vrot.lane.b32.xlu0 %v5430, 127
      %v5529 = vpop.permute.xlu0 %5528
      %5530 = vrot.lane.b32.xlu0 %v5431, 127
      %v5531 = vpop.permute.xlu0 %5530
      %5532 = vrot.lane.b32.xlu0 %v5432, 127
      %v5533 = vpop.permute.xlu0 %5532
      %5534 = vrot.lane.b32.xlu0 %v5433, 127
      %v5535 = vpop.permute.xlu0 %5534
      %5536 = vrot.lane.b32.xlu0 %v5434, 127
      %v5537 = vpop.permute.xlu0 %5536
      %5538 = vrot.lane.b32.xlu0 %v5435, 127
      %v5539 = vpop.permute.xlu0 %5538
      %5540 = vrot.lane.b32.xlu0 %v5436, 127
      %v5541 = vpop.permute.xlu0 %5540
      %5542 = vrot.lane.b32.xlu0 %v5437, 127
      %v5543 = vpop.permute.xlu0 %5542
      %5544 = vrot.lane.b32.xlu0 %v5438, 127
      %v5545 = vpop.permute.xlu0 %5544
      %5546 = vrot.lane.b32.xlu0 %v5439, 127
      %v5547 = vpop.permute.xlu0 %5546
      %5548 = vrot.lane.b32.xlu0 %v5440, 127
      %v5549 = vpop.permute.xlu0 %5548
      %5550 = vrot.lane.b32.xlu0 %v5441, 127
      %v5551 = vpop.permute.xlu0 %5550
      %5552 = vrot.lane.b32.xlu0 %v5442, 127
      %v5553 = vpop.permute.xlu0 %5552
      %5554 = vrot.lane.b32.xlu0 %v5443, 127
      %v5555 = vpop.permute.xlu0 %5554
      %5556 = vrot.lane.b32.xlu0 %v5444, 127
      %v5557 = vpop.permute.xlu0 %5556
      %5558 = vrot.lane.b32.xlu0 %v5445, 127
      %v5559 = vpop.permute.xlu0 %5558
      %5560 = vrot.lane.b32.xlu0 %v5446, 127
      %v5561 = vpop.permute.xlu0 %5560
      %5562 = vrot.lane.b32.xlu0 %v5447, 127
      %v5563 = vpop.permute.xlu0 %5562
      %5564 = vrot.lane.b32.xlu0 %v5448, 127
      %v5565 = vpop.permute.xlu0 %5564
      %5566 = vrot.lane.b32.xlu0 %v5449, 127
      %v5567 = vpop.permute.xlu0 %5566
      %5568 = vrot.lane.b32.xlu0 %v5450, 127
      %v5569 = vpop.permute.xlu0 %5568
      %5570 = vrot.lane.b32.xlu0 %v5451, 127
      %v5571 = vpop.permute.xlu0 %5570
      %5572 = vrot.lane.b32.xlu0 %v5452, 127
      %v5573 = vpop.permute.xlu0 %5572
      %5574 = vrot.lane.b32.xlu0 %v5453, 127
      %v5575 = vpop.permute.xlu0 %5574
      %5576 = vrot.lane.b32.xlu0 %v5454, 127
      %v5577 = vpop.permute.xlu0 %5576
      %5578 = vrot.lane.b32.xlu0 %v5455, 127
      %v5579 = vpop.permute.xlu0 %5578
      %5580 = vrot.lane.b32.xlu0 %v5456, 127
      %v5581 = vpop.permute.xlu0 %5580
      %5582 = vrot.lane.b32.xlu0 %v5457, 127
      %v5583 = vpop.permute.xlu0 %5582
      %5584 = vrot.lane.b32.xlu0 %v5458, 127
      %v5585 = vpop.permute.xlu0 %5584
      %5586 = vrot.lane.b32.xlu0 %v5459, 127
      %v5587 = vpop.permute.xlu0 %5586
      %5588 = vrot.lane.b32.xlu0 %v5460, 127
      %v5589 = vpop.permute.xlu0 %5588
      %5590 = vrot.lane.b32.xlu0 %v5461, 127
      %v5591 = vpop.permute.xlu0 %5590
      %5592 = vrot.lane.b32.xlu0 %v5462, 127
      %v5593 = vpop.permute.xlu0 %5592
      %5594 = vrot.lane.b32.xlu0 %v5463, 127
      %v5595 = vpop.permute.xlu0 %5594
      %v5596 = vsel %vm2065, %v5509, %v5511
      %v5597 = vsel %vm2065, %v5513, %v5515
      %v5598 = vsel %vm2065, %v5517, %v5519
      %v5599 = vsel %vm2065, %v5521, %v5523
      %v5600 = vsel %vm2065, %v5525, %v5527
      %v5601 = vsel %vm2065, %v5529, %v5531
      %v5602 = vsel %vm2065, %v5533, %v5535
      %v5603 = vsel %vm2065, %v5537, %v5539
      %v5604 = vsel %vm2065, %v5541, %v5543
      %v5605 = vsel %vm2065, %v5545, %v5547
      %v5606 = vsel %vm2065, %v5549, %v5551
      %v5607 = vsel %vm2065, %v5553, %v5555
      %v5608 = vsel %vm2065, %v5557, %v5559
      %v5609 = vsel %vm2065, %v5561, %v5563
      %v5610 = vsel %vm2065, %v5565, %v5567
      %v5611 = vsel %vm2065, %v5569, %v5571
      %v5612 = vsel %vm2065, %v5573, %v5575
      %v5613 = vsel %vm2065, %v5577, %v5579
      %v5614 = vsel %vm2065, %v5581, %v5583
      %v5615 = vsel %vm2065, %v5585, %v5587
      %v5616 = vsel %vm2065, %v5589, %v5591
      %v5617 = vsel %vm2065, %v5593, %v5595
      %v5662 = vmax.f32 %v5420, %v5596
      %v5663 = vmax.f32 %v5421, %v5511
      %v5664 = vmax.f32 %v5422, %v5597
      %v5665 = vmax.f32 %v5423, %v5515
      %v5666 = vmax.f32 %v5424, %v5598
      %v5667 = vmax.f32 %v5425, %v5519
      %v5668 = vmax.f32 %v5426, %v5599
      %v5669 = vmax.f32 %v5427, %v5523
      %v5670 = vmax.f32 %v5428, %v5600
      %v5671 = vmax.f32 %v5429, %v5527
      %v5672 = vmax.f32 %v5430, %v5601
      %v5673 = vmax.f32 %v5431, %v5531
      %v5674 = vmax.f32 %v5432, %v5602
      %v5675 = vmax.f32 %v5433, %v5535
      %v5676 = vmax.f32 %v5434, %v5603
      %v5677 = vmax.f32 %v5435, %v5539
      %v5678 = vmax.f32 %v5436, %v5604
      %v5679 = vmax.f32 %v5437, %v5543
      %v5680 = vmax.f32 %v5438, %v5605
      %v5681 = vmax.f32 %v5439, %v5547
      %v5682 = vmax.f32 %v5440, %v5606
      %v5683 = vmax.f32 %v5441, %v5551
      %v5684 = vmax.f32 %v5442, %v5607
      %v5685 = vmax.f32 %v5443, %v5555
      %v5686 = vmax.f32 %v5444, %v5608
      %v5687 = vmax.f32 %v5445, %v5559
      %v5688 = vmax.f32 %v5446, %v5609
      %v5689 = vmax.f32 %v5447, %v5563
      %v5690 = vmax.f32 %v5448, %v5610
      %v5691 = vmax.f32 %v5449, %v5567
      %v5692 = vmax.f32 %v5450, %v5611
      %v5693 = vmax.f32 %v5451, %v5571
      %v5694 = vmax.f32 %v5452, %v5612
      %v5695 = vmax.f32 %v5453, %v5575
      %v5696 = vmax.f32 %v5454, %v5613
      %v5697 = vmax.f32 %v5455, %v5579
      %v5698 = vmax.f32 %v5456, %v5614
      %v5699 = vmax.f32 %v5457, %v5583
      %v5700 = vmax.f32 %v5458, %v5615
      %v5701 = vmax.f32 %v5459, %v5587
      %v5702 = vmax.f32 %v5460, %v5616
      %v5703 = vmax.f32 %v5461, %v5591
      %v5704 = vmax.f32 %v5462, %v5617
      %v5705 = vmax.f32 %v5463, %v5595
      %v5706 = vpack.c.bf16 %v5664, %v5662
      %v5707 = vpack.c.bf16 %v5665, %v5663
      %v5708 = vpack.c.bf16 %v5668, %v5666
      %v5709 = vpack.c.bf16 %v5669, %v5667
      %v5710 = vpack.c.bf16 %v5672, %v5670
      %v5711 = vpack.c.bf16 %v5673, %v5671
      %v5712 = vpack.c.bf16 %v5676, %v5674
      %v5713 = vpack.c.bf16 %v5677, %v5675
      %v5714 = vpack.c.bf16 %v5680, %v5678
      %v5715 = vpack.c.bf16 %v5681, %v5679
      %v5716 = vpack.c.bf16 %v5684, %v5682
      %v5717 = vpack.c.bf16 %v5685, %v5683
      %v5718 = vpack.c.bf16 %v5688, %v5686
      %v5719 = vpack.c.bf16 %v5689, %v5687
      %v5720 = vpack.c.bf16 %v5692, %v5690
      %v5721 = vpack.c.bf16 %v5693, %v5691
      %v5722 = vpack.c.bf16 %v5696, %v5694
      %v5723 = vpack.c.bf16 %v5697, %v5695
      %v5724 = vpack.c.bf16 %v5700, %v5698
      %v5725 = vpack.c.bf16 %v5701, %v5699
      %v5726 = vpack.c.bf16 %v5704, %v5702
      %v5727 = vpack.c.bf16 %v5705, %v5703
      %v5728 = vld [vmem:[%s6] sm:$0xf]
      %v5729 = vld [vmem:[%s6 + $0x4] sm:$0xf]
      %v5730 = vld [vmem:[%s6 + $0x8] sm:$0xf]
      %v5731 = vld [vmem:[%s6 + $0xc] sm:$0xf]
      %v5732 = vld [vmem:[%s6 + $0x10] sm:$0xf]
      %v5733 = vld [vmem:[%s6 + $0x14] sm:$0xf]
      %v5734 = vld [vmem:[%s6 + $0x18] sm:$0xf]
      %v5735 = vld [vmem:[%s6 + $0x1c] sm:$0xf]
      %v5736 = vld [vmem:[%s6 + $0x20] sm:$0xf]
      %v5737 = vld [vmem:[%s6 + $0x24] sm:$0xf]
      %v5738 = vld [vmem:[%s6 + $0x28] sm:$0xf]
      %v5739 = vld [vmem:[%s6 + $0x2c] sm:$0xf]
      %v5740 = vld [vmem:[%s6 + $0x30] sm:$0xf]
      %v5741 = vld [vmem:[%s6 + $0x34] sm:$0xf]
      %v5742 = vld [vmem:[%s6 + $0x38] sm:$0xf]
      %v5743 = vld [vmem:[%s6 + $0x3c] sm:$0xf]
      %v5744 = vld [vmem:[%s6 + $0x40] sm:$0xf]
      %v5745 = vld [vmem:[%s6 + $0x44] sm:$0xf]
      %v5746 = vld [vmem:[%s6 + $0x48] sm:$0xf]
      %v5747 = vld [vmem:[%s6 + $0x4c] sm:$0xf]
      %v5748 = vld [vmem:[%s6 + $0x50] sm:$0xf]
      %v5749 = vld [vmem:[%s6 + $0x54] sm:$0xf]
      %v5750 = vld [vmem:[%s6 + $0x58] sm:$0xf]
      %v5751 = vld [vmem:[%s6 + $0x5c] sm:$0x7]
      %v5776 = vunpack.c.l.b16 %v5728
      %v5777 = vunpack.c.l.b16 %v5729
      %v5778 = vunpack.c.l.b16 %v5730
      %v5779 = vunpack.c.l.b16 %v5731
      %v5780 = vunpack.c.l.b16 %v5732
      %v5781 = vunpack.c.l.b16 %v5733
      %v5782 = vunpack.c.l.b16 %v5734
      %v5783 = vunpack.c.l.b16 %v5735
      %v5784 = vunpack.c.l.b16 %v5736
      %v5785 = vunpack.c.l.b16 %v5737
      %v5786 = vunpack.c.l.b16 %v5738
      %v5787 = vunpack.c.l.b16 %v5739
      %v5788 = vunpack.c.l.b16 %v5740
      %v5789 = vunpack.c.l.b16 %v5741
      %v5790 = vunpack.c.l.b16 %v5742
      %v5791 = vunpack.c.l.b16 %v5743
      %v5792 = vunpack.c.l.b16 %v5744
      %v5793 = vunpack.c.l.b16 %v5745
      %v5794 = vunpack.c.l.b16 %v5746
      %v5795 = vunpack.c.l.b16 %v5747
      %v5796 = vunpack.c.l.b16 %v5748
      %v5797 = vunpack.c.l.b16 %v5749
      %v5798 = vunpack.c.l.b16 %v5750
      %v5799 = vunpack.c.l.b16 %v5751
      %v5800 = vpack.c.b16 %v5777, %v5776
      %v5801 = vpack.c.b16 %v5779, %v5778
      %v5802 = vpack.c.b16 %v5781, %v5780
      %v5803 = vpack.c.b16 %v5783, %v5782
      %v5804 = vpack.c.b16 %v5785, %v5784
      %v5805 = vpack.c.b16 %v5787, %v5786
      %v5806 = vpack.c.b16 %v5789, %v5788
      %v5807 = vpack.c.b16 %v5791, %v5790
      %v5808 = vpack.c.b16 %v5793, %v5792
      %v5809 = vpack.c.b16 %v5795, %v5794
      %v5810 = vpack.c.b16 %v5797, %v5796
      %v5811 = vpack.c.b16 %v5799, %v5798
      %vm5823 = vcmask 498688
      %v5825 = vsel %vm5823, %v5707, 0
      %v5828 = vsel %vm5823, %v5709, 0
      %v5831 = vsel %vm5823, %v5711, 0
      %v5834 = vsel %vm5823, %v5713, 0
      %v5837 = vsel %vm5823, %v5715, 0
      %v5840 = vsel %vm5823, %v5717, 0
      %v5843 = vsel %vm5823, %v5719, 0
      %v5846 = vsel %vm5823, %v5721, 0
      %v5849 = vsel %vm5823, %v5723, 0
      %v5852 = vsel %vm5823, %v5725, 0
      %v5855 = vsel %vm5823, %v5727, 0
      %vm5857 = vcmask 1045504
      %vm5858 = vcmask 1046528
      %v5859 = vsel %vm5857, 4294967295, 65535
      %v5860 = vsel %vm5858, %v5859, 0
      %v5862 = vand.u32 %v5811, %v5860
      %5864 = vmatpush.bf16.msra.mxu0 %v5807
      %5865 = vmatpush.bf16.msra.mxu0 %v5806
      %5866 = vmatpush.bf16.msra.mxu0 %v5805
      %5867 = vmatpush.bf16.msra.mxu0 %v5804
      %5868 = vmatpush.bf16.msra.mxu0 %v5803
      %5869 = vmatpush.bf16.msra.mxu0 %v5802
      %5870 = vmatpush.bf16.msra.mxu0 %v5801
      %5871 = vmatpush.bf16.msra.mxu0 %v5800
      %5872 = vmatmul.bf16.gmra.mxu0 %v5706
      %v5873 = vpop.f32.mrf.mxu0
      %v5874 = vadd.f32 0.0, %v5873
      %v5875 = vpop.f32.mrf.mxu0
      %v5876 = vadd.f32 0.0, %v5875
      %5877 = vmatmul.bf16.gmra.mxu0 %v5708
      %v5878 = vpop.f32.mrf.mxu0
      %v5879 = vadd.f32 0.0, %v5878
      %v5880 = vpop.f32.mrf.mxu0
      %v5881 = vadd.f32 0.0, %v5880
      %5882 = vmatmul.bf16.gmra.mxu0 %v5710
      %v5883 = vpop.f32.mrf.mxu0
      %v5884 = vadd.f32 0.0, %v5883
      %v5885 = vpop.f32.mrf.mxu0
      %v5886 = vadd.f32 0.0, %v5885
      %5887 = vmatmul.bf16.gmra.mxu0 %v5712
      %v5888 = vpop.f32.mrf.mxu0
      %v5889 = vadd.f32 0.0, %v5888
      %v5890 = vpop.f32.mrf.mxu0
      %v5891 = vadd.f32 0.0, %v5890
      %5892 = vmatmul.bf16.gmra.mxu0 %v5714
      %v5893 = vpop.f32.mrf.mxu0
      %v5894 = vadd.f32 0.0, %v5893
      %v5895 = vpop.f32.mrf.mxu0
      %v5896 = vadd.f32 0.0, %v5895
      %5897 = vmatmul.bf16.gmra.mxu0 %v5716
      %v5898 = vpop.f32.mrf.mxu0
      %v5899 = vadd.f32 0.0, %v5898
      %v5900 = vpop.f32.mrf.mxu0
      %v5901 = vadd.f32 0.0, %v5900
      %5902 = vmatmul.bf16.gmra.mxu0 %v5718
      %v5903 = vpop.f32.mrf.mxu0
      %v5904 = vadd.f32 0.0, %v5903
      %v5905 = vpop.f32.mrf.mxu0
      %v5906 = vadd.f32 0.0, %v5905
      %5907 = vmatmul.bf16.gmra.mxu0 %v5720
      %v5908 = vpop.f32.mrf.mxu0
      %v5909 = vadd.f32 0.0, %v5908
      %v5910 = vpop.f32.mrf.mxu0
      %v5911 = vadd.f32 0.0, %v5910
      %5912 = vmatmul.bf16.gmra.mxu0 %v5722
      %v5913 = vpop.f32.mrf.mxu0
      %v5914 = vadd.f32 0.0, %v5913
      %v5915 = vpop.f32.mrf.mxu0
      %v5916 = vadd.f32 0.0, %v5915
      %5917 = vmatmul.bf16.gmra.mxu0 %v5724
      %v5918 = vpop.f32.mrf.mxu0
      %v5919 = vadd.f32 0.0, %v5918
      %v5920 = vpop.f32.mrf.mxu0
      %v5921 = vadd.f32 0.0, %v5920
      %5922 = vmatmul.bf16.gmra.mxu0 %v5726
      %v5923 = vpop.f32.mrf.mxu0
      %v5924 = vadd.f32 0.0, %v5923
      %v5925 = vpop.f32.mrf.mxu0
      %v5926 = vadd.f32 0.0, %v5925
      %5927 = vdwg.mxu0
      %5928 = vmatpush.bf16.msra.mxu0 0
      %5929 = vmatpush.bf16.msra.mxu0 0
      %5930 = vmatpush.bf16.msra.mxu0 0
      %5931 = vmatpush.bf16.msra.mxu0 0
      %5932 = vmatpush.bf16.msra.mxu0 %v5862
      %5933 = vmatpush.bf16.msra.mxu0 %v5810
      %5934 = vmatpush.bf16.msra.mxu0 %v5809
      %5935 = vmatpush.bf16.msra.mxu0 %v5808
      %5936 = vmatmul.bf16.gmra.mxu0 %v5825
      %v5937 = vpop.f32.mrf.mxu0
      %v5938 = vadd.f32 %v5874, %v5937
      %v5939 = vpop.f32.mrf.mxu0
      %v5940 = vadd.f32 %v5876, %v5939
      %5941 = vmatmul.bf16.gmra.mxu0 %v5828
      %v5942 = vpop.f32.mrf.mxu0
      %v5943 = vadd.f32 %v5879, %v5942
      %v5944 = vpop.f32.mrf.mxu0
      %v5945 = vadd.f32 %v5881, %v5944
      %5946 = vmatmul.bf16.gmra.mxu0 %v5831
      %v5947 = vpop.f32.mrf.mxu0
      %v5948 = vadd.f32 %v5884, %v5947
      %v5949 = vpop.f32.mrf.mxu0
      %v5950 = vadd.f32 %v5886, %v5949
      %5951 = vmatmul.bf16.gmra.mxu0 %v5834
      %v5952 = vpop.f32.mrf.mxu0
      %v5953 = vadd.f32 %v5889, %v5952
      %v5954 = vpop.f32.mrf.mxu0
      %v5955 = vadd.f32 %v5891, %v5954
      %5956 = vmatmul.bf16.gmra.mxu0 %v5837
      %v5957 = vpop.f32.mrf.mxu0
      %v5958 = vadd.f32 %v5894, %v5957
      %v5959 = vpop.f32.mrf.mxu0
      %v5960 = vadd.f32 %v5896, %v5959
      %5961 = vmatmul.bf16.gmra.mxu0 %v5840
      %v5962 = vpop.f32.mrf.mxu0
      %v5963 = vadd.f32 %v5899, %v5962
      %v5964 = vpop.f32.mrf.mxu0
      %v5965 = vadd.f32 %v5901, %v5964
      %5966 = vmatmul.bf16.gmra.mxu0 %v5843
      %v5967 = vpop.f32.mrf.mxu0
      %v5968 = vadd.f32 %v5904, %v5967
      %v5969 = vpop.f32.mrf.mxu0
      %v5970 = vadd.f32 %v5906, %v5969
      %5971 = vmatmul.bf16.gmra.mxu0 %v5846
      %v5972 = vpop.f32.mrf.mxu0
      %v5973 = vadd.f32 %v5909, %v5972
      %v5974 = vpop.f32.mrf.mxu0
      %v5975 = vadd.f32 %v5911, %v5974
      %5976 = vmatmul.bf16.gmra.mxu0 %v5849
      %v5977 = vpop.f32.mrf.mxu0
      %v5978 = vadd.f32 %v5914, %v5977
      %v5979 = vpop.f32.mrf.mxu0
      %v5980 = vadd.f32 %v5916, %v5979
      %5981 = vmatmul.bf16.gmra.mxu0 %v5852
      %v5982 = vpop.f32.mrf.mxu0
      %v5983 = vadd.f32 %v5919, %v5982
      %v5984 = vpop.f32.mrf.mxu0
      %v5985 = vadd.f32 %v5921, %v5984
      %5986 = vmatmul.bf16.gmra.mxu0 %v5855
      %v5987 = vpop.f32.mrf.mxu0
      %v5988 = vadd.f32 %v5924, %v5987
      %v5989 = vpop.f32.mrf.mxu0
      %v5990 = vadd.f32 %v5926, %v5989
      %5991 = vdwg.mxu0
      %6014 = vrot.lane.b32.xlu0 %v5938, 120
      %v6015 = vpop.permute.xlu0 %6014
      %6016 = vrot.lane.b32.xlu0 %v5940, 120
      %v6017 = vpop.permute.xlu0 %6016
      %6018 = vrot.lane.b32.xlu0 %v5943, 120
      %v6019 = vpop.permute.xlu0 %6018
      %6020 = vrot.lane.b32.xlu0 %v5945, 120
      %v6021 = vpop.permute.xlu0 %6020
      %6022 = vrot.lane.b32.xlu0 %v5948, 120
      %v6023 = vpop.permute.xlu0 %6022
      %6024 = vrot.lane.b32.xlu0 %v5950, 120
      %v6025 = vpop.permute.xlu0 %6024
      %6026 = vrot.lane.b32.xlu0 %v5953, 120
      %v6027 = vpop.permute.xlu0 %6026
      %6028 = vrot.lane.b32.xlu0 %v5955, 120
      %v6029 = vpop.permute.xlu0 %6028
      %6030 = vrot.lane.b32.xlu0 %v5958, 120
      %v6031 = vpop.permute.xlu0 %6030
      %6032 = vrot.lane.b32.xlu0 %v5960, 120
      %v6033 = vpop.permute.xlu0 %6032
      %6034 = vrot.lane.b32.xlu0 %v5963, 120
      %v6035 = vpop.permute.xlu0 %6034
      %6036 = vrot.lane.b32.xlu0 %v5965, 120
      %v6037 = vpop.permute.xlu0 %6036
      %6038 = vrot.lane.b32.xlu0 %v5968, 120
      %v6039 = vpop.permute.xlu0 %6038
      %6040 = vrot.lane.b32.xlu0 %v5970, 120
      %v6041 = vpop.permute.xlu0 %6040
      %6042 = vrot.lane.b32.xlu0 %v5973, 120
      %v6043 = vpop.permute.xlu0 %6042
      %6044 = vrot.lane.b32.xlu0 %v5975, 120
      %v6045 = vpop.permute.xlu0 %6044
      %6046 = vrot.lane.b32.xlu0 %v5978, 120
      %v6047 = vpop.permute.xlu0 %6046
      %6048 = vrot.lane.b32.xlu0 %v5980, 120
      %v6049 = vpop.permute.xlu0 %6048
      %6050 = vrot.lane.b32.xlu0 %v5983, 120
      %v6051 = vpop.permute.xlu0 %6050
      %6052 = vrot.lane.b32.xlu0 %v5985, 120
      %v6053 = vpop.permute.xlu0 %6052
      %6054 = vrot.lane.b32.xlu0 %v5988, 120
      %v6055 = vpop.permute.xlu0 %6054
      %6056 = vrot.lane.b32.xlu0 %v5990, 120
      %v6057 = vpop.permute.xlu0 %6056
      %6080 = vrot.lane.b32.xlu0 %v5938, 112
      %v6081 = vpop.permute.xlu0 %6080
      %6082 = vrot.lane.b32.xlu0 %v5940, 112
      %v6083 = vpop.permute.xlu0 %6082
      %6084 = vrot.lane.b32.xlu0 %v5943, 112
      %v6085 = vpop.permute.xlu0 %6084
      %6086 = vrot.lane.b32.xlu0 %v5945, 112
      %v6087 = vpop.permute.xlu0 %6086
      %6088 = vrot.lane.b32.xlu0 %v5948, 112
      %v6089 = vpop.permute.xlu0 %6088
      %6090 = vrot.lane.b32.xlu0 %v5950, 112
      %v6091 = vpop.permute.xlu0 %6090
      %6092 = vrot.lane.b32.xlu0 %v5953, 112
      %v6093 = vpop.permute.xlu0 %6092
      %6094 = vrot.lane.b32.xlu0 %v5955, 112
      %v6095 = vpop.permute.xlu0 %6094
      %6096 = vrot.lane.b32.xlu0 %v5958, 112
      %v6097 = vpop.permute.xlu0 %6096
      %6098 = vrot.lane.b32.xlu0 %v5960, 112
      %v6099 = vpop.permute.xlu0 %6098
      %6100 = vrot.lane.b32.xlu0 %v5963, 112
      %v6101 = vpop.permute.xlu0 %6100
      %6102 = vrot.lane.b32.xlu0 %v5965, 112
      %v6103 = vpop.permute.xlu0 %6102
      %6104 = vrot.lane.b32.xlu0 %v5968, 112
      %v6105 = vpop.permute.xlu0 %6104
      %6106 = vrot.lane.b32.xlu0 %v5970, 112
      %v6107 = vpop.permute.xlu0 %6106
      %6108 = vrot.lane.b32.xlu0 %v5973, 112
      %v6109 = vpop.permute.xlu0 %6108
      %6110 = vrot.lane.b32.xlu0 %v5975, 112
      %v6111 = vpop.permute.xlu0 %6110
      %6112 = vrot.lane.b32.xlu0 %v5978, 112
      %v6113 = vpop.permute.xlu0 %6112
      %6114 = vrot.lane.b32.xlu0 %v5980, 112
      %v6115 = vpop.permute.xlu0 %6114
      %6116 = vrot.lane.b32.xlu0 %v5983, 112
      %v6117 = vpop.permute.xlu0 %6116
      %6118 = vrot.lane.b32.xlu0 %v5985, 112
      %v6119 = vpop.permute.xlu0 %6118
      %6120 = vrot.lane.b32.xlu0 %v5988, 112
      %v6121 = vpop.permute.xlu0 %6120
      %6122 = vrot.lane.b32.xlu0 %v5990, 112
      %v6123 = vpop.permute.xlu0 %6122
      %6146 = vrot.lane.b32.xlu0 %v5938, 104
      %v6147 = vpop.permute.xlu0 %6146
      %6148 = vrot.lane.b32.xlu0 %v5940, 104
      %v6149 = vpop.permute.xlu0 %6148
      %6150 = vrot.lane.b32.xlu0 %v5943, 104
      %v6151 = vpop.permute.xlu0 %6150
      %6152 = vrot.lane.b32.xlu0 %v5945, 104
      %v6153 = vpop.permute.xlu0 %6152
      %6154 = vrot.lane.b32.xlu0 %v5948, 104
      %v6155 = vpop.permute.xlu0 %6154
      %6156 = vrot.lane.b32.xlu0 %v5950, 104
      %v6157 = vpop.permute.xlu0 %6156
      %6158 = vrot.lane.b32.xlu0 %v5953, 104
      %v6159 = vpop.permute.xlu0 %6158
      %6160 = vrot.lane.b32.xlu0 %v5955, 104
      %v6161 = vpop.permute.xlu0 %6160
      %6162 = vrot.lane.b32.xlu0 %v5958, 104
      %v6163 = vpop.permute.xlu0 %6162
      %6164 = vrot.lane.b32.xlu0 %v5960, 104
      %v6165 = vpop.permute.xlu0 %6164
      %6166 = vrot.lane.b32.xlu0 %v5963, 104
      %v6167 = vpop.permute.xlu0 %6166
      %6168 = vrot.lane.b32.xlu0 %v5965, 104
      %v6169 = vpop.permute.xlu0 %6168
      %6170 = vrot.lane.b32.xlu0 %v5968, 104
      %v6171 = vpop.permute.xlu0 %6170
      %6172 = vrot.lane.b32.xlu0 %v5970, 104
      %v6173 = vpop.permute.xlu0 %6172
      %6174 = vrot.lane.b32.xlu0 %v5973, 104
      %v6175 = vpop.permute.xlu0 %6174
      %6176 = vrot.lane.b32.xlu0 %v5975, 104
      %v6177 = vpop.permute.xlu0 %6176
      %6178 = vrot.lane.b32.xlu0 %v5978, 104
      %v6179 = vpop.permute.xlu0 %6178
      %6180 = vrot.lane.b32.xlu0 %v5980, 104
      %v6181 = vpop.permute.xlu0 %6180
      %6182 = vrot.lane.b32.xlu0 %v5983, 104
      %v6183 = vpop.permute.xlu0 %6182
      %6184 = vrot.lane.b32.xlu0 %v5985, 104
      %v6185 = vpop.permute.xlu0 %6184
      %6186 = vrot.lane.b32.xlu0 %v5988, 104
      %v6187 = vpop.permute.xlu0 %6186
      %6188 = vrot.lane.b32.xlu0 %v5990, 104
      %v6189 = vpop.permute.xlu0 %6188
      %6212 = vrot.lane.b32.xlu0 %v5938, 96
      %v6213 = vpop.permute.xlu0 %6212
      %6214 = vrot.lane.b32.xlu0 %v5940, 96
      %v6215 = vpop.permute.xlu0 %6214
      %6216 = vrot.lane.b32.xlu0 %v5943, 96
      %v6217 = vpop.permute.xlu0 %6216
      %6218 = vrot.lane.b32.xlu0 %v5945, 96
      %v6219 = vpop.permute.xlu0 %6218
      %6220 = vrot.lane.b32.xlu0 %v5948, 96
      %v6221 = vpop.permute.xlu0 %6220
      %6222 = vrot.lane.b32.xlu0 %v5950, 96
      %v6223 = vpop.permute.xlu0 %6222
      %6224 = vrot.lane.b32.xlu0 %v5953, 96
      %v6225 = vpop.permute.xlu0 %6224
      %6226 = vrot.lane.b32.xlu0 %v5955, 96
      %v6227 = vpop.permute.xlu0 %6226
      %6228 = vrot.lane.b32.xlu0 %v5958, 96
      %v6229 = vpop.permute.xlu0 %6228
      %6230 = vrot.lane.b32.xlu0 %v5960, 96
      %v6231 = vpop.permute.xlu0 %6230
      %6232 = vrot.lane.b32.xlu0 %v5963, 96
      %v6233 = vpop.permute.xlu0 %6232
      %6234 = vrot.lane.b32.xlu0 %v5965, 96
      %v6235 = vpop.permute.xlu0 %6234
      %6236 = vrot.lane.b32.xlu0 %v5968, 96
      %v6237 = vpop.permute.xlu0 %6236
      %6238 = vrot.lane.b32.xlu0 %v5970, 96
      %v6239 = vpop.permute.xlu0 %6238
      %6240 = vrot.lane.b32.xlu0 %v5973, 96
      %v6241 = vpop.permute.xlu0 %6240
      %6242 = vrot.lane.b32.xlu0 %v5975, 96
      %v6243 = vpop.permute.xlu0 %6242
      %6244 = vrot.lane.b32.xlu0 %v5978, 96
      %v6245 = vpop.permute.xlu0 %6244
      %6246 = vrot.lane.b32.xlu0 %v5980, 96
      %v6247 = vpop.permute.xlu0 %6246
      %6248 = vrot.lane.b32.xlu0 %v5983, 96
      %v6249 = vpop.permute.xlu0 %6248
      %6250 = vrot.lane.b32.xlu0 %v5985, 96
      %v6251 = vpop.permute.xlu0 %6250
      %6252 = vrot.lane.b32.xlu0 %v5988, 96
      %v6253 = vpop.permute.xlu0 %6252
      %6254 = vrot.lane.b32.xlu0 %v5990, 96
      %v6255 = vpop.permute.xlu0 %6254
      %6278 = vrot.lane.b32.xlu0 %v5938, 88
      %v6279 = vpop.permute.xlu0 %6278
      %6280 = vrot.lane.b32.xlu0 %v5940, 88
      %v6281 = vpop.permute.xlu0 %6280
      %6282 = vrot.lane.b32.xlu0 %v5943, 88
      %v6283 = vpop.permute.xlu0 %6282
      %6284 = vrot.lane.b32.xlu0 %v5945, 88
      %v6285 = vpop.permute.xlu0 %6284
      %6286 = vrot.lane.b32.xlu0 %v5948, 88
      %v6287 = vpop.permute.xlu0 %6286
      %6288 = vrot.lane.b32.xlu0 %v5950, 88
      %v6289 = vpop.permute.xlu0 %6288
      %6290 = vrot.lane.b32.xlu0 %v5953, 88
      %v6291 = vpop.permute.xlu0 %6290
      %6292 = vrot.lane.b32.xlu0 %v5955, 88
      %v6293 = vpop.permute.xlu0 %6292
      %6294 = vrot.lane.b32.xlu0 %v5958, 88
      %v6295 = vpop.permute.xlu0 %6294
      %6296 = vrot.lane.b32.xlu0 %v5960, 88
      %v6297 = vpop.permute.xlu0 %6296
      %6298 = vrot.lane.b32.xlu0 %v5963, 88
      %v6299 = vpop.permute.xlu0 %6298
      %6300 = vrot.lane.b32.xlu0 %v5965, 88
      %v6301 = vpop.permute.xlu0 %6300
      %6302 = vrot.lane.b32.xlu0 %v5968, 88
      %v6303 = vpop.permute.xlu0 %6302
      %6304 = vrot.lane.b32.xlu0 %v5970, 88
      %v6305 = vpop.permute.xlu0 %6304
      %6306 = vrot.lane.b32.xlu0 %v5973, 88
      %v6307 = vpop.permute.xlu0 %6306
      %6308 = vrot.lane.b32.xlu0 %v5975, 88
      %v6309 = vpop.permute.xlu0 %6308
      %6310 = vrot.lane.b32.xlu0 %v5978, 88
      %v6311 = vpop.permute.xlu0 %6310
      %6312 = vrot.lane.b32.xlu0 %v5980, 88
      %v6313 = vpop.permute.xlu0 %6312
      %6314 = vrot.lane.b32.xlu0 %v5983, 88
      %v6315 = vpop.permute.xlu0 %6314
      %6316 = vrot.lane.b32.xlu0 %v5985, 88
      %v6317 = vpop.permute.xlu0 %6316
      %6318 = vrot.lane.b32.xlu0 %v5988, 88
      %v6319 = vpop.permute.xlu0 %6318
      %6320 = vrot.lane.b32.xlu0 %v5990, 88
      %v6321 = vpop.permute.xlu0 %6320
      %6344 = vrot.lane.b32.xlu0 %v5938, 80
      %v6345 = vpop.permute.xlu0 %6344
      %6346 = vrot.lane.b32.xlu0 %v5940, 80
      %v6347 = vpop.permute.xlu0 %6346
      %6348 = vrot.lane.b32.xlu0 %v5943, 80
      %v6349 = vpop.permute.xlu0 %6348
      %6350 = vrot.lane.b32.xlu0 %v5945, 80
      %v6351 = vpop.permute.xlu0 %6350
      %6352 = vrot.lane.b32.xlu0 %v5948, 80
      %v6353 = vpop.permute.xlu0 %6352
      %6354 = vrot.lane.b32.xlu0 %v5950, 80
      %v6355 = vpop.permute.xlu0 %6354
      %6356 = vrot.lane.b32.xlu0 %v5953, 80
      %v6357 = vpop.permute.xlu0 %6356
      %6358 = vrot.lane.b32.xlu0 %v5955, 80
      %v6359 = vpop.permute.xlu0 %6358
      %6360 = vrot.lane.b32.xlu0 %v5958, 80
      %v6361 = vpop.permute.xlu0 %6360
      %6362 = vrot.lane.b32.xlu0 %v5960, 80
      %v6363 = vpop.permute.xlu0 %6362
      %6364 = vrot.lane.b32.xlu0 %v5963, 80
      %v6365 = vpop.permute.xlu0 %6364
      %6366 = vrot.lane.b32.xlu0 %v5965, 80
      %v6367 = vpop.permute.xlu0 %6366
      %6368 = vrot.lane.b32.xlu0 %v5968, 80
      %v6369 = vpop.permute.xlu0 %6368
      %6370 = vrot.lane.b32.xlu0 %v5970, 80
      %v6371 = vpop.permute.xlu0 %6370
      %6372 = vrot.lane.b32.xlu0 %v5973, 80
      %v6373 = vpop.permute.xlu0 %6372
      %6374 = vrot.lane.b32.xlu0 %v5975, 80
      %v6375 = vpop.permute.xlu0 %6374
      %6376 = vrot.lane.b32.xlu0 %v5978, 80
      %v6377 = vpop.permute.xlu0 %6376
      %6378 = vrot.lane.b32.xlu0 %v5980, 80
      %v6379 = vpop.permute.xlu0 %6378
      %6380 = vrot.lane.b32.xlu0 %v5983, 80
      %v6381 = vpop.permute.xlu0 %6380
      %6382 = vrot.lane.b32.xlu0 %v5985, 80
      %v6383 = vpop.permute.xlu0 %6382
      %6384 = vrot.lane.b32.xlu0 %v5988, 80
      %v6385 = vpop.permute.xlu0 %6384
      %6386 = vrot.lane.b32.xlu0 %v5990, 80
      %v6387 = vpop.permute.xlu0 %6386
      %6410 = vrot.lane.b32.xlu0 %v5938, 72
      %v6411 = vpop.permute.xlu0 %6410
      %6412 = vrot.lane.b32.xlu0 %v5940, 72
      %v6413 = vpop.permute.xlu0 %6412
      %6414 = vrot.lane.b32.xlu0 %v5943, 72
      %v6415 = vpop.permute.xlu0 %6414
      %6416 = vrot.lane.b32.xlu0 %v5945, 72
      %v6417 = vpop.permute.xlu0 %6416
      %6418 = vrot.lane.b32.xlu0 %v5948, 72
      %v6419 = vpop.permute.xlu0 %6418
      %6420 = vrot.lane.b32.xlu0 %v5950, 72
      %v6421 = vpop.permute.xlu0 %6420
      %6422 = vrot.lane.b32.xlu0 %v5953, 72
      %v6423 = vpop.permute.xlu0 %6422
      %6424 = vrot.lane.b32.xlu0 %v5955, 72
      %v6425 = vpop.permute.xlu0 %6424
      %6426 = vrot.lane.b32.xlu0 %v5958, 72
      %v6427 = vpop.permute.xlu0 %6426
      %6428 = vrot.lane.b32.xlu0 %v5960, 72
      %v6429 = vpop.permute.xlu0 %6428
      %6430 = vrot.lane.b32.xlu0 %v5963, 72
      %v6431 = vpop.permute.xlu0 %6430
      %6432 = vrot.lane.b32.xlu0 %v5965, 72
      %v6433 = vpop.permute.xlu0 %6432
      %6434 = vrot.lane.b32.xlu0 %v5968, 72
      %v6435 = vpop.permute.xlu0 %6434
      %6436 = vrot.lane.b32.xlu0 %v5970, 72
      %v6437 = vpop.permute.xlu0 %6436
      %6438 = vrot.lane.b32.xlu0 %v5973, 72
      %v6439 = vpop.permute.xlu0 %6438
      %6440 = vrot.lane.b32.xlu0 %v5975, 72
      %v6441 = vpop.permute.xlu0 %6440
      %6442 = vrot.lane.b32.xlu0 %v5978, 72
      %v6443 = vpop.permute.xlu0 %6442
      %6444 = vrot.lane.b32.xlu0 %v5980, 72
      %v6445 = vpop.permute.xlu0 %6444
      %6446 = vrot.lane.b32.xlu0 %v5983, 72
      %v6447 = vpop.permute.xlu0 %6446
      %6448 = vrot.lane.b32.xlu0 %v5985, 72
      %v6449 = vpop.permute.xlu0 %6448
      %6450 = vrot.lane.b32.xlu0 %v5988, 72
      %v6451 = vpop.permute.xlu0 %6450
      %6452 = vrot.lane.b32.xlu0 %v5990, 72
      %v6453 = vpop.permute.xlu0 %6452
      %6476 = vrot.lane.b32.xlu0 %v5938, 64
      %v6477 = vpop.permute.xlu0 %6476
      %6478 = vrot.lane.b32.xlu0 %v5940, 64
      %v6479 = vpop.permute.xlu0 %6478
      %6480 = vrot.lane.b32.xlu0 %v5943, 64
      %v6481 = vpop.permute.xlu0 %6480
      %6482 = vrot.lane.b32.xlu0 %v5945, 64
      %v6483 = vpop.permute.xlu0 %6482
      %6484 = vrot.lane.b32.xlu0 %v5948, 64
      %v6485 = vpop.permute.xlu0 %6484
      %6486 = vrot.lane.b32.xlu0 %v5950, 64
      %v6487 = vpop.permute.xlu0 %6486
      %6488 = vrot.lane.b32.xlu0 %v5953, 64
      %v6489 = vpop.permute.xlu0 %6488
      %6490 = vrot.lane.b32.xlu0 %v5955, 64
      %v6491 = vpop.permute.xlu0 %6490
      %6492 = vrot.lane.b32.xlu0 %v5958, 64
      %v6493 = vpop.permute.xlu0 %6492
      %6494 = vrot.lane.b32.xlu0 %v5960, 64
      %v6495 = vpop.permute.xlu0 %6494
      %6496 = vrot.lane.b32.xlu0 %v5963, 64
      %v6497 = vpop.permute.xlu0 %6496
      %6498 = vrot.lane.b32.xlu0 %v5965, 64
      %v6499 = vpop.permute.xlu0 %6498
      %6500 = vrot.lane.b32.xlu0 %v5968, 64
      %v6501 = vpop.permute.xlu0 %6500
      %6502 = vrot.lane.b32.xlu0 %v5970, 64
      %v6503 = vpop.permute.xlu0 %6502
      %6504 = vrot.lane.b32.xlu0 %v5973, 64
      %v6505 = vpop.permute.xlu0 %6504
      %6506 = vrot.lane.b32.xlu0 %v5975, 64
      %v6507 = vpop.permute.xlu0 %6506
      %6508 = vrot.lane.b32.xlu0 %v5978, 64
      %v6509 = vpop.permute.xlu0 %6508
      %6510 = vrot.lane.b32.xlu0 %v5980, 64
      %v6511 = vpop.permute.xlu0 %6510
      %6512 = vrot.lane.b32.xlu0 %v5983, 64
      %v6513 = vpop.permute.xlu0 %6512
      %6514 = vrot.lane.b32.xlu0 %v5985, 64
      %v6515 = vpop.permute.xlu0 %6514
      %6516 = vrot.lane.b32.xlu0 %v5988, 64
      %v6517 = vpop.permute.xlu0 %6516
      %6518 = vrot.lane.b32.xlu0 %v5990, 64
      %v6519 = vpop.permute.xlu0 %6518
      %6542 = vrot.lane.b32.xlu0 %v5938, 56
      %v6543 = vpop.permute.xlu0 %6542
      %6544 = vrot.lane.b32.xlu0 %v5940, 56
      %v6545 = vpop.permute.xlu0 %6544
      %6546 = vrot.lane.b32.xlu0 %v5943, 56
      %v6547 = vpop.permute.xlu0 %6546
      %6548 = vrot.lane.b32.xlu0 %v5945, 56
      %v6549 = vpop.permute.xlu0 %6548
      %6550 = vrot.lane.b32.xlu0 %v5948, 56
      %v6551 = vpop.permute.xlu0 %6550
      %6552 = vrot.lane.b32.xlu0 %v5950, 56
      %v6553 = vpop.permute.xlu0 %6552
      %6554 = vrot.lane.b32.xlu0 %v5953, 56
      %v6555 = vpop.permute.xlu0 %6554
      %6556 = vrot.lane.b32.xlu0 %v5955, 56
      %v6557 = vpop.permute.xlu0 %6556
      %6558 = vrot.lane.b32.xlu0 %v5958, 56
      %v6559 = vpop.permute.xlu0 %6558
      %6560 = vrot.lane.b32.xlu0 %v5960, 56
      %v6561 = vpop.permute.xlu0 %6560
      %6562 = vrot.lane.b32.xlu0 %v5963, 56
      %v6563 = vpop.permute.xlu0 %6562
      %6564 = vrot.lane.b32.xlu0 %v5965, 56
      %v6565 = vpop.permute.xlu0 %6564
      %6566 = vrot.lane.b32.xlu0 %v5968, 56
      %v6567 = vpop.permute.xlu0 %6566
      %6568 = vrot.lane.b32.xlu0 %v5970, 56
      %v6569 = vpop.permute.xlu0 %6568
      %6570 = vrot.lane.b32.xlu0 %v5973, 56
      %v6571 = vpop.permute.xlu0 %6570
      %6572 = vrot.lane.b32.xlu0 %v5975, 56
      %v6573 = vpop.permute.xlu0 %6572
      %6574 = vrot.lane.b32.xlu0 %v5978, 56
      %v6575 = vpop.permute.xlu0 %6574
      %6576 = vrot.lane.b32.xlu0 %v5980, 56
      %v6577 = vpop.permute.xlu0 %6576
      %6578 = vrot.lane.b32.xlu0 %v5983, 56
      %v6579 = vpop.permute.xlu0 %6578
      %6580 = vrot.lane.b32.xlu0 %v5985, 56
      %v6581 = vpop.permute.xlu0 %6580
      %6582 = vrot.lane.b32.xlu0 %v5988, 56
      %v6583 = vpop.permute.xlu0 %6582
      %6584 = vrot.lane.b32.xlu0 %v5990, 56
      %v6585 = vpop.permute.xlu0 %6584
      %6608 = vrot.lane.b32.xlu0 %v5938, 48
      %v6609 = vpop.permute.xlu0 %6608
      %6610 = vrot.lane.b32.xlu0 %v5940, 48
      %v6611 = vpop.permute.xlu0 %6610
      %6612 = vrot.lane.b32.xlu0 %v5943, 48
      %v6613 = vpop.permute.xlu0 %6612
      %6614 = vrot.lane.b32.xlu0 %v5945, 48
      %v6615 = vpop.permute.xlu0 %6614
      %6616 = vrot.lane.b32.xlu0 %v5948, 48
      %v6617 = vpop.permute.xlu0 %6616
      %6618 = vrot.lane.b32.xlu0 %v5950, 48
      %v6619 = vpop.permute.xlu0 %6618
      %6620 = vrot.lane.b32.xlu0 %v5953, 48
      %v6621 = vpop.permute.xlu0 %6620
      %6622 = vrot.lane.b32.xlu0 %v5955, 48
      %v6623 = vpop.permute.xlu0 %6622
      %6624 = vrot.lane.b32.xlu0 %v5958, 48
      %v6625 = vpop.permute.xlu0 %6624
      %6626 = vrot.lane.b32.xlu0 %v5960, 48
      %v6627 = vpop.permute.xlu0 %6626
      %6628 = vrot.lane.b32.xlu0 %v5963, 48
      %v6629 = vpop.permute.xlu0 %6628
      %6630 = vrot.lane.b32.xlu0 %v5965, 48
      %v6631 = vpop.permute.xlu0 %6630
      %6632 = vrot.lane.b32.xlu0 %v5968, 48
      %v6633 = vpop.permute.xlu0 %6632
      %6634 = vrot.lane.b32.xlu0 %v5970, 48
      %v6635 = vpop.permute.xlu0 %6634
      %6636 = vrot.lane.b32.xlu0 %v5973, 48
      %v6637 = vpop.permute.xlu0 %6636
      %6638 = vrot.lane.b32.xlu0 %v5975, 48
      %v6639 = vpop.permute.xlu0 %6638
      %6640 = vrot.lane.b32.xlu0 %v5978, 48
      %v6641 = vpop.permute.xlu0 %6640
      %6642 = vrot.lane.b32.xlu0 %v5980, 48
      %v6643 = vpop.permute.xlu0 %6642
      %6644 = vrot.lane.b32.xlu0 %v5983, 48
      %v6645 = vpop.permute.xlu0 %6644
      %6646 = vrot.lane.b32.xlu0 %v5985, 48
      %v6647 = vpop.permute.xlu0 %6646
      %6648 = vrot.lane.b32.xlu0 %v5988, 48
      %v6649 = vpop.permute.xlu0 %6648
      %6650 = vrot.lane.b32.xlu0 %v5990, 48
      %v6651 = vpop.permute.xlu0 %6650
      %v6674 = vld [vmem:[%s7] sm:$0xff]
      %v6675 = vld [vmem:[%s7 + $0x8] sm:$0xff]
      %v6676 = vld [vmem:[%s7 + $0x10] sm:$0xff]
      %v6677 = vld [vmem:[%s7 + $0x18] sm:$0xff]
      %v6678 = vld [vmem:[%s7 + $0x20] sm:$0xff]
      %v6679 = vld [vmem:[%s7 + $0x28] sm:$0xff]
      %v6680 = vld [vmem:[%s7 + $0x30] sm:$0xff]
      %v6681 = vld [vmem:[%s7 + $0x38] sm:$0xff]
      %v6682 = vld [vmem:[%s7 + $0x40] sm:$0xff]
      %v6683 = vld [vmem:[%s7 + $0x48] sm:$0xff]
      %v6684 = vld [vmem:[%s7 + $0x50] sm:$0xff]
      %v6685 = vld [vmem:[%s7 + $0x58] sm:$0xff]
      %v6686 = vld [vmem:[%s7 + $0x60] sm:$0xff]
      %v6687 = vld [vmem:[%s7 + $0x68] sm:$0xff]
      %v6688 = vld [vmem:[%s7 + $0x70] sm:$0xff]
      %v6689 = vld [vmem:[%s7 + $0x78] sm:$0xff]
      %v6690 = vld [vmem:[%s7 + $0x80] sm:$0xff]
      %v6691 = vld [vmem:[%s7 + $0x88] sm:$0xff]
      %v6692 = vld [vmem:[%s7 + $0x90] sm:$0xff]
      %v6693 = vld [vmem:[%s7 + $0x98] sm:$0xff]
      %v6694 = vld [vmem:[%s7 + $0xa0] sm:$0xff]
      %v6695 = vld [vmem:[%s7 + $0xa8] sm:$0xff]
      %v6696 = vld [vmem:[%s7 + $0xb0] sm:$0xff]
      %v6697 = vld [vmem:[%s7 + $0xb8] sm:$0xff]
      %v6698 = vld [vmem:[%s7 + $0xc0] sm:$0xff]
      %v6699 = vld [vmem:[%s7 + $0xc8] sm:$0xff]
      %v6700 = vld [vmem:[%s7 + $0xd0] sm:$0xff]
      %v6701 = vld [vmem:[%s7 + $0xd8] sm:$0xff]
      %v6702 = vld [vmem:[%s7 + $0xe0] sm:$0xff]
      %v6703 = vld [vmem:[%s7 + $0xe8] sm:$0xff]
      %v6704 = vld [vmem:[%s7 + $0xf0] sm:$0xff]
      %v6705 = vld [vmem:[%s7 + $0xf8] sm:$0xff]
      %v6706 = vld [vmem:[%s7 + $0x100] sm:$0xff]
      %v6707 = vld [vmem:[%s7 + $0x108] sm:$0xff]
      %v6708 = vld [vmem:[%s7 + $0x110] sm:$0xff]
      %v6709 = vld [vmem:[%s7 + $0x118] sm:$0xff]
      %v6710 = vld [vmem:[%s7 + $0x120] sm:$0xff]
      %v6711 = vld [vmem:[%s7 + $0x128] sm:$0xff]
      %v6712 = vld [vmem:[%s7 + $0x130] sm:$0xff]
      %v6713 = vld [vmem:[%s7 + $0x138] sm:$0xff]
      %v6714 = vld [vmem:[%s7 + $0x140] sm:$0xff]
      %v6715 = vld [vmem:[%s7 + $0x148] sm:$0xff]
      %v6716 = vld [vmem:[%s7 + $0x150] sm:$0xff]
      %v6717 = vld [vmem:[%s7 + $0x158] sm:$0xff]
      %v6718 = vld [vmem:[%s7 + $0x160] sm:$0xff]
      %v6719 = vld [vmem:[%s7 + $0x168] sm:$0xff]
      %v6720 = vld [vmem:[%s7 + $0x170] sm:$0xff]
      %v6721 = vld [vmem:[%s7 + $0x178] sm:$0xff]
      %v6722 = vld [vmem:[%s7 + $0x180] sm:$0xff]
      %v6723 = vld [vmem:[%s7 + $0x188] sm:$0xff]
      %v6724 = vld [vmem:[%s7 + $0x190] sm:$0xff]
      %v6725 = vld [vmem:[%s7 + $0x198] sm:$0xff]
      %v6726 = vld [vmem:[%s7 + $0x1a0] sm:$0xff]
      %v6727 = vld [vmem:[%s7 + $0x1a8] sm:$0xff]
      %v6728 = vld [vmem:[%s7 + $0x1b0] sm:$0xff]
      %v6729 = vld [vmem:[%s7 + $0x1b8] sm:$0xff]
      %v6730 = vld [vmem:[%s7 + $0x1c0] sm:$0xff]
      %v6731 = vld [vmem:[%s7 + $0x1c8] sm:$0xff]
      %v6732 = vld [vmem:[%s7 + $0x1d0] sm:$0xff]
      %v6733 = vld [vmem:[%s7 + $0x1d8] sm:$0xff]
      %v6734 = vld [vmem:[%s7 + $0x1e0] sm:$0xff]
      %v6735 = vld [vmem:[%s7 + $0x1e8] sm:$0xff]
      %v6736 = vld [vmem:[%s7 + $0x1f0] sm:$0xff]
      %v6737 = vld [vmem:[%s7 + $0x1f8] sm:$0xff]
      %v6738 = vld [vmem:[%s7 + $0x200] sm:$0xff]
      %v6739 = vld [vmem:[%s7 + $0x208] sm:$0xff]
      %v6740 = vld [vmem:[%s7 + $0x210] sm:$0xff]
      %v6741 = vld [vmem:[%s7 + $0x218] sm:$0xff]
      %v6742 = vld [vmem:[%s7 + $0x220] sm:$0xff]
      %v6743 = vld [vmem:[%s7 + $0x228] sm:$0xff]
      %v6744 = vld [vmem:[%s7 + $0x230] sm:$0xff]
      %v6745 = vld [vmem:[%s7 + $0x238] sm:$0xff]
      %v6746 = vld [vmem:[%s7 + $0x240] sm:$0xff]
      %v6747 = vld [vmem:[%s7 + $0x248] sm:$0xff]
      %v6748 = vld [vmem:[%s7 + $0x250] sm:$0xff]
      %v6749 = vld [vmem:[%s7 + $0x258] sm:$0xff]
      %v6750 = vld [vmem:[%s7 + $0x260] sm:$0xff]
      %v6751 = vld [vmem:[%s7 + $0x268] sm:$0xff]
      %v6752 = vld [vmem:[%s7 + $0x270] sm:$0xff]
      %v6753 = vld [vmem:[%s7 + $0x278] sm:$0xff]
      %v6754 = vld [vmem:[%s7 + $0x280] sm:$0xff]
      %v6755 = vld [vmem:[%s7 + $0x288] sm:$0xff]
      %v6756 = vld [vmem:[%s7 + $0x290] sm:$0xff]
      %v6757 = vld [vmem:[%s7 + $0x298] sm:$0xff]
      %v6758 = vld [vmem:[%s7 + $0x2a0] sm:$0xff]
      %v6759 = vld [vmem:[%s7 + $0x2a8] sm:$0xff]
      %v6760 = vld [vmem:[%s7 + $0x2b0] sm:$0xff]
      %v6761 = vld [vmem:[%s7 + $0x2b8] sm:$0xff]
      %v6762 = vld [vmem:[%s7 + $0x2c0] sm:$0xff]
      %v6763 = vld [vmem:[%s7 + $0x2c8] sm:$0xff]
      %v6764 = vld [vmem:[%s7 + $0x2d0] sm:$0xff]
      %v6765 = vld [vmem:[%s7 + $0x2d8] sm:$0xff]
      %v6766 = vld [vmem:[%s7 + $0x2e0] sm:$0xff]
      %v6767 = vld [vmem:[%s7 + $0x2e8] sm:$0xff]
      %v6768 = vld [vmem:[%s7 + $0x2f0] sm:$0xff]
      %v6769 = vld [vmem:[%s7 + $0x2f8] sm:$0xff]
      %v6770 = vld [vmem:[%s7 + $0x300] sm:$0xff]
      %v6771 = vld [vmem:[%s7 + $0x308] sm:$0xff]
      %v6772 = vld [vmem:[%s7 + $0x310] sm:$0xff]
      %v6773 = vld [vmem:[%s7 + $0x318] sm:$0xff]
      %v6774 = vld [vmem:[%s7 + $0x320] sm:$0xff]
      %v6775 = vld [vmem:[%s7 + $0x328] sm:$0xff]
      %v6776 = vld [vmem:[%s7 + $0x330] sm:$0xff]
      %v6777 = vld [vmem:[%s7 + $0x338] sm:$0xff]
      %v6778 = vld [vmem:[%s7 + $0x340] sm:$0xff]
      %v6779 = vld [vmem:[%s7 + $0x348] sm:$0xff]
      %v6780 = vld [vmem:[%s7 + $0x350] sm:$0xff]
      %v6781 = vld [vmem:[%s7 + $0x358] sm:$0xff]
      %v6782 = vld [vmem:[%s7 + $0x360] sm:$0xff]
      %v6783 = vld [vmem:[%s7 + $0x368] sm:$0xff]
      %v6784 = vld [vmem:[%s7 + $0x370] sm:$0xff]
      %v6785 = vld [vmem:[%s7 + $0x378] sm:$0xff]
      %v6786 = vld [vmem:[%s7 + $0x380] sm:$0xff]
      %v6787 = vld [vmem:[%s7 + $0x388] sm:$0xff]
      %v6788 = vld [vmem:[%s7 + $0x390] sm:$0xff]
      %v6789 = vld [vmem:[%s7 + $0x398] sm:$0xff]
      %v6790 = vld [vmem:[%s7 + $0x3a0] sm:$0xff]
      %v6791 = vld [vmem:[%s7 + $0x3a8] sm:$0xff]
      %v6792 = vld [vmem:[%s7 + $0x3b0] sm:$0xff]
      %v6793 = vld [vmem:[%s7 + $0x3b8] sm:$0xff]
      %v6794 = vld [vmem:[%s7 + $0x3c0] sm:$0xff]
      %v6795 = vld [vmem:[%s7 + $0x3c8] sm:$0xff]
      %v6796 = vld [vmem:[%s7 + $0x3d0] sm:$0xff]
      %v6797 = vld [vmem:[%s7 + $0x3d8] sm:$0xff]
      %v6798 = vld [vmem:[%s7 + $0x3e0] sm:$0xff]
      %v6799 = vld [vmem:[%s7 + $0x3e8] sm:$0xff]
      %v6800 = vld [vmem:[%s7 + $0x3f0] sm:$0xff]
      %v6801 = vld [vmem:[%s7 + $0x3f8] sm:$0xff]
      %v6802 = vpack.c.bf16 %v5940, %v5938
      %v6803 = vpack.c.bf16 %v5945, %v5943
      %v6804 = vpack.c.bf16 %v5950, %v5948
      %v6805 = vpack.c.bf16 %v5955, %v5953
      %v6806 = vpack.c.bf16 %v5960, %v5958
      %v6807 = vpack.c.bf16 %v5965, %v5963
      %v6808 = vpack.c.bf16 %v5970, %v5968
      %v6809 = vpack.c.bf16 %v5975, %v5973
      %v6810 = vpack.c.bf16 %v5980, %v5978
      %v6811 = vpack.c.bf16 %v5985, %v5983
      %v6812 = vpack.c.bf16 %v5990, %v5988
      %v6813 = vpack.c.bf16 %v6017, %v6015
      %v6814 = vpack.c.bf16 %v6021, %v6019
      %v6815 = vpack.c.bf16 %v6025, %v6023
      %v6816 = vpack.c.bf16 %v6029, %v6027
      %v6817 = vpack.c.bf16 %v6033, %v6031
      %v6818 = vpack.c.bf16 %v6037, %v6035
      %v6819 = vpack.c.bf16 %v6041, %v6039
      %v6820 = vpack.c.bf16 %v6045, %v6043
      %v6821 = vpack.c.bf16 %v6049, %v6047
      %v6822 = vpack.c.bf16 %v6053, %v6051
      %v6823 = vpack.c.bf16 %v6057, %v6055
      %v6824 = vpack.c.bf16 %v6083, %v6081
      %v6825 = vpack.c.bf16 %v6087, %v6085
      %v6826 = vpack.c.bf16 %v6091, %v6089
      %v6827 = vpack.c.bf16 %v6095, %v6093
      %v6828 = vpack.c.bf16 %v6099, %v6097
      %v6829 = vpack.c.bf16 %v6103, %v6101
      %v6830 = vpack.c.bf16 %v6107, %v6105
      %v6831 = vpack.c.bf16 %v6111, %v6109
      %v6832 = vpack.c.bf16 %v6115, %v6113
      %v6833 = vpack.c.bf16 %v6119, %v6117
      %v6834 = vpack.c.bf16 %v6123, %v6121
      %v6835 = vpack.c.bf16 %v6149, %v6147
      %v6836 = vpack.c.bf16 %v6153, %v6151
      %v6837 = vpack.c.bf16 %v6157, %v6155
      %v6838 = vpack.c.bf16 %v6161, %v6159
      %v6839 = vpack.c.bf16 %v6165, %v6163
      %v6840 = vpack.c.bf16 %v6169, %v6167
      %v6841 = vpack.c.bf16 %v6173, %v6171
      %v6842 = vpack.c.bf16 %v6177, %v6175
      %v6843 = vpack.c.bf16 %v6181, %v6179
      %v6844 = vpack.c.bf16 %v6185, %v6183
      %v6845 = vpack.c.bf16 %v6189, %v6187
      %v6846 = vpack.c.bf16 %v6215, %v6213
      %v6847 = vpack.c.bf16 %v6219, %v6217
      %v6848 = vpack.c.bf16 %v6223, %v6221
      %v6849 = vpack.c.bf16 %v6227, %v6225
      %v6850 = vpack.c.bf16 %v6231, %v6229
      %v6851 = vpack.c.bf16 %v6235, %v6233
      %v6852 = vpack.c.bf16 %v6239, %v6237
      %v6853 = vpack.c.bf16 %v6243, %v6241
      %v6854 = vpack.c.bf16 %v6247, %v6245
      %v6855 = vpack.c.bf16 %v6251, %v6249
      %v6856 = vpack.c.bf16 %v6255, %v6253
      %v6857 = vpack.c.bf16 %v6281, %v6279
      %v6858 = vpack.c.bf16 %v6285, %v6283
      %v6859 = vpack.c.bf16 %v6289, %v6287
      %v6860 = vpack.c.bf16 %v6293, %v6291
      %v6861 = vpack.c.bf16 %v6297, %v6295
      %v6862 = vpack.c.bf16 %v6301, %v6299
      %v6863 = vpack.c.bf16 %v6305, %v6303
      %v6864 = vpack.c.bf16 %v6309, %v6307
      %v6865 = vpack.c.bf16 %v6313, %v6311
      %v6866 = vpack.c.bf16 %v6317, %v6315
      %v6867 = vpack.c.bf16 %v6321, %v6319
      %v6868 = vpack.c.bf16 %v6347, %v6345
      %v6869 = vpack.c.bf16 %v6351, %v6349
      %v6870 = vpack.c.bf16 %v6355, %v6353
      %v6871 = vpack.c.bf16 %v6359, %v6357
      %v6872 = vpack.c.bf16 %v6363, %v6361
      %v6873 = vpack.c.bf16 %v6367, %v6365
      %v6874 = vpack.c.bf16 %v6371, %v6369
      %v6875 = vpack.c.bf16 %v6375, %v6373
      %v6876 = vpack.c.bf16 %v6379, %v6377
      %v6877 = vpack.c.bf16 %v6383, %v6381
      %v6878 = vpack.c.bf16 %v6387, %v6385
      %v6879 = vpack.c.bf16 %v6413, %v6411
      %v6880 = vpack.c.bf16 %v6417, %v6415
      %v6881 = vpack.c.bf16 %v6421, %v6419
      %v6882 = vpack.c.bf16 %v6425, %v6423
      %v6883 = vpack.c.bf16 %v6429, %v6427
      %v6884 = vpack.c.bf16 %v6433, %v6431
      %v6885 = vpack.c.bf16 %v6437, %v6435
      %v6886 = vpack.c.bf16 %v6441, %v6439
      %v6887 = vpack.c.bf16 %v6445, %v6443
      %v6888 = vpack.c.bf16 %v6449, %v6447
      %v6889 = vpack.c.bf16 %v6453, %v6451
      %v6890 = vpack.c.bf16 %v6479, %v6477
      %v6891 = vpack.c.bf16 %v6483, %v6481
      %v6892 = vpack.c.bf16 %v6487, %v6485
      %v6893 = vpack.c.bf16 %v6491, %v6489
      %v6894 = vpack.c.bf16 %v6495, %v6493
      %v6895 = vpack.c.bf16 %v6499, %v6497
      %v6896 = vpack.c.bf16 %v6503, %v6501
      %v6897 = vpack.c.bf16 %v6507, %v6505
      %v6898 = vpack.c.bf16 %v6511, %v6509
      %v6899 = vpack.c.bf16 %v6515, %v6513
      %v6900 = vpack.c.bf16 %v6519, %v6517
      %v6901 = vpack.c.bf16 %v6545, %v6543
      %v6902 = vpack.c.bf16 %v6549, %v6547
      %v6903 = vpack.c.bf16 %v6553, %v6551
      %v6904 = vpack.c.bf16 %v6557, %v6555
      %v6905 = vpack.c.bf16 %v6561, %v6559
      %v6906 = vpack.c.bf16 %v6565, %v6563
      %v6907 = vpack.c.bf16 %v6569, %v6567
      %v6908 = vpack.c.bf16 %v6573, %v6571
      %v6909 = vpack.c.bf16 %v6577, %v6575
      %v6910 = vpack.c.bf16 %v6581, %v6579
      %v6911 = vpack.c.bf16 %v6585, %v6583
      %v6912 = vpack.c.bf16 %v6611, %v6609
      %v6913 = vpack.c.bf16 %v6615, %v6613
      %v6914 = vpack.c.bf16 %v6619, %v6617
      %v6915 = vpack.c.bf16 %v6623, %v6621
      %v6916 = vpack.c.bf16 %v6627, %v6625
      %v6917 = vpack.c.bf16 %v6631, %v6629
      %v6918 = vpack.c.bf16 %v6635, %v6633
      %v6919 = vpack.c.bf16 %v6639, %v6637
      %v6920 = vpack.c.bf16 %v6643, %v6641
      %v6921 = vpack.c.bf16 %v6647, %v6645
      %v6922 = vpack.c.bf16 %v6651, %v6649
      %v6923 = vld [vmem:[%s8] sm:$0xff]
      %v6924 = vld [vmem:[%s8 + $0x8] sm:$0xff]
      %v6925 = vld [vmem:[%s8 + $0x10] sm:$0xff]
      %v6926 = vld [vmem:[%s8 + $0x18] sm:$0xff]
      %v6927 = vld [vmem:[%s8 + $0x20] sm:$0xff]
      %v6928 = vld [vmem:[%s8 + $0x28] sm:$0xff]
      %v6929 = vld [vmem:[%s8 + $0x30] sm:$0xff]
      %v6930 = vld [vmem:[%s8 + $0x38] sm:$0xff]
      %v6931 = vld [vmem:[%s8 + $0x40] sm:$0xff]
      %v6932 = vld [vmem:[%s8 + $0x48] sm:$0xff]
      %v6933 = vld [vmem:[%s8 + $0x50] sm:$0xff]
      %v6934 = vld [vmem:[%s8 + $0x58] sm:$0xff]
      %v6935 = vld [vmem:[%s8 + $0x60] sm:$0xff]
      %v6936 = vld [vmem:[%s8 + $0x68] sm:$0xff]
      %v6937 = vld [vmem:[%s8 + $0x70] sm:$0xff]
      %v6938 = vld [vmem:[%s8 + $0x78] sm:$0xff]
      %6940 = vset.pattern.permute.xlu0 0
      %6941 = vperm.xlu0 %6940, %v6923
      %v6942 = vpop.permute.xlu0 %6941
      %6945 = vset.pattern.permute.xlu0 0
      %6946 = vperm.xlu0 %6945, %v6924
      %v6947 = vpop.permute.xlu0 %6946
      %6950 = vset.pattern.permute.xlu0 0
      %6951 = vperm.xlu0 %6950, %v6925
      %v6952 = vpop.permute.xlu0 %6951
      %6955 = vset.pattern.permute.xlu0 0
      %6956 = vperm.xlu0 %6955, %v6926
      %v6957 = vpop.permute.xlu0 %6956
      %6960 = vset.pattern.permute.xlu0 0
      %6961 = vperm.xlu0 %6960, %v6927
      %v6962 = vpop.permute.xlu0 %6961
      %6965 = vset.pattern.permute.xlu0 0
      %6966 = vperm.xlu0 %6965, %v6928
      %v6967 = vpop.permute.xlu0 %6966
      %6970 = vset.pattern.permute.xlu0 0
      %6971 = vperm.xlu0 %6970, %v6929
      %v6972 = vpop.permute.xlu0 %6971
      %6975 = vset.pattern.permute.xlu0 0
      %6976 = vperm.xlu0 %6975, %v6930
      %v6977 = vpop.permute.xlu0 %6976
      %6980 = vset.pattern.permute.xlu0 0
      %6981 = vperm.xlu0 %6980, %v6931
      %v6982 = vpop.permute.xlu0 %6981
      %6985 = vset.pattern.permute.xlu0 0
      %6986 = vperm.xlu0 %6985, %v6932
      %v6987 = vpop.permute.xlu0 %6986
      %6990 = vset.pattern.permute.xlu0 0
      %6991 = vperm.xlu0 %6990, %v6933
      %v6992 = vpop.permute.xlu0 %6991
      %6995 = vset.pattern.permute.xlu0 0
      %6996 = vperm.xlu0 %6995, %v6934
      %v6997 = vpop.permute.xlu0 %6996
      %7000 = vset.pattern.permute.xlu0 0
      %7001 = vperm.xlu0 %7000, %v6935
      %v7002 = vpop.permute.xlu0 %7001
      %7005 = vset.pattern.permute.xlu0 0
      %7006 = vperm.xlu0 %7005, %v6936
      %v7007 = vpop.permute.xlu0 %7006
      %7010 = vset.pattern.permute.xlu0 0
      %7011 = vperm.xlu0 %7010, %v6937
      %v7012 = vpop.permute.xlu0 %7011
      %7015 = vset.pattern.permute.xlu0 0
      %7016 = vperm.xlu0 %7015, %v6938
      %v7017 = vpop.permute.xlu0 %7016
      %v7147 = vunpack.c.l.b16 %v6674
      %v7148 = vunpack.c.h.b16 %v6674
      %v7149 = vunpack.c.l.b16 %v6675
      %v7150 = vunpack.c.h.b16 %v6675
      %v7151 = vunpack.c.l.b16 %v6676
      %v7152 = vunpack.c.h.b16 %v6676
      %v7153 = vunpack.c.l.b16 %v6677
      %v7154 = vunpack.c.h.b16 %v6677
      %v7155 = vunpack.c.l.b16 %v6678
      %v7156 = vunpack.c.h.b16 %v6678
      %v7157 = vunpack.c.l.b16 %v6679
      %v7158 = vunpack.c.h.b16 %v6679
      %v7159 = vunpack.c.l.b16 %v6680
      %v7160 = vunpack.c.h.b16 %v6680
      %v7161 = vunpack.c.l.b16 %v6681
      %v7162 = vunpack.c.h.b16 %v6681
      %v7163 = vunpack.c.l.b16 %v6682
      %v7164 = vunpack.c.h.b16 %v6682
      %v7165 = vunpack.c.l.b16 %v6683
      %v7166 = vunpack.c.h.b16 %v6683
      %v7167 = vunpack.c.l.b16 %v6684
      %v7168 = vunpack.c.h.b16 %v6684
      %v7169 = vunpack.c.l.b16 %v6685
      %v7170 = vunpack.c.h.b16 %v6685
      %v7171 = vunpack.c.l.b16 %v6686
      %v7172 = vunpack.c.h.b16 %v6686
      %v7173 = vunpack.c.l.b16 %v6687
      %v7174 = vunpack.c.h.b16 %v6687
      %v7175 = vunpack.c.l.b16 %v6688
      %v7176 = vunpack.c.h.b16 %v6688
      %v7177 = vunpack.c.l.b16 %v6689
      %v7178 = vunpack.c.h.b16 %v6689
      %v7179 = vunpack.c.l.b16 %v6690
      %v7180 = vunpack.c.h.b16 %v6690
      %v7181 = vunpack.c.l.b16 %v6691
      %v7182 = vunpack.c.h.b16 %v6691
      %v7183 = vunpack.c.l.b16 %v6692
      %v7184 = vunpack.c.h.b16 %v6692
      %v7185 = vunpack.c.l.b16 %v6693
      %v7186 = vunpack.c.h.b16 %v6693
      %v7187 = vunpack.c.l.b16 %v6694
      %v7188 = vunpack.c.h.b16 %v6694
      %v7189 = vunpack.c.l.b16 %v6695
      %v7190 = vunpack.c.h.b16 %v6695
      %v7191 = vunpack.c.l.b16 %v6696
      %v7192 = vunpack.c.h.b16 %v6696
      %v7193 = vunpack.c.l.b16 %v6697
      %v7194 = vunpack.c.h.b16 %v6697
      %v7195 = vunpack.c.l.b16 %v6698
      %v7196 = vunpack.c.h.b16 %v6698
      %v7197 = vunpack.c.l.b16 %v6699
      %v7198 = vunpack.c.h.b16 %v6699
      %v7199 = vunpack.c.l.b16 %v6700
      %v7200 = vunpack.c.h.b16 %v6700
      %v7201 = vunpack.c.l.b16 %v6701
      %v7202 = vunpack.c.h.b16 %v6701
      %v7203 = vunpack.c.l.b16 %v6702
      %v7204 = vunpack.c.h.b16 %v6702
      %v7205 = vunpack.c.l.b16 %v6703
      %v7206 = vunpack.c.h.b16 %v6703
      %v7207 = vunpack.c.l.b16 %v6704
      %v7208 = vunpack.c.h.b16 %v6704
      %v7209 = vunpack.c.l.b16 %v6705
      %v7210 = vunpack.c.h.b16 %v6705
      %v7211 = vunpack.c.l.b16 %v6706
      %v7212 = vunpack.c.h.b16 %v6706
      %v7213 = vunpack.c.l.b16 %v6707
      %v7214 = vunpack.c.h.b16 %v6707
      %v7215 = vunpack.c.l.b16 %v6708
      %v7216 = vunpack.c.h.b16 %v6708
      %v7217 = vunpack.c.l.b16 %v6709
      %v7218 = vunpack.c.h.b16 %v6709
      %v7219 = vunpack.c.l.b16 %v6710
      %v7220 = vunpack.c.h.b16 %v6710
      %v7221 = vunpack.c.l.b16 %v6711
      %v7222 = vunpack.c.h.b16 %v6711
      %v7223 = vunpack.c.l.b16 %v6712
      %v7224 = vunpack.c.h.b16 %v6712
      %v7225 = vunpack.c.l.b16 %v6713
      %v7226 = vunpack.c.h.b16 %v6713
      %v7227 = vunpack.c.l.b16 %v6714
      %v7228 = vunpack.c.h.b16 %v6714
      %v7229 = vunpack.c.l.b16 %v6715
      %v7230 = vunpack.c.h.b16 %v6715
      %v7231 = vunpack.c.l.b16 %v6716
      %v7232 = vunpack.c.h.b16 %v6716
      %v7233 = vunpack.c.l.b16 %v6717
      %v7234 = vunpack.c.h.b16 %v6717
      %v7235 = vunpack.c.l.b16 %v6718
      %v7236 = vunpack.c.h.b16 %v6718
      %v7237 = vunpack.c.l.b16 %v6719
      %v7238 = vunpack.c.h.b16 %v6719
      %v7239 = vunpack.c.l.b16 %v6720
      %v7240 = vunpack.c.h.b16 %v6720
      %v7241 = vunpack.c.l.b16 %v6721
      %v7242 = vunpack.c.h.b16 %v6721
      %v7243 = vunpack.c.l.b16 %v6722
      %v7244 = vunpack.c.h.b16 %v6722
      %v7245 = vunpack.c.l.b16 %v6723
      %v7246 = vunpack.c.h.b16 %v6723
      %v7247 = vunpack.c.l.b16 %v6724
      %v7248 = vunpack.c.h.b16 %v6724
      %v7249 = vunpack.c.l.b16 %v6725
      %v7250 = vunpack.c.h.b16 %v6725
      %v7251 = vunpack.c.l.b16 %v6726
      %v7252 = vunpack.c.h.b16 %v6726
      %v7253 = vunpack.c.l.b16 %v6727
      %v7254 = vunpack.c.h.b16 %v6727
      %v7255 = vunpack.c.l.b16 %v6728
      %v7256 = vunpack.c.h.b16 %v6728
      %v7257 = vunpack.c.l.b16 %v6729
      %v7258 = vunpack.c.h.b16 %v6729
      %v7259 = vunpack.c.l.b16 %v6730
      %v7260 = vunpack.c.h.b16 %v6730
      %v7261 = vunpack.c.l.b16 %v6731
      %v7262 = vunpack.c.h.b16 %v6731
      %v7263 = vunpack.c.l.b16 %v6732
      %v7264 = vunpack.c.h.b16 %v6732
      %v7265 = vunpack.c.l.b16 %v6733
      %v7266 = vunpack.c.h.b16 %v6733
      %v7267 = vunpack.c.l.b16 %v6734
      %v7268 = vunpack.c.h.b16 %v6734
      %v7269 = vunpack.c.l.b16 %v6735
      %v7270 = vunpack.c.h.b16 %v6735
      %v7271 = vunpack.c.l.b16 %v6736
      %v7272 = vunpack.c.h.b16 %v6736
      %v7273 = vunpack.c.l.b16 %v6737
      %v7274 = vunpack.c.h.b16 %v6737
      %v7275 = vunpack.c.l.b16 %v6738
      %v7276 = vunpack.c.h.b16 %v6738
      %v7277 = vunpack.c.l.b16 %v6739
      %v7278 = vunpack.c.h.b16 %v6739
      %v7279 = vunpack.c.l.b16 %v6740
      %v7280 = vunpack.c.h.b16 %v6740
      %v7281 = vunpack.c.l.b16 %v6741
      %v7282 = vunpack.c.h.b16 %v6741
      %v7283 = vunpack.c.l.b16 %v6742
      %v7284 = vunpack.c.h.b16 %v6742
      %v7285 = vunpack.c.l.b16 %v6743
      %v7286 = vunpack.c.h.b16 %v6743
      %v7287 = vunpack.c.l.b16 %v6744
      %v7288 = vunpack.c.h.b16 %v6744
      %v7289 = vunpack.c.l.b16 %v6745
      %v7290 = vunpack.c.h.b16 %v6745
      %v7291 = vunpack.c.l.b16 %v6746
      %v7292 = vunpack.c.h.b16 %v6746
      %v7293 = vunpack.c.l.b16 %v6747
      %v7294 = vunpack.c.h.b16 %v6747
      %v7295 = vunpack.c.l.b16 %v6748
      %v7296 = vunpack.c.h.b16 %v6748
      %v7297 = vunpack.c.l.b16 %v6749
      %v7298 = vunpack.c.h.b16 %v6749
      %v7299 = vunpack.c.l.b16 %v6750
      %v7300 = vunpack.c.h.b16 %v6750
      %v7301 = vunpack.c.l.b16 %v6751
      %v7302 = vunpack.c.h.b16 %v6751
      %v7303 = vunpack.c.l.b16 %v6752
      %v7304 = vunpack.c.h.b16 %v6752
      %v7305 = vunpack.c.l.b16 %v6753
      %v7306 = vunpack.c.h.b16 %v6753
      %v7307 = vunpack.c.l.b16 %v6754
      %v7308 = vunpack.c.h.b16 %v6754
      %v7309 = vunpack.c.l.b16 %v6755
      %v7310 = vunpack.c.h.b16 %v6755
      %v7311 = vunpack.c.l.b16 %v6756
      %v7312 = vunpack.c.h.b16 %v6756
      %v7313 = vunpack.c.l.b16 %v6757
      %v7314 = vunpack.c.h.b16 %v6757
      %v7315 = vunpack.c.l.b16 %v6758
      %v7316 = vunpack.c.h.b16 %v6758
      %v7317 = vunpack.c.l.b16 %v6759
      %v7318 = vunpack.c.h.b16 %v6759
      %v7319 = vunpack.c.l.b16 %v6760
      %v7320 = vunpack.c.h.b16 %v6760
      %v7321 = vunpack.c.l.b16 %v6761
      %v7322 = vunpack.c.h.b16 %v6761
      %v7323 = vunpack.c.l.b16 %v6762
      %v7324 = vunpack.c.h.b16 %v6762
      %v7325 = vunpack.c.l.b16 %v6763
      %v7326 = vunpack.c.h.b16 %v6763
      %v7327 = vunpack.c.l.b16 %v6764
      %v7328 = vunpack.c.h.b16 %v6764
      %v7329 = vunpack.c.l.b16 %v6765
      %v7330 = vunpack.c.h.b16 %v6765
      %v7331 = vunpack.c.l.b16 %v6766
      %v7332 = vunpack.c.h.b16 %v6766
      %v7333 = vunpack.c.l.b16 %v6767
      %v7334 = vunpack.c.h.b16 %v6767
      %v7335 = vunpack.c.l.b16 %v6768
      %v7336 = vunpack.c.h.b16 %v6768
      %v7337 = vunpack.c.l.b16 %v6769
      %v7338 = vunpack.c.h.b16 %v6769
      %v7339 = vunpack.c.l.b16 %v6770
      %v7340 = vunpack.c.h.b16 %v6770
      %v7341 = vunpack.c.l.b16 %v6771
      %v7342 = vunpack.c.h.b16 %v6771
      %v7343 = vunpack.c.l.b16 %v6772
      %v7344 = vunpack.c.h.b16 %v6772
      %v7345 = vunpack.c.l.b16 %v6773
      %v7346 = vunpack.c.h.b16 %v6773
      %v7347 = vunpack.c.l.b16 %v6774
      %v7348 = vunpack.c.h.b16 %v6774
      %v7349 = vunpack.c.l.b16 %v6775
      %v7350 = vunpack.c.h.b16 %v6775
      %v7351 = vunpack.c.l.b16 %v6776
      %v7352 = vunpack.c.h.b16 %v6776
      %v7353 = vunpack.c.l.b16 %v6777
      %v7354 = vunpack.c.h.b16 %v6777
      %v7355 = vunpack.c.l.b16 %v6778
      %v7356 = vunpack.c.h.b16 %v6778
      %v7357 = vunpack.c.l.b16 %v6779
      %v7358 = vunpack.c.h.b16 %v6779
      %v7359 = vunpack.c.l.b16 %v6780
      %v7360 = vunpack.c.h.b16 %v6780
      %v7361 = vunpack.c.l.b16 %v6781
      %v7362 = vunpack.c.h.b16 %v6781
      %v7363 = vunpack.c.l.b16 %v6782
      %v7364 = vunpack.c.h.b16 %v6782
      %v7365 = vunpack.c.l.b16 %v6783
      %v7366 = vunpack.c.h.b16 %v6783
      %v7367 = vunpack.c.l.b16 %v6784
      %v7368 = vunpack.c.h.b16 %v6784
      %v7369 = vunpack.c.l.b16 %v6785
      %v7370 = vunpack.c.h.b16 %v6785
      %v7371 = vunpack.c.l.b16 %v6786
      %v7372 = vunpack.c.h.b16 %v6786
      %v7373 = vunpack.c.l.b16 %v6787
      %v7374 = vunpack.c.h.b16 %v6787
      %v7375 = vunpack.c.l.b16 %v6788
      %v7376 = vunpack.c.h.b16 %v6788
      %v7377 = vunpack.c.l.b16 %v6789
      %v7378 = vunpack.c.h.b16 %v6789
      %v7379 = vunpack.c.l.b16 %v6790
      %v7380 = vunpack.c.h.b16 %v6790
      %v7381 = vunpack.c.l.b16 %v6791
      %v7382 = vunpack.c.h.b16 %v6791
      %v7383 = vunpack.c.l.b16 %v6792
      %v7384 = vunpack.c.h.b16 %v6792
      %v7385 = vunpack.c.l.b16 %v6793
      %v7386 = vunpack.c.h.b16 %v6793
      %v7387 = vunpack.c.l.b16 %v6794
      %v7388 = vunpack.c.h.b16 %v6794
      %v7389 = vunpack.c.l.b16 %v6795
      %v7390 = vunpack.c.h.b16 %v6795
      %v7391 = vunpack.c.l.b16 %v6796
      %v7392 = vunpack.c.h.b16 %v6796
      %v7393 = vunpack.c.l.b16 %v6797
      %v7394 = vunpack.c.h.b16 %v6797
      %v7395 = vunpack.c.l.b16 %v6798
      %v7396 = vunpack.c.h.b16 %v6798
      %v7397 = vunpack.c.l.b16 %v6799
      %v7398 = vunpack.c.h.b16 %v6799
      %v7399 = vunpack.c.l.b16 %v6800
      %v7400 = vunpack.c.h.b16 %v6800
      %v7401 = vunpack.c.l.b16 %v6801
      %v7402 = vunpack.c.h.b16 %v6801
      %v7403 = vpack.c.b16 %v7163, %v7147
      %v7404 = vpack.c.b16 %v7164, %v7148
      %v7405 = vpack.c.b16 %v7165, %v7149
      %v7406 = vpack.c.b16 %v7166, %v7150
      %v7407 = vpack.c.b16 %v7167, %v7151
      %v7408 = vpack.c.b16 %v7168, %v7152
      %v7409 = vpack.c.b16 %v7169, %v7153
      %v7410 = vpack.c.b16 %v7170, %v7154
      %v7411 = vpack.c.b16 %v7171, %v7155
      %v7412 = vpack.c.b16 %v7172, %v7156
      %v7413 = vpack.c.b16 %v7173, %v7157
      %v7414 = vpack.c.b16 %v7174, %v7158
      %v7415 = vpack.c.b16 %v7175, %v7159
      %v7416 = vpack.c.b16 %v7176, %v7160
      %v7417 = vpack.c.b16 %v7177, %v7161
      %v7418 = vpack.c.b16 %v7178, %v7162
      %v7419 = vpack.c.b16 %v7195, %v7179
      %v7420 = vpack.c.b16 %v7196, %v7180
      %v7421 = vpack.c.b16 %v7197, %v7181
      %v7422 = vpack.c.b16 %v7198, %v7182
      %v7423 = vpack.c.b16 %v7199, %v7183
      %v7424 = vpack.c.b16 %v7200, %v7184
      %v7425 = vpack.c.b16 %v7201, %v7185
      %v7426 = vpack.c.b16 %v7202, %v7186
      %v7427 = vpack.c.b16 %v7203, %v7187
      %v7428 = vpack.c.b16 %v7204, %v7188
      %v7429 = vpack.c.b16 %v7205, %v7189
      %v7430 = vpack.c.b16 %v7206, %v7190
      %v7431 = vpack.c.b16 %v7207, %v7191
      %v7432 = vpack.c.b16 %v7208, %v7192
      %v7433 = vpack.c.b16 %v7209, %v7193
      %v7434 = vpack.c.b16 %v7210, %v7194
      %v7435 = vpack.c.b16 %v7227, %v7211
      %v7436 = vpack.c.b16 %v7228, %v7212
      %v7437 = vpack.c.b16 %v7229, %v7213
      %v7438 = vpack.c.b16 %v7230, %v7214
      %v7439 = vpack.c.b16 %v7231, %v7215
      %v7440 = vpack.c.b16 %v7232, %v7216
      %v7441 = vpack.c.b16 %v7233, %v7217
      %v7442 = vpack.c.b16 %v7234, %v7218
      %v7443 = vpack.c.b16 %v7235, %v7219
      %v7444 = vpack.c.b16 %v7236, %v7220
      %v7445 = vpack.c.b16 %v7237, %v7221
      %v7446 = vpack.c.b16 %v7238, %v7222
      %v7447 = vpack.c.b16 %v7239, %v7223
      %v7448 = vpack.c.b16 %v7240, %v7224
      %v7449 = vpack.c.b16 %v7241, %v7225
      %v7450 = vpack.c.b16 %v7242, %v7226
      %v7451 = vpack.c.b16 %v7259, %v7243
      %v7452 = vpack.c.b16 %v7260, %v7244
      %v7453 = vpack.c.b16 %v7261, %v7245
      %v7454 = vpack.c.b16 %v7262, %v7246
      %v7455 = vpack.c.b16 %v7263, %v7247
      %v7456 = vpack.c.b16 %v7264, %v7248
      %v7457 = vpack.c.b16 %v7265, %v7249
      %v7458 = vpack.c.b16 %v7266, %v7250
      %v7459 = vpack.c.b16 %v7267, %v7251
      %v7460 = vpack.c.b16 %v7268, %v7252
      %v7461 = vpack.c.b16 %v7269, %v7253
      %v7462 = vpack.c.b16 %v7270, %v7254
      %v7463 = vpack.c.b16 %v7271, %v7255
      %v7464 = vpack.c.b16 %v7272, %v7256
      %v7465 = vpack.c.b16 %v7273, %v7257
      %v7466 = vpack.c.b16 %v7274, %v7258
      %v7467 = vpack.c.b16 %v7291, %v7275
      %v7468 = vpack.c.b16 %v7292, %v7276
      %v7469 = vpack.c.b16 %v7293, %v7277
      %v7470 = vpack.c.b16 %v7294, %v7278
      %v7471 = vpack.c.b16 %v7295, %v7279
      %v7472 = vpack.c.b16 %v7296, %v7280
      %v7473 = vpack.c.b16 %v7297, %v7281
      %v7474 = vpack.c.b16 %v7298, %v7282
      %v7475 = vpack.c.b16 %v7299, %v7283
      %v7476 = vpack.c.b16 %v7300, %v7284
      %v7477 = vpack.c.b16 %v7301, %v7285
      %v7478 = vpack.c.b16 %v7302, %v7286
      %v7479 = vpack.c.b16 %v7303, %v7287
      %v7480 = vpack.c.b16 %v7304, %v7288
      %v7481 = vpack.c.b16 %v7305, %v7289
      %v7482 = vpack.c.b16 %v7306, %v7290
      %v7483 = vpack.c.b16 %v7323, %v7307
      %v7484 = vpack.c.b16 %v7324, %v7308
      %v7485 = vpack.c.b16 %v7325, %v7309
      %v7486 = vpack.c.b16 %v7326, %v7310
      %v7487 = vpack.c.b16 %v7327, %v7311
      %v7488 = vpack.c.b16 %v7328, %v7312
      %v7489 = vpack.c.b16 %v7329, %v7313
      %v7490 = vpack.c.b16 %v7330, %v7314
      %v7491 = vpack.c.b16 %v7331, %v7315
      %v7492 = vpack.c.b16 %v7332, %v7316
      %v7493 = vpack.c.b16 %v7333, %v7317
      %v7494 = vpack.c.b16 %v7334, %v7318
      %v7495 = vpack.c.b16 %v7335, %v7319
      %v7496 = vpack.c.b16 %v7336, %v7320
      %v7497 = vpack.c.b16 %v7337, %v7321
      %v7498 = vpack.c.b16 %v7338, %v7322
      %v7499 = vpack.c.b16 %v7355, %v7339
      %v7500 = vpack.c.b16 %v7356, %v7340
      %v7501 = vpack.c.b16 %v7357, %v7341
      %v7502 = vpack.c.b16 %v7358, %v7342
      %v7503 = vpack.c.b16 %v7359, %v7343
      %v7504 = vpack.c.b16 %v7360, %v7344
      %v7505 = vpack.c.b16 %v7361, %v7345
      %v7506 = vpack.c.b16 %v7362, %v7346
      %v7507 = vpack.c.b16 %v7363, %v7347
      %v7508 = vpack.c.b16 %v7364, %v7348
      %v7509 = vpack.c.b16 %v7365, %v7349
      %v7510 = vpack.c.b16 %v7366, %v7350
      %v7511 = vpack.c.b16 %v7367, %v7351
      %v7512 = vpack.c.b16 %v7368, %v7352
      %v7513 = vpack.c.b16 %v7369, %v7353
      %v7514 = vpack.c.b16 %v7370, %v7354
      %v7515 = vpack.c.b16 %v7387, %v7371
      %v7516 = vpack.c.b16 %v7388, %v7372
      %v7517 = vpack.c.b16 %v7389, %v7373
      %v7518 = vpack.c.b16 %v7390, %v7374
      %v7519 = vpack.c.b16 %v7391, %v7375
      %v7520 = vpack.c.b16 %v7392, %v7376
      %v7521 = vpack.c.b16 %v7393, %v7377
      %v7522 = vpack.c.b16 %v7394, %v7378
      %v7523 = vpack.c.b16 %v7395, %v7379
      %v7524 = vpack.c.b16 %v7396, %v7380
      %v7525 = vpack.c.b16 %v7397, %v7381
      %v7526 = vpack.c.b16 %v7398, %v7382
      %v7527 = vpack.c.b16 %v7399, %v7383
      %v7528 = vpack.c.b16 %v7400, %v7384
      %v7529 = vpack.c.b16 %v7401, %v7385
      %v7530 = vpack.c.b16 %v7402, %v7386
      %v7652 = vsel %vm729, %v7418, 0
      %v7655 = vsel %vm729, %v7434, 0
      %v7658 = vsel %vm729, %v7450, 0
      %v7661 = vsel %vm729, %v7466, 0
      %v7664 = vsel %vm729, %v7482, 0
      %v7667 = vsel %vm729, %v7498, 0
      %v7670 = vsel %vm729, %v7514, 0
      %v7673 = vsel %vm729, %v7530, 0
      %7675 = vmatpush.bf16.msra.mxu0 %v6809
      %7676 = vmatpush.bf16.msra.mxu0 %v6808
      %7677 = vmatpush.bf16.msra.mxu0 %v6807
      %7678 = vmatpush.bf16.msra.mxu0 %v6806
      %7679 = vmatpush.bf16.msra.mxu0 %v6805
      %7680 = vmatpush.bf16.msra.mxu0 %v6804
      %7681 = vmatpush.bf16.msra.mxu0 %v6803
      %7682 = vmatpush.bf16.msra.mxu0 %v6802
      %7683 = vmatmul.bf16.gmra.mxu0 %v7403
      %v7684 = vpop.f32.mrf.mxu0
      %v7685 = vadd.f32 %v6942, %v7684
      %v7686 = vpop.f32.mrf.mxu0
      %v7687 = vadd.f32 %v6947, %v7686
      %7688 = vmatmul.bf16.gmra.mxu0 %v7419
      %v7689 = vpop.f32.mrf.mxu0
      %v7690 = vadd.f32 %v6952, %v7689
      %v7691 = vpop.f32.mrf.mxu0
      %v7692 = vadd.f32 %v6957, %v7691
      %7693 = vmatmul.bf16.gmra.mxu0 %v7435
      %v7694 = vpop.f32.mrf.mxu0
      %v7695 = vadd.f32 %v6962, %v7694
      %v7696 = vpop.f32.mrf.mxu0
      %v7697 = vadd.f32 %v6967, %v7696
      %7698 = vmatmul.bf16.gmra.mxu0 %v7451
      %v7699 = vpop.f32.mrf.mxu0
      %v7700 = vadd.f32 %v6972, %v7699
      %v7701 = vpop.f32.mrf.mxu0
      %v7702 = vadd.f32 %v6977, %v7701
      %7703 = vmatmul.bf16.gmra.mxu0 %v7467
      %v7704 = vpop.f32.mrf.mxu0
      %v7705 = vadd.f32 %v6982, %v7704
      %v7706 = vpop.f32.mrf.mxu0
      %v7707 = vadd.f32 %v6987, %v7706
      %7708 = vmatmul.bf16.gmra.mxu0 %v7483
      %v7709 = vpop.f32.mrf.mxu0
      %v7710 = vadd.f32 %v6992, %v7709
      %v7711 = vpop.f32.mrf.mxu0
      %v7712 = vadd.f32 %v6997, %v7711
      %7713 = vmatmul.bf16.gmra.mxu0 %v7499
      %v7714 = vpop.f32.mrf.mxu0
      %v7715 = vadd.f32 %v7002, %v7714
      %v7716 = vpop.f32.mrf.mxu0
      %v7717 = vadd.f32 %v7007, %v7716
      %7718 = vmatmul.bf16.gmra.mxu0 %v7515
      %v7719 = vpop.f32.mrf.mxu0
      %v7720 = vadd.f32 %v7012, %v7719
      %v7721 = vpop.f32.mrf.mxu0
      %v7722 = vadd.f32 %v7017, %v7721
      %7723 = vdwg.mxu0
      %7724 = vmatpush.bf16.msra.mxu0 %v6817
      %7725 = vmatpush.bf16.msra.mxu0 %v6816
      %7726 = vmatpush.bf16.msra.mxu0 %v6815
      %7727 = vmatpush.bf16.msra.mxu0 %v6814
      %7728 = vmatpush.bf16.msra.mxu0 %v6813
      %7729 = vmatpush.bf16.msra.mxu0 %v6812
      %7730 = vmatpush.bf16.msra.mxu0 %v6811
      %7731 = vmatpush.bf16.msra.mxu0 %v6810
      %7732 = vmatmul.bf16.gmra.mxu0 %v7404
      %v7733 = vpop.f32.mrf.mxu0
      %v7734 = vadd.f32 %v7685, %v7733
      %v7735 = vpop.f32.mrf.mxu0
      %v7736 = vadd.f32 %v7687, %v7735
      %7737 = vmatmul.bf16.gmra.mxu0 %v7420
      %v7738 = vpop.f32.mrf.mxu0
      %v7739 = vadd.f32 %v7690, %v7738
      %v7740 = vpop.f32.mrf.mxu0
      %v7741 = vadd.f32 %v7692, %v7740
      %7742 = vmatmul.bf16.gmra.mxu0 %v7436
      %v7743 = vpop.f32.mrf.mxu0
      %v7744 = vadd.f32 %v7695, %v7743
      %v7745 = vpop.f32.mrf.mxu0
      %v7746 = vadd.f32 %v7697, %v7745
      %7747 = vmatmul.bf16.gmra.mxu0 %v7452
      %v7748 = vpop.f32.mrf.mxu0
      %v7749 = vadd.f32 %v7700, %v7748
      %v7750 = vpop.f32.mrf.mxu0
      %v7751 = vadd.f32 %v7702, %v7750
      %7752 = vmatmul.bf16.gmra.mxu0 %v7468
      %v7753 = vpop.f32.mrf.mxu0
      %v7754 = vadd.f32 %v7705, %v7753
      %v7755 = vpop.f32.mrf.mxu0
      %v7756 = vadd.f32 %v7707, %v7755
      %7757 = vmatmul.bf16.gmra.mxu0 %v7484
      %v7758 = vpop.f32.mrf.mxu0
      %v7759 = vadd.f32 %v7710, %v7758
      %v7760 = vpop.f32.mrf.mxu0
      %v7761 = vadd.f32 %v7712, %v7760
      %7762 = vmatmul.bf16.gmra.mxu0 %v7500
      %v7763 = vpop.f32.mrf.mxu0
      %v7764 = vadd.f32 %v7715, %v7763
      %v7765 = vpop.f32.mrf.mxu0
      %v7766 = vadd.f32 %v7717, %v7765
      %7767 = vmatmul.bf16.gmra.mxu0 %v7516
      %v7768 = vpop.f32.mrf.mxu0
      %v7769 = vadd.f32 %v7720, %v7768
      %v7770 = vpop.f32.mrf.mxu0
      %v7771 = vadd.f32 %v7722, %v7770
      %7772 = vdwg.mxu0
      %7773 = vmatpush.bf16.msra.mxu0 %v6825
      %7774 = vmatpush.bf16.msra.mxu0 %v6824
      %7775 = vmatpush.bf16.msra.mxu0 %v6823
      %7776 = vmatpush.bf16.msra.mxu0 %v6822
      %7777 = vmatpush.bf16.msra.mxu0 %v6821
      %7778 = vmatpush.bf16.msra.mxu0 %v6820
      %7779 = vmatpush.bf16.msra.mxu0 %v6819
      %7780 = vmatpush.bf16.msra.mxu0 %v6818
      %7781 = vmatmul.bf16.gmra.mxu0 %v7405
      %v7782 = vpop.f32.mrf.mxu0
      %v7783 = vadd.f32 %v7734, %v7782
      %v7784 = vpop.f32.mrf.mxu0
      %v7785 = vadd.f32 %v7736, %v7784
      %7786 = vmatmul.bf16.gmra.mxu0 %v7421
      %v7787 = vpop.f32.mrf.mxu0
      %v7788 = vadd.f32 %v7739, %v7787
      %v7789 = vpop.f32.mrf.mxu0
      %v7790 = vadd.f32 %v7741, %v7789
      %7791 = vmatmul.bf16.gmra.mxu0 %v7437
      %v7792 = vpop.f32.mrf.mxu0
      %v7793 = vadd.f32 %v7744, %v7792
      %v7794 = vpop.f32.mrf.mxu0
      %v7795 = vadd.f32 %v7746, %v7794
      %7796 = vmatmul.bf16.gmra.mxu0 %v7453
      %v7797 = vpop.f32.mrf.mxu0
      %v7798 = vadd.f32 %v7749, %v7797
      %v7799 = vpop.f32.mrf.mxu0
      %v7800 = vadd.f32 %v7751, %v7799
      %7801 = vmatmul.bf16.gmra.mxu0 %v7469
      %v7802 = vpop.f32.mrf.mxu0
      %v7803 = vadd.f32 %v7754, %v7802
      %v7804 = vpop.f32.mrf.mxu0
      %v7805 = vadd.f32 %v7756, %v7804
      %7806 = vmatmul.bf16.gmra.mxu0 %v7485
      %v7807 = vpop.f32.mrf.mxu0
      %v7808 = vadd.f32 %v7759, %v7807
      %v7809 = vpop.f32.mrf.mxu0
      %v7810 = vadd.f32 %v7761, %v7809
      %7811 = vmatmul.bf16.gmra.mxu0 %v7501
      %v7812 = vpop.f32.mrf.mxu0
      %v7813 = vadd.f32 %v7764, %v7812
      %v7814 = vpop.f32.mrf.mxu0
      %v7815 = vadd.f32 %v7766, %v7814
      %7816 = vmatmul.bf16.gmra.mxu0 %v7517
      %v7817 = vpop.f32.mrf.mxu0
      %v7818 = vadd.f32 %v7769, %v7817
      %v7819 = vpop.f32.mrf.mxu0
      %v7820 = vadd.f32 %v7771, %v7819
      %7821 = vdwg.mxu0
      %7822 = vmatpush.bf16.msra.mxu0 %v6833
      %7823 = vmatpush.bf16.msra.mxu0 %v6832
      %7824 = vmatpush.bf16.msra.mxu0 %v6831
      %7825 = vmatpush.bf16.msra.mxu0 %v6830
      %7826 = vmatpush.bf16.msra.mxu0 %v6829
      %7827 = vmatpush.bf16.msra.mxu0 %v6828
      %7828 = vmatpush.bf16.msra.mxu0 %v6827
      %7829 = vmatpush.bf16.msra.mxu0 %v6826
      %7830 = vmatmul.bf16.gmra.mxu0 %v7406
      %v7831 = vpop.f32.mrf.mxu0
      %v7832 = vadd.f32 %v7783, %v7831
      %v7833 = vpop.f32.mrf.mxu0
      %v7834 = vadd.f32 %v7785, %v7833
      %7835 = vmatmul.bf16.gmra.mxu0 %v7422
      %v7836 = vpop.f32.mrf.mxu0
      %v7837 = vadd.f32 %v7788, %v7836
      %v7838 = vpop.f32.mrf.mxu0
      %v7839 = vadd.f32 %v7790, %v7838
      %7840 = vmatmul.bf16.gmra.mxu0 %v7438
      %v7841 = vpop.f32.mrf.mxu0
      %v7842 = vadd.f32 %v7793, %v7841
      %v7843 = vpop.f32.mrf.mxu0
      %v7844 = vadd.f32 %v7795, %v7843
      %7845 = vmatmul.bf16.gmra.mxu0 %v7454
      %v7846 = vpop.f32.mrf.mxu0
      %v7847 = vadd.f32 %v7798, %v7846
      %v7848 = vpop.f32.mrf.mxu0
      %v7849 = vadd.f32 %v7800, %v7848
      %7850 = vmatmul.bf16.gmra.mxu0 %v7470
      %v7851 = vpop.f32.mrf.mxu0
      %v7852 = vadd.f32 %v7803, %v7851
      %v7853 = vpop.f32.mrf.mxu0
      %v7854 = vadd.f32 %v7805, %v7853
      %7855 = vmatmul.bf16.gmra.mxu0 %v7486
      %v7856 = vpop.f32.mrf.mxu0
      %v7857 = vadd.f32 %v7808, %v7856
      %v7858 = vpop.f32.mrf.mxu0
      %v7859 = vadd.f32 %v7810, %v7858
      %7860 = vmatmul.bf16.gmra.mxu0 %v7502
      %v7861 = vpop.f32.mrf.mxu0
      %v7862 = vadd.f32 %v7813, %v7861
      %v7863 = vpop.f32.mrf.mxu0
      %v7864 = vadd.f32 %v7815, %v7863
      %7865 = vmatmul.bf16.gmra.mxu0 %v7518
      %v7866 = vpop.f32.mrf.mxu0
      %v7867 = vadd.f32 %v7818, %v7866
      %v7868 = vpop.f32.mrf.mxu0
      %v7869 = vadd.f32 %v7820, %v7868
      %7870 = vdwg.mxu0
      %7871 = vmatpush.bf16.msra.mxu0 %v6841
      %7872 = vmatpush.bf16.msra.mxu0 %v6840
      %7873 = vmatpush.bf16.msra.mxu0 %v6839
      %7874 = vmatpush.bf16.msra.mxu0 %v6838
      %7875 = vmatpush.bf16.msra.mxu0 %v6837
      %7876 = vmatpush.bf16.msra.mxu0 %v6836
      %7877 = vmatpush.bf16.msra.mxu0 %v6835
      %7878 = vmatpush.bf16.msra.mxu0 %v6834
      %7879 = vmatmul.bf16.gmra.mxu0 %v7407
      %v7880 = vpop.f32.mrf.mxu0
      %v7881 = vadd.f32 %v7832, %v7880
      %v7882 = vpop.f32.mrf.mxu0
      %v7883 = vadd.f32 %v7834, %v7882
      %7884 = vmatmul.bf16.gmra.mxu0 %v7423
      %v7885 = vpop.f32.mrf.mxu0
      %v7886 = vadd.f32 %v7837, %v7885
      %v7887 = vpop.f32.mrf.mxu0
      %v7888 = vadd.f32 %v7839, %v7887
      %7889 = vmatmul.bf16.gmra.mxu0 %v7439
      %v7890 = vpop.f32.mrf.mxu0
      %v7891 = vadd.f32 %v7842, %v7890
      %v7892 = vpop.f32.mrf.mxu0
      %v7893 = vadd.f32 %v7844, %v7892
      %7894 = vmatmul.bf16.gmra.mxu0 %v7455
      %v7895 = vpop.f32.mrf.mxu0
      %v7896 = vadd.f32 %v7847, %v7895
      %v7897 = vpop.f32.mrf.mxu0
      %v7898 = vadd.f32 %v7849, %v7897
      %7899 = vmatmul.bf16.gmra.mxu0 %v7471
      %v7900 = vpop.f32.mrf.mxu0
      %v7901 = vadd.f32 %v7852, %v7900
      %v7902 = vpop.f32.mrf.mxu0
      %v7903 = vadd.f32 %v7854, %v7902
      %7904 = vmatmul.bf16.gmra.mxu0 %v7487
      %v7905 = vpop.f32.mrf.mxu0
      %v7906 = vadd.f32 %v7857, %v7905
      %v7907 = vpop.f32.mrf.mxu0
      %v7908 = vadd.f32 %v7859, %v7907
      %7909 = vmatmul.bf16.gmra.mxu0 %v7503
      %v7910 = vpop.f32.mrf.mxu0
      %v7911 = vadd.f32 %v7862, %v7910
      %v7912 = vpop.f32.mrf.mxu0
      %v7913 = vadd.f32 %v7864, %v7912
      %7914 = vmatmul.bf16.gmra.mxu0 %v7519
      %v7915 = vpop.f32.mrf.mxu0
      %v7916 = vadd.f32 %v7867, %v7915
      %v7917 = vpop.f32.mrf.mxu0
      %v7918 = vadd.f32 %v7869, %v7917
      %7919 = vdwg.mxu0
      %7920 = vmatpush.bf16.msra.mxu0 %v6849
      %7921 = vmatpush.bf16.msra.mxu0 %v6848
      %7922 = vmatpush.bf16.msra.mxu0 %v6847
      %7923 = vmatpush.bf16.msra.mxu0 %v6846
      %7924 = vmatpush.bf16.msra.mxu0 %v6845
      %7925 = vmatpush.bf16.msra.mxu0 %v6844
      %7926 = vmatpush.bf16.msra.mxu0 %v6843
      %7927 = vmatpush.bf16.msra.mxu0 %v6842
      %7928 = vmatmul.bf16.gmra.mxu0 %v7408
      %v7929 = vpop.f32.mrf.mxu0
      %v7930 = vadd.f32 %v7881, %v7929
      %v7931 = vpop.f32.mrf.mxu0
      %v7932 = vadd.f32 %v7883, %v7931
      %7933 = vmatmul.bf16.gmra.mxu0 %v7424
      %v7934 = vpop.f32.mrf.mxu0
      %v7935 = vadd.f32 %v7886, %v7934
      %v7936 = vpop.f32.mrf.mxu0
      %v7937 = vadd.f32 %v7888, %v7936
      %7938 = vmatmul.bf16.gmra.mxu0 %v7440
      %v7939 = vpop.f32.mrf.mxu0
      %v7940 = vadd.f32 %v7891, %v7939
      %v7941 = vpop.f32.mrf.mxu0
      %v7942 = vadd.f32 %v7893, %v7941
      %7943 = vmatmul.bf16.gmra.mxu0 %v7456
      %v7944 = vpop.f32.mrf.mxu0
      %v7945 = vadd.f32 %v7896, %v7944
      %v7946 = vpop.f32.mrf.mxu0
      %v7947 = vadd.f32 %v7898, %v7946
      %7948 = vmatmul.bf16.gmra.mxu0 %v7472
      %v7949 = vpop.f32.mrf.mxu0
      %v7950 = vadd.f32 %v7901, %v7949
      %v7951 = vpop.f32.mrf.mxu0
      %v7952 = vadd.f32 %v7903, %v7951
      %7953 = vmatmul.bf16.gmra.mxu0 %v7488
      %v7954 = vpop.f32.mrf.mxu0
      %v7955 = vadd.f32 %v7906, %v7954
      %v7956 = vpop.f32.mrf.mxu0
      %v7957 = vadd.f32 %v7908, %v7956
      %7958 = vmatmul.bf16.gmra.mxu0 %v7504
      %v7959 = vpop.f32.mrf.mxu0
      %v7960 = vadd.f32 %v7911, %v7959
      %v7961 = vpop.f32.mrf.mxu0
      %v7962 = vadd.f32 %v7913, %v7961
      %7963 = vmatmul.bf16.gmra.mxu0 %v7520
      %v7964 = vpop.f32.mrf.mxu0
      %v7965 = vadd.f32 %v7916, %v7964
      %v7966 = vpop.f32.mrf.mxu0
      %v7967 = vadd.f32 %v7918, %v7966
      %7968 = vdwg.mxu0
      %7969 = vmatpush.bf16.msra.mxu0 %v6857
      %7970 = vmatpush.bf16.msra.mxu0 %v6856
      %7971 = vmatpush.bf16.msra.mxu0 %v6855
      %7972 = vmatpush.bf16.msra.mxu0 %v6854
      %7973 = vmatpush.bf16.msra.mxu0 %v6853
      %7974 = vmatpush.bf16.msra.mxu0 %v6852
      %7975 = vmatpush.bf16.msra.mxu0 %v6851
      %7976 = vmatpush.bf16.msra.mxu0 %v6850
      %7977 = vmatmul.bf16.gmra.mxu0 %v7409
      %v7978 = vpop.f32.mrf.mxu0
      %v7979 = vadd.f32 %v7930, %v7978
      %v7980 = vpop.f32.mrf.mxu0
      %v7981 = vadd.f32 %v7932, %v7980
      %7982 = vmatmul.bf16.gmra.mxu0 %v7425
      %v7983 = vpop.f32.mrf.mxu0
      %v7984 = vadd.f32 %v7935, %v7983
      %v7985 = vpop.f32.mrf.mxu0
      %v7986 = vadd.f32 %v7937, %v7985
      %7987 = vmatmul.bf16.gmra.mxu0 %v7441
      %v7988 = vpop.f32.mrf.mxu0
      %v7989 = vadd.f32 %v7940, %v7988
      %v7990 = vpop.f32.mrf.mxu0
      %v7991 = vadd.f32 %v7942, %v7990
      %7992 = vmatmul.bf16.gmra.mxu0 %v7457
      %v7993 = vpop.f32.mrf.mxu0
      %v7994 = vadd.f32 %v7945, %v7993
      %v7995 = vpop.f32.mrf.mxu0
      %v7996 = vadd.f32 %v7947, %v7995
      %7997 = vmatmul.bf16.gmra.mxu0 %v7473
      %v7998 = vpop.f32.mrf.mxu0
      %v7999 = vadd.f32 %v7950, %v7998
      %v8000 = vpop.f32.mrf.mxu0
      %v8001 = vadd.f32 %v7952, %v8000
      %8002 = vmatmul.bf16.gmra.mxu0 %v7489
      %v8003 = vpop.f32.mrf.mxu0
      %v8004 = vadd.f32 %v7955, %v8003
      %v8005 = vpop.f32.mrf.mxu0
      %v8006 = vadd.f32 %v7957, %v8005
      %8007 = vmatmul.bf16.gmra.mxu0 %v7505
      %v8008 = vpop.f32.mrf.mxu0
      %v8009 = vadd.f32 %v7960, %v8008
      %v8010 = vpop.f32.mrf.mxu0
      %v8011 = vadd.f32 %v7962, %v8010
      %8012 = vmatmul.bf16.gmra.mxu0 %v7521
      %v8013 = vpop.f32.mrf.mxu0
      %v8014 = vadd.f32 %v7965, %v8013
      %v8015 = vpop.f32.mrf.mxu0
      %v8016 = vadd.f32 %v7967, %v8015
      %8017 = vdwg.mxu0
      %8018 = vmatpush.bf16.msra.mxu0 %v6865
      %8019 = vmatpush.bf16.msra.mxu0 %v6864
      %8020 = vmatpush.bf16.msra.mxu0 %v6863
      %8021 = vmatpush.bf16.msra.mxu0 %v6862
      %8022 = vmatpush.bf16.msra.mxu0 %v6861
      %8023 = vmatpush.bf16.msra.mxu0 %v6860
      %8024 = vmatpush.bf16.msra.mxu0 %v6859
      %8025 = vmatpush.bf16.msra.mxu0 %v6858
      %8026 = vmatmul.bf16.gmra.mxu0 %v7410
      %v8027 = vpop.f32.mrf.mxu0
      %v8028 = vadd.f32 %v7979, %v8027
      %v8029 = vpop.f32.mrf.mxu0
      %v8030 = vadd.f32 %v7981, %v8029
      %8031 = vmatmul.bf16.gmra.mxu0 %v7426
      %v8032 = vpop.f32.mrf.mxu0
      %v8033 = vadd.f32 %v7984, %v8032
      %v8034 = vpop.f32.mrf.mxu0
      %v8035 = vadd.f32 %v7986, %v8034
      %8036 = vmatmul.bf16.gmra.mxu0 %v7442
      %v8037 = vpop.f32.mrf.mxu0
      %v8038 = vadd.f32 %v7989, %v8037
      %v8039 = vpop.f32.mrf.mxu0
      %v8040 = vadd.f32 %v7991, %v8039
      %8041 = vmatmul.bf16.gmra.mxu0 %v7458
      %v8042 = vpop.f32.mrf.mxu0
      %v8043 = vadd.f32 %v7994, %v8042
      %v8044 = vpop.f32.mrf.mxu0
      %v8045 = vadd.f32 %v7996, %v8044
      %8046 = vmatmul.bf16.gmra.mxu0 %v7474
      %v8047 = vpop.f32.mrf.mxu0
      %v8048 = vadd.f32 %v7999, %v8047
      %v8049 = vpop.f32.mrf.mxu0
      %v8050 = vadd.f32 %v8001, %v8049
      %8051 = vmatmul.bf16.gmra.mxu0 %v7490
      %v8052 = vpop.f32.mrf.mxu0
      %v8053 = vadd.f32 %v8004, %v8052
      %v8054 = vpop.f32.mrf.mxu0
      %v8055 = vadd.f32 %v8006, %v8054
      %8056 = vmatmul.bf16.gmra.mxu0 %v7506
      %v8057 = vpop.f32.mrf.mxu0
      %v8058 = vadd.f32 %v8009, %v8057
      %v8059 = vpop.f32.mrf.mxu0
      %v8060 = vadd.f32 %v8011, %v8059
      %8061 = vmatmul.bf16.gmra.mxu0 %v7522
      %v8062 = vpop.f32.mrf.mxu0
      %v8063 = vadd.f32 %v8014, %v8062
      %v8064 = vpop.f32.mrf.mxu0
      %v8065 = vadd.f32 %v8016, %v8064
      %8066 = vdwg.mxu0
      %8067 = vmatpush.bf16.msra.mxu0 %v6873
      %8068 = vmatpush.bf16.msra.mxu0 %v6872
      %8069 = vmatpush.bf16.msra.mxu0 %v6871
      %8070 = vmatpush.bf16.msra.mxu0 %v6870
      %8071 = vmatpush.bf16.msra.mxu0 %v6869
      %8072 = vmatpush.bf16.msra.mxu0 %v6868
      %8073 = vmatpush.bf16.msra.mxu0 %v6867
      %8074 = vmatpush.bf16.msra.mxu0 %v6866
      %8075 = vmatmul.bf16.gmra.mxu0 %v7411
      %v8076 = vpop.f32.mrf.mxu0
      %v8077 = vadd.f32 %v8028, %v8076
      %v8078 = vpop.f32.mrf.mxu0
      %v8079 = vadd.f32 %v8030, %v8078
      %8080 = vmatmul.bf16.gmra.mxu0 %v7427
      %v8081 = vpop.f32.mrf.mxu0
      %v8082 = vadd.f32 %v8033, %v8081
      %v8083 = vpop.f32.mrf.mxu0
      %v8084 = vadd.f32 %v8035, %v8083
      %8085 = vmatmul.bf16.gmra.mxu0 %v7443
      %v8086 = vpop.f32.mrf.mxu0
      %v8087 = vadd.f32 %v8038, %v8086
      %v8088 = vpop.f32.mrf.mxu0
      %v8089 = vadd.f32 %v8040, %v8088
      %8090 = vmatmul.bf16.gmra.mxu0 %v7459
      %v8091 = vpop.f32.mrf.mxu0
      %v8092 = vadd.f32 %v8043, %v8091
      %v8093 = vpop.f32.mrf.mxu0
      %v8094 = vadd.f32 %v8045, %v8093
      %8095 = vmatmul.bf16.gmra.mxu0 %v7475
      %v8096 = vpop.f32.mrf.mxu0
      %v8097 = vadd.f32 %v8048, %v8096
      %v8098 = vpop.f32.mrf.mxu0
      %v8099 = vadd.f32 %v8050, %v8098
      %8100 = vmatmul.bf16.gmra.mxu0 %v7491
      %v8101 = vpop.f32.mrf.mxu0
      %v8102 = vadd.f32 %v8053, %v8101
      %v8103 = vpop.f32.mrf.mxu0
      %v8104 = vadd.f32 %v8055, %v8103
      %8105 = vmatmul.bf16.gmra.mxu0 %v7507
      %v8106 = vpop.f32.mrf.mxu0
      %v8107 = vadd.f32 %v8058, %v8106
      %v8108 = vpop.f32.mrf.mxu0
      %v8109 = vadd.f32 %v8060, %v8108
      %8110 = vmatmul.bf16.gmra.mxu0 %v7523
      %v8111 = vpop.f32.mrf.mxu0
      %v8112 = vadd.f32 %v8063, %v8111
      %v8113 = vpop.f32.mrf.mxu0
      %v8114 = vadd.f32 %v8065, %v8113
      %8115 = vdwg.mxu0
      %8116 = vmatpush.bf16.msra.mxu0 %v6881
      %8117 = vmatpush.bf16.msra.mxu0 %v6880
      %8118 = vmatpush.bf16.msra.mxu0 %v6879
      %8119 = vmatpush.bf16.msra.mxu0 %v6878
      %8120 = vmatpush.bf16.msra.mxu0 %v6877
      %8121 = vmatpush.bf16.msra.mxu0 %v6876
      %8122 = vmatpush.bf16.msra.mxu0 %v6875
      %8123 = vmatpush.bf16.msra.mxu0 %v6874
      %8124 = vmatmul.bf16.gmra.mxu0 %v7412
      %v8125 = vpop.f32.mrf.mxu0
      %v8126 = vadd.f32 %v8077, %v8125
      %v8127 = vpop.f32.mrf.mxu0
      %v8128 = vadd.f32 %v8079, %v8127
      %8129 = vmatmul.bf16.gmra.mxu0 %v7428
      %v8130 = vpop.f32.mrf.mxu0
      %v8131 = vadd.f32 %v8082, %v8130
      %v8132 = vpop.f32.mrf.mxu0
      %v8133 = vadd.f32 %v8084, %v8132
      %8134 = vmatmul.bf16.gmra.mxu0 %v7444
      %v8135 = vpop.f32.mrf.mxu0
      %v8136 = vadd.f32 %v8087, %v8135
      %v8137 = vpop.f32.mrf.mxu0
      %v8138 = vadd.f32 %v8089, %v8137
      %8139 = vmatmul.bf16.gmra.mxu0 %v7460
      %v8140 = vpop.f32.mrf.mxu0
      %v8141 = vadd.f32 %v8092, %v8140
      %v8142 = vpop.f32.mrf.mxu0
      %v8143 = vadd.f32 %v8094, %v8142
      %8144 = vmatmul.bf16.gmra.mxu0 %v7476
      %v8145 = vpop.f32.mrf.mxu0
      %v8146 = vadd.f32 %v8097, %v8145
      %v8147 = vpop.f32.mrf.mxu0
      %v8148 = vadd.f32 %v8099, %v8147
      %8149 = vmatmul.bf16.gmra.mxu0 %v7492
      %v8150 = vpop.f32.mrf.mxu0
      %v8151 = vadd.f32 %v8102, %v8150
      %v8152 = vpop.f32.mrf.mxu0
      %v8153 = vadd.f32 %v8104, %v8152
      %8154 = vmatmul.bf16.gmra.mxu0 %v7508
      %v8155 = vpop.f32.mrf.mxu0
      %v8156 = vadd.f32 %v8107, %v8155
      %v8157 = vpop.f32.mrf.mxu0
      %v8158 = vadd.f32 %v8109, %v8157
      %8159 = vmatmul.bf16.gmra.mxu0 %v7524
      %v8160 = vpop.f32.mrf.mxu0
      %v8161 = vadd.f32 %v8112, %v8160
      %v8162 = vpop.f32.mrf.mxu0
      %v8163 = vadd.f32 %v8114, %v8162
      %8164 = vdwg.mxu0
      %8165 = vmatpush.bf16.msra.mxu0 %v6889
      %8166 = vmatpush.bf16.msra.mxu0 %v6888
      %8167 = vmatpush.bf16.msra.mxu0 %v6887
      %8168 = vmatpush.bf16.msra.mxu0 %v6886
      %8169 = vmatpush.bf16.msra.mxu0 %v6885
      %8170 = vmatpush.bf16.msra.mxu0 %v6884
      %8171 = vmatpush.bf16.msra.mxu0 %v6883
      %8172 = vmatpush.bf16.msra.mxu0 %v6882
      %8173 = vmatmul.bf16.gmra.mxu0 %v7413
      %v8174 = vpop.f32.mrf.mxu0
      %v8175 = vadd.f32 %v8126, %v8174
      %v8176 = vpop.f32.mrf.mxu0
      %v8177 = vadd.f32 %v8128, %v8176
      %8178 = vmatmul.bf16.gmra.mxu0 %v7429
      %v8179 = vpop.f32.mrf.mxu0
      %v8180 = vadd.f32 %v8131, %v8179
      %v8181 = vpop.f32.mrf.mxu0
      %v8182 = vadd.f32 %v8133, %v8181
      %8183 = vmatmul.bf16.gmra.mxu0 %v7445
      %v8184 = vpop.f32.mrf.mxu0
      %v8185 = vadd.f32 %v8136, %v8184
      %v8186 = vpop.f32.mrf.mxu0
      %v8187 = vadd.f32 %v8138, %v8186
      %8188 = vmatmul.bf16.gmra.mxu0 %v7461
      %v8189 = vpop.f32.mrf.mxu0
      %v8190 = vadd.f32 %v8141, %v8189
      %v8191 = vpop.f32.mrf.mxu0
      %v8192 = vadd.f32 %v8143, %v8191
      %8193 = vmatmul.bf16.gmra.mxu0 %v7477
      %v8194 = vpop.f32.mrf.mxu0
      %v8195 = vadd.f32 %v8146, %v8194
      %v8196 = vpop.f32.mrf.mxu0
      %v8197 = vadd.f32 %v8148, %v8196
      %8198 = vmatmul.bf16.gmra.mxu0 %v7493
      %v8199 = vpop.f32.mrf.mxu0
      %v8200 = vadd.f32 %v8151, %v8199
      %v8201 = vpop.f32.mrf.mxu0
      %v8202 = vadd.f32 %v8153, %v8201
      %8203 = vmatmul.bf16.gmra.mxu0 %v7509
      %v8204 = vpop.f32.mrf.mxu0
      %v8205 = vadd.f32 %v8156, %v8204
      %v8206 = vpop.f32.mrf.mxu0
      %v8207 = vadd.f32 %v8158, %v8206
      %8208 = vmatmul.bf16.gmra.mxu0 %v7525
      %v8209 = vpop.f32.mrf.mxu0
      %v8210 = vadd.f32 %v8161, %v8209
      %v8211 = vpop.f32.mrf.mxu0
      %v8212 = vadd.f32 %v8163, %v8211
      %8213 = vdwg.mxu0
      %8214 = vmatpush.bf16.msra.mxu0 %v6897
      %8215 = vmatpush.bf16.msra.mxu0 %v6896
      %8216 = vmatpush.bf16.msra.mxu0 %v6895
      %8217 = vmatpush.bf16.msra.mxu0 %v6894
      %8218 = vmatpush.bf16.msra.mxu0 %v6893
      %8219 = vmatpush.bf16.msra.mxu0 %v6892
      %8220 = vmatpush.bf16.msra.mxu0 %v6891
      %8221 = vmatpush.bf16.msra.mxu0 %v6890
      %8222 = vmatmul.bf16.gmra.mxu0 %v7414
      %v8223 = vpop.f32.mrf.mxu0
      %v8224 = vadd.f32 %v8175, %v8223
      %v8225 = vpop.f32.mrf.mxu0
      %v8226 = vadd.f32 %v8177, %v8225
      %8227 = vmatmul.bf16.gmra.mxu0 %v7430
      %v8228 = vpop.f32.mrf.mxu0
      %v8229 = vadd.f32 %v8180, %v8228
      %v8230 = vpop.f32.mrf.mxu0
      %v8231 = vadd.f32 %v8182, %v8230
      %8232 = vmatmul.bf16.gmra.mxu0 %v7446
      %v8233 = vpop.f32.mrf.mxu0
      %v8234 = vadd.f32 %v8185, %v8233
      %v8235 = vpop.f32.mrf.mxu0
      %v8236 = vadd.f32 %v8187, %v8235
      %8237 = vmatmul.bf16.gmra.mxu0 %v7462
      %v8238 = vpop.f32.mrf.mxu0
      %v8239 = vadd.f32 %v8190, %v8238
      %v8240 = vpop.f32.mrf.mxu0
      %v8241 = vadd.f32 %v8192, %v8240
      %8242 = vmatmul.bf16.gmra.mxu0 %v7478
      %v8243 = vpop.f32.mrf.mxu0
      %v8244 = vadd.f32 %v8195, %v8243
      %v8245 = vpop.f32.mrf.mxu0
      %v8246 = vadd.f32 %v8197, %v8245
      %8247 = vmatmul.bf16.gmra.mxu0 %v7494
      %v8248 = vpop.f32.mrf.mxu0
      %v8249 = vadd.f32 %v8200, %v8248
      %v8250 = vpop.f32.mrf.mxu0
      %v8251 = vadd.f32 %v8202, %v8250
      %8252 = vmatmul.bf16.gmra.mxu0 %v7510
      %v8253 = vpop.f32.mrf.mxu0
      %v8254 = vadd.f32 %v8205, %v8253
      %v8255 = vpop.f32.mrf.mxu0
      %v8256 = vadd.f32 %v8207, %v8255
      %8257 = vmatmul.bf16.gmra.mxu0 %v7526
      %v8258 = vpop.f32.mrf.mxu0
      %v8259 = vadd.f32 %v8210, %v8258
      %v8260 = vpop.f32.mrf.mxu0
      %v8261 = vadd.f32 %v8212, %v8260
      %8262 = vdwg.mxu0
      %8263 = vmatpush.bf16.msra.mxu0 %v6905
      %8264 = vmatpush.bf16.msra.mxu0 %v6904
      %8265 = vmatpush.bf16.msra.mxu0 %v6903
      %8266 = vmatpush.bf16.msra.mxu0 %v6902
      %8267 = vmatpush.bf16.msra.mxu0 %v6901
      %8268 = vmatpush.bf16.msra.mxu0 %v6900
      %8269 = vmatpush.bf16.msra.mxu0 %v6899
      %8270 = vmatpush.bf16.msra.mxu0 %v6898
      %8271 = vmatmul.bf16.gmra.mxu0 %v7415
      %v8272 = vpop.f32.mrf.mxu0
      %v8273 = vadd.f32 %v8224, %v8272
      %v8274 = vpop.f32.mrf.mxu0
      %v8275 = vadd.f32 %v8226, %v8274
      %8276 = vmatmul.bf16.gmra.mxu0 %v7431
      %v8277 = vpop.f32.mrf.mxu0
      %v8278 = vadd.f32 %v8229, %v8277
      %v8279 = vpop.f32.mrf.mxu0
      %v8280 = vadd.f32 %v8231, %v8279
      %8281 = vmatmul.bf16.gmra.mxu0 %v7447
      %v8282 = vpop.f32.mrf.mxu0
      %v8283 = vadd.f32 %v8234, %v8282
      %v8284 = vpop.f32.mrf.mxu0
      %v8285 = vadd.f32 %v8236, %v8284
      %8286 = vmatmul.bf16.gmra.mxu0 %v7463
      %v8287 = vpop.f32.mrf.mxu0
      %v8288 = vadd.f32 %v8239, %v8287
      %v8289 = vpop.f32.mrf.mxu0
      %v8290 = vadd.f32 %v8241, %v8289
      %8291 = vmatmul.bf16.gmra.mxu0 %v7479
      %v8292 = vpop.f32.mrf.mxu0
      %v8293 = vadd.f32 %v8244, %v8292
      %v8294 = vpop.f32.mrf.mxu0
      %v8295 = vadd.f32 %v8246, %v8294
      %8296 = vmatmul.bf16.gmra.mxu0 %v7495
      %v8297 = vpop.f32.mrf.mxu0
      %v8298 = vadd.f32 %v8249, %v8297
      %v8299 = vpop.f32.mrf.mxu0
      %v8300 = vadd.f32 %v8251, %v8299
      %8301 = vmatmul.bf16.gmra.mxu0 %v7511
      %v8302 = vpop.f32.mrf.mxu0
      %v8303 = vadd.f32 %v8254, %v8302
      %v8304 = vpop.f32.mrf.mxu0
      %v8305 = vadd.f32 %v8256, %v8304
      %8306 = vmatmul.bf16.gmra.mxu0 %v7527
      %v8307 = vpop.f32.mrf.mxu0
      %v8308 = vadd.f32 %v8259, %v8307
      %v8309 = vpop.f32.mrf.mxu0
      %v8310 = vadd.f32 %v8261, %v8309
      %8311 = vdwg.mxu0
      %8312 = vmatpush.bf16.msra.mxu0 %v6913
      %8313 = vmatpush.bf16.msra.mxu0 %v6912
      %8314 = vmatpush.bf16.msra.mxu0 %v6911
      %8315 = vmatpush.bf16.msra.mxu0 %v6910
      %8316 = vmatpush.bf16.msra.mxu0 %v6909
      %8317 = vmatpush.bf16.msra.mxu0 %v6908
      %8318 = vmatpush.bf16.msra.mxu0 %v6907
      %8319 = vmatpush.bf16.msra.mxu0 %v6906
      %8320 = vmatmul.bf16.gmra.mxu0 %v7416
      %v8321 = vpop.f32.mrf.mxu0
      %v8322 = vadd.f32 %v8273, %v8321
      %v8323 = vpop.f32.mrf.mxu0
      %v8324 = vadd.f32 %v8275, %v8323
      %8325 = vmatmul.bf16.gmra.mxu0 %v7432
      %v8326 = vpop.f32.mrf.mxu0
      %v8327 = vadd.f32 %v8278, %v8326
      %v8328 = vpop.f32.mrf.mxu0
      %v8329 = vadd.f32 %v8280, %v8328
      %8330 = vmatmul.bf16.gmra.mxu0 %v7448
      %v8331 = vpop.f32.mrf.mxu0
      %v8332 = vadd.f32 %v8283, %v8331
      %v8333 = vpop.f32.mrf.mxu0
      %v8334 = vadd.f32 %v8285, %v8333
      %8335 = vmatmul.bf16.gmra.mxu0 %v7464
      %v8336 = vpop.f32.mrf.mxu0
      %v8337 = vadd.f32 %v8288, %v8336
      %v8338 = vpop.f32.mrf.mxu0
      %v8339 = vadd.f32 %v8290, %v8338
      %8340 = vmatmul.bf16.gmra.mxu0 %v7480
      %v8341 = vpop.f32.mrf.mxu0
      %v8342 = vadd.f32 %v8293, %v8341
      %v8343 = vpop.f32.mrf.mxu0
      %v8344 = vadd.f32 %v8295, %v8343
      %8345 = vmatmul.bf16.gmra.mxu0 %v7496
      %v8346 = vpop.f32.mrf.mxu0
      %v8347 = vadd.f32 %v8298, %v8346
      %v8348 = vpop.f32.mrf.mxu0
      %v8349 = vadd.f32 %v8300, %v8348
      %8350 = vmatmul.bf16.gmra.mxu0 %v7512
      %v8351 = vpop.f32.mrf.mxu0
      %v8352 = vadd.f32 %v8303, %v8351
      %v8353 = vpop.f32.mrf.mxu0
      %v8354 = vadd.f32 %v8305, %v8353
      %8355 = vmatmul.bf16.gmra.mxu0 %v7528
      %v8356 = vpop.f32.mrf.mxu0
      %v8357 = vadd.f32 %v8308, %v8356
      %v8358 = vpop.f32.mrf.mxu0
      %v8359 = vadd.f32 %v8310, %v8358
      %8360 = vdwg.mxu0
      %8361 = vmatpush.bf16.msra.mxu0 %v6921
      %8362 = vmatpush.bf16.msra.mxu0 %v6920
      %8363 = vmatpush.bf16.msra.mxu0 %v6919
      %8364 = vmatpush.bf16.msra.mxu0 %v6918
      %8365 = vmatpush.bf16.msra.mxu0 %v6917
      %8366 = vmatpush.bf16.msra.mxu0 %v6916
      %8367 = vmatpush.bf16.msra.mxu0 %v6915
      %8368 = vmatpush.bf16.msra.mxu0 %v6914
      %8369 = vmatmul.bf16.gmra.mxu0 %v7417
      %v8370 = vpop.f32.mrf.mxu0
      %v8371 = vadd.f32 %v8322, %v8370
      %v8372 = vpop.f32.mrf.mxu0
      %v8373 = vadd.f32 %v8324, %v8372
      %8374 = vmatmul.bf16.gmra.mxu0 %v7433
      %v8375 = vpop.f32.mrf.mxu0
      %v8376 = vadd.f32 %v8327, %v8375
      %v8377 = vpop.f32.mrf.mxu0
      %v8378 = vadd.f32 %v8329, %v8377
      %8379 = vmatmul.bf16.gmra.mxu0 %v7449
      %v8380 = vpop.f32.mrf.mxu0
      %v8381 = vadd.f32 %v8332, %v8380
      %v8382 = vpop.f32.mrf.mxu0
      %v8383 = vadd.f32 %v8334, %v8382
      %8384 = vmatmul.bf16.gmra.mxu0 %v7465
      %v8385 = vpop.f32.mrf.mxu0
      %v8386 = vadd.f32 %v8337, %v8385
      %v8387 = vpop.f32.mrf.mxu0
      %v8388 = vadd.f32 %v8339, %v8387
      %8389 = vmatmul.bf16.gmra.mxu0 %v7481
      %v8390 = vpop.f32.mrf.mxu0
      %v8391 = vadd.f32 %v8342, %v8390
      %v8392 = vpop.f32.mrf.mxu0
      %v8393 = vadd.f32 %v8344, %v8392
      %8394 = vmatmul.bf16.gmra.mxu0 %v7497
      %v8395 = vpop.f32.mrf.mxu0
      %v8396 = vadd.f32 %v8347, %v8395
      %v8397 = vpop.f32.mrf.mxu0
      %v8398 = vadd.f32 %v8349, %v8397
      %8399 = vmatmul.bf16.gmra.mxu0 %v7513
      %v8400 = vpop.f32.mrf.mxu0
      %v8401 = vadd.f32 %v8352, %v8400
      %v8402 = vpop.f32.mrf.mxu0
      %v8403 = vadd.f32 %v8354, %v8402
      %8404 = vmatmul.bf16.gmra.mxu0 %v7529
      %v8405 = vpop.f32.mrf.mxu0
      %v8406 = vadd.f32 %v8357, %v8405
      %v8407 = vpop.f32.mrf.mxu0
      %v8408 = vadd.f32 %v8359, %v8407
      %8409 = vdwg.mxu0
      %8410 = vmatpush.bf16.msra.mxu0 0
      %8411 = vmatpush.bf16.msra.mxu0 0
      %8412 = vmatpush.bf16.msra.mxu0 0
      %8413 = vmatpush.bf16.msra.mxu0 0
      %8414 = vmatpush.bf16.msra.mxu0 0
      %8415 = vmatpush.bf16.msra.mxu0 0
      %8416 = vmatpush.bf16.msra.mxu0 0
      %8417 = vmatpush.bf16.msra.mxu0 %v6922
      %8418 = vmatmul.bf16.gmra.mxu0 %v7652
      %v8419 = vpop.f32.mrf.mxu0
      %v8420 = vadd.f32 %v8371, %v8419
      %v8421 = vpop.f32.mrf.mxu0
      %v8422 = vadd.f32 %v8373, %v8421
      %8423 = vmatmul.bf16.gmra.mxu0 %v7655
      %v8424 = vpop.f32.mrf.mxu0
      %v8425 = vadd.f32 %v8376, %v8424
      %v8426 = vpop.f32.mrf.mxu0
      %v8427 = vadd.f32 %v8378, %v8426
      %8428 = vmatmul.bf16.gmra.mxu0 %v7658
      %v8429 = vpop.f32.mrf.mxu0
      %v8430 = vadd.f32 %v8381, %v8429
      %v8431 = vpop.f32.mrf.mxu0
      %v8432 = vadd.f32 %v8383, %v8431
      %8433 = vmatmul.bf16.gmra.mxu0 %v7661
      %v8434 = vpop.f32.mrf.mxu0
      %v8435 = vadd.f32 %v8386, %v8434
      %v8436 = vpop.f32.mrf.mxu0
      %v8437 = vadd.f32 %v8388, %v8436
      %8438 = vmatmul.bf16.gmra.mxu0 %v7664
      %v8439 = vpop.f32.mrf.mxu0
      %v8440 = vadd.f32 %v8391, %v8439
      %v8441 = vpop.f32.mrf.mxu0
      %v8442 = vadd.f32 %v8393, %v8441
      %8443 = vmatmul.bf16.gmra.mxu0 %v7667
      %v8444 = vpop.f32.mrf.mxu0
      %v8445 = vadd.f32 %v8396, %v8444
      %v8446 = vpop.f32.mrf.mxu0
      %v8447 = vadd.f32 %v8398, %v8446
      %8448 = vmatmul.bf16.gmra.mxu0 %v7670
      %v8449 = vpop.f32.mrf.mxu0
      %v8450 = vadd.f32 %v8401, %v8449
      %v8451 = vpop.f32.mrf.mxu0
      %v8452 = vadd.f32 %v8403, %v8451
      %8453 = vmatmul.bf16.gmra.mxu0 %v7673
      %v8454 = vpop.f32.mrf.mxu0
      %v8455 = vadd.f32 %v8406, %v8454
      %v8456 = vpop.f32.mrf.mxu0
      %v8457 = vadd.f32 %v8408, %v8456
      %8458 = vdwg.mxu0
      %v8459 = vmax.f32 %v8420, 0.0
      %v8460 = vmax.f32 %v8422, 0.0
      %v8461 = vmax.f32 %v8425, 0.0
      %v8462 = vmax.f32 %v8427, 0.0
      %v8463 = vmax.f32 %v8430, 0.0
      %v8464 = vmax.f32 %v8432, 0.0
      %v8465 = vmax.f32 %v8435, 0.0
      %v8466 = vmax.f32 %v8437, 0.0
      %v8467 = vmax.f32 %v8440, 0.0
      %v8468 = vmax.f32 %v8442, 0.0
      %v8469 = vmax.f32 %v8445, 0.0
      %v8470 = vmax.f32 %v8447, 0.0
      %v8471 = vmax.f32 %v8450, 0.0
      %v8472 = vmax.f32 %v8452, 0.0
      %v8473 = vmax.f32 %v8455, 0.0
      %v8474 = vmax.f32 %v8457, 0.0
      %vm8475 = vcmask 64512
      %8476 = vst.msk [vmem:[%s332] sm:$0xff] %vm8475, %v8459
      %8477 = vst.msk [vmem:[%s332 + $0x8] sm:$0xff] %vm8475, %v8460
      %8478 = vst.msk [vmem:[%s332 + $0x10] sm:$0xff] %vm8475, %v8461
      %8479 = vst.msk [vmem:[%s332 + $0x18] sm:$0xff] %vm8475, %v8462
      %8480 = vst.msk [vmem:[%s332 + $0x20] sm:$0xff] %vm8475, %v8463
      %8481 = vst.msk [vmem:[%s332 + $0x28] sm:$0xff] %vm8475, %v8464
      %8482 = vst.msk [vmem:[%s332 + $0x30] sm:$0xff] %vm8475, %v8465
      %8483 = vst.msk [vmem:[%s332 + $0x38] sm:$0xff] %vm8475, %v8466
      %8484 = vst.msk [vmem:[%s332 + $0x40] sm:$0xff] %vm8475, %v8467
      %8485 = vst.msk [vmem:[%s332 + $0x48] sm:$0xff] %vm8475, %v8468
      %8486 = vst.msk [vmem:[%s332 + $0x50] sm:$0xff] %vm8475, %v8469
      %8487 = vst.msk [vmem:[%s332 + $0x58] sm:$0xff] %vm8475, %v8470
      %8488 = vst.msk [vmem:[%s332 + $0x60] sm:$0xff] %vm8475, %v8471
      %8489 = vst.msk [vmem:[%s332 + $0x68] sm:$0xff] %vm8475, %v8472
      %8490 = vst.msk [vmem:[%s332 + $0x70] sm:$0xff] %vm8475, %v8473
      %8491 = vst.msk [vmem:[%s332 + $0x78] sm:$0xff] %vm8475, %v8474
      %p8492 = scmp.lt.s32.totalorder %s20, 1
      %s8493 = scalar_select %p8492, %s20, 1
      %s8494 = smul.addr %s8493, 16
      %s8495 = smul.addr %s8494, 8
      %s8496 = scalar_lea.vmem %s9, %s8495
      // Predicated region
      $region57: #{symbol_encoder_forward.1} parent=55 // pred_check
        %p8497 = pneg %p232
      $region58: #{symbol_encoder_forward.1} parent=55 // pred_check_branch
        %8499 = sbr.rel (%p8497) target = $region60
      $region59: #{symbol_encoder_forward.1} parent=55 // pred_region
        _
      $region60: #{symbol_encoder_forward.1} parent=55 // pred_fallthru
        _
    $region56: #{symbol_encoder_forward.1} parent=5 // pred_fallthru
      _
    %p8500 = scmp.le.s32.totalorder 2, %s15
    // Predicated region
    $region61: #{symbol_encoder_forward.1} parent=5 // pred_check
      %p8501 = pneg %p8500
    $region62: #{symbol_encoder_forward.1} parent=5 // pred_check_branch
      %8503 = sbr.rel (%p8501) target = $region64
    $region63: #{symbol_encoder_forward.1} parent=5 // pred_region
      %s8504 = ssub.s32 %s15, 2
      // Predicated region
      $region65: #{symbol_encoder_forward.1} parent=63 // pred_check
        %p8505 = pneg %p238
      $region66: #{symbol_encoder_forward.1} parent=63 // pred_check_branch
        %8507 = sbr.rel (%p8505) target = $region68
      $region67: #{symbol_encoder_forward.1} parent=63 // pred_region
        %p8508 = scmp.lt.s32.totalorder %s21, 1
        %s8509 = scalar_select %p8508, %s21, 1
        %s8510 = smul.addr %s8509, 16
        %s8511 = smul.addr %s8510, 8
        %s8512 = scalar_lea.vmem %s9, %s8511
      $region68: #{symbol_encoder_forward.1} parent=63 // pred_fallthru
        _
    $region64: #{symbol_encoder_forward.1} parent=5 // pred_fallthru
      _
  $region6: #{symbol_encoder_forward.1} parent=0 // loop_footer
    %s19 = sadd.s32 1, %s15
  $region7: #{symbol_encoder_forward.1} parent=0 // loop_footer_branch
    %14 = sbr.rel target = $region3
  $region8: #{symbol_encoder_forward.1} parent=0 // loop_exit
    _

</llo_original>
